<compile_context>
chip_gen: v7x
topology: tpu7x:2x2x1
jax: 0.10.0
libtpu: 0.0.40
codegen_flags: <defaults>
</compile_context>

<pallas_src>
import functools

import jax
import jax.numpy as jnp
from jax import lax
from jax.experimental import pallas as pl
from jax.experimental.pallas import tpu as pltpu

NUM_LAYERS = 2  # decoder depth (StackedLSTM(num_layers=2, ...))


def _round_up(x, m):
    return ((x + m - 1) // m) * m


def _swap01(x):
    """(a, b, rest) -> (b, a, rest); lane dim untouched (cheap XLU relayout)."""
    if hasattr(pltpu, "einshape"):
        return pltpu.einshape("abc->bac", x)
    return jnp.transpose(x, (1, 0, 2))


# ----------------------------------------------------------------------------
# Pallas kernel: TT decoder timesteps per grid iteration
# ----------------------------------------------------------------------------
def decoder_block_kernel(emb_ref, mem_ref, mask_ref, h0_ref, c0_ref,
                         wx0_ref, wh0_ref, b0_ref, wxh1_ref, b1_ref,
                         wa_ref, wo_ref,
                         out_ref, attn_ref, hfin_ref, cfin_ref,
                         xg_scr, rnn_scr):
    i = pl.program_id(0)
    tt, B, _ = emb_ref.shape
    _, _, H = hfin_ref.shape

    # Final-state outputs have constant index_maps -> resident across the grid;
    # use them directly as the carried decoder state.
    @pl.when(i == 0)
    def _():
        hfin_ref[...] = h0_ref[...]
        cfin_ref[...] = c0_ref[...]

    # ---- Hoisted: embedding contribution to layer-0 gates, M = tt*B ----------
    emb_blk = emb_ref[...]                                    # (tt, B, E_pad) bf16
    xg_scr[...] = jnp.dot(
        emb_blk.reshape(tt * B, emb_blk.shape[-1]), wx0_ref[...],
        preferred_element_type=jnp.float32).reshape(tt, B, 4 * H)

    # Loop-invariant loads / broadcasts (hoisted out of the unrolled loop).
    wh0 = wh0_ref[...]                                        # (H, 4H)  bf16
    wxh1 = wxh1_ref[...]                                      # (2H, 4H) bf16
    b0b = jnp.broadcast_to(b0_ref[...], (B, 4 * H))           # (B, 4H)  f32
    b1b = jnp.broadcast_to(b1_ref[...], (B, 4 * H))

    def gates_to_hc(g, c):
        # PyTorch LSTMCell gate order: i, f, g, o.  All elementwise math in f32.
        ig = jax.nn.sigmoid(g[:, 0 * H:1 * H])
        fg = jax.nn.sigmoid(g[:, 1 * H:2 * H])
        gg = jnp.tanh(g[:, 2 * H:3 * H])
        og = jax.nn.sigmoid(g[:, 3 * H:4 * H])
        c_new = fg * c + ig * gg
        return og * jnp.tanh(c_new), c_new

    # ---- Serial recurrence: LSTM cells only (attention deferred) -------------
    h0 = hfin_ref[0]
    c0 = cfin_ref[0]
    h1 = hfin_ref[1]
    c1 = cfin_ref[1]
    for t in range(tt):  # static unroll; tt is small and a compile-time const
        g0 = xg_scr[t] + jnp.dot(h0.astype(jnp.bfloat16), wh0,
                                 preferred_element_type=jnp.float32) + b0b
        h0, c0 = gates_to_hc(g0, c0)
        xin1 = jnp.concatenate([h0, h1], axis=-1).astype(jnp.bfloat16)
        g1 = jnp.dot(xin1, wxh1, preferred_element_type=jnp.float32) + b1b
        h1, c1 = gates_to_hc(g1, c1)
        rnn_scr[t] = h1                                       # (B, H) f32

    # State write-back once per TT-step block.
    hfin_ref[0] = h0
    hfin_ref[1] = h1
    cfin_ref[0] = c0
    cfin_ref[1] = c1

    # ---- Deferred GlobalAttention over the whole tt block (MXU, batched) -----
    mem = mem_ref[...]                                        # (B, S_pad, H) bf16
    mask = mask_ref[...]                                      # (B, 1, S_pad) f32
    rnn_bt = _swap01(rnn_scr[...])                            # (B, tt, H)    f32

    # q = rnn_out @ W_a  as one (B*tt, H) @ (H, H) matmul.
    q = jnp.dot(rnn_bt.reshape(B * tt, H).astype(jnp.bfloat16), wa_ref[...],
                preferred_element_type=jnp.float32).reshape(B, tt, H)

    # scores_b = q_b(tt,H) @ mem_b(S,H)^T : per-batch MXU matmuls.
    scores = jnp.einsum("bth,bsh->bts", q.astype(jnp.bfloat16), mem,
                        preferred_element_type=jnp.float32)   # (B, tt, S_pad)
    scores = scores + mask                                    # additive -1e9 pad
    scores = scores - jnp.max(scores, axis=-1, keepdims=True)
    p = jnp.exp(scores)
    align = p * pl.reciprocal(jnp.sum(p, axis=-1, keepdims=True), approx=True)

    # ctx_b = align_b(tt,S) @ mem_b(S,H) : per-batch MXU matmuls.
    ctx = jnp.einsum("bts,bsh->bth", align.astype(jnp.bfloat16), mem,
                     preferred_element_type=jnp.float32)      # (B, tt, H)

    # linear_out([ctx ; rnn_out]) as one (B*tt, 2H) @ (2H, H) matmul.
    co = jnp.concatenate([ctx, rnn_bt], axis=-1)              # (B, tt, 2H) f32
    attn_h = jnp.tanh(
        jnp.dot(co.reshape(B * tt, 2 * H).astype(jnp.bfloat16), wo_ref[...],
                preferred_element_type=jnp.float32)).reshape(B, tt, H)

    # dropout(attn_h) == identity (eval mode)
    out_ref[...] = _swap01(attn_h)                            # (tt, B, H)
    attn_ref[...] = _swap01(align)                            # (tt, B, S_pad)


# ----------------------------------------------------------------------------
# Wrapper: padding, weight packing, pallas_call plumbing
# ----------------------------------------------------------------------------
@functools.partial(jax.jit, static_argnames=("tt",))
def rnn_decoder_forward(emb, mem_bsh, memory_lengths, h_init, c_init, params,
                        *, tt=8):
    T, B, E = emb.shape
    _, S, H = mem_bsh.shape
    L = NUM_LAYERS
    assert T % tt == 0, "tgt length must be a multiple of the time block"
    assert tt % 8 == 0 and B % 8 == 0, "tt and batch must be sublane-aligned"

    # Lane-dense padding (stores + aligned matmuls); zero-padding is exact.
    S_pad = _round_up(S, 128)
    E_pad = _round_up(E, 128)
    emb_p = jnp.pad(emb, ((0, 0), (0, 0), (0, E_pad - E))).astype(jnp.bfloat16)
    mem_p = jnp.pad(mem_bsh, ((0, 0), (0, S_pad - S), (0, 0))).astype(jnp.bfloat16)
    mask = jnp.where(jnp.arange(S_pad)[None, :] < memory_lengths[:, None],
                     0.0, -1e9).astype(jnp.float32)[:, None, :]   # (B, 1, S_pad)

    # Pack weights once; bf16 MXU operands, f32 accumulation.
    wx0 = jnp.pad(params["wx0"], ((0, E_pad - E), (0, 0))).astype(jnp.bfloat16)
    wh0 = params["wh0"].astype(jnp.bfloat16)
    wxh1 = jnp.concatenate([params["wx1"], params["wh1"]], axis=0).astype(jnp.bfloat16)
    wa = params["wa"].astype(jnp.bfloat16)
    wo = params["wo"].astype(jnp.bfloat16)
    b0 = params["b0"].astype(jnp.float32)
    b1 = params["b1"].astype(jnp.float32)

    grid_spec = pltpu.PrefetchScalarGridSpec(
        num_scalar_prefetch=0,
        grid=(T // tt,),
        in_specs=[
            pl.BlockSpec((tt, B, E_pad), lambda i: (i, 0, 0)),    # emb (TT slab)
            pl.BlockSpec((B, S_pad, H), lambda i: (0, 0, 0)),     # memory bank
            pl.BlockSpec((B, 1, S_pad), lambda i: (0, 0, 0)),     # length mask
            pl.BlockSpec((L, B, H), lambda i: (0, 0, 0)),         # h_init
            pl.BlockSpec((L, B, H), lambda i: (0, 0, 0)),         # c_init
            pl.BlockSpec((E_pad, 4 * H), lambda i: (0, 0)),       # Wx layer0
            pl.BlockSpec((H, 4 * H), lambda i: (0, 0)),           # Wh layer0
            pl.BlockSpec((1, 4 * H), lambda i: (0, 0)),           # b layer0
            pl.BlockSpec((2 * H, 4 * H), lambda i: (0, 0)),       # fused Wxh layer1
            pl.BlockSpec((1, 4 * H), lambda i: (0, 0)),           # b layer1
            pl.BlockSpec((H, H), lambda i: (0, 0)),               # W_a (linear_in)
            pl.BlockSpec((2 * H, H), lambda i: (0, 0)),           # W_out (linear_out)
        ],
        out_specs=[
            pl.BlockSpec((tt, B, H), lambda i: (i, 0, 0)),        # decoder_outputs
            pl.BlockSpec((tt, B, S_pad), lambda i: (i, 0, 0)),    # attns["std"] (padded)
            pl.BlockSpec((L, B, H), lambda i: (0, 0, 0)),         # final hidden (carried)
            pl.BlockSpec((L, B, H), lambda i: (0, 0, 0)),         # final cell (carried)
        ],
        scratch_shapes=[
            pltpu.VMEM((tt, B, 4 * H), jnp.float32),              # hoisted x-gates
            pltpu.VMEM((tt, B, H), jnp.float32),                  # rnn_out block
        ],
    )

    out_shapes = (
        jax.ShapeDtypeStruct((T, B, H), jnp.float32),
        jax.ShapeDtypeStruct((T, B, S_pad), jnp.float32),
        jax.ShapeDtypeStruct((L, B, H), jnp.float32),
        jax.ShapeDtypeStruct((L, B, H), jnp.float32),
    )

    outs, attns_pad, h_fin, c_fin = pl.pallas_call(
        decoder_block_kernel,
        out_shape=out_shapes,
        grid_spec=grid_spec,
        compiler_params=pltpu.CompilerParams(
            dimension_semantics=("arbitrary",)),     # sequential time recurrence
    )(emb_p, mem_p, mask, h_init, c_init, wx0, wh0, b0, wxh1, b1, wa, wo)

    # Return attention padded (slice lazily at the consumer; avoids an extra
    # full-size HBM->HBM copy here).
    return outs, attns_pad, h_fin, c_fin


# ----------------------------------------------------------------------------
# Glue: init_decoder_state (_fix_enc_hidden)
# ----------------------------------------------------------------------------
def fix_enc_hidden(h, bidirectional_encoder=True):
    """torch.cat([h[0::2], h[1::2]], 2) for a bidirectional encoder."""
    if bidirectional_encoder:
        h = jnp.concatenate([h[0::2], h[1::2]], axis=2)
    return h


# ----------------------------------------------------------------------------
# Pure-JAX reference (same math: bf16 matmul operands, f32 accumulation)
# ----------------------------------------------------------------------------
def reference_forward(emb, mem_bsh, memory_lengths, h_init, c_init, params):
    B, S, H = mem_bsh.shape
    mask = jnp.where(jnp.arange(S)[None, :] < memory_lengths[:, None],
                     0.0, -1e9).astype(jnp.float32)
    mem_bf = mem_bsh.astype(jnp.bfloat16)
    wx0 = params["wx0"].astype(jnp.bfloat16)
    wh0 = params["wh0"].astype(jnp.bfloat16)
    wxh1 = jnp.concatenate([params["wx1"], params["wh1"]], 0).astype(jnp.bfloat16)
    wa = params["wa"].astype(jnp.bfloat16)
    wo = params["wo"].astype(jnp.bfloat16)
    b0, b1 = params["b0"], params["b1"]

    def gates_to_hc(g, c):
        i, f, gg, o = jnp.split(g, 4, axis=-1)
        c_new = jax.nn.sigmoid(f) * c + jax.nn.sigmoid(i) * jnp.tanh(gg)
        return jax.nn.sigmoid(o) * jnp.tanh(c_new), c_new

    def step(carry, x):
        h0, c0, h1, c1 = carry
        g0 = (jnp.dot(x.astype(jnp.bfloat16), wx0, preferred_element_type=jnp.float32)
              + jnp.dot(h0.astype(jnp.bfloat16), wh0, preferred_element_type=jnp.float32)
              + b0)
        h0, c0 = gates_to_hc(g0, c0)
        xin1 = jnp.concatenate([h0, h1], -1).astype(jnp.bfloat16)
        g1 = jnp.dot(xin1, wxh1, preferred_element_type=jnp.float32) + b1
        h1, c1 = gates_to_hc(g1, c1)
        rnn_out = h1
        q = jnp.dot(rnn_out.astype(jnp.bfloat16), wa, preferred_element_type=jnp.float32)
        scores = jnp.einsum("bh,bsh->bs", q.astype(jnp.bfloat16), mem_bf,
                            preferred_element_type=jnp.float32) + mask
        align = jax.nn.softmax(scores, axis=-1)
        ctx = jnp.einsum("bs,bsh->bh", align.astype(jnp.bfloat16), mem_bf,
                         preferred_element_type=jnp.float32)
        co = jnp.concatenate([ctx, rnn_out], -1).astype(jnp.bfloat16)
        attn_h = jnp.tanh(jnp.dot(co, wo, preferred_element_type=jnp.float32))
        return (h0, c0, h1, c1), (attn_h, align)

    (h0, c0, h1, c1), (outs, attns) = lax.scan(
        step, (h_init[0], c_init[0], h_init[1], c_init[1]), emb)
    return outs, attns, jnp.stack([h0, h1]), jnp.stack([c0, c1])


# ----------------------------------------------------------------------------
if __name__ == "__main__":
    key = jax.random.PRNGKey(0)

    # Small shapes consistent with the module's forward.
    T, B, S = 16, 8, 16         # tgt_len, batch, src_len
    H = 128                     # decoder hidden_size
    E = 64                      # embedding dim (= self._input_size)
    V = 32                      # vocab size
    L = NUM_LAYERS
    TT = 8                      # timesteps per grid step

    ks = jax.random.split(key, 16)

    # Embedding table + target tokens (embedding lookup is glue: a gather).
    emb_table = jax.random.normal(ks[0], (V, E), jnp.float32) * 0.1
    tgt = jax.random.randint(ks[1], (T, B), 0, V)
    emb = jnp.take(emb_table, tgt, axis=0)                      # (T, B, E)

    # Encoder memory bank, PyTorch layout (S, B, H) -> kernel layout (B, S, H).
    memory_bank_sbh = jax.random.normal(ks[2], (S, B, H), jnp.float32) * 0.1
    mem_bsh = jnp.transpose(memory_bank_sbh, (1, 0, 2))

    memory_lengths = jnp.array([16, 12, 16, 9, 16, 16, 5, 16], jnp.int32)

    # init_decoder_state: bidirectional encoder final (2L, B, H/2) -> (L, B, H).
    enc_h = jax.random.normal(ks[3], (2 * L, B, H // 2), jnp.float32) * 0.1
    enc_c = jax.random.normal(ks[4], (2 * L, B, H // 2), jnp.float32) * 0.1
    h_init = fix_enc_hidden(enc_h, bidirectional_encoder=True)  # (L, B, H)
    c_init = fix_enc_hidden(enc_c, bidirectional_encoder=True)

    scale = 0.05
    params = {
        "wx0": jax.random.normal(ks[5], (E, 4 * H), jnp.float32) * scale,
        "wh0": jax.random.normal(ks[6], (H, 4 * H), jnp.float32) * scale,
        "b0": jax.random.normal(ks[7], (1, 4 * H), jnp.float32) * scale,
        "wx1": jax.random.normal(ks[8], (H, 4 * H), jnp.float32) * scale,
        "wh1": jax.random.normal(ks[9], (H, 4 * H), jnp.float32) * scale,
        "b1": jax.random.normal(ks[10], (1, 4 * H), jnp.float32) * scale,
        "wa": jax.random.normal(ks[11], (H, H), jnp.float32) * scale,
        "wo": jax.random.normal(ks[12], (2 * H, H), jnp.float32) * scale,
    }

    outs, attns_pad, h_fin, c_fin = rnn_decoder_forward(
        emb, mem_bsh, memory_lengths, h_init, c_init, params, tt=TT)
    jax.block_until_ready((outs, attns_pad, h_fin, c_fin))
    attns = attns_pad[:, :, :S]

    # Correctness check vs pure-JAX reference (same bf16 matmul operands).
    r_outs, r_attns, r_h, r_c = reference_forward(
        emb, mem_bsh, memory_lengths, h_init, c_init, params)
    assert jnp.allclose(outs, r_outs, rtol=2e-2, atol=2e-2), "outputs mismatch"
    assert jnp.allclose(attns, r_attns, rtol=2e-2, atol=2e-2), "attns mismatch"
    assert jnp.allclose(h_fin, r_h, rtol=2e-2, atol=2e-2), "hidden mismatch"
    assert jnp.allclose(c_fin, r_c, rtol=2e-2, atol=2e-2), "cell mismatch"

    # (forward() glue) state.update_state(decoder_final, final_output.unsqueeze(0), None)
    final_output = outs[-1][None]          # (1, B, H) == input_feed update
    decoder_state = {"hidden": (h_fin, c_fin), "input_feed": final_output,
                     "coverage": None}
    jax.block_until_ready(decoder_state["input_feed"])

    print("KERNEL_OK")
</pallas_src>

<mosaic_0001>
module attributes {stable_mosaic.version = 11 : i64} {
  func.func @decoder_block_kernel(%arg0: i32, %arg1: memref<8x8x128xbf16, #tpu.memory_space<vmem>>, %arg2: memref<8x128x128xbf16, #tpu.memory_space<vmem>>, %arg3: memref<8x1x128xf32, #tpu.memory_space<vmem>>, %arg4: memref<2x8x128xf32, #tpu.memory_space<vmem>>, %arg5: memref<2x8x128xf32, #tpu.memory_space<vmem>>, %arg6: memref<128x512xbf16, #tpu.memory_space<vmem>>, %arg7: memref<128x512xbf16, #tpu.memory_space<vmem>>, %arg8: memref<1x512xf32, #tpu.memory_space<vmem>>, %arg9: memref<256x512xbf16, #tpu.memory_space<vmem>>, %arg10: memref<1x512xf32, #tpu.memory_space<vmem>>, %arg11: memref<128x128xbf16, #tpu.memory_space<vmem>>, %arg12: memref<256x128xbf16, #tpu.memory_space<vmem>>, %arg13: memref<8x8x128xf32, #tpu.memory_space<vmem>>, %arg14: memref<8x8x128xf32, #tpu.memory_space<vmem>>, %arg15: memref<2x8x128xf32, #tpu.memory_space<vmem>>, %arg16: memref<2x8x128xf32, #tpu.memory_space<vmem>>, %arg17: memref<8x8x512xf32, #tpu.memory_space<vmem>>, %arg18: memref<8x8x128xf32, #tpu.memory_space<vmem>>) attributes {dimension_semantics = [#tpu.dimension_semantics<arbitrary>], iteration_bounds = array<i64: 2>, scalar_prefetch = 0 : i64, scratch_operands = 2 : i64, tpu.core_type = #tpu.core_type<tc>, window_params = [{transform_indices = @transform_0, window_bounds = array<i64: 8, 8, 128>}, {pipeline_mode = #tpu.pipeline_mode<synchronous>, transform_indices = @transform_1, window_bounds = array<i64: 8, 128, 128>}, {pipeline_mode = #tpu.pipeline_mode<synchronous>, transform_indices = @transform_2, window_bounds = array<i64: 8, 1, 128>}, {pipeline_mode = #tpu.pipeline_mode<synchronous>, transform_indices = @transform_3, window_bounds = array<i64: 2, 8, 128>}, {pipeline_mode = #tpu.pipeline_mode<synchronous>, transform_indices = @transform_4, window_bounds = array<i64: 2, 8, 128>}, {pipeline_mode = #tpu.pipeline_mode<synchronous>, transform_indices = @transform_5, window_bounds = array<i64: 128, 512>}, {pipeline_mode = #tpu.pipeline_mode<synchronous>, transform_indices = @transform_6, window_bounds = array<i64: 128, 512>}, {pipeline_mode = #tpu.pipeline_mode<synchronous>, transform_indices = @transform_7, window_bounds = array<i64: 1, 512>}, {pipeline_mode = #tpu.pipeline_mode<synchronous>, transform_indices = @transform_8, window_bounds = array<i64: 256, 512>}, {pipeline_mode = #tpu.pipeline_mode<synchronous>, transform_indices = @transform_9, window_bounds = array<i64: 1, 512>}, {pipeline_mode = #tpu.pipeline_mode<synchronous>, transform_indices = @transform_10, window_bounds = array<i64: 128, 128>}, {pipeline_mode = #tpu.pipeline_mode<synchronous>, transform_indices = @transform_11, window_bounds = array<i64: 256, 128>}, {transform_indices = @transform_12, window_bounds = array<i64: 8, 8, 128>}, {transform_indices = @transform_13, window_bounds = array<i64: 8, 8, 128>}, {pipeline_mode = #tpu.pipeline_mode<synchronous>, transform_indices = @transform_14, window_bounds = array<i64: 2, 8, 128>}, {pipeline_mode = #tpu.pipeline_mode<synchronous>, transform_indices = @transform_15, window_bounds = array<i64: 2, 8, 128>}]} {
    %c0_i32 = arith.constant 0 : i32
    %0 = arith.cmpi eq, %arg0, %c0_i32 : i32
    %1 = arith.extui %0 : i1 to i32
    %c0_i32_0 = arith.constant 0 : i32
    %2 = arith.cmpi ne, %1, %c0_i32_0 : i32
    scf.if %2 {
      %c0_170 = arith.constant 0 : index
      %c0_171 = arith.constant 0 : index
      %c0_172 = arith.constant 0 : index
      %577 = vector.load %arg4[%c0_170, %c0_171, %c0_172] : memref<2x8x128xf32, #tpu.memory_space<vmem>>, vector<2x8x128xf32>
      %c0_173 = arith.constant 0 : index
      %c0_174 = arith.constant 0 : index
      %c0_175 = arith.constant 0 : index
      %578 = vector.load %arg15[%c0_173, %c0_174, %c0_175] : memref<2x8x128xf32, #tpu.memory_space<vmem>>, vector<2x8x128xf32>
      tpu.vector_store %arg15[%c0_173, %c0_174, %c0_175], %577 {strides = array<i32>} : memref<2x8x128xf32, #tpu.memory_space<vmem>>, vector<2x8x128xf32>,
      %c0_176 = arith.constant 0 : index
      %c0_177 = arith.constant 0 : index
      %c0_178 = arith.constant 0 : index
      %579 = vector.load %arg5[%c0_176, %c0_177, %c0_178] : memref<2x8x128xf32, #tpu.memory_space<vmem>>, vector<2x8x128xf32>
      %c0_179 = arith.constant 0 : index
      %c0_180 = arith.constant 0 : index
      %c0_181 = arith.constant 0 : index
      %580 = vector.load %arg16[%c0_179, %c0_180, %c0_181] : memref<2x8x128xf32, #tpu.memory_space<vmem>>, vector<2x8x128xf32>
      tpu.vector_store %arg16[%c0_179, %c0_180, %c0_181], %579 {strides = array<i32>} : memref<2x8x128xf32, #tpu.memory_space<vmem>>, vector<2x8x128xf32>,
    } else {
    }
    %c0 = arith.constant 0 : index
    %c0_1 = arith.constant 0 : index
    %c0_2 = arith.constant 0 : index
    %3 = vector.load %arg1[%c0, %c0_1, %c0_2] : memref<8x8x128xbf16, #tpu.memory_space<vmem>>, vector<8x8x128xbf16>
    %4 = vector.shape_cast %3 : vector<8x8x128xbf16> to vector<64x128xbf16>
    %c0_3 = arith.constant 0 : index
    %c0_4 = arith.constant 0 : index
    %5 = vector.load %arg6[%c0_3, %c0_4] : memref<128x512xbf16, #tpu.memory_space<vmem>>, vector<128x512xbf16>
    %cst = arith.constant dense<0.000000e+00> : vector<64x512xf32>
    %6 = tpu.matmul %4, %5, %cst {dimension_numbers = #tpu.dot_dimension_numbers<[1], [0], [0], [1], [0, 0, 1, 1], [], []>} : vector<64x128xbf16>, vector<128x512xbf16>, vector<64x512xf32> -> vector<64x512xf32>
    %7 = vector.shape_cast %6 : vector<64x512xf32> to vector<8x8x512xf32>
    %c0_5 = arith.constant 0 : index
    %c0_6 = arith.constant 0 : index
    %c0_7 = arith.constant 0 : index
    %8 = vector.load %arg17[%c0_5, %c0_6, %c0_7] : memref<8x8x512xf32, #tpu.memory_space<vmem>>, vector<8x8x512xf32>
    tpu.vector_store %arg17[%c0_5, %c0_6, %c0_7], %7 {strides = array<i32>} : memref<8x8x512xf32, #tpu.memory_space<vmem>>, vector<8x8x512xf32>,
    %c0_8 = arith.constant 0 : index
    %c0_9 = arith.constant 0 : index
    %9 = vector.load %arg7[%c0_8, %c0_9] : memref<128x512xbf16, #tpu.memory_space<vmem>>, vector<128x512xbf16>
    %c0_10 = arith.constant 0 : index
    %c0_11 = arith.constant 0 : index
    %10 = vector.load %arg9[%c0_10, %c0_11] : memref<256x512xbf16, #tpu.memory_space<vmem>>, vector<256x512xbf16>
    %c0_12 = arith.constant 0 : index
    %c0_13 = arith.constant 0 : index
    %11 = vector.load %arg8[%c0_12, %c0_13] : memref<1x512xf32, #tpu.memory_space<vmem>>, vector<1x512xf32>
    %12 = vector.shape_cast %11 : vector<1x512xf32> to vector<1x512xf32>
    %13 = vector.broadcast %12 : vector<1x512xf32> to vector<8x512xf32>
    %c0_14 = arith.constant 0 : index
    %c0_15 = arith.constant 0 : index
    %14 = vector.load %arg10[%c0_14, %c0_15] : memref<1x512xf32, #tpu.memory_space<vmem>>, vector<1x512xf32>
    %15 = vector.shape_cast %14 : vector<1x512xf32> to vector<1x512xf32>
    %16 = vector.broadcast %15 : vector<1x512xf32> to vector<8x512xf32>
    %c0_16 = arith.constant 0 : index
    %c0_17 = arith.constant 0 : index
    %c0_18 = arith.constant 0 : index
    %17 = vector.load %arg15[%c0_16, %c0_17, %c0_18] : memref<2x8x128xf32, #tpu.memory_space<vmem>>, vector<1x8x128xf32>
    %18 = vector.shape_cast %17 : vector<1x8x128xf32> to vector<8x128xf32>
    %c0_19 = arith.constant 0 : index
    %c0_20 = arith.constant 0 : index
    %c0_21 = arith.constant 0 : index
    %19 = vector.load %arg16[%c0_19, %c0_20, %c0_21] : memref<2x8x128xf32, #tpu.memory_space<vmem>>, vector<1x8x128xf32>
    %20 = vector.shape_cast %19 : vector<1x8x128xf32> to vector<8x128xf32>
    %c1 = arith.constant 1 : index
    %c0_22 = arith.constant 0 : index
    %c0_23 = arith.constant 0 : index
    %21 = vector.load %arg15[%c1, %c0_22, %c0_23] : memref<2x8x128xf32, #tpu.memory_space<vmem>>, vector<1x8x128xf32>
    %22 = vector.shape_cast %21 : vector<1x8x128xf32> to vector<8x128xf32>
    %c1_24 = arith.constant 1 : index
    %c0_25 = arith.constant 0 : index
    %c0_26 = arith.constant 0 : index
    %23 = vector.load %arg16[%c1_24, %c0_25, %c0_26] : memref<2x8x128xf32, #tpu.memory_space<vmem>>, vector<1x8x128xf32>
    %24 = vector.shape_cast %23 : vector<1x8x128xf32> to vector<8x128xf32>
    %c0_27 = arith.constant 0 : index
    %c0_28 = arith.constant 0 : index
    %c0_29 = arith.constant 0 : index
    %25 = vector.load %arg17[%c0_27, %c0_28, %c0_29] : memref<8x8x512xf32, #tpu.memory_space<vmem>>, vector<1x8x512xf32>
    %26 = vector.shape_cast %25 : vector<1x8x512xf32> to vector<8x512xf32>
    %27 = arith.truncf %18 : vector<8x128xf32> to vector<8x128xbf16>
    %cst_30 = arith.constant dense<0.000000e+00> : vector<8x512xf32>
    %28 = tpu.matmul %27, %9, %cst_30 {dimension_numbers = #tpu.dot_dimension_numbers<[1], [0], [0], [1], [0, 0, 1, 1], [], []>} : vector<8x128xbf16>, vector<128x512xbf16>, vector<8x512xf32> -> vector<8x512xf32>
    %29 = arith.addf %26, %28 : vector<8x512xf32>
    %30 = arith.addf %29, %13 : vector<8x512xf32>
    %31 = vector.extract_strided_slice %30 {offsets = [0, 0], sizes = [8, 128], strides = [1, 1]} : vector<8x512xf32> to vector<8x128xf32>
    %32 = arith.negf %31 : vector<8x128xf32>
    %33 = math.exp %32 : vector<8x128xf32>
    %cst_31 = arith.constant 1.000000e+00 : f32
    %34 = vector.broadcast %cst_31 : f32 to vector<8x128xf32>
    %35 = arith.addf %34, %33 : vector<8x128xf32>
    %36 = arith.divf %34, %35 : vector<8x128xf32>
    %37 = vector.extract_strided_slice %30 {offsets = [0, 128], sizes = [8, 128], strides = [1, 1]} : vector<8x512xf32> to vector<8x128xf32>
    %38 = arith.negf %37 : vector<8x128xf32>
    %39 = math.exp %38 : vector<8x128xf32>
    %cst_32 = arith.constant 1.000000e+00 : f32
    %40 = vector.broadcast %cst_32 : f32 to vector<8x128xf32>
    %41 = arith.addf %40, %39 : vector<8x128xf32>
    %42 = arith.divf %40, %41 : vector<8x128xf32>
    %43 = vector.extract_strided_slice %30 {offsets = [0, 256], sizes = [8, 128], strides = [1, 1]} : vector<8x512xf32> to vector<8x128xf32>
    %44 = math.tanh %43 : vector<8x128xf32>
    %45 = vector.extract_strided_slice %30 {offsets = [0, 384], sizes = [8, 128], strides = [1, 1]} : vector<8x512xf32> to vector<8x128xf32>
    %46 = arith.negf %45 : vector<8x128xf32>
    %47 = math.exp %46 : vector<8x128xf32>
    %cst_33 = arith.constant 1.000000e+00 : f32
    %48 = vector.broadcast %cst_33 : f32 to vector<8x128xf32>
    %49 = arith.addf %48, %47 : vector<8x128xf32>
    %50 = arith.divf %48, %49 : vector<8x128xf32>
    %51 = arith.mulf %42, %20 : vector<8x128xf32>
    %52 = arith.mulf %36, %44 : vector<8x128xf32>
    %53 = arith.addf %51, %52 : vector<8x128xf32>
    %54 = math.tanh %53 : vector<8x128xf32>
    %55 = arith.mulf %50, %54 : vector<8x128xf32>
    %56 = tpu.concatenate %55, %22 in 1 : vector<8x128xf32>, vector<8x128xf32> -> vector<8x256xf32>
    %57 = arith.truncf %56 : vector<8x256xf32> to vector<8x256xbf16>
    %cst_34 = arith.constant dense<0.000000e+00> : vector<8x512xf32>
    %58 = tpu.matmul %57, %10, %cst_34 {dimension_numbers = #tpu.dot_dimension_numbers<[1], [0], [0], [1], [0, 0, 1, 1], [], []>} : vector<8x256xbf16>, vector<256x512xbf16>, vector<8x512xf32> -> vector<8x512xf32>
    %59 = arith.addf %58, %16 : vector<8x512xf32>
    %60 = vector.extract_strided_slice %59 {offsets = [0, 0], sizes = [8, 128], strides = [1, 1]} : vector<8x512xf32> to vector<8x128xf32>
    %61 = arith.negf %60 : vector<8x128xf32>
    %62 = math.exp %61 : vector<8x128xf32>
    %cst_35 = arith.constant 1.000000e+00 : f32
    %63 = vector.broadcast %cst_35 : f32 to vector<8x128xf32>
    %64 = arith.addf %63, %62 : vector<8x128xf32>
    %65 = arith.divf %63, %64 : vector<8x128xf32>
    %66 = vector.extract_strided_slice %59 {offsets = [0, 128], sizes = [8, 128], strides = [1, 1]} : vector<8x512xf32> to vector<8x128xf32>
    %67 = arith.negf %66 : vector<8x128xf32>
    %68 = math.exp %67 : vector<8x128xf32>
    %cst_36 = arith.constant 1.000000e+00 : f32
    %69 = vector.broadcast %cst_36 : f32 to vector<8x128xf32>
    %70 = arith.addf %69, %68 : vector<8x128xf32>
    %71 = arith.divf %69, %70 : vector<8x128xf32>
    %72 = vector.extract_strided_slice %59 {offsets = [0, 256], sizes = [8, 128], strides = [1, 1]} : vector<8x512xf32> to vector<8x128xf32>
    %73 = math.tanh %72 : vector<8x128xf32>
    %74 = vector.extract_strided_slice %59 {offsets = [0, 384], sizes = [8, 128], strides = [1, 1]} : vector<8x512xf32> to vector<8x128xf32>
    %75 = arith.negf %74 : vector<8x128xf32>
    %76 = math.exp %75 : vector<8x128xf32>
    %cst_37 = arith.constant 1.000000e+00 : f32
    %77 = vector.broadcast %cst_37 : f32 to vector<8x128xf32>
    %78 = arith.addf %77, %76 : vector<8x128xf32>
    %79 = arith.divf %77, %78 : vector<8x128xf32>
    %80 = arith.mulf %71, %24 : vector<8x128xf32>
    %81 = arith.mulf %65, %73 : vector<8x128xf32>
    %82 = arith.addf %80, %81 : vector<8x128xf32>
    %83 = math.tanh %82 : vector<8x128xf32>
    %84 = arith.mulf %79, %83 : vector<8x128xf32>
    %c0_38 = arith.constant 0 : index
    %c0_39 = arith.constant 0 : index
    %c0_40 = arith.constant 0 : index
    %85 = vector.load %arg18[%c0_38, %c0_39, %c0_40] : memref<8x8x128xf32, #tpu.memory_space<vmem>>, vector<1x8x128xf32>
    %86 = vector.shape_cast %85 : vector<1x8x128xf32> to vector<8x128xf32>
    %87 = vector.shape_cast %84 : vector<8x128xf32> to vector<1x8x128xf32>
    tpu.vector_store %arg18[%c0_38, %c0_39, %c0_40], %87 {strides = array<i32>} : memref<8x8x128xf32, #tpu.memory_space<vmem>>, vector<1x8x128xf32>,
    %c1_41 = arith.constant 1 : index
    %c0_42 = arith.constant 0 : index
    %c0_43 = arith.constant 0 : index
    %88 = vector.load %arg17[%c1_41, %c0_42, %c0_43] : memref<8x8x512xf32, #tpu.memory_space<vmem>>, vector<1x8x512xf32>
    %89 = vector.shape_cast %88 : vector<1x8x512xf32> to vector<8x512xf32>
    %90 = arith.truncf %55 : vector<8x128xf32> to vector<8x128xbf16>
    %cst_44 = arith.constant dense<0.000000e+00> : vector<8x512xf32>
    %91 = tpu.matmul %90, %9, %cst_44 {dimension_numbers = #tpu.dot_dimension_numbers<[1], [0], [0], [1], [0, 0, 1, 1], [], []>} : vector<8x128xbf16>, vector<128x512xbf16>, vector<8x512xf32> -> vector<8x512xf32>
    %92 = arith.addf %89, %91 : vector<8x512xf32>
    %93 = arith.addf %92, %13 : vector<8x512xf32>
    %94 = vector.extract_strided_slice %93 {offsets = [0, 0], sizes = [8, 128], strides = [1, 1]} : vector<8x512xf32> to vector<8x128xf32>
    %95 = arith.negf %94 : vector<8x128xf32>
    %96 = math.exp %95 : vector<8x128xf32>
    %cst_45 = arith.constant 1.000000e+00 : f32
    %97 = vector.broadcast %cst_45 : f32 to vector<8x128xf32>
    %98 = arith.addf %97, %96 : vector<8x128xf32>
    %99 = arith.divf %97, %98 : vector<8x128xf32>
    %100 = vector.extract_strided_slice %93 {offsets = [0, 128], sizes = [8, 128], strides = [1, 1]} : vector<8x512xf32> to vector<8x128xf32>
    %101 = arith.negf %100 : vector<8x128xf32>
    %102 = math.exp %101 : vector<8x128xf32>
    %cst_46 = arith.constant 1.000000e+00 : f32
    %103 = vector.broadcast %cst_46 : f32 to vector<8x128xf32>
    %104 = arith.addf %103, %102 : vector<8x128xf32>
    %105 = arith.divf %103, %104 : vector<8x128xf32>
    %106 = vector.extract_strided_slice %93 {offsets = [0, 256], sizes = [8, 128], strides = [1, 1]} : vector<8x512xf32> to vector<8x128xf32>
    %107 = math.tanh %106 : vector<8x128xf32>
    %108 = vector.extract_strided_slice %93 {offsets = [0, 384], sizes = [8, 128], strides = [1, 1]} : vector<8x512xf32> to vector<8x128xf32>
    %109 = arith.negf %108 : vector<8x128xf32>
    %110 = math.exp %109 : vector<8x128xf32>
    %cst_47 = arith.constant 1.000000e+00 : f32
    %111 = vector.broadcast %cst_47 : f32 to vector<8x128xf32>
    %112 = arith.addf %111, %110 : vector<8x128xf32>
    %113 = arith.divf %111, %112 : vector<8x128xf32>
    %114 = arith.mulf %105, %53 : vector<8x128xf32>
    %115 = arith.mulf %99, %107 : vector<8x128xf32>
    %116 = arith.addf %114, %115 : vector<8x128xf32>
    %117 = math.tanh %116 : vector<8x128xf32>
    %118 = arith.mulf %113, %117 : vector<8x128xf32>
    %119 = tpu.concatenate %118, %84 in 1 : vector<8x128xf32>, vector<8x128xf32> -> vector<8x256xf32>
    %120 = arith.truncf %119 : vector<8x256xf32> to vector<8x256xbf16>
    %cst_48 = arith.constant dense<0.000000e+00> : vector<8x512xf32>
    %121 = tpu.matmul %120, %10, %cst_48 {dimension_numbers = #tpu.dot_dimension_numbers<[1], [0], [0], [1], [0, 0, 1, 1], [], []>} : vector<8x256xbf16>, vector<256x512xbf16>, vector<8x512xf32> -> vector<8x512xf32>
    %122 = arith.addf %121, %16 : vector<8x512xf32>
    %123 = vector.extract_strided_slice %122 {offsets = [0, 0], sizes = [8, 128], strides = [1, 1]} : vector<8x512xf32> to vector<8x128xf32>
    %124 = arith.negf %123 : vector<8x128xf32>
    %125 = math.exp %124 : vector<8x128xf32>
    %cst_49 = arith.constant 1.000000e+00 : f32
    %126 = vector.broadcast %cst_49 : f32 to vector<8x128xf32>
    %127 = arith.addf %126, %125 : vector<8x128xf32>
    %128 = arith.divf %126, %127 : vector<8x128xf32>
    %129 = vector.extract_strided_slice %122 {offsets = [0, 128], sizes = [8, 128], strides = [1, 1]} : vector<8x512xf32> to vector<8x128xf32>
    %130 = arith.negf %129 : vector<8x128xf32>
    %131 = math.exp %130 : vector<8x128xf32>
    %cst_50 = arith.constant 1.000000e+00 : f32
    %132 = vector.broadcast %cst_50 : f32 to vector<8x128xf32>
    %133 = arith.addf %132, %131 : vector<8x128xf32>
    %134 = arith.divf %132, %133 : vector<8x128xf32>
    %135 = vector.extract_strided_slice %122 {offsets = [0, 256], sizes = [8, 128], strides = [1, 1]} : vector<8x512xf32> to vector<8x128xf32>
    %136 = math.tanh %135 : vector<8x128xf32>
    %137 = vector.extract_strided_slice %122 {offsets = [0, 384], sizes = [8, 128], strides = [1, 1]} : vector<8x512xf32> to vector<8x128xf32>
    %138 = arith.negf %137 : vector<8x128xf32>
    %139 = math.exp %138 : vector<8x128xf32>
    %cst_51 = arith.constant 1.000000e+00 : f32
    %140 = vector.broadcast %cst_51 : f32 to vector<8x128xf32>
    %141 = arith.addf %140, %139 : vector<8x128xf32>
    %142 = arith.divf %140, %141 : vector<8x128xf32>
    %143 = arith.mulf %134, %82 : vector<8x128xf32>
    %144 = arith.mulf %128, %136 : vector<8x128xf32>
    %145 = arith.addf %143, %144 : vector<8x128xf32>
    %146 = math.tanh %145 : vector<8x128xf32>
    %147 = arith.mulf %142, %146 : vector<8x128xf32>
    %c1_52 = arith.constant 1 : index
    %c0_53 = arith.constant 0 : index
    %c0_54 = arith.constant 0 : index
    %148 = vector.load %arg18[%c1_52, %c0_53, %c0_54] : memref<8x8x128xf32, #tpu.memory_space<vmem>>, vector<1x8x128xf32>
    %149 = vector.shape_cast %148 : vector<1x8x128xf32> to vector<8x128xf32>
    %150 = vector.shape_cast %147 : vector<8x128xf32> to vector<1x8x128xf32>
    tpu.vector_store %arg18[%c1_52, %c0_53, %c0_54], %150 {strides = array<i32>} : memref<8x8x128xf32, #tpu.memory_space<vmem>>, vector<1x8x128xf32>,
    %c2 = arith.constant 2 : index
    %c0_55 = arith.constant 0 : index
    %c0_56 = arith.constant 0 : index
    %151 = vector.load %arg17[%c2, %c0_55, %c0_56] : memref<8x8x512xf32, #tpu.memory_space<vmem>>, vector<1x8x512xf32>
    %152 = vector.shape_cast %151 : vector<1x8x512xf32> to vector<8x512xf32>
    %153 = arith.truncf %118 : vector<8x128xf32> to vector<8x128xbf16>
    %cst_57 = arith.constant dense<0.000000e+00> : vector<8x512xf32>
    %154 = tpu.matmul %153, %9, %cst_57 {dimension_numbers = #tpu.dot_dimension_numbers<[1], [0], [0], [1], [0, 0, 1, 1], [], []>} : vector<8x128xbf16>, vector<128x512xbf16>, vector<8x512xf32> -> vector<8x512xf32>
    %155 = arith.addf %152, %154 : vector<8x512xf32>
    %156 = arith.addf %155, %13 : vector<8x512xf32>
    %157 = vector.extract_strided_slice %156 {offsets = [0, 0], sizes = [8, 128], strides = [1, 1]} : vector<8x512xf32> to vector<8x128xf32>
    %158 = arith.negf %157 : vector<8x128xf32>
    %159 = math.exp %158 : vector<8x128xf32>
    %cst_58 = arith.constant 1.000000e+00 : f32
    %160 = vector.broadcast %cst_58 : f32 to vector<8x128xf32>
    %161 = arith.addf %160, %159 : vector<8x128xf32>
    %162 = arith.divf %160, %161 : vector<8x128xf32>
    %163 = vector.extract_strided_slice %156 {offsets = [0, 128], sizes = [8, 128], strides = [1, 1]} : vector<8x512xf32> to vector<8x128xf32>
    %164 = arith.negf %163 : vector<8x128xf32>
    %165 = math.exp %164 : vector<8x128xf32>
    %cst_59 = arith.constant 1.000000e+00 : f32
    %166 = vector.broadcast %cst_59 : f32 to vector<8x128xf32>
    %167 = arith.addf %166, %165 : vector<8x128xf32>
    %168 = arith.divf %166, %167 : vector<8x128xf32>
    %169 = vector.extract_strided_slice %156 {offsets = [0, 256], sizes = [8, 128], strides = [1, 1]} : vector<8x512xf32> to vector<8x128xf32>
    %170 = math.tanh %169 : vector<8x128xf32>
    %171 = vector.extract_strided_slice %156 {offsets = [0, 384], sizes = [8, 128], strides = [1, 1]} : vector<8x512xf32> to vector<8x128xf32>
    %172 = arith.negf %171 : vector<8x128xf32>
    %173 = math.exp %172 : vector<8x128xf32>
    %cst_60 = arith.constant 1.000000e+00 : f32
    %174 = vector.broadcast %cst_60 : f32 to vector<8x128xf32>
    %175 = arith.addf %174, %173 : vector<8x128xf32>
    %176 = arith.divf %174, %175 : vector<8x128xf32>
    %177 = arith.mulf %168, %116 : vector<8x128xf32>
    %178 = arith.mulf %162, %170 : vector<8x128xf32>
    %179 = arith.addf %177, %178 : vector<8x128xf32>
    %180 = math.tanh %179 : vector<8x128xf32>
    %181 = arith.mulf %176, %180 : vector<8x128xf32>
    %182 = tpu.concatenate %181, %147 in 1 : vector<8x128xf32>, vector<8x128xf32> -> vector<8x256xf32>
    %183 = arith.truncf %182 : vector<8x256xf32> to vector<8x256xbf16>
    %cst_61 = arith.constant dense<0.000000e+00> : vector<8x512xf32>
    %184 = tpu.matmul %183, %10, %cst_61 {dimension_numbers = #tpu.dot_dimension_numbers<[1], [0], [0], [1], [0, 0, 1, 1], [], []>} : vector<8x256xbf16>, vector<256x512xbf16>, vector<8x512xf32> -> vector<8x512xf32>
    %185 = arith.addf %184, %16 : vector<8x512xf32>
    %186 = vector.extract_strided_slice %185 {offsets = [0, 0], sizes = [8, 128], strides = [1, 1]} : vector<8x512xf32> to vector<8x128xf32>
    %187 = arith.negf %186 : vector<8x128xf32>
    %188 = math.exp %187 : vector<8x128xf32>
    %cst_62 = arith.constant 1.000000e+00 : f32
    %189 = vector.broadcast %cst_62 : f32 to vector<8x128xf32>
    %190 = arith.addf %189, %188 : vector<8x128xf32>
    %191 = arith.divf %189, %190 : vector<8x128xf32>
    %192 = vector.extract_strided_slice %185 {offsets = [0, 128], sizes = [8, 128], strides = [1, 1]} : vector<8x512xf32> to vector<8x128xf32>
    %193 = arith.negf %192 : vector<8x128xf32>
    %194 = math.exp %193 : vector<8x128xf32>
    %cst_63 = arith.constant 1.000000e+00 : f32
    %195 = vector.broadcast %cst_63 : f32 to vector<8x128xf32>
    %196 = arith.addf %195, %194 : vector<8x128xf32>
    %197 = arith.divf %195, %196 : vector<8x128xf32>
    %198 = vector.extract_strided_slice %185 {offsets = [0, 256], sizes = [8, 128], strides = [1, 1]} : vector<8x512xf32> to vector<8x128xf32>
    %199 = math.tanh %198 : vector<8x128xf32>
    %200 = vector.extract_strided_slice %185 {offsets = [0, 384], sizes = [8, 128], strides = [1, 1]} : vector<8x512xf32> to vector<8x128xf32>
    %201 = arith.negf %200 : vector<8x128xf32>
    %202 = math.exp %201 : vector<8x128xf32>
    %cst_64 = arith.constant 1.000000e+00 : f32
    %203 = vector.broadcast %cst_64 : f32 to vector<8x128xf32>
    %204 = arith.addf %203, %202 : vector<8x128xf32>
    %205 = arith.divf %203, %204 : vector<8x128xf32>
    %206 = arith.mulf %197, %145 : vector<8x128xf32>
    %207 = arith.mulf %191, %199 : vector<8x128xf32>
    %208 = arith.addf %206, %207 : vector<8x128xf32>
    %209 = math.tanh %208 : vector<8x128xf32>
    %210 = arith.mulf %205, %209 : vector<8x128xf32>
    %c2_65 = arith.constant 2 : index
    %c0_66 = arith.constant 0 : index
    %c0_67 = arith.constant 0 : index
    %211 = vector.load %arg18[%c2_65, %c0_66, %c0_67] : memref<8x8x128xf32, #tpu.memory_space<vmem>>, vector<1x8x128xf32>
    %212 = vector.shape_cast %211 : vector<1x8x128xf32> to vector<8x128xf32>
    %213 = vector.shape_cast %210 : vector<8x128xf32> to vector<1x8x128xf32>
    tpu.vector_store %arg18[%c2_65, %c0_66, %c0_67], %213 {strides = array<i32>} : memref<8x8x128xf32, #tpu.memory_space<vmem>>, vector<1x8x128xf32>,
    %c3 = arith.constant 3 : index
    %c0_68 = arith.constant 0 : index
    %c0_69 = arith.constant 0 : index
    %214 = vector.load %arg17[%c3, %c0_68, %c0_69] : memref<8x8x512xf32, #tpu.memory_space<vmem>>, vector<1x8x512xf32>
    %215 = vector.shape_cast %214 : vector<1x8x512xf32> to vector<8x512xf32>
    %216 = arith.truncf %181 : vector<8x128xf32> to vector<8x128xbf16>
    %cst_70 = arith.constant dense<0.000000e+00> : vector<8x512xf32>
    %217 = tpu.matmul %216, %9, %cst_70 {dimension_numbers = #tpu.dot_dimension_numbers<[1], [0], [0], [1], [0, 0, 1, 1], [], []>} : vector<8x128xbf16>, vector<128x512xbf16>, vector<8x512xf32> -> vector<8x512xf32>
    %218 = arith.addf %215, %217 : vector<8x512xf32>
    %219 = arith.addf %218, %13 : vector<8x512xf32>
    %220 = vector.extract_strided_slice %219 {offsets = [0, 0], sizes = [8, 128], strides = [1, 1]} : vector<8x512xf32> to vector<8x128xf32>
    %221 = arith.negf %220 : vector<8x128xf32>
    %222 = math.exp %221 : vector<8x128xf32>
    %cst_71 = arith.constant 1.000000e+00 : f32
    %223 = vector.broadcast %cst_71 : f32 to vector<8x128xf32>
    %224 = arith.addf %223, %222 : vector<8x128xf32>
    %225 = arith.divf %223, %224 : vector<8x128xf32>
    %226 = vector.extract_strided_slice %219 {offsets = [0, 128], sizes = [8, 128], strides = [1, 1]} : vector<8x512xf32> to vector<8x128xf32>
    %227 = arith.negf %226 : vector<8x128xf32>
    %228 = math.exp %227 : vector<8x128xf32>
    %cst_72 = arith.constant 1.000000e+00 : f32
    %229 = vector.broadcast %cst_72 : f32 to vector<8x128xf32>
    %230 = arith.addf %229, %228 : vector<8x128xf32>
    %231 = arith.divf %229, %230 : vector<8x128xf32>
    %232 = vector.extract_strided_slice %219 {offsets = [0, 256], sizes = [8, 128], strides = [1, 1]} : vector<8x512xf32> to vector<8x128xf32>
    %233 = math.tanh %232 : vector<8x128xf32>
    %234 = vector.extract_strided_slice %219 {offsets = [0, 384], sizes = [8, 128], strides = [1, 1]} : vector<8x512xf32> to vector<8x128xf32>
    %235 = arith.negf %234 : vector<8x128xf32>
    %236 = math.exp %235 : vector<8x128xf32>
    %cst_73 = arith.constant 1.000000e+00 : f32
    %237 = vector.broadcast %cst_73 : f32 to vector<8x128xf32>
    %238 = arith.addf %237, %236 : vector<8x128xf32>
    %239 = arith.divf %237, %238 : vector<8x128xf32>
    %240 = arith.mulf %231, %179 : vector<8x128xf32>
    %241 = arith.mulf %225, %233 : vector<8x128xf32>
    %242 = arith.addf %240, %241 : vector<8x128xf32>
    %243 = math.tanh %242 : vector<8x128xf32>
    %244 = arith.mulf %239, %243 : vector<8x128xf32>
    %245 = tpu.concatenate %244, %210 in 1 : vector<8x128xf32>, vector<8x128xf32> -> vector<8x256xf32>
    %246 = arith.truncf %245 : vector<8x256xf32> to vector<8x256xbf16>
    %cst_74 = arith.constant dense<0.000000e+00> : vector<8x512xf32>
    %247 = tpu.matmul %246, %10, %cst_74 {dimension_numbers = #tpu.dot_dimension_numbers<[1], [0], [0], [1], [0, 0, 1, 1], [], []>} : vector<8x256xbf16>, vector<256x512xbf16>, vector<8x512xf32> -> vector<8x512xf32>
    %248 = arith.addf %247, %16 : vector<8x512xf32>
    %249 = vector.extract_strided_slice %248 {offsets = [0, 0], sizes = [8, 128], strides = [1, 1]} : vector<8x512xf32> to vector<8x128xf32>
    %250 = arith.negf %249 : vector<8x128xf32>
    %251 = math.exp %250 : vector<8x128xf32>
    %cst_75 = arith.constant 1.000000e+00 : f32
    %252 = vector.broadcast %cst_75 : f32 to vector<8x128xf32>
    %253 = arith.addf %252, %251 : vector<8x128xf32>
    %254 = arith.divf %252, %253 : vector<8x128xf32>
    %255 = vector.extract_strided_slice %248 {offsets = [0, 128], sizes = [8, 128], strides = [1, 1]} : vector<8x512xf32> to vector<8x128xf32>
    %256 = arith.negf %255 : vector<8x128xf32>
    %257 = math.exp %256 : vector<8x128xf32>
    %cst_76 = arith.constant 1.000000e+00 : f32
    %258 = vector.broadcast %cst_76 : f32 to vector<8x128xf32>
    %259 = arith.addf %258, %257 : vector<8x128xf32>
    %260 = arith.divf %258, %259 : vector<8x128xf32>
    %261 = vector.extract_strided_slice %248 {offsets = [0, 256], sizes = [8, 128], strides = [1, 1]} : vector<8x512xf32> to vector<8x128xf32>
    %262 = math.tanh %261 : vector<8x128xf32>
    %263 = vector.extract_strided_slice %248 {offsets = [0, 384], sizes = [8, 128], strides = [1, 1]} : vector<8x512xf32> to vector<8x128xf32>
    %264 = arith.negf %263 : vector<8x128xf32>
    %265 = math.exp %264 : vector<8x128xf32>
    %cst_77 = arith.constant 1.000000e+00 : f32
    %266 = vector.broadcast %cst_77 : f32 to vector<8x128xf32>
    %267 = arith.addf %266, %265 : vector<8x128xf32>
    %268 = arith.divf %266, %267 : vector<8x128xf32>
    %269 = arith.mulf %260, %208 : vector<8x128xf32>
    %270 = arith.mulf %254, %262 : vector<8x128xf32>
    %271 = arith.addf %269, %270 : vector<8x128xf32>
    %272 = math.tanh %271 : vector<8x128xf32>
    %273 = arith.mulf %268, %272 : vector<8x128xf32>
    %c3_78 = arith.constant 3 : index
    %c0_79 = arith.constant 0 : index
    %c0_80 = arith.constant 0 : index
    %274 = vector.load %arg18[%c3_78, %c0_79, %c0_80] : memref<8x8x128xf32, #tpu.memory_space<vmem>>, vector<1x8x128xf32>
    %275 = vector.shape_cast %274 : vector<1x8x128xf32> to vector<8x128xf32>
    %276 = vector.shape_cast %273 : vector<8x128xf32> to vector<1x8x128xf32>
    tpu.vector_store %arg18[%c3_78, %c0_79, %c0_80], %276 {strides = array<i32>} : memref<8x8x128xf32, #tpu.memory_space<vmem>>, vector<1x8x128xf32>,
    %c4 = arith.constant 4 : index
    %c0_81 = arith.constant 0 : index
    %c0_82 = arith.constant 0 : index
    %277 = vector.load %arg17[%c4, %c0_81, %c0_82] : memref<8x8x512xf32, #tpu.memory_space<vmem>>, vector<1x8x512xf32>
    %278 = vector.shape_cast %277 : vector<1x8x512xf32> to vector<8x512xf32>
    %279 = arith.truncf %244 : vector<8x128xf32> to vector<8x128xbf16>
    %cst_83 = arith.constant dense<0.000000e+00> : vector<8x512xf32>
    %280 = tpu.matmul %279, %9, %cst_83 {dimension_numbers = #tpu.dot_dimension_numbers<[1], [0], [0], [1], [0, 0, 1, 1], [], []>} : vector<8x128xbf16>, vector<128x512xbf16>, vector<8x512xf32> -> vector<8x512xf32>
    %281 = arith.addf %278, %280 : vector<8x512xf32>
    %282 = arith.addf %281, %13 : vector<8x512xf32>
    %283 = vector.extract_strided_slice %282 {offsets = [0, 0], sizes = [8, 128], strides = [1, 1]} : vector<8x512xf32> to vector<8x128xf32>
    %284 = arith.negf %283 : vector<8x128xf32>
    %285 = math.exp %284 : vector<8x128xf32>
    %cst_84 = arith.constant 1.000000e+00 : f32
    %286 = vector.broadcast %cst_84 : f32 to vector<8x128xf32>
    %287 = arith.addf %286, %285 : vector<8x128xf32>
    %288 = arith.divf %286, %287 : vector<8x128xf32>
    %289 = vector.extract_strided_slice %282 {offsets = [0, 128], sizes = [8, 128], strides = [1, 1]} : vector<8x512xf32> to vector<8x128xf32>
    %290 = arith.negf %289 : vector<8x128xf32>
    %291 = math.exp %290 : vector<8x128xf32>
    %cst_85 = arith.constant 1.000000e+00 : f32
    %292 = vector.broadcast %cst_85 : f32 to vector<8x128xf32>
    %293 = arith.addf %292, %291 : vector<8x128xf32>
    %294 = arith.divf %292, %293 : vector<8x128xf32>
    %295 = vector.extract_strided_slice %282 {offsets = [0, 256], sizes = [8, 128], strides = [1, 1]} : vector<8x512xf32> to vector<8x128xf32>
    %296 = math.tanh %295 : vector<8x128xf32>
    %297 = vector.extract_strided_slice %282 {offsets = [0, 384], sizes = [8, 128], strides = [1, 1]} : vector<8x512xf32> to vector<8x128xf32>
    %298 = arith.negf %297 : vector<8x128xf32>
    %299 = math.exp %298 : vector<8x128xf32>
    %cst_86 = arith.constant 1.000000e+00 : f32
    %300 = vector.broadcast %cst_86 : f32 to vector<8x128xf32>
    %301 = arith.addf %300, %299 : vector<8x128xf32>
    %302 = arith.divf %300, %301 : vector<8x128xf32>
    %303 = arith.mulf %294, %242 : vector<8x128xf32>
    %304 = arith.mulf %288, %296 : vector<8x128xf32>
    %305 = arith.addf %303, %304 : vector<8x128xf32>
    %306 = math.tanh %305 : vector<8x128xf32>
    %307 = arith.mulf %302, %306 : vector<8x128xf32>
    %308 = tpu.concatenate %307, %273 in 1 : vector<8x128xf32>, vector<8x128xf32> -> vector<8x256xf32>
    %309 = arith.truncf %308 : vector<8x256xf32> to vector<8x256xbf16>
    %cst_87 = arith.constant dense<0.000000e+00> : vector<8x512xf32>
    %310 = tpu.matmul %309, %10, %cst_87 {dimension_numbers = #tpu.dot_dimension_numbers<[1], [0], [0], [1], [0, 0, 1, 1], [], []>} : vector<8x256xbf16>, vector<256x512xbf16>, vector<8x512xf32> -> vector<8x512xf32>
    %311 = arith.addf %310, %16 : vector<8x512xf32>
    %312 = vector.extract_strided_slice %311 {offsets = [0, 0], sizes = [8, 128], strides = [1, 1]} : vector<8x512xf32> to vector<8x128xf32>
    %313 = arith.negf %312 : vector<8x128xf32>
    %314 = math.exp %313 : vector<8x128xf32>
    %cst_88 = arith.constant 1.000000e+00 : f32
    %315 = vector.broadcast %cst_88 : f32 to vector<8x128xf32>
    %316 = arith.addf %315, %314 : vector<8x128xf32>
    %317 = arith.divf %315, %316 : vector<8x128xf32>
    %318 = vector.extract_strided_slice %311 {offsets = [0, 128], sizes = [8, 128], strides = [1, 1]} : vector<8x512xf32> to vector<8x128xf32>
    %319 = arith.negf %318 : vector<8x128xf32>
    %320 = math.exp %319 : vector<8x128xf32>
    %cst_89 = arith.constant 1.000000e+00 : f32
    %321 = vector.broadcast %cst_89 : f32 to vector<8x128xf32>
    %322 = arith.addf %321, %320 : vector<8x128xf32>
    %323 = arith.divf %321, %322 : vector<8x128xf32>
    %324 = vector.extract_strided_slice %311 {offsets = [0, 256], sizes = [8, 128], strides = [1, 1]} : vector<8x512xf32> to vector<8x128xf32>
    %325 = math.tanh %324 : vector<8x128xf32>
    %326 = vector.extract_strided_slice %311 {offsets = [0, 384], sizes = [8, 128], strides = [1, 1]} : vector<8x512xf32> to vector<8x128xf32>
    %327 = arith.negf %326 : vector<8x128xf32>
    %328 = math.exp %327 : vector<8x128xf32>
    %cst_90 = arith.constant 1.000000e+00 : f32
    %329 = vector.broadcast %cst_90 : f32 to vector<8x128xf32>
    %330 = arith.addf %329, %328 : vector<8x128xf32>
    %331 = arith.divf %329, %330 : vector<8x128xf32>
    %332 = arith.mulf %323, %271 : vector<8x128xf32>
    %333 = arith.mulf %317, %325 : vector<8x128xf32>
    %334 = arith.addf %332, %333 : vector<8x128xf32>
    %335 = math.tanh %334 : vector<8x128xf32>
    %336 = arith.mulf %331, %335 : vector<8x128xf32>
    %c4_91 = arith.constant 4 : index
    %c0_92 = arith.constant 0 : index
    %c0_93 = arith.constant 0 : index
    %337 = vector.load %arg18[%c4_91, %c0_92, %c0_93] : memref<8x8x128xf32, #tpu.memory_space<vmem>>, vector<1x8x128xf32>
    %338 = vector.shape_cast %337 : vector<1x8x128xf32> to vector<8x128xf32>
    %339 = vector.shape_cast %336 : vector<8x128xf32> to vector<1x8x128xf32>
    tpu.vector_store %arg18[%c4_91, %c0_92, %c0_93], %339 {strides = array<i32>} : memref<8x8x128xf32, #tpu.memory_space<vmem>>, vector<1x8x128xf32>,
    %c5 = arith.constant 5 : index
    %c0_94 = arith.constant 0 : index
    %c0_95 = arith.constant 0 : index
    %340 = vector.load %arg17[%c5, %c0_94, %c0_95] : memref<8x8x512xf32, #tpu.memory_space<vmem>>, vector<1x8x512xf32>
    %341 = vector.shape_cast %340 : vector<1x8x512xf32> to vector<8x512xf32>
    %342 = arith.truncf %307 : vector<8x128xf32> to vector<8x128xbf16>
    %cst_96 = arith.constant dense<0.000000e+00> : vector<8x512xf32>
    %343 = tpu.matmul %342, %9, %cst_96 {dimension_numbers = #tpu.dot_dimension_numbers<[1], [0], [0], [1], [0, 0, 1, 1], [], []>} : vector<8x128xbf16>, vector<128x512xbf16>, vector<8x512xf32> -> vector<8x512xf32>
    %344 = arith.addf %341, %343 : vector<8x512xf32>
    %345 = arith.addf %344, %13 : vector<8x512xf32>
    %346 = vector.extract_strided_slice %345 {offsets = [0, 0], sizes = [8, 128], strides = [1, 1]} : vector<8x512xf32> to vector<8x128xf32>
    %347 = arith.negf %346 : vector<8x128xf32>
    %348 = math.exp %347 : vector<8x128xf32>
    %cst_97 = arith.constant 1.000000e+00 : f32
    %349 = vector.broadcast %cst_97 : f32 to vector<8x128xf32>
    %350 = arith.addf %349, %348 : vector<8x128xf32>
    %351 = arith.divf %349, %350 : vector<8x128xf32>
    %352 = vector.extract_strided_slice %345 {offsets = [0, 128], sizes = [8, 128], strides = [1, 1]} : vector<8x512xf32> to vector<8x128xf32>
    %353 = arith.negf %352 : vector<8x128xf32>
    %354 = math.exp %353 : vector<8x128xf32>
    %cst_98 = arith.constant 1.000000e+00 : f32
    %355 = vector.broadcast %cst_98 : f32 to vector<8x128xf32>
    %356 = arith.addf %355, %354 : vector<8x128xf32>
    %357 = arith.divf %355, %356 : vector<8x128xf32>
    %358 = vector.extract_strided_slice %345 {offsets = [0, 256], sizes = [8, 128], strides = [1, 1]} : vector<8x512xf32> to vector<8x128xf32>
    %359 = math.tanh %358 : vector<8x128xf32>
    %360 = vector.extract_strided_slice %345 {offsets = [0, 384], sizes = [8, 128], strides = [1, 1]} : vector<8x512xf32> to vector<8x128xf32>
    %361 = arith.negf %360 : vector<8x128xf32>
    %362 = math.exp %361 : vector<8x128xf32>
    %cst_99 = arith.constant 1.000000e+00 : f32
    %363 = vector.broadcast %cst_99 : f32 to vector<8x128xf32>
    %364 = arith.addf %363, %362 : vector<8x128xf32>
    %365 = arith.divf %363, %364 : vector<8x128xf32>
    %366 = arith.mulf %357, %305 : vector<8x128xf32>
    %367 = arith.mulf %351, %359 : vector<8x128xf32>
    %368 = arith.addf %366, %367 : vector<8x128xf32>
    %369 = math.tanh %368 : vector<8x128xf32>
    %370 = arith.mulf %365, %369 : vector<8x128xf32>
    %371 = tpu.concatenate %370, %336 in 1 : vector<8x128xf32>, vector<8x128xf32> -> vector<8x256xf32>
    %372 = arith.truncf %371 : vector<8x256xf32> to vector<8x256xbf16>
    %cst_100 = arith.constant dense<0.000000e+00> : vector<8x512xf32>
    %373 = tpu.matmul %372, %10, %cst_100 {dimension_numbers = #tpu.dot_dimension_numbers<[1], [0], [0], [1], [0, 0, 1, 1], [], []>} : vector<8x256xbf16>, vector<256x512xbf16>, vector<8x512xf32> -> vector<8x512xf32>
    %374 = arith.addf %373, %16 : vector<8x512xf32>
    %375 = vector.extract_strided_slice %374 {offsets = [0, 0], sizes = [8, 128], strides = [1, 1]} : vector<8x512xf32> to vector<8x128xf32>
    %376 = arith.negf %375 : vector<8x128xf32>
    %377 = math.exp %376 : vector<8x128xf32>
    %cst_101 = arith.constant 1.000000e+00 : f32
    %378 = vector.broadcast %cst_101 : f32 to vector<8x128xf32>
    %379 = arith.addf %378, %377 : vector<8x128xf32>
    %380 = arith.divf %378, %379 : vector<8x128xf32>
    %381 = vector.extract_strided_slice %374 {offsets = [0, 128], sizes = [8, 128], strides = [1, 1]} : vector<8x512xf32> to vector<8x128xf32>
    %382 = arith.negf %381 : vector<8x128xf32>
    %383 = math.exp %382 : vector<8x128xf32>
    %cst_102 = arith.constant 1.000000e+00 : f32
    %384 = vector.broadcast %cst_102 : f32 to vector<8x128xf32>
    %385 = arith.addf %384, %383 : vector<8x128xf32>
    %386 = arith.divf %384, %385 : vector<8x128xf32>
    %387 = vector.extract_strided_slice %374 {offsets = [0, 256], sizes = [8, 128], strides = [1, 1]} : vector<8x512xf32> to vector<8x128xf32>
    %388 = math.tanh %387 : vector<8x128xf32>
    %389 = vector.extract_strided_slice %374 {offsets = [0, 384], sizes = [8, 128], strides = [1, 1]} : vector<8x512xf32> to vector<8x128xf32>
    %390 = arith.negf %389 : vector<8x128xf32>
    %391 = math.exp %390 : vector<8x128xf32>
    %cst_103 = arith.constant 1.000000e+00 : f32
    %392 = vector.broadcast %cst_103 : f32 to vector<8x128xf32>
    %393 = arith.addf %392, %391 : vector<8x128xf32>
    %394 = arith.divf %392, %393 : vector<8x128xf32>
    %395 = arith.mulf %386, %334 : vector<8x128xf32>
    %396 = arith.mulf %380, %388 : vector<8x128xf32>
    %397 = arith.addf %395, %396 : vector<8x128xf32>
    %398 = math.tanh %397 : vector<8x128xf32>
    %399 = arith.mulf %394, %398 : vector<8x128xf32>
    %c5_104 = arith.constant 5 : index
    %c0_105 = arith.constant 0 : index
    %c0_106 = arith.constant 0 : index
    %400 = vector.load %arg18[%c5_104, %c0_105, %c0_106] : memref<8x8x128xf32, #tpu.memory_space<vmem>>, vector<1x8x128xf32>
    %401 = vector.shape_cast %400 : vector<1x8x128xf32> to vector<8x128xf32>
    %402 = vector.shape_cast %399 : vector<8x128xf32> to vector<1x8x128xf32>
    tpu.vector_store %arg18[%c5_104, %c0_105, %c0_106], %402 {strides = array<i32>} : memref<8x8x128xf32, #tpu.memory_space<vmem>>, vector<1x8x128xf32>,
    %c6 = arith.constant 6 : index
    %c0_107 = arith.constant 0 : index
    %c0_108 = arith.constant 0 : index
    %403 = vector.load %arg17[%c6, %c0_107, %c0_108] : memref<8x8x512xf32, #tpu.memory_space<vmem>>, vector<1x8x512xf32>
    %404 = vector.shape_cast %403 : vector<1x8x512xf32> to vector<8x512xf32>
    %405 = arith.truncf %370 : vector<8x128xf32> to vector<8x128xbf16>
    %cst_109 = arith.constant dense<0.000000e+00> : vector<8x512xf32>
    %406 = tpu.matmul %405, %9, %cst_109 {dimension_numbers = #tpu.dot_dimension_numbers<[1], [0], [0], [1], [0, 0, 1, 1], [], []>} : vector<8x128xbf16>, vector<128x512xbf16>, vector<8x512xf32> -> vector<8x512xf32>
    %407 = arith.addf %404, %406 : vector<8x512xf32>
    %408 = arith.addf %407, %13 : vector<8x512xf32>
    %409 = vector.extract_strided_slice %408 {offsets = [0, 0], sizes = [8, 128], strides = [1, 1]} : vector<8x512xf32> to vector<8x128xf32>
    %410 = arith.negf %409 : vector<8x128xf32>
    %411 = math.exp %410 : vector<8x128xf32>
    %cst_110 = arith.constant 1.000000e+00 : f32
    %412 = vector.broadcast %cst_110 : f32 to vector<8x128xf32>
    %413 = arith.addf %412, %411 : vector<8x128xf32>
    %414 = arith.divf %412, %413 : vector<8x128xf32>
    %415 = vector.extract_strided_slice %408 {offsets = [0, 128], sizes = [8, 128], strides = [1, 1]} : vector<8x512xf32> to vector<8x128xf32>
    %416 = arith.negf %415 : vector<8x128xf32>
    %417 = math.exp %416 : vector<8x128xf32>
    %cst_111 = arith.constant 1.000000e+00 : f32
    %418 = vector.broadcast %cst_111 : f32 to vector<8x128xf32>
    %419 = arith.addf %418, %417 : vector<8x128xf32>
    %420 = arith.divf %418, %419 : vector<8x128xf32>
    %421 = vector.extract_strided_slice %408 {offsets = [0, 256], sizes = [8, 128], strides = [1, 1]} : vector<8x512xf32> to vector<8x128xf32>
    %422 = math.tanh %421 : vector<8x128xf32>
    %423 = vector.extract_strided_slice %408 {offsets = [0, 384], sizes = [8, 128], strides = [1, 1]} : vector<8x512xf32> to vector<8x128xf32>
    %424 = arith.negf %423 : vector<8x128xf32>
    %425 = math.exp %424 : vector<8x128xf32>
    %cst_112 = arith.constant 1.000000e+00 : f32
    %426 = vector.broadcast %cst_112 : f32 to vector<8x128xf32>
    %427 = arith.addf %426, %425 : vector<8x128xf32>
    %428 = arith.divf %426, %427 : vector<8x128xf32>
    %429 = arith.mulf %420, %368 : vector<8x128xf32>
    %430 = arith.mulf %414, %422 : vector<8x128xf32>
    %431 = arith.addf %429, %430 : vector<8x128xf32>
    %432 = math.tanh %431 : vector<8x128xf32>
    %433 = arith.mulf %428, %432 : vector<8x128xf32>
    %434 = tpu.concatenate %433, %399 in 1 : vector<8x128xf32>, vector<8x128xf32> -> vector<8x256xf32>
    %435 = arith.truncf %434 : vector<8x256xf32> to vector<8x256xbf16>
    %cst_113 = arith.constant dense<0.000000e+00> : vector<8x512xf32>
    %436 = tpu.matmul %435, %10, %cst_113 {dimension_numbers = #tpu.dot_dimension_numbers<[1], [0], [0], [1], [0, 0, 1, 1], [], []>} : vector<8x256xbf16>, vector<256x512xbf16>, vector<8x512xf32> -> vector<8x512xf32>
    %437 = arith.addf %436, %16 : vector<8x512xf32>
    %438 = vector.extract_strided_slice %437 {offsets = [0, 0], sizes = [8, 128], strides = [1, 1]} : vector<8x512xf32> to vector<8x128xf32>
    %439 = arith.negf %438 : vector<8x128xf32>
    %440 = math.exp %439 : vector<8x128xf32>
    %cst_114 = arith.constant 1.000000e+00 : f32
    %441 = vector.broadcast %cst_114 : f32 to vector<8x128xf32>
    %442 = arith.addf %441, %440 : vector<8x128xf32>
    %443 = arith.divf %441, %442 : vector<8x128xf32>
    %444 = vector.extract_strided_slice %437 {offsets = [0, 128], sizes = [8, 128], strides = [1, 1]} : vector<8x512xf32> to vector<8x128xf32>
    %445 = arith.negf %444 : vector<8x128xf32>
    %446 = math.exp %445 : vector<8x128xf32>
    %cst_115 = arith.constant 1.000000e+00 : f32
    %447 = vector.broadcast %cst_115 : f32 to vector<8x128xf32>
    %448 = arith.addf %447, %446 : vector<8x128xf32>
    %449 = arith.divf %447, %448 : vector<8x128xf32>
    %450 = vector.extract_strided_slice %437 {offsets = [0, 256], sizes = [8, 128], strides = [1, 1]} : vector<8x512xf32> to vector<8x128xf32>
    %451 = math.tanh %450 : vector<8x128xf32>
    %452 = vector.extract_strided_slice %437 {offsets = [0, 384], sizes = [8, 128], strides = [1, 1]} : vector<8x512xf32> to vector<8x128xf32>
    %453 = arith.negf %452 : vector<8x128xf32>
    %454 = math.exp %453 : vector<8x128xf32>
    %cst_116 = arith.constant 1.000000e+00 : f32
    %455 = vector.broadcast %cst_116 : f32 to vector<8x128xf32>
    %456 = arith.addf %455, %454 : vector<8x128xf32>
    %457 = arith.divf %455, %456 : vector<8x128xf32>
    %458 = arith.mulf %449, %397 : vector<8x128xf32>
    %459 = arith.mulf %443, %451 : vector<8x128xf32>
    %460 = arith.addf %458, %459 : vector<8x128xf32>
    %461 = math.tanh %460 : vector<8x128xf32>
    %462 = arith.mulf %457, %461 : vector<8x128xf32>
    %c6_117 = arith.constant 6 : index
    %c0_118 = arith.constant 0 : index
    %c0_119 = arith.constant 0 : index
    %463 = vector.load %arg18[%c6_117, %c0_118, %c0_119] : memref<8x8x128xf32, #tpu.memory_space<vmem>>, vector<1x8x128xf32>
    %464 = vector.shape_cast %463 : vector<1x8x128xf32> to vector<8x128xf32>
    %465 = vector.shape_cast %462 : vector<8x128xf32> to vector<1x8x128xf32>
    tpu.vector_store %arg18[%c6_117, %c0_118, %c0_119], %465 {strides = array<i32>} : memref<8x8x128xf32, #tpu.memory_space<vmem>>, vector<1x8x128xf32>,
    %c7 = arith.constant 7 : index
    %c0_120 = arith.constant 0 : index
    %c0_121 = arith.constant 0 : index
    %466 = vector.load %arg17[%c7, %c0_120, %c0_121] : memref<8x8x512xf32, #tpu.memory_space<vmem>>, vector<1x8x512xf32>
    %467 = vector.shape_cast %466 : vector<1x8x512xf32> to vector<8x512xf32>
    %468 = arith.truncf %433 : vector<8x128xf32> to vector<8x128xbf16>
    %cst_122 = arith.constant dense<0.000000e+00> : vector<8x512xf32>
    %469 = tpu.matmul %468, %9, %cst_122 {dimension_numbers = #tpu.dot_dimension_numbers<[1], [0], [0], [1], [0, 0, 1, 1], [], []>} : vector<8x128xbf16>, vector<128x512xbf16>, vector<8x512xf32> -> vector<8x512xf32>
    %470 = arith.addf %467, %469 : vector<8x512xf32>
    %471 = arith.addf %470, %13 : vector<8x512xf32>
    %472 = vector.extract_strided_slice %471 {offsets = [0, 0], sizes = [8, 128], strides = [1, 1]} : vector<8x512xf32> to vector<8x128xf32>
    %473 = arith.negf %472 : vector<8x128xf32>
    %474 = math.exp %473 : vector<8x128xf32>
    %cst_123 = arith.constant 1.000000e+00 : f32
    %475 = vector.broadcast %cst_123 : f32 to vector<8x128xf32>
    %476 = arith.addf %475, %474 : vector<8x128xf32>
    %477 = arith.divf %475, %476 : vector<8x128xf32>
    %478 = vector.extract_strided_slice %471 {offsets = [0, 128], sizes = [8, 128], strides = [1, 1]} : vector<8x512xf32> to vector<8x128xf32>
    %479 = arith.negf %478 : vector<8x128xf32>
    %480 = math.exp %479 : vector<8x128xf32>
    %cst_124 = arith.constant 1.000000e+00 : f32
    %481 = vector.broadcast %cst_124 : f32 to vector<8x128xf32>
    %482 = arith.addf %481, %480 : vector<8x128xf32>
    %483 = arith.divf %481, %482 : vector<8x128xf32>
    %484 = vector.extract_strided_slice %471 {offsets = [0, 256], sizes = [8, 128], strides = [1, 1]} : vector<8x512xf32> to vector<8x128xf32>
    %485 = math.tanh %484 : vector<8x128xf32>
    %486 = vector.extract_strided_slice %471 {offsets = [0, 384], sizes = [8, 128], strides = [1, 1]} : vector<8x512xf32> to vector<8x128xf32>
    %487 = arith.negf %486 : vector<8x128xf32>
    %488 = math.exp %487 : vector<8x128xf32>
    %cst_125 = arith.constant 1.000000e+00 : f32
    %489 = vector.broadcast %cst_125 : f32 to vector<8x128xf32>
    %490 = arith.addf %489, %488 : vector<8x128xf32>
    %491 = arith.divf %489, %490 : vector<8x128xf32>
    %492 = arith.mulf %483, %431 : vector<8x128xf32>
    %493 = arith.mulf %477, %485 : vector<8x128xf32>
    %494 = arith.addf %492, %493 : vector<8x128xf32>
    %495 = math.tanh %494 : vector<8x128xf32>
    %496 = arith.mulf %491, %495 : vector<8x128xf32>
    %497 = tpu.concatenate %496, %462 in 1 : vector<8x128xf32>, vector<8x128xf32> -> vector<8x256xf32>
    %498 = arith.truncf %497 : vector<8x256xf32> to vector<8x256xbf16>
    %cst_126 = arith.constant dense<0.000000e+00> : vector<8x512xf32>
    %499 = tpu.matmul %498, %10, %cst_126 {dimension_numbers = #tpu.dot_dimension_numbers<[1], [0], [0], [1], [0, 0, 1, 1], [], []>} : vector<8x256xbf16>, vector<256x512xbf16>, vector<8x512xf32> -> vector<8x512xf32>
    %500 = arith.addf %499, %16 : vector<8x512xf32>
    %501 = vector.extract_strided_slice %500 {offsets = [0, 0], sizes = [8, 128], strides = [1, 1]} : vector<8x512xf32> to vector<8x128xf32>
    %502 = arith.negf %501 : vector<8x128xf32>
    %503 = math.exp %502 : vector<8x128xf32>
    %cst_127 = arith.constant 1.000000e+00 : f32
    %504 = vector.broadcast %cst_127 : f32 to vector<8x128xf32>
    %505 = arith.addf %504, %503 : vector<8x128xf32>
    %506 = arith.divf %504, %505 : vector<8x128xf32>
    %507 = vector.extract_strided_slice %500 {offsets = [0, 128], sizes = [8, 128], strides = [1, 1]} : vector<8x512xf32> to vector<8x128xf32>
    %508 = arith.negf %507 : vector<8x128xf32>
    %509 = math.exp %508 : vector<8x128xf32>
    %cst_128 = arith.constant 1.000000e+00 : f32
    %510 = vector.broadcast %cst_128 : f32 to vector<8x128xf32>
    %511 = arith.addf %510, %509 : vector<8x128xf32>
    %512 = arith.divf %510, %511 : vector<8x128xf32>
    %513 = vector.extract_strided_slice %500 {offsets = [0, 256], sizes = [8, 128], strides = [1, 1]} : vector<8x512xf32> to vector<8x128xf32>
    %514 = math.tanh %513 : vector<8x128xf32>
    %515 = vector.extract_strided_slice %500 {offsets = [0, 384], sizes = [8, 128], strides = [1, 1]} : vector<8x512xf32> to vector<8x128xf32>
    %516 = arith.negf %515 : vector<8x128xf32>
    %517 = math.exp %516 : vector<8x128xf32>
    %cst_129 = arith.constant 1.000000e+00 : f32
    %518 = vector.broadcast %cst_129 : f32 to vector<8x128xf32>
    %519 = arith.addf %518, %517 : vector<8x128xf32>
    %520 = arith.divf %518, %519 : vector<8x128xf32>
    %521 = arith.mulf %512, %460 : vector<8x128xf32>
    %522 = arith.mulf %506, %514 : vector<8x128xf32>
    %523 = arith.addf %521, %522 : vector<8x128xf32>
    %524 = math.tanh %523 : vector<8x128xf32>
    %525 = arith.mulf %520, %524 : vector<8x128xf32>
    %c7_130 = arith.constant 7 : index
    %c0_131 = arith.constant 0 : index
    %c0_132 = arith.constant 0 : index
    %526 = vector.load %arg18[%c7_130, %c0_131, %c0_132] : memref<8x8x128xf32, #tpu.memory_space<vmem>>, vector<1x8x128xf32>
    %527 = vector.shape_cast %526 : vector<1x8x128xf32> to vector<8x128xf32>
    %528 = vector.shape_cast %525 : vector<8x128xf32> to vector<1x8x128xf32>
    tpu.vector_store %arg18[%c7_130, %c0_131, %c0_132], %528 {strides = array<i32>} : memref<8x8x128xf32, #tpu.memory_space<vmem>>, vector<1x8x128xf32>,
    %c0_133 = arith.constant 0 : index
    %c0_134 = arith.constant 0 : index
    %c0_135 = arith.constant 0 : index
    %529 = vector.load %arg15[%c0_133, %c0_134, %c0_135] : memref<2x8x128xf32, #tpu.memory_space<vmem>>, vector<1x8x128xf32>
    %530 = vector.shape_cast %529 : vector<1x8x128xf32> to vector<8x128xf32>
    %531 = vector.shape_cast %496 : vector<8x128xf32> to vector<1x8x128xf32>
    tpu.vector_store %arg15[%c0_133, %c0_134, %c0_135], %531 {strides = array<i32>} : memref<2x8x128xf32, #tpu.memory_space<vmem>>, vector<1x8x128xf32>,
    %c1_136 = arith.constant 1 : index
    %c0_137 = arith.constant 0 : index
    %c0_138 = arith.constant 0 : index
    %532 = vector.load %arg15[%c1_136, %c0_137, %c0_138] : memref<2x8x128xf32, #tpu.memory_space<vmem>>, vector<1x8x128xf32>
    %533 = vector.shape_cast %532 : vector<1x8x128xf32> to vector<8x128xf32>
    %534 = vector.shape_cast %525 : vector<8x128xf32> to vector<1x8x128xf32>
    tpu.vector_store %arg15[%c1_136, %c0_137, %c0_138], %534 {strides = array<i32>} : memref<2x8x128xf32, #tpu.memory_space<vmem>>, vector<1x8x128xf32>,
    %c0_139 = arith.constant 0 : index
    %c0_140 = arith.constant 0 : index
    %c0_141 = arith.constant 0 : index
    %535 = vector.load %arg16[%c0_139, %c0_140, %c0_141] : memref<2x8x128xf32, #tpu.memory_space<vmem>>, vector<1x8x128xf32>
    %536 = vector.shape_cast %535 : vector<1x8x128xf32> to vector<8x128xf32>
    %537 = vector.shape_cast %494 : vector<8x128xf32> to vector<1x8x128xf32>
    tpu.vector_store %arg16[%c0_139, %c0_140, %c0_141], %537 {strides = array<i32>} : memref<2x8x128xf32, #tpu.memory_space<vmem>>, vector<1x8x128xf32>,
    %c1_142 = arith.constant 1 : index
    %c0_143 = arith.constant 0 : index
    %c0_144 = arith.constant 0 : index
    %538 = vector.load %arg16[%c1_142, %c0_143, %c0_144] : memref<2x8x128xf32, #tpu.memory_space<vmem>>, vector<1x8x128xf32>
    %539 = vector.shape_cast %538 : vector<1x8x128xf32> to vector<8x128xf32>
    %540 = vector.shape_cast %523 : vector<8x128xf32> to vector<1x8x128xf32>
    tpu.vector_store %arg16[%c1_142, %c0_143, %c0_144], %540 {strides = array<i32>} : memref<2x8x128xf32, #tpu.memory_space<vmem>>, vector<1x8x128xf32>,
    %c0_145 = arith.constant 0 : index
    %c0_146 = arith.constant 0 : index
    %c0_147 = arith.constant 0 : index
    %541 = vector.load %arg2[%c0_145, %c0_146, %c0_147] : memref<8x128x128xbf16, #tpu.memory_space<vmem>>, vector<8x128x128xbf16>
    %c0_148 = arith.constant 0 : index
    %c0_149 = arith.constant 0 : index
    %c0_150 = arith.constant 0 : index
    %542 = vector.load %arg3[%c0_148, %c0_149, %c0_150] : memref<8x1x128xf32, #tpu.memory_space<vmem>>, vector<8x1x128xf32>
    %c0_151 = arith.constant 0 : index
    %c0_152 = arith.constant 0 : index
    %c0_153 = arith.constant 0 : index
    %543 = vector.load %arg18[%c0_151, %c0_152, %c0_153] : memref<8x8x128xf32, #tpu.memory_space<vmem>>, vector<8x8x128xf32>
    %544 = tpu.transpose %543, [1, 0, 2] : vector<8x8x128xf32> -> vector<8x8x128xf32>
    %545 = vector.shape_cast %544 : vector<8x8x128xf32> to vector<64x128xf32>
    %546 = arith.truncf %545 : vector<64x128xf32> to vector<64x128xbf16>
    %c0_154 = arith.constant 0 : index
    %c0_155 = arith.constant 0 : index
    %547 = vector.load %arg11[%c0_154, %c0_155] : memref<128x128xbf16, #tpu.memory_space<vmem>>, vector<128x128xbf16>
    %cst_156 = arith.constant dense<0.000000e+00> : vector<64x128xf32>
    %548 = tpu.matmul %546, %547, %cst_156 {dimension_numbers = #tpu.dot_dimension_numbers<[1], [0], [0], [1], [0, 0, 1, 1], [], []>} : vector<64x128xbf16>, vector<128x128xbf16>, vector<64x128xf32> -> vector<64x128xf32>
    %549 = vector.shape_cast %548 : vector<64x128xf32> to vector<8x8x128xf32>
    %550 = arith.truncf %549 : vector<8x8x128xf32> to vector<8x8x128xbf16>
    "tpu.trace_start"() <{level = 10 : i32, message = "bth,bsh->bts"}> : () -> ()
    %cst_157 = arith.constant dense<0.000000e+00> : vector<8x8x128xf32>
    %551 = tpu.matmul %550, %541, %cst_157 {dimension_numbers = #tpu.dot_dimension_numbers<[2], [2], [1], [1], [0, 0, 0, 1, 1, 1], [0], [0]>} : vector<8x8x128xbf16>, vector<8x128x128xbf16>, vector<8x8x128xf32> -> vector<8x8x128xf32>
    "tpu.trace_stop"() : () -> ()
    %552 = vector.broadcast %542 : vector<8x1x128xf32> to vector<8x8x128xf32>
    %553 = arith.addf %551, %552 : vector<8x8x128xf32>
    %cst_158 = arith.constant dense<0xFF800000> : vector<8x8xf32>
    %554 = vector.multi_reduction <maximumf>, %553, %cst_158 [2] : vector<8x8x128xf32> to vector<8x8xf32>
    %555 = vector.shape_cast %554 : vector<8x8xf32> to vector<8x8x1xf32>
    %556 = vector.broadcast %555 : vector<8x8x1xf32> to vector<8x8x128xf32>
    %557 = arith.subf %553, %556 : vector<8x8x128xf32>
    %558 = math.exp %557 : vector<8x8x128xf32>
    %cst_159 = arith.constant dense<0.000000e+00> : vector<8x8xf32>
    %559 = vector.multi_reduction <add>, %558, %cst_159 [2] : vector<8x8x128xf32> to vector<8x8xf32>
    %560 = vector.shape_cast %559 : vector<8x8xf32> to vector<8x8x1xf32>
    %561 = tpu.reciprocal %560 {approx = true} : vector<8x8x1xf32> -> vector<8x8x1xf32>
    %562 = vector.broadcast %561 : vector<8x8x1xf32> to vector<8x8x128xf32>
    %563 = arith.mulf %558, %562 : vector<8x8x128xf32>
    %564 = arith.truncf %563 : vector<8x8x128xf32> to vector<8x8x128xbf16>
    "tpu.trace_start"() <{level = 10 : i32, message = "bts,bsh->bth"}> : () -> ()
    %cst_160 = arith.constant dense<0.000000e+00> : vector<8x8x128xf32>
    %565 = tpu.matmul %564, %541, %cst_160 {dimension_numbers = #tpu.dot_dimension_numbers<[2], [1], [1], [2], [0, 0, 0, 1, 1, 2], [0], [0]>} : vector<8x8x128xbf16>, vector<8x128x128xbf16>, vector<8x8x128xf32> -> vector<8x8x128xf32>
    "tpu.trace_stop"() : () -> ()
    %566 = tpu.concatenate %565, %544 in 2 : vector<8x8x128xf32>, vector<8x8x128xf32> -> vector<8x8x256xf32>
    %567 = vector.shape_cast %566 : vector<8x8x256xf32> to vector<64x256xf32>
    %568 = arith.truncf %567 : vector<64x256xf32> to vector<64x256xbf16>
    %c0_161 = arith.constant 0 : index
    %c0_162 = arith.constant 0 : index
    %569 = vector.load %arg12[%c0_161, %c0_162] : memref<256x128xbf16, #tpu.memory_space<vmem>>, vector<256x128xbf16>
    %cst_163 = arith.constant dense<0.000000e+00> : vector<64x128xf32>
    %570 = tpu.matmul %568, %569, %cst_163 {dimension_numbers = #tpu.dot_dimension_numbers<[1], [0], [0], [1], [0, 0, 1, 1], [], []>} : vector<64x256xbf16>, vector<256x128xbf16>, vector<64x128xf32> -> vector<64x128xf32>
    %571 = math.tanh %570 : vector<64x128xf32>
    %572 = vector.shape_cast %571 : vector<64x128xf32> to vector<8x8x128xf32>
    %573 = tpu.transpose %572, [1, 0, 2] : vector<8x8x128xf32> -> vector<8x8x128xf32>
    %c0_164 = arith.constant 0 : index
    %c0_165 = arith.constant 0 : index
    %c0_166 = arith.constant 0 : index
    %574 = vector.load %arg13[%c0_164, %c0_165, %c0_166] : memref<8x8x128xf32, #tpu.memory_space<vmem>>, vector<8x8x128xf32>
    tpu.vector_store %arg13[%c0_164, %c0_165, %c0_166], %573 {strides = array<i32>} : memref<8x8x128xf32, #tpu.memory_space<vmem>>, vector<8x8x128xf32>,
    %575 = tpu.transpose %563, [1, 0, 2] : vector<8x8x128xf32> -> vector<8x8x128xf32>
    %c0_167 = arith.constant 0 : index
    %c0_168 = arith.constant 0 : index
    %c0_169 = arith.constant 0 : index
    %576 = vector.load %arg14[%c0_167, %c0_168, %c0_169] : memref<8x8x128xf32, #tpu.memory_space<vmem>>, vector<8x8x128xf32>
    tpu.vector_store %arg14[%c0_167, %c0_168, %c0_169], %575 {strides = array<i32>} : memref<8x8x128xf32, #tpu.memory_space<vmem>>, vector<8x8x128xf32>,
    return
  }
  func.func @transform_0(%arg0: i32) -> (i32, i32, i32) {
    %c0_i32 = arith.constant 0 : i32
    %c0_i32_0 = arith.constant 0 : i32
    %c0_i32_1 = arith.constant 0 : i32
    return %arg0, %c0_i32, %c0_i32_0 : i32, i32, i32
  }
  func.func @transform_1(%arg0: i32) -> (i32, i32, i32) {
    %c0_i32 = arith.constant 0 : i32
    %c0_i32_0 = arith.constant 0 : i32
    %c0_i32_1 = arith.constant 0 : i32
    %c0_i32_2 = arith.constant 0 : i32
    return %c0_i32, %c0_i32_0, %c0_i32_1 : i32, i32, i32
  }
  func.func @transform_2(%arg0: i32) -> (i32, i32, i32) {
    %c0_i32 = arith.constant 0 : i32
    %c0_i32_0 = arith.constant 0 : i32
    %c0_i32_1 = arith.constant 0 : i32
    %c0_i32_2 = arith.constant 0 : i32
    return %c0_i32, %c0_i32_0, %c0_i32_1 : i32, i32, i32
  }
  func.func @transform_3(%arg0: i32) -> (i32, i32, i32) {
    %c0_i32 = arith.constant 0 : i32
    %c0_i32_0 = arith.constant 0 : i32
    %c0_i32_1 = arith.constant 0 : i32
    %c0_i32_2 = arith.constant 0 : i32
    return %c0_i32, %c0_i32_0, %c0_i32_1 : i32, i32, i32
  }
  func.func @transform_4(%arg0: i32) -> (i32, i32, i32) {
    %c0_i32 = arith.constant 0 : i32
    %c0_i32_0 = arith.constant 0 : i32
    %c0_i32_1 = arith.constant 0 : i32
    %c0_i32_2 = arith.constant 0 : i32
    return %c0_i32, %c0_i32_0, %c0_i32_1 : i32, i32, i32
  }
  func.func @transform_5(%arg0: i32) -> (i32, i32) {
    %c0_i32 = arith.constant 0 : i32
    %c0_i32_0 = arith.constant 0 : i32
    %c0_i32_1 = arith.constant 0 : i32
    return %c0_i32, %c0_i32_0 : i32, i32
  }
  func.func @transform_6(%arg0: i32) -> (i32, i32) {
    %c0_i32 = arith.constant 0 : i32
    %c0_i32_0 = arith.constant 0 : i32
    %c0_i32_1 = arith.constant 0 : i32
    return %c0_i32, %c0_i32_0 : i32, i32
  }
  func.func @transform_7(%arg0: i32) -> (i32, i32) {
    %c0_i32 = arith.constant 0 : i32
    %c0_i32_0 = arith.constant 0 : i32
    %c0_i32_1 = arith.constant 0 : i32
    return %c0_i32, %c0_i32_0 : i32, i32
  }
  func.func @transform_8(%arg0: i32) -> (i32, i32) {
    %c0_i32 = arith.constant 0 : i32
    %c0_i32_0 = arith.constant 0 : i32
    %c0_i32_1 = arith.constant 0 : i32
    return %c0_i32, %c0_i32_0 : i32, i32
  }
  func.func @transform_9(%arg0: i32) -> (i32, i32) {
    %c0_i32 = arith.constant 0 : i32
    %c0_i32_0 = arith.constant 0 : i32
    %c0_i32_1 = arith.constant 0 : i32
    return %c0_i32, %c0_i32_0 : i32, i32
  }
  func.func @transform_10(%arg0: i32) -> (i32, i32) {
    %c0_i32 = arith.constant 0 : i32
    %c0_i32_0 = arith.constant 0 : i32
    %c0_i32_1 = arith.constant 0 : i32
    return %c0_i32, %c0_i32_0 : i32, i32
  }
  func.func @transform_11(%arg0: i32) -> (i32, i32) {
    %c0_i32 = arith.constant 0 : i32
    %c0_i32_0 = arith.constant 0 : i32
    %c0_i32_1 = arith.constant 0 : i32
    return %c0_i32, %c0_i32_0 : i32, i32
  }
  func.func @transform_12(%arg0: i32) -> (i32, i32, i32) {
    %c0_i32 = arith.constant 0 : i32
    %c0_i32_0 = arith.constant 0 : i32
    %c0_i32_1 = arith.constant 0 : i32
    return %arg0, %c0_i32, %c0_i32_0 : i32, i32, i32
  }
  func.func @transform_13(%arg0: i32) -> (i32, i32, i32) {
    %c0_i32 = arith.constant 0 : i32
    %c0_i32_0 = arith.constant 0 : i32
    %c0_i32_1 = arith.constant 0 : i32
    return %arg0, %c0_i32, %c0_i32_0 : i32, i32, i32
  }
  func.func @transform_14(%arg0: i32) -> (i32, i32, i32) {
    %c0_i32 = arith.constant 0 : i32
    %c0_i32_0 = arith.constant 0 : i32
    %c0_i32_1 = arith.constant 0 : i32
    %c0_i32_2 = arith.constant 0 : i32
    return %c0_i32, %c0_i32_0, %c0_i32_1 : i32, i32, i32
  }
  func.func @transform_15(%arg0: i32) -> (i32, i32, i32) {
    %c0_i32 = arith.constant 0 : i32
    %c0_i32_0 = arith.constant 0 : i32
    %c0_i32_1 = arith.constant 0 : i32
    %c0_i32_2 = arith.constant 0 : i32
    return %c0_i32, %c0_i32_0, %c0_i32_1 : i32, i32, i32
  }
}

</mosaic_0001>

<llo_original>
// kernel: rnn_decoder_forward.1
$region0: #{rnn_decoder_forward.1}
  #allocation0 [shape = 'u32[]', space=smem, size = 0x4, offset = 0x4, fixed_abs, tag = 'smem constant byte address 0x4 - core index']
  #allocation1 [shape = 'u32[144,128]{1,0:T(1,128)}', space=vmem, size = 0x12000, scoped, tag = 'internal scratch']
  #allocation2 [shape = 'f32[8,8,512]{2,1,0:T(8,128)}', space=vmem, size = 0x20000, scoped, tag = 'scratch operand']
  #allocation3 [shape = 'f32[8,8,128]{2,1,0:T(8,128)}', space=vmem, size = 0x8000, scoped, tag = 'scratch operand']
  %s0 = inlined_call_operand.vmem [shape: bf16[16,8,128], index: 0, kind: input, shape index: {}]
  %s1 = inlined_call_operand.vmem [shape: bf16[8,128,128], index: 1, kind: input, shape index: {}]
  %s2 = inlined_call_operand.vmem [shape: f32[8,1,128], index: 2, kind: input, shape index: {}]
  %s3 = inlined_call_operand.vmem [shape: f32[2,8,128], index: 3, kind: input, shape index: {}]
  %s4 = inlined_call_operand.vmem [shape: f32[2,8,128], index: 4, kind: input, shape index: {}]
  %s5 = inlined_call_operand.vmem [shape: bf16[128,512], index: 5, kind: input, shape index: {}]
  %s6 = inlined_call_operand.vmem [shape: bf16[128,512], index: 6, kind: input, shape index: {}]
  %s7 = inlined_call_operand.vmem [shape: f32[1,512], index: 7, kind: input, shape index: {}]
  %s8 = inlined_call_operand.vmem [shape: bf16[256,512], index: 8, kind: input, shape index: {}]
  %s9 = inlined_call_operand.vmem [shape: f32[1,512], index: 9, kind: input, shape index: {}]
  %s10 = inlined_call_operand.vmem [shape: bf16[128,128], index: 10, kind: input, shape index: {}]
  %s11 = inlined_call_operand.vmem [shape: bf16[256,128], index: 11, kind: input, shape index: {}]
  %s12 = inlined_call_operand.hbm [shape: f32[16,8,128], index: 12, kind: output, shape index: {0}]
  %s13 = inlined_call_operand.hbm [shape: f32[16,8,128], index: 13, kind: output, shape index: {1}]
  %s14 = inlined_call_operand.hbm [shape: f32[2,8,128], index: 14, kind: output, shape index: {2}]
  %s15 = inlined_call_operand.hbm [shape: f32[2,8,128], index: 15, kind: output, shape index: {3}]
  %16 = xla_tuple %s12, %s13, %s14, %s15
  %s17 = sld [smem:[#allocation0]]
  $region109: #{rnn_decoder_forward.1} parent=0
    _
  %s19 = ssub.s32 1, %s17
  %s20 = scalar_select 0, %s19, %s17
  $region1: #{rnn_decoder_forward.1} parent=0
    #allocation4 [shape = 'u8[65536]{0}', space=vmem, size = 0x10000, scoped, tag = 'output window, operand 0']
    #allocation5 [shape = 's32[2]{0}', space=sflag, size = 0x8, scoped, tag = 'scoped memory for rnn_decoder_forward.1']
    #allocation6 [shape = 'u8[65536]{0}', space=vmem, size = 0x10000, scoped, tag = 'output window, operand 1']
    #allocation7 [shape = 's32[2]{0}', space=sflag, size = 0x8, scoped, tag = 'scoped memory for rnn_decoder_forward.1']
    #allocation8 [shape = 'u8[8192]{0}', space=vmem, size = 0x2000, scoped, tag = 'output window, operand 2, single buffered']
    #allocation9 [shape = 'u8[8192]{0}', space=vmem, size = 0x2000, scoped, tag = 'output window, operand 3, single buffered']
    #allocation10 [shape = 's32[1]{0}', space=sflag, size = 0x4, scoped, tag = 'scoped memory for rnn_decoder_forward.1']
    %21 = vsyncpa [#allocation5], 0
    %s22 = scalar_lea.sflag [#allocation5], 1
    %23 = vsyncpa %s22, 0
    %24 = vsyncpa [#allocation7], 0
    %s25 = scalar_lea.sflag [#allocation7], 1
    %26 = vsyncpa %s25, 0
    %27 = vsyncpa [#allocation10], 0
    loop: start=0, step=1, limit=4
    $region2: #{rnn_decoder_forward.1} parent=1 // loop_pre_header
      _
    $region3: #{rnn_decoder_forward.1} parent=1 // loop_header
      %s29 = sphi 0, %s33
      %p30 = scmp.ge.s32.totalorder %s29, 4
      %s39 = sphi 0, %s41
      %s42 = sphi 0, %s39
      %s43 = sphi 0, %s42
      %s59 = sphi 0, %s43
      %s63 = sphi 0, %s63
      %s65 = sphi 0, %s63
      %s66 = sphi 0, %s65
      %s80 = sphi 0, %s66
      %s84 = sphi 0, %s84
      %s86 = sphi 0, %s84
      %s87 = sphi 0, %s86
      %s101 = sphi 0, %s87
      %s105 = sphi 0, %s105
      %s107 = sphi 0, %s105
      %s108 = sphi 0, %s107
      %s122 = sphi 0, %s108
      %s126 = sphi 0, %s126
      %s128 = sphi 0, %s126
      %s129 = sphi 0, %s128
      %s143 = sphi 0, %s129
      %s147 = sphi 0, %s147
      %s149 = sphi 0, %s147
      %s150 = sphi 0, %s149
      %s164 = sphi 0, %s150
      %s168 = sphi 0, %s168
      %s170 = sphi 0, %s168
      %s171 = sphi 0, %s170
      %s185 = sphi 0, %s171
      %s189 = sphi 0, %s189
      %s191 = sphi 0, %s189
      %s192 = sphi 0, %s191
      %s206 = sphi 0, %s192
      %s210 = sphi 0, %s210
      %s212 = sphi 0, %s210
      %s213 = sphi 0, %s212
      %s227 = sphi 0, %s213
      %s231 = sphi 0, %s231
      %s233 = sphi 0, %s231
      %s234 = sphi 0, %s233
      %s248 = sphi 0, %s234
      %s252 = sphi 0, %s252
      %s254 = sphi 0, %s252
      %s255 = sphi 0, %s254
      %s269 = sphi 0, %s255
      %s273 = sphi 0, %s273
      %s275 = sphi 0, %s273
      %s276 = sphi 0, %s275
      %s290 = sphi 0, %s276
      %s296 = sphi 0, %s298
      %s299 = sphi 0, %s296
      %s300 = sphi 0, %s299
      %s316 = sphi 0, %s300
      %s322 = sphi 0, %s324
      %s325 = sphi 0, %s322
      %s326 = sphi 0, %s325
      %s342 = sphi 0, %s326
      %s346 = sphi 0, %s346
      %s348 = sphi 0, %s346
      %s349 = sphi 0, %s348
      %s363 = sphi 0, %s349
      %s367 = sphi 0, %s367
      %s369 = sphi 0, %s367
      %s370 = sphi 0, %s369
      %s384 = sphi 0, %s370
    $region4: #{rnn_decoder_forward.1} parent=1 // loop_header_branch
      %32 = sbr.rel (%p30) target = $region8
    $region5: #{rnn_decoder_forward.1} parent=1 // loop_body
      %s34 = ssub.s32 %s29, 1
      %s35 = ssub.s32 %s29, 2
      %s36 = sadd.s32 %s29, 1
      %s37 = ssub.s32 %s29, %s36
      %p38 = scmp.eq.s32.totalorder %s37, 0
      %s40 = sadd.s32 %s39, 1
      %s41 = scalar_select %p38, %s39, %s40
      %p44 = pneg %p38
      %p45 = scmp.eq.s32.totalorder %s29, 1
      %p46 = por %p44, %p45
      %p47 = scmp.ne.s32.totalorder %s39, %s42
      %p48 = scmp.eq.s32.totalorder %s29, 0
      %p49 = por %p47, %p48
      %p50 = scmp.ne.s32.totalorder %s39, %s42
      %p51 = scmp.eq.s32.totalorder %s34, 1
      %p52 = por %p50, %p51
      %p53 = scmp.ne.s32.totalorder %s42, %s43
      %p54 = scmp.eq.s32.totalorder %s34, 0
      %p55 = por %p53, %p54
      %p56 = scmp.ne.s32.totalorder %s42, %s43
      %p57 = scmp.eq.s32.totalorder %s35, 1
      %p58 = por %p56, %p57
      %p60 = scmp.ne.s32.totalorder %s43, %s59
      %p61 = scmp.eq.s32.totalorder %s35, 0
      %p62 = por %p60, %p61
      %s64 = sadd.s32 %s63, 1
      %p67 = scmp.eq.s32.totalorder %s29, 1
      %p68 = scmp.ne.s32.totalorder %s63, %s65
      %p69 = scmp.eq.s32.totalorder %s29, 0
      %p70 = por %p68, %p69
      %p71 = scmp.ne.s32.totalorder %s63, %s65
      %p72 = scmp.eq.s32.totalorder %s34, 1
      %p73 = por %p71, %p72
      %p74 = scmp.ne.s32.totalorder %s65, %s66
      %p75 = scmp.eq.s32.totalorder %s34, 0
      %p76 = por %p74, %p75
      %p77 = scmp.ne.s32.totalorder %s65, %s66
      %p78 = scmp.eq.s32.totalorder %s35, 1
      %p79 = por %p77, %p78
      %p81 = scmp.ne.s32.totalorder %s66, %s80
      %p82 = scmp.eq.s32.totalorder %s35, 0
      %p83 = por %p81, %p82
      %s85 = sadd.s32 %s84, 1
      %p88 = scmp.eq.s32.totalorder %s29, 1
      %p89 = scmp.ne.s32.totalorder %s84, %s86
      %p90 = scmp.eq.s32.totalorder %s29, 0
      %p91 = por %p89, %p90
      %p92 = scmp.ne.s32.totalorder %s84, %s86
      %p93 = scmp.eq.s32.totalorder %s34, 1
      %p94 = por %p92, %p93
      %p95 = scmp.ne.s32.totalorder %s86, %s87
      %p96 = scmp.eq.s32.totalorder %s34, 0
      %p97 = por %p95, %p96
      %p98 = scmp.ne.s32.totalorder %s86, %s87
      %p99 = scmp.eq.s32.totalorder %s35, 1
      %p100 = por %p98, %p99
      %p102 = scmp.ne.s32.totalorder %s87, %s101
      %p103 = scmp.eq.s32.totalorder %s35, 0
      %p104 = por %p102, %p103
      %s106 = sadd.s32 %s105, 1
      %p109 = scmp.eq.s32.totalorder %s29, 1
      %p110 = scmp.ne.s32.totalorder %s105, %s107
      %p111 = scmp.eq.s32.totalorder %s29, 0
      %p112 = por %p110, %p111
      %p113 = scmp.ne.s32.totalorder %s105, %s107
      %p114 = scmp.eq.s32.totalorder %s34, 1
      %p115 = por %p113, %p114
      %p116 = scmp.ne.s32.totalorder %s107, %s108
      %p117 = scmp.eq.s32.totalorder %s34, 0
      %p118 = por %p116, %p117
      %p119 = scmp.ne.s32.totalorder %s107, %s108
      %p120 = scmp.eq.s32.totalorder %s35, 1
      %p121 = por %p119, %p120
      %p123 = scmp.ne.s32.totalorder %s108, %s122
      %p124 = scmp.eq.s32.totalorder %s35, 0
      %p125 = por %p123, %p124
      %s127 = sadd.s32 %s126, 1
      %p130 = scmp.eq.s32.totalorder %s29, 1
      %p131 = scmp.ne.s32.totalorder %s126, %s128
      %p132 = scmp.eq.s32.totalorder %s29, 0
      %p133 = por %p131, %p132
      %p134 = scmp.ne.s32.totalorder %s126, %s128
      %p135 = scmp.eq.s32.totalorder %s34, 1
      %p136 = por %p134, %p135
      %p137 = scmp.ne.s32.totalorder %s128, %s129
      %p138 = scmp.eq.s32.totalorder %s34, 0
      %p139 = por %p137, %p138
      %p140 = scmp.ne.s32.totalorder %s128, %s129
      %p141 = scmp.eq.s32.totalorder %s35, 1
      %p142 = por %p140, %p141
      %p144 = scmp.ne.s32.totalorder %s129, %s143
      %p145 = scmp.eq.s32.totalorder %s35, 0
      %p146 = por %p144, %p145
      %s148 = sadd.s32 %s147, 1
      %p151 = scmp.eq.s32.totalorder %s29, 1
      %p152 = scmp.ne.s32.totalorder %s147, %s149
      %p153 = scmp.eq.s32.totalorder %s29, 0
      %p154 = por %p152, %p153
      %p155 = scmp.ne.s32.totalorder %s147, %s149
      %p156 = scmp.eq.s32.totalorder %s34, 1
      %p157 = por %p155, %p156
      %p158 = scmp.ne.s32.totalorder %s149, %s150
      %p159 = scmp.eq.s32.totalorder %s34, 0
      %p160 = por %p158, %p159
      %p161 = scmp.ne.s32.totalorder %s149, %s150
      %p162 = scmp.eq.s32.totalorder %s35, 1
      %p163 = por %p161, %p162
      %p165 = scmp.ne.s32.totalorder %s150, %s164
      %p166 = scmp.eq.s32.totalorder %s35, 0
      %p167 = por %p165, %p166
      %s169 = sadd.s32 %s168, 1
      %p172 = scmp.eq.s32.totalorder %s29, 1
      %p173 = scmp.ne.s32.totalorder %s168, %s170
      %p174 = scmp.eq.s32.totalorder %s29, 0
      %p175 = por %p173, %p174
      %p176 = scmp.ne.s32.totalorder %s168, %s170
      %p177 = scmp.eq.s32.totalorder %s34, 1
      %p178 = por %p176, %p177
      %p179 = scmp.ne.s32.totalorder %s170, %s171
      %p180 = scmp.eq.s32.totalorder %s34, 0
      %p181 = por %p179, %p180
      %p182 = scmp.ne.s32.totalorder %s170, %s171
      %p183 = scmp.eq.s32.totalorder %s35, 1
      %p184 = por %p182, %p183
      %p186 = scmp.ne.s32.totalorder %s171, %s185
      %p187 = scmp.eq.s32.totalorder %s35, 0
      %p188 = por %p186, %p187
      %s190 = sadd.s32 %s189, 1
      %p193 = scmp.eq.s32.totalorder %s29, 1
      %p194 = scmp.ne.s32.totalorder %s189, %s191
      %p195 = scmp.eq.s32.totalorder %s29, 0
      %p196 = por %p194, %p195
      %p197 = scmp.ne.s32.totalorder %s189, %s191
      %p198 = scmp.eq.s32.totalorder %s34, 1
      %p199 = por %p197, %p198
      %p200 = scmp.ne.s32.totalorder %s191, %s192
      %p201 = scmp.eq.s32.totalorder %s34, 0
      %p202 = por %p200, %p201
      %p203 = scmp.ne.s32.totalorder %s191, %s192
      %p204 = scmp.eq.s32.totalorder %s35, 1
      %p205 = por %p203, %p204
      %p207 = scmp.ne.s32.totalorder %s192, %s206
      %p208 = scmp.eq.s32.totalorder %s35, 0
      %p209 = por %p207, %p208
      %s211 = sadd.s32 %s210, 1
      %p214 = scmp.eq.s32.totalorder %s29, 1
      %p215 = scmp.ne.s32.totalorder %s210, %s212
      %p216 = scmp.eq.s32.totalorder %s29, 0
      %p217 = por %p215, %p216
      %p218 = scmp.ne.s32.totalorder %s210, %s212
      %p219 = scmp.eq.s32.totalorder %s34, 1
      %p220 = por %p218, %p219
      %p221 = scmp.ne.s32.totalorder %s212, %s213
      %p222 = scmp.eq.s32.totalorder %s34, 0
      %p223 = por %p221, %p222
      %p224 = scmp.ne.s32.totalorder %s212, %s213
      %p225 = scmp.eq.s32.totalorder %s35, 1
      %p226 = por %p224, %p225
      %p228 = scmp.ne.s32.totalorder %s213, %s227
      %p229 = scmp.eq.s32.totalorder %s35, 0
      %p230 = por %p228, %p229
      %s232 = sadd.s32 %s231, 1
      %p235 = scmp.eq.s32.totalorder %s29, 1
      %p236 = scmp.ne.s32.totalorder %s231, %s233
      %p237 = scmp.eq.s32.totalorder %s29, 0
      %p238 = por %p236, %p237
      %p239 = scmp.ne.s32.totalorder %s231, %s233
      %p240 = scmp.eq.s32.totalorder %s34, 1
      %p241 = por %p239, %p240
      %p242 = scmp.ne.s32.totalorder %s233, %s234
      %p243 = scmp.eq.s32.totalorder %s34, 0
      %p244 = por %p242, %p243
      %p245 = scmp.ne.s32.totalorder %s233, %s234
      %p246 = scmp.eq.s32.totalorder %s35, 1
      %p247 = por %p245, %p246
      %p249 = scmp.ne.s32.totalorder %s234, %s248
      %p250 = scmp.eq.s32.totalorder %s35, 0
      %p251 = por %p249, %p250
      %s253 = sadd.s32 %s252, 1
      %p256 = scmp.eq.s32.totalorder %s29, 1
      %p257 = scmp.ne.s32.totalorder %s252, %s254
      %p258 = scmp.eq.s32.totalorder %s29, 0
      %p259 = por %p257, %p258
      %p260 = scmp.ne.s32.totalorder %s252, %s254
      %p261 = scmp.eq.s32.totalorder %s34, 1
      %p262 = por %p260, %p261
      %p263 = scmp.ne.s32.totalorder %s254, %s255
      %p264 = scmp.eq.s32.totalorder %s34, 0
      %p265 = por %p263, %p264
      %p266 = scmp.ne.s32.totalorder %s254, %s255
      %p267 = scmp.eq.s32.totalorder %s35, 1
      %p268 = por %p266, %p267
      %p270 = scmp.ne.s32.totalorder %s255, %s269
      %p271 = scmp.eq.s32.totalorder %s35, 0
      %p272 = por %p270, %p271
      %s274 = sadd.s32 %s273, 1
      %p277 = scmp.eq.s32.totalorder %s29, 1
      %p278 = scmp.ne.s32.totalorder %s273, %s275
      %p279 = scmp.eq.s32.totalorder %s29, 0
      %p280 = por %p278, %p279
      %p281 = scmp.ne.s32.totalorder %s273, %s275
      %p282 = scmp.eq.s32.totalorder %s34, 1
      %p283 = por %p281, %p282
      %p284 = scmp.ne.s32.totalorder %s275, %s276
      %p285 = scmp.eq.s32.totalorder %s34, 0
      %p286 = por %p284, %p285
      %p287 = scmp.ne.s32.totalorder %s275, %s276
      %p288 = scmp.eq.s32.totalorder %s35, 1
      %p289 = por %p287, %p288
      %p291 = scmp.ne.s32.totalorder %s276, %s290
      %p292 = scmp.eq.s32.totalorder %s35, 0
      %p293 = por %p291, %p292
      %s294 = ssub.s32 %s29, %s36
      %p295 = scmp.eq.s32.totalorder %s294, 0
      %s297 = sadd.s32 %s296, 1
      %s298 = scalar_select %p295, %s296, %s297
      %p301 = pneg %p295
      %p302 = scmp.eq.s32.totalorder %s29, 1
      %p303 = por %p301, %p302
      %p304 = scmp.ne.s32.totalorder %s296, %s299
      %p305 = scmp.eq.s32.totalorder %s29, 0
      %p306 = por %p304, %p305
      %p307 = scmp.ne.s32.totalorder %s296, %s299
      %p308 = scmp.eq.s32.totalorder %s34, 1
      %p309 = por %p307, %p308
      %p310 = scmp.ne.s32.totalorder %s299, %s300
      %p311 = scmp.eq.s32.totalorder %s34, 0
      %p312 = por %p310, %p311
      %p313 = scmp.ne.s32.totalorder %s299, %s300
      %p314 = scmp.eq.s32.totalorder %s35, 1
      %p315 = por %p313, %p314
      %p317 = scmp.ne.s32.totalorder %s300, %s316
      %p318 = scmp.eq.s32.totalorder %s35, 0
      %p319 = por %p317, %p318
      %s320 = ssub.s32 %s29, %s36
      %p321 = scmp.eq.s32.totalorder %s320, 0
      %s323 = sadd.s32 %s322, 1
      %s324 = scalar_select %p321, %s322, %s323
      %p327 = pneg %p321
      %p328 = scmp.eq.s32.totalorder %s29, 1
      %p329 = por %p327, %p328
      %p330 = scmp.ne.s32.totalorder %s322, %s325
      %p331 = scmp.eq.s32.totalorder %s29, 0
      %p332 = por %p330, %p331
      %p333 = scmp.ne.s32.totalorder %s322, %s325
      %p334 = scmp.eq.s32.totalorder %s34, 1
      %p335 = por %p333, %p334
      %p336 = scmp.ne.s32.totalorder %s325, %s326
      %p337 = scmp.eq.s32.totalorder %s34, 0
      %p338 = por %p336, %p337
      %p339 = scmp.ne.s32.totalorder %s325, %s326
      %p340 = scmp.eq.s32.totalorder %s35, 1
      %p341 = por %p339, %p340
      %p343 = scmp.ne.s32.totalorder %s326, %s342
      %p344 = scmp.eq.s32.totalorder %s35, 0
      %p345 = por %p343, %p344
      %s347 = sadd.s32 %s346, 1
      %p350 = scmp.eq.s32.totalorder %s29, 1
      %p351 = scmp.ne.s32.totalorder %s346, %s348
      %p352 = scmp.eq.s32.totalorder %s29, 0
      %p353 = por %p351, %p352
      %p354 = scmp.ne.s32.totalorder %s346, %s348
      %p355 = scmp.eq.s32.totalorder %s34, 1
      %p356 = por %p354, %p355
      %p357 = scmp.ne.s32.totalorder %s348, %s349
      %p358 = scmp.eq.s32.totalorder %s34, 0
      %p359 = por %p357, %p358
      %p360 = scmp.ne.s32.totalorder %s348, %s349
      %p361 = scmp.eq.s32.totalorder %s35, 1
      %p362 = por %p360, %p361
      %p364 = scmp.ne.s32.totalorder %s349, %s363
      %p365 = scmp.eq.s32.totalorder %s35, 0
      %p366 = por %p364, %p365
      %s368 = sadd.s32 %s367, 1
      %p371 = scmp.eq.s32.totalorder %s29, 1
      %p372 = scmp.ne.s32.totalorder %s367, %s369
      %p373 = scmp.eq.s32.totalorder %s29, 0
      %p374 = por %p372, %p373
      %p375 = scmp.ne.s32.totalorder %s367, %s369
      %p376 = scmp.eq.s32.totalorder %s34, 1
      %p377 = por %p375, %p376
      %p378 = scmp.ne.s32.totalorder %s369, %s370
      %p379 = scmp.eq.s32.totalorder %s34, 0
      %p380 = por %p378, %p379
      %p381 = scmp.ne.s32.totalorder %s369, %s370
      %p382 = scmp.eq.s32.totalorder %s35, 1
      %p383 = por %p381, %p382
      %p385 = scmp.ne.s32.totalorder %s370, %s384
      %p386 = scmp.eq.s32.totalorder %s35, 0
      %p387 = por %p385, %p386
      %p388 = scmp.le.s32.totalorder 1, %s29
      %p389 = scmp.lt.s32.totalorder %s29, 3
      %p390 = pnand %p388, %p389
      %p391 = pneg %p390
      // Predicated region
      $region9: #{rnn_decoder_forward.1} parent=5 // pred_check
        _
      $region10: #{rnn_decoder_forward.1} parent=5 // pred_check_branch
        %393 = sbr.rel (%p390) target = $region12
      $region11: #{rnn_decoder_forward.1} parent=5 // pred_region
        %s394 = ssub.s32 %s29, 1
        // Predicated region
        $region13: #{rnn_decoder_forward.1} parent=11 // pred_check
          %p395 = pneg %p76
        $region14: #{rnn_decoder_forward.1} parent=11 // pred_check_branch
          %397 = sbr.rel (%p395) target = $region16
        $region15: #{rnn_decoder_forward.1} parent=11 // pred_region
          _
        $region16: #{rnn_decoder_forward.1} parent=11 // pred_fallthru
          _
        // Predicated region
        $region17: #{rnn_decoder_forward.1} parent=11 // pred_check
          %p398 = pneg %p97
        $region18: #{rnn_decoder_forward.1} parent=11 // pred_check_branch
          %400 = sbr.rel (%p398) target = $region20
        $region19: #{rnn_decoder_forward.1} parent=11 // pred_region
          _
        $region20: #{rnn_decoder_forward.1} parent=11 // pred_fallthru
          _
        // Predicated region
        $region21: #{rnn_decoder_forward.1} parent=11 // pred_check
          %p401 = pneg %p118
        $region22: #{rnn_decoder_forward.1} parent=11 // pred_check_branch
          %403 = sbr.rel (%p401) target = $region24
        $region23: #{rnn_decoder_forward.1} parent=11 // pred_region
          _
        $region24: #{rnn_decoder_forward.1} parent=11 // pred_fallthru
          _
        // Predicated region
        $region25: #{rnn_decoder_forward.1} parent=11 // pred_check
          %p404 = pneg %p139
        $region26: #{rnn_decoder_forward.1} parent=11 // pred_check_branch
          %406 = sbr.rel (%p404) target = $region28
        $region27: #{rnn_decoder_forward.1} parent=11 // pred_region
          _
        $region28: #{rnn_decoder_forward.1} parent=11 // pred_fallthru
          _
        // Predicated region
        $region29: #{rnn_decoder_forward.1} parent=11 // pred_check
          %p407 = pneg %p160
        $region30: #{rnn_decoder_forward.1} parent=11 // pred_check_branch
          %409 = sbr.rel (%p407) target = $region32
        $region31: #{rnn_decoder_forward.1} parent=11 // pred_region
          _
        $region32: #{rnn_decoder_forward.1} parent=11 // pred_fallthru
          _
        // Predicated region
        $region33: #{rnn_decoder_forward.1} parent=11 // pred_check
          %p410 = pneg %p181
        $region34: #{rnn_decoder_forward.1} parent=11 // pred_check_branch
          %412 = sbr.rel (%p410) target = $region36
        $region35: #{rnn_decoder_forward.1} parent=11 // pred_region
          _
        $region36: #{rnn_decoder_forward.1} parent=11 // pred_fallthru
          _
        // Predicated region
        $region37: #{rnn_decoder_forward.1} parent=11 // pred_check
          %p413 = pneg %p202
        $region38: #{rnn_decoder_forward.1} parent=11 // pred_check_branch
          %415 = sbr.rel (%p413) target = $region40
        $region39: #{rnn_decoder_forward.1} parent=11 // pred_region
          _
        $region40: #{rnn_decoder_forward.1} parent=11 // pred_fallthru
          _
        // Predicated region
        $region41: #{rnn_decoder_forward.1} parent=11 // pred_check
          %p416 = pneg %p223
        $region42: #{rnn_decoder_forward.1} parent=11 // pred_check_branch
          %418 = sbr.rel (%p416) target = $region44
        $region43: #{rnn_decoder_forward.1} parent=11 // pred_region
          _
        $region44: #{rnn_decoder_forward.1} parent=11 // pred_fallthru
          _
        // Predicated region
        $region45: #{rnn_decoder_forward.1} parent=11 // pred_check
          %p419 = pneg %p244
        $region46: #{rnn_decoder_forward.1} parent=11 // pred_check_branch
          %421 = sbr.rel (%p419) target = $region48
        $region47: #{rnn_decoder_forward.1} parent=11 // pred_region
          _
        $region48: #{rnn_decoder_forward.1} parent=11 // pred_fallthru
          _
        // Predicated region
        $region49: #{rnn_decoder_forward.1} parent=11 // pred_check
          %p422 = pneg %p265
        $region50: #{rnn_decoder_forward.1} parent=11 // pred_check_branch
          %424 = sbr.rel (%p422) target = $region52
        $region51: #{rnn_decoder_forward.1} parent=11 // pred_region
          _
        $region52: #{rnn_decoder_forward.1} parent=11 // pred_fallthru
          _
        // Predicated region
        $region53: #{rnn_decoder_forward.1} parent=11 // pred_check
          %p425 = pneg %p286
        $region54: #{rnn_decoder_forward.1} parent=11 // pred_check_branch
          %427 = sbr.rel (%p425) target = $region56
        $region55: #{rnn_decoder_forward.1} parent=11 // pred_region
          _
        $region56: #{rnn_decoder_forward.1} parent=11 // pred_fallthru
          _
      $region12: #{rnn_decoder_forward.1} parent=5 // pred_fallthru
        _
      %p428 = scmp.lt.s32.totalorder %s29, 2
      // Predicated region
      $region57: #{rnn_decoder_forward.1} parent=5 // pred_check
        %p429 = pneg %p428
      $region58: #{rnn_decoder_forward.1} parent=5 // pred_check_branch
        %431 = sbr.rel (%p429) target = $region60
      $region59: #{rnn_decoder_forward.1} parent=5 // pred_region
        // Predicated region
        $region61: #{rnn_decoder_forward.1} parent=59 // pred_check
          %p432 = pneg %p49
        $region62: #{rnn_decoder_forward.1} parent=59 // pred_check_branch
          %434 = sbr.rel (%p432) target = $region64
        $region63: #{rnn_decoder_forward.1} parent=59 // pred_region
          %s435 = smul.u32 8, %s29
          %p436 = scmp.lt.s32.totalorder %s435, 15
          %s437 = scalar_select %p436, %s435, 15
          %s438 = smul.addr %s437, 4
          %s439 = scalar_lea.vmem %s0, %s438
          %s440 = smul.u32 8, %s29
        $region64: #{rnn_decoder_forward.1} parent=59 // pred_fallthru
          _
      $region60: #{rnn_decoder_forward.1} parent=5 // pred_fallthru
        _
      %p441 = scmp.le.s32.totalorder 1, %s29
      %p442 = scmp.lt.s32.totalorder %s29, 3
      %p443 = pnand %p441, %p442
      %p444 = pneg %p443
      // Predicated region
      $region65: #{rnn_decoder_forward.1} parent=5 // pred_check
        _
      $region66: #{rnn_decoder_forward.1} parent=5 // pred_check_branch
        %446 = sbr.rel (%p443) target = $region68
      $region67: #{rnn_decoder_forward.1} parent=5 // pred_region
        %s447 = ssub.s32 %s29, 1
        %s448 = smul.u32 8, %s34
        %p449 = scmp.lt.s32.totalorder %s448, 15
        %s450 = scalar_select %p449, %s448, 15
        %s451 = smul.addr %s450, 4
        %s452 = scalar_lea.vmem %s0, %s451
        %p453 = pneg %p55
        %p454 = pneg %p52
        %p455 = pneg %p76
        %p456 = pneg %p73
        %p457 = pneg %p97
        %p458 = pneg %p94
        %p459 = pneg %p118
        %p460 = pneg %p115
        %p461 = pneg %p139
        %p462 = pneg %p136
        %p463 = pneg %p160
        %p464 = pneg %p157
        %p465 = pneg %p181
        %p466 = pneg %p178
        %p467 = pneg %p202
        %p468 = pneg %p199
        %p469 = pneg %p223
        %p470 = pneg %p220
        %p471 = pneg %p244
        %p472 = pneg %p241
        %p473 = pneg %p265
        %p474 = pneg %p262
        %p475 = pneg %p286
        %p476 = pneg %p283
        %p477 = pneg %p312
        %p478 = pneg %p309
        %s479 = sand.u32 %s299, 1
        %s480 = scalar_lea.sflag [#allocation5], %s479
        %s481 = sand.u32 %s299, 1
        %s482 = smul.addr %s481, 64
        %s483 = scalar_lea.vmem [#allocation4], %s482
        %p484 = pneg %p338
        %p485 = pneg %p335
        %s486 = sand.u32 %s34, 1
        %s487 = scalar_lea.sflag [#allocation7], %s486
        %s488 = sand.u32 %s325, 1
        %s489 = smul.addr %s488, 64
        %s490 = scalar_lea.vmem [#allocation6], %s489
        %p491 = pneg %p359
        %p492 = pneg %p356
        %p493 = pneg %p380
        %p494 = pneg %p377
        %s495 = smul.u32 8, %s34
        %p496 = scmp.lt.s32.totalorder %s495, 15
        %s497 = scalar_select %p496, %s495, 15
        %s498 = smul.addr %s497, 4
        %s499 = scalar_lea.vmem %s0, %s498
        %s500 = smul.u32 8, %s34
        %s501 = smul.u32 8, %s34
        %s502 = smul.u32 8, %s34
        %p504 = scmp.eq.s32.totalorder %s34, 0
        // Predicated region
        $region69: #{rnn_decoder_forward.1} parent=67 // pred_check
          %p505 = pneg %p504
        $region70: #{rnn_decoder_forward.1} parent=67 // pred_check_branch
          %507 = sbr.rel (%p505) target = $region72
        $region71: #{rnn_decoder_forward.1} parent=67 // pred_region
          %v508 = vld [vmem:[%s3] sm:$0xff]
          %v509 = vld [vmem:[%s3 + $0x8] sm:$0xff]
          %510 = vst [vmem:[#allocation8] sm:$0xff] %v508
          %511 = vst [vmem:[#allocation8 + $0x8] sm:$0xff] %v509
          %v512 = vld [vmem:[%s4] sm:$0xff]
          %v513 = vld [vmem:[%s4 + $0x8] sm:$0xff]
          %514 = vst [vmem:[#allocation9] sm:$0xff] %v512
          %515 = vst [vmem:[#allocation9 + $0x8] sm:$0xff] %v513
        $region72: #{rnn_decoder_forward.1} parent=67 // pred_fallthru
          _
        %v516 = vld [vmem:[%s499] sm:$0xf]
        %v517 = vld [vmem:[%s499 + $0x4] sm:$0xf]
        %v518 = vld [vmem:[%s499 + $0x8] sm:$0xf]
        %v519 = vld [vmem:[%s499 + $0xc] sm:$0xf]
        %v520 = vld [vmem:[%s499 + $0x10] sm:$0xf]
        %v521 = vld [vmem:[%s499 + $0x14] sm:$0xf]
        %v522 = vld [vmem:[%s499 + $0x18] sm:$0xf]
        %v523 = vld [vmem:[%s499 + $0x1c] sm:$0xf]
        %v524 = vld [vmem:[%s5] sm:$0xff]
        %v525 = vld [vmem:[%s5 + $0x8] sm:$0xff]
        %v526 = vld [vmem:[%s5 + $0x10] sm:$0xff]
        %v527 = vld [vmem:[%s5 + $0x18] sm:$0xff]
        %v528 = vld [vmem:[%s5 + $0x20] sm:$0xff]
        %v529 = vld [vmem:[%s5 + $0x28] sm:$0xff]
        %v530 = vld [vmem:[%s5 + $0x30] sm:$0xff]
        %v531 = vld [vmem:[%s5 + $0x38] sm:$0xff]
        %v532 = vld [vmem:[%s5 + $0x40] sm:$0xff]
        %v533 = vld [vmem:[%s5 + $0x48] sm:$0xff]
        %v534 = vld [vmem:[%s5 + $0x50] sm:$0xff]
        %v535 = vld [vmem:[%s5 + $0x58] sm:$0xff]
        %v536 = vld [vmem:[%s5 + $0x60] sm:$0xff]
        %v537 = vld [vmem:[%s5 + $0x68] sm:$0xff]
        %v538 = vld [vmem:[%s5 + $0x70] sm:$0xff]
        %v539 = vld [vmem:[%s5 + $0x78] sm:$0xff]
        %v540 = vld [vmem:[%s5 + $0x80] sm:$0xff]
        %v541 = vld [vmem:[%s5 + $0x88] sm:$0xff]
        %v542 = vld [vmem:[%s5 + $0x90] sm:$0xff]
        %v543 = vld [vmem:[%s5 + $0x98] sm:$0xff]
        %v544 = vld [vmem:[%s5 + $0xa0] sm:$0xff]
        %v545 = vld [vmem:[%s5 + $0xa8] sm:$0xff]
        %v546 = vld [vmem:[%s5 + $0xb0] sm:$0xff]
        %v547 = vld [vmem:[%s5 + $0xb8] sm:$0xff]
        %v548 = vld [vmem:[%s5 + $0xc0] sm:$0xff]
        %v549 = vld [vmem:[%s5 + $0xc8] sm:$0xff]
        %v550 = vld [vmem:[%s5 + $0xd0] sm:$0xff]
        %v551 = vld [vmem:[%s5 + $0xd8] sm:$0xff]
        %v552 = vld [vmem:[%s5 + $0xe0] sm:$0xff]
        %v553 = vld [vmem:[%s5 + $0xe8] sm:$0xff]
        %v554 = vld [vmem:[%s5 + $0xf0] sm:$0xff]
        %v555 = vld [vmem:[%s5 + $0xf8] sm:$0xff]
        %v564 = vunpack.c.l.b16 %v516
        %v565 = vunpack.c.l.b16 %v517
        %v566 = vunpack.c.l.b16 %v518
        %v567 = vunpack.c.l.b16 %v519
        %v568 = vunpack.c.l.b16 %v520
        %v569 = vunpack.c.l.b16 %v521
        %v570 = vunpack.c.l.b16 %v522
        %v571 = vunpack.c.l.b16 %v523
        %v572 = vpack.c.b16 %v565, %v564
        %v573 = vpack.c.b16 %v567, %v566
        %v574 = vpack.c.b16 %v569, %v568
        %v575 = vpack.c.b16 %v571, %v570
        %v612 = vunpack.c.l.b16 %v524
        %v613 = vunpack.c.h.b16 %v524
        %v614 = vunpack.c.l.b16 %v525
        %v615 = vunpack.c.h.b16 %v525
        %v616 = vunpack.c.l.b16 %v526
        %v617 = vunpack.c.h.b16 %v526
        %v618 = vunpack.c.l.b16 %v527
        %v619 = vunpack.c.h.b16 %v527
        %v620 = vunpack.c.l.b16 %v528
        %v621 = vunpack.c.h.b16 %v528
        %v622 = vunpack.c.l.b16 %v529
        %v623 = vunpack.c.h.b16 %v529
        %v624 = vunpack.c.l.b16 %v530
        %v625 = vunpack.c.h.b16 %v530
        %v626 = vunpack.c.l.b16 %v531
        %v627 = vunpack.c.h.b16 %v531
        %v628 = vunpack.c.l.b16 %v532
        %v629 = vunpack.c.h.b16 %v532
        %v630 = vunpack.c.l.b16 %v533
        %v631 = vunpack.c.h.b16 %v533
        %v632 = vunpack.c.l.b16 %v534
        %v633 = vunpack.c.h.b16 %v534
        %v634 = vunpack.c.l.b16 %v535
        %v635 = vunpack.c.h.b16 %v535
        %v636 = vunpack.c.l.b16 %v536
        %v637 = vunpack.c.h.b16 %v536
        %v638 = vunpack.c.l.b16 %v537
        %v639 = vunpack.c.h.b16 %v537
        %v640 = vunpack.c.l.b16 %v538
        %v641 = vunpack.c.h.b16 %v538
        %v642 = vunpack.c.l.b16 %v539
        %v643 = vunpack.c.h.b16 %v539
        %v644 = vunpack.c.l.b16 %v540
        %v645 = vunpack.c.h.b16 %v540
        %v646 = vunpack.c.l.b16 %v541
        %v647 = vunpack.c.h.b16 %v541
        %v648 = vunpack.c.l.b16 %v542
        %v649 = vunpack.c.h.b16 %v542
        %v650 = vunpack.c.l.b16 %v543
        %v651 = vunpack.c.h.b16 %v543
        %v652 = vunpack.c.l.b16 %v544
        %v653 = vunpack.c.h.b16 %v544
        %v654 = vunpack.c.l.b16 %v545
        %v655 = vunpack.c.h.b16 %v545
        %v656 = vunpack.c.l.b16 %v546
        %v657 = vunpack.c.h.b16 %v546
        %v658 = vunpack.c.l.b16 %v547
        %v659 = vunpack.c.h.b16 %v547
        %v660 = vunpack.c.l.b16 %v548
        %v661 = vunpack.c.h.b16 %v548
        %v662 = vunpack.c.l.b16 %v549
        %v663 = vunpack.c.h.b16 %v549
        %v664 = vunpack.c.l.b16 %v550
        %v665 = vunpack.c.h.b16 %v550
        %v666 = vunpack.c.l.b16 %v551
        %v667 = vunpack.c.h.b16 %v551
        %v668 = vunpack.c.l.b16 %v552
        %v669 = vunpack.c.h.b16 %v552
        %v670 = vunpack.c.l.b16 %v553
        %v671 = vunpack.c.h.b16 %v553
        %v672 = vunpack.c.l.b16 %v554
        %v673 = vunpack.c.h.b16 %v554
        %v674 = vunpack.c.l.b16 %v555
        %v675 = vunpack.c.h.b16 %v555
        %v676 = vpack.c.b16 %v616, %v612
        %v677 = vpack.c.b16 %v617, %v613
        %v678 = vpack.c.b16 %v618, %v614
        %v679 = vpack.c.b16 %v619, %v615
        %v680 = vpack.c.b16 %v624, %v620
        %v681 = vpack.c.b16 %v625, %v621
        %v682 = vpack.c.b16 %v626, %v622
        %v683 = vpack.c.b16 %v627, %v623
        %v684 = vpack.c.b16 %v632, %v628
        %v685 = vpack.c.b16 %v633, %v629
        %v686 = vpack.c.b16 %v634, %v630
        %v687 = vpack.c.b16 %v635, %v631
        %v688 = vpack.c.b16 %v640, %v636
        %v689 = vpack.c.b16 %v641, %v637
        %v690 = vpack.c.b16 %v642, %v638
        %v691 = vpack.c.b16 %v643, %v639
        %v692 = vpack.c.b16 %v648, %v644
        %v693 = vpack.c.b16 %v649, %v645
        %v694 = vpack.c.b16 %v650, %v646
        %v695 = vpack.c.b16 %v651, %v647
        %v696 = vpack.c.b16 %v656, %v652
        %v697 = vpack.c.b16 %v657, %v653
        %v698 = vpack.c.b16 %v658, %v654
        %v699 = vpack.c.b16 %v659, %v655
        %v700 = vpack.c.b16 %v664, %v660
        %v701 = vpack.c.b16 %v665, %v661
        %v702 = vpack.c.b16 %v666, %v662
        %v703 = vpack.c.b16 %v667, %v663
        %v704 = vpack.c.b16 %v672, %v668
        %v705 = vpack.c.b16 %v673, %v669
        %v706 = vpack.c.b16 %v674, %v670
        %v707 = vpack.c.b16 %v675, %v671
        %740 = vmatprep.subr.bf16.mxu0 %v677
        %741 = vmatpush1.bf16.msra.mxu0 %v676
        %742 = vmatprep.subr.bf16.mxu0 %v681
        %743 = vmatpush1.bf16.msra.mxu0 %v680
        %744 = vmatprep.subr.bf16.mxu0 %v685
        %745 = vmatpush1.bf16.msra.mxu0 %v684
        %746 = vmatprep.subr.bf16.mxu0 %v689
        %747 = vmatpush1.bf16.msra.mxu0 %v688
        %748 = vmatprep.subr.bf16.mxu0 %v693
        %749 = vmatpush1.bf16.msra.mxu0 %v692
        %750 = vmatprep.subr.bf16.mxu0 %v697
        %751 = vmatpush1.bf16.msra.mxu0 %v696
        %752 = vmatprep.subr.bf16.mxu0 %v701
        %753 = vmatpush1.bf16.msra.mxu0 %v700
        %754 = vmatprep.subr.bf16.mxu0 %v705
        %755 = vmatpush1.bf16.msra.mxu0 %v704
        %756 = vmatprep.subr.bf16.mxu0 0
        %757 = vmatpush1.bf16.msra.mxu0 0
        %758 = vmatprep.subr.bf16.mxu0 0
        %759 = vmatpush1.bf16.msra.mxu0 0
        %760 = vmatprep.subr.bf16.mxu0 0
        %761 = vmatpush1.bf16.msra.mxu0 0
        %762 = vmatprep.subr.bf16.mxu0 0
        %763 = vmatpush1.bf16.msra.mxu0 0
        %764 = vmatprep.subr.bf16.mxu0 0
        %765 = vmatpush1.bf16.msra.mxu0 0
        %766 = vmatprep.subr.bf16.mxu0 0
        %767 = vmatpush1.bf16.msra.mxu0 0
        %768 = vmatprep.subr.bf16.mxu0 0
        %769 = vmatpush1.bf16.msra.mxu0 0
        %770 = vmatprep.subr.bf16.mxu0 0
        %771 = vmatpush1.bf16.msra.mxu0 0
        %772 = vmatprep.mubr.bf16.mxu0 0
        %773 = vmatmul.mubr.bf16.gmra.mrb[0].mxu0 %v572
        %v774 = vpop.f32.mrb[0].mxu0
        %v775 = vadd.f32 0.0, %v774
        %v776 = vpop.f32.mrb[0].mxu0
        %v777 = vadd.f32 0.0, %v776
        %v778 = vpop.f32.mrb[0].mxu0
        %v779 = vadd.f32 0.0, %v778
        %v780 = vpop.f32.mrb[0].mxu0
        %v781 = vadd.f32 0.0, %v780
        %782 = vmatprep.mubr.bf16.mxu0 0
        %783 = vmatmul.mubr.bf16.gmra.mrb[0].mxu0 %v573
        %v784 = vpop.f32.mrb[0].mxu0
        %v785 = vadd.f32 0.0, %v784
        %v786 = vpop.f32.mrb[0].mxu0
        %v787 = vadd.f32 0.0, %v786
        %v788 = vpop.f32.mrb[0].mxu0
        %v789 = vadd.f32 0.0, %v788
        %v790 = vpop.f32.mrb[0].mxu0
        %v791 = vadd.f32 0.0, %v790
        %792 = vmatprep.mubr.bf16.mxu0 0
        %793 = vmatmul.mubr.bf16.gmra.mrb[0].mxu0 %v574
        %v794 = vpop.f32.mrb[0].mxu0
        %v795 = vadd.f32 0.0, %v794
        %v796 = vpop.f32.mrb[0].mxu0
        %v797 = vadd.f32 0.0, %v796
        %v798 = vpop.f32.mrb[0].mxu0
        %v799 = vadd.f32 0.0, %v798
        %v800 = vpop.f32.mrb[0].mxu0
        %v801 = vadd.f32 0.0, %v800
        %802 = vmatprep.mubr.bf16.mxu0 0
        %803 = vmatmul.mubr.bf16.gmra.mrb[0].mxu0 %v575
        %v804 = vpop.f32.mrb[0].mxu0
        %v805 = vadd.f32 0.0, %v804
        %v806 = vpop.f32.mrb[0].mxu0
        %v807 = vadd.f32 0.0, %v806
        %v808 = vpop.f32.mrb[0].mxu0
        %v809 = vadd.f32 0.0, %v808
        %v810 = vpop.f32.mrb[0].mxu0
        %v811 = vadd.f32 0.0, %v810
        %812 = vdwg.mxu0
        %813 = vmatprep.subr.bf16.mxu0 %v679
        %814 = vmatpush1.bf16.msra.mxu0 %v678
        %815 = vmatprep.subr.bf16.mxu0 %v683
        %816 = vmatpush1.bf16.msra.mxu0 %v682
        %817 = vmatprep.subr.bf16.mxu0 %v687
        %818 = vmatpush1.bf16.msra.mxu0 %v686
        %819 = vmatprep.subr.bf16.mxu0 %v691
        %820 = vmatpush1.bf16.msra.mxu0 %v690
        %821 = vmatprep.subr.bf16.mxu0 %v695
        %822 = vmatpush1.bf16.msra.mxu0 %v694
        %823 = vmatprep.subr.bf16.mxu0 %v699
        %824 = vmatpush1.bf16.msra.mxu0 %v698
        %825 = vmatprep.subr.bf16.mxu0 %v703
        %826 = vmatpush1.bf16.msra.mxu0 %v702
        %827 = vmatprep.subr.bf16.mxu0 %v707
        %828 = vmatpush1.bf16.msra.mxu0 %v706
        %829 = vmatprep.subr.bf16.mxu0 0
        %830 = vmatpush1.bf16.msra.mxu0 0
        %831 = vmatprep.subr.bf16.mxu0 0
        %832 = vmatpush1.bf16.msra.mxu0 0
        %833 = vmatprep.subr.bf16.mxu0 0
        %834 = vmatpush1.bf16.msra.mxu0 0
        %835 = vmatprep.subr.bf16.mxu0 0
        %836 = vmatpush1.bf16.msra.mxu0 0
        %837 = vmatprep.subr.bf16.mxu0 0
        %838 = vmatpush1.bf16.msra.mxu0 0
        %839 = vmatprep.subr.bf16.mxu0 0
        %840 = vmatpush1.bf16.msra.mxu0 0
        %841 = vmatprep.subr.bf16.mxu0 0
        %842 = vmatpush1.bf16.msra.mxu0 0
        %843 = vmatprep.subr.bf16.mxu0 0
        %844 = vmatpush1.bf16.msra.mxu0 0
        %845 = vmatprep.mubr.bf16.mxu0 0
        %846 = vmatmul.mubr.bf16.gmra.mrb[0].mxu0 %v572
        %v847 = vpop.f32.mrb[0].mxu0
        %v848 = vadd.f32 0.0, %v847
        %v849 = vpop.f32.mrb[0].mxu0
        %v850 = vadd.f32 0.0, %v849
        %v851 = vpop.f32.mrb[0].mxu0
        %v852 = vadd.f32 0.0, %v851
        %v853 = vpop.f32.mrb[0].mxu0
        %v854 = vadd.f32 0.0, %v853
        %855 = vmatprep.mubr.bf16.mxu0 0
        %856 = vmatmul.mubr.bf16.gmra.mrb[0].mxu0 %v573
        %v857 = vpop.f32.mrb[0].mxu0
        %v858 = vadd.f32 0.0, %v857
        %v859 = vpop.f32.mrb[0].mxu0
        %v860 = vadd.f32 0.0, %v859
        %v861 = vpop.f32.mrb[0].mxu0
        %v862 = vadd.f32 0.0, %v861
        %v863 = vpop.f32.mrb[0].mxu0
        %v864 = vadd.f32 0.0, %v863
        %865 = vmatprep.mubr.bf16.mxu0 0
        %866 = vmatmul.mubr.bf16.gmra.mrb[0].mxu0 %v574
        %v867 = vpop.f32.mrb[0].mxu0
        %v868 = vadd.f32 0.0, %v867
        %v869 = vpop.f32.mrb[0].mxu0
        %v870 = vadd.f32 0.0, %v869
        %v871 = vpop.f32.mrb[0].mxu0
        %v872 = vadd.f32 0.0, %v871
        %v873 = vpop.f32.mrb[0].mxu0
        %v874 = vadd.f32 0.0, %v873
        %875 = vmatprep.mubr.bf16.mxu0 0
        %876 = vmatmul.mubr.bf16.gmra.mrb[0].mxu0 %v575
        %v877 = vpop.f32.mrb[0].mxu0
        %v878 = vadd.f32 0.0, %v877
        %v879 = vpop.f32.mrb[0].mxu0
        %v880 = vadd.f32 0.0, %v879
        %v881 = vpop.f32.mrb[0].mxu0
        %v882 = vadd.f32 0.0, %v881
        %v883 = vpop.f32.mrb[0].mxu0
        %v884 = vadd.f32 0.0, %v883
        %885 = vdwg.mxu0
        %886 = vst [vmem:[#allocation2] sm:$0xff] %v775
        %887 = vst [vmem:[#allocation2 + $0x8] sm:$0xff] %v777
        %888 = vst [vmem:[#allocation2 + $0x10] sm:$0xff] %v848
        %889 = vst [vmem:[#allocation2 + $0x18] sm:$0xff] %v850
        %890 = vst [vmem:[#allocation2 + $0x20] sm:$0xff] %v779
        %891 = vst [vmem:[#allocation2 + $0x28] sm:$0xff] %v781
        %892 = vst [vmem:[#allocation2 + $0x30] sm:$0xff] %v852
        %893 = vst [vmem:[#allocation2 + $0x38] sm:$0xff] %v854
        %894 = vst [vmem:[#allocation2 + $0x40] sm:$0xff] %v785
        %895 = vst [vmem:[#allocation2 + $0x48] sm:$0xff] %v787
        %896 = vst [vmem:[#allocation2 + $0x50] sm:$0xff] %v858
        %897 = vst [vmem:[#allocation2 + $0x58] sm:$0xff] %v860
        %898 = vst [vmem:[#allocation2 + $0x60] sm:$0xff] %v789
        %899 = vst [vmem:[#allocation2 + $0x68] sm:$0xff] %v791
        %900 = vst [vmem:[#allocation2 + $0x70] sm:$0xff] %v862
        %901 = vst [vmem:[#allocation2 + $0x78] sm:$0xff] %v864
        %902 = vst [vmem:[#allocation2 + $0x80] sm:$0xff] %v795
        %903 = vst [vmem:[#allocation2 + $0x88] sm:$0xff] %v797
        %904 = vst [vmem:[#allocation2 + $0x90] sm:$0xff] %v868
        %905 = vst [vmem:[#allocation2 + $0x98] sm:$0xff] %v870
        %906 = vst [vmem:[#allocation2 + $0xa0] sm:$0xff] %v799
        %907 = vst [vmem:[#allocation2 + $0xa8] sm:$0xff] %v801
        %908 = vst [vmem:[#allocation2 + $0xb0] sm:$0xff] %v872
        %909 = vst [vmem:[#allocation2 + $0xb8] sm:$0xff] %v874
        %910 = vst [vmem:[#allocation2 + $0xc0] sm:$0xff] %v805
        %911 = vst [vmem:[#allocation2 + $0xc8] sm:$0xff] %v807
        %912 = vst [vmem:[#allocation2 + $0xd0] sm:$0xff] %v878
        %913 = vst [vmem:[#allocation2 + $0xd8] sm:$0xff] %v880
        %914 = vst [vmem:[#allocation2 + $0xe0] sm:$0xff] %v809
        %915 = vst [vmem:[#allocation2 + $0xe8] sm:$0xff] %v811
        %916 = vst [vmem:[#allocation2 + $0xf0] sm:$0xff] %v882
        %917 = vst [vmem:[#allocation2 + $0xf8] sm:$0xff] %v884
        %v918 = vld [vmem:[%s6] sm:$0xff]
        %v919 = vld [vmem:[%s6 + $0x8] sm:$0xff]
        %v920 = vld [vmem:[%s6 + $0x10] sm:$0xff]
        %v921 = vld [vmem:[%s6 + $0x18] sm:$0xff]
        %v922 = vld [vmem:[%s6 + $0x20] sm:$0xff]
        %v923 = vld [vmem:[%s6 + $0x28] sm:$0xff]
        %v924 = vld [vmem:[%s6 + $0x30] sm:$0xff]
        %v925 = vld [vmem:[%s6 + $0x38] sm:$0xff]
        %v926 = vld [vmem:[%s6 + $0x40] sm:$0xff]
        %v927 = vld [vmem:[%s6 + $0x48] sm:$0xff]
        %v928 = vld [vmem:[%s6 + $0x50] sm:$0xff]
        %v929 = vld [vmem:[%s6 + $0x58] sm:$0xff]
        %v930 = vld [vmem:[%s6 + $0x60] sm:$0xff]
        %v931 = vld [vmem:[%s6 + $0x68] sm:$0xff]
        %v932 = vld [vmem:[%s6 + $0x70] sm:$0xff]
        %v933 = vld [vmem:[%s6 + $0x78] sm:$0xff]
        %v934 = vld [vmem:[%s6 + $0x80] sm:$0xff]
        %v935 = vld [vmem:[%s6 + $0x88] sm:$0xff]
        %v936 = vld [vmem:[%s6 + $0x90] sm:$0xff]
        %v937 = vld [vmem:[%s6 + $0x98] sm:$0xff]
        %v938 = vld [vmem:[%s6 + $0xa0] sm:$0xff]
        %v939 = vld [vmem:[%s6 + $0xa8] sm:$0xff]
        %v940 = vld [vmem:[%s6 + $0xb0] sm:$0xff]
        %v941 = vld [vmem:[%s6 + $0xb8] sm:$0xff]
        %v942 = vld [vmem:[%s6 + $0xc0] sm:$0xff]
        %v943 = vld [vmem:[%s6 + $0xc8] sm:$0xff]
        %v944 = vld [vmem:[%s6 + $0xd0] sm:$0xff]
        %v945 = vld [vmem:[%s6 + $0xd8] sm:$0xff]
        %v946 = vld [vmem:[%s6 + $0xe0] sm:$0xff]
        %v947 = vld [vmem:[%s6 + $0xe8] sm:$0xff]
        %v948 = vld [vmem:[%s6 + $0xf0] sm:$0xff]
        %v949 = vld [vmem:[%s6 + $0xf8] sm:$0xff]
        %v950 = vld [vmem:[%s8] sm:$0xff]
        %v951 = vld [vmem:[%s8 + $0x8] sm:$0xff]
        %v952 = vld [vmem:[%s8 + $0x10] sm:$0xff]
        %v953 = vld [vmem:[%s8 + $0x18] sm:$0xff]
        %v954 = vld [vmem:[%s8 + $0x20] sm:$0xff]
        %v955 = vld [vmem:[%s8 + $0x28] sm:$0xff]
        %v956 = vld [vmem:[%s8 + $0x30] sm:$0xff]
        %v957 = vld [vmem:[%s8 + $0x38] sm:$0xff]
        %v958 = vld [vmem:[%s8 + $0x40] sm:$0xff]
        %v959 = vld [vmem:[%s8 + $0x48] sm:$0xff]
        %v960 = vld [vmem:[%s8 + $0x50] sm:$0xff]
        %v961 = vld [vmem:[%s8 + $0x58] sm:$0xff]
        %v962 = vld [vmem:[%s8 + $0x60] sm:$0xff]
        %v963 = vld [vmem:[%s8 + $0x68] sm:$0xff]
        %v964 = vld [vmem:[%s8 + $0x70] sm:$0xff]
        %v965 = vld [vmem:[%s8 + $0x78] sm:$0xff]
        %v966 = vld [vmem:[%s8 + $0x80] sm:$0xff]
        %v967 = vld [vmem:[%s8 + $0x88] sm:$0xff]
        %v968 = vld [vmem:[%s8 + $0x90] sm:$0xff]
        %v969 = vld [vmem:[%s8 + $0x98] sm:$0xff]
        %v970 = vld [vmem:[%s8 + $0xa0] sm:$0xff]
        %v971 = vld [vmem:[%s8 + $0xa8] sm:$0xff]
        %v972 = vld [vmem:[%s8 + $0xb0] sm:$0xff]
        %v973 = vld [vmem:[%s8 + $0xb8] sm:$0xff]
        %v974 = vld [vmem:[%s8 + $0xc0] sm:$0xff]
        %v975 = vld [vmem:[%s8 + $0xc8] sm:$0xff]
        %v976 = vld [vmem:[%s8 + $0xd0] sm:$0xff]
        %v977 = vld [vmem:[%s8 + $0xd8] sm:$0xff]
        %v978 = vld [vmem:[%s8 + $0xe0] sm:$0xff]
        %v979 = vld [vmem:[%s8 + $0xe8] sm:$0xff]
        %v980 = vld [vmem:[%s8 + $0xf0] sm:$0xff]
        %v981 = vld [vmem:[%s8 + $0xf8] sm:$0xff]
        %v982 = vld [vmem:[%s8 + $0x100] sm:$0xff]
        %v983 = vld [vmem:[%s8 + $0x108] sm:$0xff]
        %v984 = vld [vmem:[%s8 + $0x110] sm:$0xff]
        %v985 = vld [vmem:[%s8 + $0x118] sm:$0xff]
        %v986 = vld [vmem:[%s8 + $0x120] sm:$0xff]
        %v987 = vld [vmem:[%s8 + $0x128] sm:$0xff]
        %v988 = vld [vmem:[%s8 + $0x130] sm:$0xff]
        %v989 = vld [vmem:[%s8 + $0x138] sm:$0xff]
        %v990 = vld [vmem:[%s8 + $0x140] sm:$0xff]
        %v991 = vld [vmem:[%s8 + $0x148] sm:$0xff]
        %v992 = vld [vmem:[%s8 + $0x150] sm:$0xff]
        %v993 = vld [vmem:[%s8 + $0x158] sm:$0xff]
        %v994 = vld [vmem:[%s8 + $0x160] sm:$0xff]
        %v995 = vld [vmem:[%s8 + $0x168] sm:$0xff]
        %v996 = vld [vmem:[%s8 + $0x170] sm:$0xff]
        %v997 = vld [vmem:[%s8 + $0x178] sm:$0xff]
        %v998 = vld [vmem:[%s8 + $0x180] sm:$0xff]
        %v999 = vld [vmem:[%s8 + $0x188] sm:$0xff]
        %v1000 = vld [vmem:[%s8 + $0x190] sm:$0xff]
        %v1001 = vld [vmem:[%s8 + $0x198] sm:$0xff]
        %v1002 = vld [vmem:[%s8 + $0x1a0] sm:$0xff]
        %v1003 = vld [vmem:[%s8 + $0x1a8] sm:$0xff]
        %v1004 = vld [vmem:[%s8 + $0x1b0] sm:$0xff]
        %v1005 = vld [vmem:[%s8 + $0x1b8] sm:$0xff]
        %v1006 = vld [vmem:[%s8 + $0x1c0] sm:$0xff]
        %v1007 = vld [vmem:[%s8 + $0x1c8] sm:$0xff]
        %v1008 = vld [vmem:[%s8 + $0x1d0] sm:$0xff]
        %v1009 = vld [vmem:[%s8 + $0x1d8] sm:$0xff]
        %v1010 = vld [vmem:[%s8 + $0x1e0] sm:$0xff]
        %v1011 = vld [vmem:[%s8 + $0x1e8] sm:$0xff]
        %v1012 = vld [vmem:[%s8 + $0x1f0] sm:$0xff]
        %v1013 = vld [vmem:[%s8 + $0x1f8] sm:$0xff]
        %v1014 = vld [vmem:[%s7] sm:$0xf]
        %v1016 = vlaneseq
        %v1017 = vshrl.u32 %v1016, 7
        %v1018 = vsub.s32 0, %v1017
        %v1019 = vrot.slane %v1014, %v1018
        %v1020 = vlaneseq
        %v1021 = vshrl.u32 %v1020, 7
        %v1022 = vsub.s32 1, %v1021
        %v1023 = vrot.slane %v1014, %v1022
        %v1024 = vlaneseq
        %v1025 = vshrl.u32 %v1024, 7
        %v1026 = vsub.s32 2, %v1025
        %v1027 = vrot.slane %v1014, %v1026
        %v1028 = vlaneseq
        %v1029 = vshrl.u32 %v1028, 7
        %v1030 = vsub.s32 3, %v1029
        %v1031 = vrot.slane %v1014, %v1030
        %v1036 = vld [vmem:[%s9] sm:$0xf]
        %v1038 = vlaneseq
        %v1039 = vshrl.u32 %v1038, 7
        %v1040 = vsub.s32 0, %v1039
        %v1041 = vrot.slane %v1036, %v1040
        %v1042 = vlaneseq
        %v1043 = vshrl.u32 %v1042, 7
        %v1044 = vsub.s32 1, %v1043
        %v1045 = vrot.slane %v1036, %v1044
        %v1046 = vlaneseq
        %v1047 = vshrl.u32 %v1046, 7
        %v1048 = vsub.s32 2, %v1047
        %v1049 = vrot.slane %v1036, %v1048
        %v1050 = vlaneseq
        %v1051 = vshrl.u32 %v1050, 7
        %v1052 = vsub.s32 3, %v1051
        %v1053 = vrot.slane %v1036, %v1052
        %v1058 = vld [vmem:[#allocation8] sm:$0xff]
        %v1059 = vld [vmem:[#allocation9] sm:$0xff]
        %s1060 = scalar_lea.vmem [#allocation8], 8
        %v1061 = vld [vmem:[%s1060] sm:$0xff]
        %s1062 = scalar_lea.vmem [#allocation9], 8
        %v1063 = vld [vmem:[%s1062] sm:$0xff]
        %v1064 = vld [vmem:[#allocation2] sm:$0xff]
        %v1065 = vld [vmem:[#allocation2 + $0x8] sm:$0xff]
        %v1066 = vld [vmem:[#allocation2 + $0x10] sm:$0xff]
        %v1067 = vld [vmem:[#allocation2 + $0x18] sm:$0xff]
        %v1068 = vpack.c.bf16 %v1058, %v1058
        %v1101 = vunpack.c.l.b16 %v918
        %v1102 = vunpack.c.h.b16 %v918
        %v1103 = vunpack.c.l.b16 %v919
        %v1104 = vunpack.c.h.b16 %v919
        %v1105 = vunpack.c.l.b16 %v920
        %v1106 = vunpack.c.h.b16 %v920
        %v1107 = vunpack.c.l.b16 %v921
        %v1108 = vunpack.c.h.b16 %v921
        %v1109 = vunpack.c.l.b16 %v922
        %v1110 = vunpack.c.h.b16 %v922
        %v1111 = vunpack.c.l.b16 %v923
        %v1112 = vunpack.c.h.b16 %v923
        %v1113 = vunpack.c.l.b16 %v924
        %v1114 = vunpack.c.h.b16 %v924
        %v1115 = vunpack.c.l.b16 %v925
        %v1116 = vunpack.c.h.b16 %v925
        %v1117 = vunpack.c.l.b16 %v926
        %v1118 = vunpack.c.h.b16 %v926
        %v1119 = vunpack.c.l.b16 %v927
        %v1120 = vunpack.c.h.b16 %v927
        %v1121 = vunpack.c.l.b16 %v928
        %v1122 = vunpack.c.h.b16 %v928
        %v1123 = vunpack.c.l.b16 %v929
        %v1124 = vunpack.c.h.b16 %v929
        %v1125 = vunpack.c.l.b16 %v930
        %v1126 = vunpack.c.h.b16 %v930
        %v1127 = vunpack.c.l.b16 %v931
        %v1128 = vunpack.c.h.b16 %v931
        %v1129 = vunpack.c.l.b16 %v932
        %v1130 = vunpack.c.h.b16 %v932
        %v1131 = vunpack.c.l.b16 %v933
        %v1132 = vunpack.c.h.b16 %v933
        %v1133 = vunpack.c.l.b16 %v934
        %v1134 = vunpack.c.h.b16 %v934
        %v1135 = vunpack.c.l.b16 %v935
        %v1136 = vunpack.c.h.b16 %v935
        %v1137 = vunpack.c.l.b16 %v936
        %v1138 = vunpack.c.h.b16 %v936
        %v1139 = vunpack.c.l.b16 %v937
        %v1140 = vunpack.c.h.b16 %v937
        %v1141 = vunpack.c.l.b16 %v938
        %v1142 = vunpack.c.h.b16 %v938
        %v1143 = vunpack.c.l.b16 %v939
        %v1144 = vunpack.c.h.b16 %v939
        %v1145 = vunpack.c.l.b16 %v940
        %v1146 = vunpack.c.h.b16 %v940
        %v1147 = vunpack.c.l.b16 %v941
        %v1148 = vunpack.c.h.b16 %v941
        %v1149 = vunpack.c.l.b16 %v942
        %v1150 = vunpack.c.h.b16 %v942
        %v1151 = vunpack.c.l.b16 %v943
        %v1152 = vunpack.c.h.b16 %v943
        %v1153 = vunpack.c.l.b16 %v944
        %v1154 = vunpack.c.h.b16 %v944
        %v1155 = vunpack.c.l.b16 %v945
        %v1156 = vunpack.c.h.b16 %v945
        %v1157 = vunpack.c.l.b16 %v946
        %v1158 = vunpack.c.h.b16 %v946
        %v1159 = vunpack.c.l.b16 %v947
        %v1160 = vunpack.c.h.b16 %v947
        %v1161 = vunpack.c.l.b16 %v948
        %v1162 = vunpack.c.h.b16 %v948
        %v1163 = vunpack.c.l.b16 %v949
        %v1164 = vunpack.c.h.b16 %v949
        %v1165 = vpack.c.b16 %v1105, %v1101
        %v1166 = vpack.c.b16 %v1106, %v1102
        %v1167 = vpack.c.b16 %v1107, %v1103
        %v1168 = vpack.c.b16 %v1108, %v1104
        %v1169 = vpack.c.b16 %v1113, %v1109
        %v1170 = vpack.c.b16 %v1114, %v1110
        %v1171 = vpack.c.b16 %v1115, %v1111
        %v1172 = vpack.c.b16 %v1116, %v1112
        %v1173 = vpack.c.b16 %v1121, %v1117
        %v1174 = vpack.c.b16 %v1122, %v1118
        %v1175 = vpack.c.b16 %v1123, %v1119
        %v1176 = vpack.c.b16 %v1124, %v1120
        %v1177 = vpack.c.b16 %v1129, %v1125
        %v1178 = vpack.c.b16 %v1130, %v1126
        %v1179 = vpack.c.b16 %v1131, %v1127
        %v1180 = vpack.c.b16 %v1132, %v1128
        %v1181 = vpack.c.b16 %v1137, %v1133
        %v1182 = vpack.c.b16 %v1138, %v1134
        %v1183 = vpack.c.b16 %v1139, %v1135
        %v1184 = vpack.c.b16 %v1140, %v1136
        %v1185 = vpack.c.b16 %v1145, %v1141
        %v1186 = vpack.c.b16 %v1146, %v1142
        %v1187 = vpack.c.b16 %v1147, %v1143
        %v1188 = vpack.c.b16 %v1148, %v1144
        %v1189 = vpack.c.b16 %v1153, %v1149
        %v1190 = vpack.c.b16 %v1154, %v1150
        %v1191 = vpack.c.b16 %v1155, %v1151
        %v1192 = vpack.c.b16 %v1156, %v1152
        %v1193 = vpack.c.b16 %v1161, %v1157
        %v1194 = vpack.c.b16 %v1162, %v1158
        %v1195 = vpack.c.b16 %v1163, %v1159
        %v1196 = vpack.c.b16 %v1164, %v1160
        %1229 = vmatprep.subr.bf16.mxu0 %v1166
        %1230 = vmatpush1.bf16.msra.mxu0 %v1165
        %1231 = vmatprep.subr.bf16.mxu0 %v1170
        %1232 = vmatpush1.bf16.msra.mxu0 %v1169
        %1233 = vmatprep.subr.bf16.mxu0 %v1174
        %1234 = vmatpush1.bf16.msra.mxu0 %v1173
        %1235 = vmatprep.subr.bf16.mxu0 %v1178
        %1236 = vmatpush1.bf16.msra.mxu0 %v1177
        %1237 = vmatprep.subr.bf16.mxu0 %v1182
        %1238 = vmatpush1.bf16.msra.mxu0 %v1181
        %1239 = vmatprep.subr.bf16.mxu0 %v1186
        %1240 = vmatpush1.bf16.msra.mxu0 %v1185
        %1241 = vmatprep.subr.bf16.mxu0 %v1190
        %1242 = vmatpush1.bf16.msra.mxu0 %v1189
        %1243 = vmatprep.subr.bf16.mxu0 %v1194
        %1244 = vmatpush1.bf16.msra.mxu0 %v1193
        %1245 = vmatprep.subr.bf16.mxu0 0
        %1246 = vmatpush1.bf16.msra.mxu0 0
        %1247 = vmatprep.subr.bf16.mxu0 0
        %1248 = vmatpush1.bf16.msra.mxu0 0
        %1249 = vmatprep.subr.bf16.mxu0 0
        %1250 = vmatpush1.bf16.msra.mxu0 0
        %1251 = vmatprep.subr.bf16.mxu0 0
        %1252 = vmatpush1.bf16.msra.mxu0 0
        %1253 = vmatprep.subr.bf16.mxu0 0
        %1254 = vmatpush1.bf16.msra.mxu0 0
        %1255 = vmatprep.subr.bf16.mxu0 0
        %1256 = vmatpush1.bf16.msra.mxu0 0
        %1257 = vmatprep.subr.bf16.mxu0 0
        %1258 = vmatpush1.bf16.msra.mxu0 0
        %1259 = vmatprep.subr.bf16.mxu0 0
        %1260 = vmatpush1.bf16.msra.mxu0 0
        %1261 = vmatprep.mubr.bf16.mxu0 0
        %1262 = vmatmul.mubr.bf16.gmra.mrb[0].mxu0 %v1068
        %v1263 = vpop.f32.mrb[0].mxu0
        %v1264 = vadd.f32 0.0, %v1263
        %v1265 = vpop.f32.mrb[0].mxu0
        %v1266 = vadd.f32 0.0, %v1265
        %v1267 = vpop.f32.mrb[0].mxu0
        %v1268 = vpop.f32.mrb[0].mxu0
        %1269 = vdwg.mxu0
        %1270 = vmatprep.subr.bf16.mxu0 %v1168
        %1271 = vmatpush1.bf16.msra.mxu0 %v1167
        %1272 = vmatprep.subr.bf16.mxu0 %v1172
        %1273 = vmatpush1.bf16.msra.mxu0 %v1171
        %1274 = vmatprep.subr.bf16.mxu0 %v1176
        %1275 = vmatpush1.bf16.msra.mxu0 %v1175
        %1276 = vmatprep.subr.bf16.mxu0 %v1180
        %1277 = vmatpush1.bf16.msra.mxu0 %v1179
        %1278 = vmatprep.subr.bf16.mxu0 %v1184
        %1279 = vmatpush1.bf16.msra.mxu0 %v1183
        %1280 = vmatprep.subr.bf16.mxu0 %v1188
        %1281 = vmatpush1.bf16.msra.mxu0 %v1187
        %1282 = vmatprep.subr.bf16.mxu0 %v1192
        %1283 = vmatpush1.bf16.msra.mxu0 %v1191
        %1284 = vmatprep.subr.bf16.mxu0 %v1196
        %1285 = vmatpush1.bf16.msra.mxu0 %v1195
        %1286 = vmatprep.subr.bf16.mxu0 0
        %1287 = vmatpush1.bf16.msra.mxu0 0
        %1288 = vmatprep.subr.bf16.mxu0 0
        %1289 = vmatpush1.bf16.msra.mxu0 0
        %1290 = vmatprep.subr.bf16.mxu0 0
        %1291 = vmatpush1.bf16.msra.mxu0 0
        %1292 = vmatprep.subr.bf16.mxu0 0
        %1293 = vmatpush1.bf16.msra.mxu0 0
        %1294 = vmatprep.subr.bf16.mxu0 0
        %1295 = vmatpush1.bf16.msra.mxu0 0
        %1296 = vmatprep.subr.bf16.mxu0 0
        %1297 = vmatpush1.bf16.msra.mxu0 0
        %1298 = vmatprep.subr.bf16.mxu0 0
        %1299 = vmatpush1.bf16.msra.mxu0 0
        %1300 = vmatprep.subr.bf16.mxu0 0
        %1301 = vmatpush1.bf16.msra.mxu0 0
        %1302 = vmatprep.mubr.bf16.mxu0 0
        %1303 = vmatmul.mubr.bf16.gmra.mrb[0].mxu0 %v1068
        %v1304 = vpop.f32.mrb[0].mxu0
        %v1305 = vadd.f32 0.0, %v1304
        %v1306 = vpop.f32.mrb[0].mxu0
        %v1307 = vadd.f32 0.0, %v1306
        %v1308 = vpop.f32.mrb[0].mxu0
        %v1309 = vpop.f32.mrb[0].mxu0
        %1310 = vdwg.mxu0
        %v1311 = vadd.f32 %v1064, %v1264
        %v1312 = vadd.f32 %v1065, %v1266
        %v1313 = vadd.f32 %v1066, %v1305
        %v1314 = vadd.f32 %v1067, %v1307
        %v1315 = vadd.f32 %v1311, %v1019
        %v1316 = vadd.f32 %v1312, %v1023
        %v1317 = vadd.f32 %v1313, %v1027
        %v1318 = vadd.f32 %v1314, %v1031
        %v1319 = vxor.u32 %v1315, 2147483648
        %v1320 = vmul.f32 %v1319, 1.442695
        %v1321 = vpow.pop %v1320
        %v1322 = vadd.f32 %v1321, 1.0
        %v1323 = vrcp.pop %v1322
        %v1324 = vmul.f32 1.0, %v1323
        %v1325 = vxor.u32 %v1316, 2147483648
        %v1326 = vmul.f32 %v1325, 1.442695
        %v1327 = vpow.pop %v1326
        %v1328 = vadd.f32 %v1327, 1.0
        %v1329 = vrcp.pop %v1328
        %v1330 = vmul.f32 1.0, %v1329
        %v1331 = vtanh.pop %v1317
        %v1332 = vxor.u32 %v1318, 2147483648
        %v1333 = vmul.f32 %v1332, 1.442695
        %v1334 = vpow.pop %v1333
        %v1335 = vadd.f32 %v1334, 1.0
        %v1336 = vrcp.pop %v1335
        %v1337 = vmul.f32 1.0, %v1336
        %v1338 = vmul.f32 %v1330, %v1059
        %v1339 = vmul.f32 %v1324, %v1331
        %v1340 = vadd.f32 %v1338, %v1339
        %v1341 = vtanh.pop %v1340
        %v1342 = vmul.f32 %v1337, %v1341
        %v1343 = vpack.c.bf16 %v1342, %v1342
        %v1344 = vpack.c.bf16 %v1061, %v1061
        %v1409 = vunpack.c.l.b16 %v950
        %v1410 = vunpack.c.h.b16 %v950
        %v1411 = vunpack.c.l.b16 %v951
        %v1412 = vunpack.c.h.b16 %v951
        %v1413 = vunpack.c.l.b16 %v952
        %v1414 = vunpack.c.h.b16 %v952
        %v1415 = vunpack.c.l.b16 %v953
        %v1416 = vunpack.c.h.b16 %v953
        %v1417 = vunpack.c.l.b16 %v954
        %v1418 = vunpack.c.h.b16 %v954
        %v1419 = vunpack.c.l.b16 %v955
        %v1420 = vunpack.c.h.b16 %v955
        %v1421 = vunpack.c.l.b16 %v956
        %v1422 = vunpack.c.h.b16 %v956
        %v1423 = vunpack.c.l.b16 %v957
        %v1424 = vunpack.c.h.b16 %v957
        %v1425 = vunpack.c.l.b16 %v958
        %v1426 = vunpack.c.h.b16 %v958
        %v1427 = vunpack.c.l.b16 %v959
        %v1428 = vunpack.c.h.b16 %v959
        %v1429 = vunpack.c.l.b16 %v960
        %v1430 = vunpack.c.h.b16 %v960
        %v1431 = vunpack.c.l.b16 %v961
        %v1432 = vunpack.c.h.b16 %v961
        %v1433 = vunpack.c.l.b16 %v962
        %v1434 = vunpack.c.h.b16 %v962
        %v1435 = vunpack.c.l.b16 %v963
        %v1436 = vunpack.c.h.b16 %v963
        %v1437 = vunpack.c.l.b16 %v964
        %v1438 = vunpack.c.h.b16 %v964
        %v1439 = vunpack.c.l.b16 %v965
        %v1440 = vunpack.c.h.b16 %v965
        %v1441 = vunpack.c.l.b16 %v966
        %v1442 = vunpack.c.h.b16 %v966
        %v1443 = vunpack.c.l.b16 %v967
        %v1444 = vunpack.c.h.b16 %v967
        %v1445 = vunpack.c.l.b16 %v968
        %v1446 = vunpack.c.h.b16 %v968
        %v1447 = vunpack.c.l.b16 %v969
        %v1448 = vunpack.c.h.b16 %v969
        %v1449 = vunpack.c.l.b16 %v970
        %v1450 = vunpack.c.h.b16 %v970
        %v1451 = vunpack.c.l.b16 %v971
        %v1452 = vunpack.c.h.b16 %v971
        %v1453 = vunpack.c.l.b16 %v972
        %v1454 = vunpack.c.h.b16 %v972
        %v1455 = vunpack.c.l.b16 %v973
        %v1456 = vunpack.c.h.b16 %v973
        %v1457 = vunpack.c.l.b16 %v974
        %v1458 = vunpack.c.h.b16 %v974
        %v1459 = vunpack.c.l.b16 %v975
        %v1460 = vunpack.c.h.b16 %v975
        %v1461 = vunpack.c.l.b16 %v976
        %v1462 = vunpack.c.h.b16 %v976
        %v1463 = vunpack.c.l.b16 %v977
        %v1464 = vunpack.c.h.b16 %v977
        %v1465 = vunpack.c.l.b16 %v978
        %v1466 = vunpack.c.h.b16 %v978
        %v1467 = vunpack.c.l.b16 %v979
        %v1468 = vunpack.c.h.b16 %v979
        %v1469 = vunpack.c.l.b16 %v980
        %v1470 = vunpack.c.h.b16 %v980
        %v1471 = vunpack.c.l.b16 %v981
        %v1472 = vunpack.c.h.b16 %v981
        %v1473 = vunpack.c.l.b16 %v982
        %v1474 = vunpack.c.h.b16 %v982
        %v1475 = vunpack.c.l.b16 %v983
        %v1476 = vunpack.c.h.b16 %v983
        %v1477 = vunpack.c.l.b16 %v984
        %v1478 = vunpack.c.h.b16 %v984
        %v1479 = vunpack.c.l.b16 %v985
        %v1480 = vunpack.c.h.b16 %v985
        %v1481 = vunpack.c.l.b16 %v986
        %v1482 = vunpack.c.h.b16 %v986
        %v1483 = vunpack.c.l.b16 %v987
        %v1484 = vunpack.c.h.b16 %v987
        %v1485 = vunpack.c.l.b16 %v988
        %v1486 = vunpack.c.h.b16 %v988
        %v1487 = vunpack.c.l.b16 %v989
        %v1488 = vunpack.c.h.b16 %v989
        %v1489 = vunpack.c.l.b16 %v990
        %v1490 = vunpack.c.h.b16 %v990
        %v1491 = vunpack.c.l.b16 %v991
        %v1492 = vunpack.c.h.b16 %v991
        %v1493 = vunpack.c.l.b16 %v992
        %v1494 = vunpack.c.h.b16 %v992
        %v1495 = vunpack.c.l.b16 %v993
        %v1496 = vunpack.c.h.b16 %v993
        %v1497 = vunpack.c.l.b16 %v994
        %v1498 = vunpack.c.h.b16 %v994
        %v1499 = vunpack.c.l.b16 %v995
        %v1500 = vunpack.c.h.b16 %v995
        %v1501 = vunpack.c.l.b16 %v996
        %v1502 = vunpack.c.h.b16 %v996
        %v1503 = vunpack.c.l.b16 %v997
        %v1504 = vunpack.c.h.b16 %v997
        %v1505 = vunpack.c.l.b16 %v998
        %v1506 = vunpack.c.h.b16 %v998
        %v1507 = vunpack.c.l.b16 %v999
        %v1508 = vunpack.c.h.b16 %v999
        %v1509 = vunpack.c.l.b16 %v1000
        %v1510 = vunpack.c.h.b16 %v1000
        %v1511 = vunpack.c.l.b16 %v1001
        %v1512 = vunpack.c.h.b16 %v1001
        %v1513 = vunpack.c.l.b16 %v1002
        %v1514 = vunpack.c.h.b16 %v1002
        %v1515 = vunpack.c.l.b16 %v1003
        %v1516 = vunpack.c.h.b16 %v1003
        %v1517 = vunpack.c.l.b16 %v1004
        %v1518 = vunpack.c.h.b16 %v1004
        %v1519 = vunpack.c.l.b16 %v1005
        %v1520 = vunpack.c.h.b16 %v1005
        %v1521 = vunpack.c.l.b16 %v1006
        %v1522 = vunpack.c.h.b16 %v1006
        %v1523 = vunpack.c.l.b16 %v1007
        %v1524 = vunpack.c.h.b16 %v1007
        %v1525 = vunpack.c.l.b16 %v1008
        %v1526 = vunpack.c.h.b16 %v1008
        %v1527 = vunpack.c.l.b16 %v1009
        %v1528 = vunpack.c.h.b16 %v1009
        %v1529 = vunpack.c.l.b16 %v1010
        %v1530 = vunpack.c.h.b16 %v1010
        %v1531 = vunpack.c.l.b16 %v1011
        %v1532 = vunpack.c.h.b16 %v1011
        %v1533 = vunpack.c.l.b16 %v1012
        %v1534 = vunpack.c.h.b16 %v1012
        %v1535 = vunpack.c.l.b16 %v1013
        %v1536 = vunpack.c.h.b16 %v1013
        %v1537 = vpack.c.b16 %v1413, %v1409
        %v1538 = vpack.c.b16 %v1414, %v1410
        %v1539 = vpack.c.b16 %v1415, %v1411
        %v1540 = vpack.c.b16 %v1416, %v1412
        %v1541 = vpack.c.b16 %v1421, %v1417
        %v1542 = vpack.c.b16 %v1422, %v1418
        %v1543 = vpack.c.b16 %v1423, %v1419
        %v1544 = vpack.c.b16 %v1424, %v1420
        %v1545 = vpack.c.b16 %v1429, %v1425
        %v1546 = vpack.c.b16 %v1430, %v1426
        %v1547 = vpack.c.b16 %v1431, %v1427
        %v1548 = vpack.c.b16 %v1432, %v1428
        %v1549 = vpack.c.b16 %v1437, %v1433
        %v1550 = vpack.c.b16 %v1438, %v1434
        %v1551 = vpack.c.b16 %v1439, %v1435
        %v1552 = vpack.c.b16 %v1440, %v1436
        %v1553 = vpack.c.b16 %v1445, %v1441
        %v1554 = vpack.c.b16 %v1446, %v1442
        %v1555 = vpack.c.b16 %v1447, %v1443
        %v1556 = vpack.c.b16 %v1448, %v1444
        %v1557 = vpack.c.b16 %v1453, %v1449
        %v1558 = vpack.c.b16 %v1454, %v1450
        %v1559 = vpack.c.b16 %v1455, %v1451
        %v1560 = vpack.c.b16 %v1456, %v1452
        %v1561 = vpack.c.b16 %v1461, %v1457
        %v1562 = vpack.c.b16 %v1462, %v1458
        %v1563 = vpack.c.b16 %v1463, %v1459
        %v1564 = vpack.c.b16 %v1464, %v1460
        %v1565 = vpack.c.b16 %v1469, %v1465
        %v1566 = vpack.c.b16 %v1470, %v1466
        %v1567 = vpack.c.b16 %v1471, %v1467
        %v1568 = vpack.c.b16 %v1472, %v1468
        %v1569 = vpack.c.b16 %v1477, %v1473
        %v1570 = vpack.c.b16 %v1478, %v1474
        %v1571 = vpack.c.b16 %v1479, %v1475
        %v1572 = vpack.c.b16 %v1480, %v1476
        %v1573 = vpack.c.b16 %v1485, %v1481
        %v1574 = vpack.c.b16 %v1486, %v1482
        %v1575 = vpack.c.b16 %v1487, %v1483
        %v1576 = vpack.c.b16 %v1488, %v1484
        %v1577 = vpack.c.b16 %v1493, %v1489
        %v1578 = vpack.c.b16 %v1494, %v1490
        %v1579 = vpack.c.b16 %v1495, %v1491
        %v1580 = vpack.c.b16 %v1496, %v1492
        %v1581 = vpack.c.b16 %v1501, %v1497
        %v1582 = vpack.c.b16 %v1502, %v1498
        %v1583 = vpack.c.b16 %v1503, %v1499
        %v1584 = vpack.c.b16 %v1504, %v1500
        %v1585 = vpack.c.b16 %v1509, %v1505
        %v1586 = vpack.c.b16 %v1510, %v1506
        %v1587 = vpack.c.b16 %v1511, %v1507
        %v1588 = vpack.c.b16 %v1512, %v1508
        %v1589 = vpack.c.b16 %v1517, %v1513
        %v1590 = vpack.c.b16 %v1518, %v1514
        %v1591 = vpack.c.b16 %v1519, %v1515
        %v1592 = vpack.c.b16 %v1520, %v1516
        %v1593 = vpack.c.b16 %v1525, %v1521
        %v1594 = vpack.c.b16 %v1526, %v1522
        %v1595 = vpack.c.b16 %v1527, %v1523
        %v1596 = vpack.c.b16 %v1528, %v1524
        %v1597 = vpack.c.b16 %v1533, %v1529
        %v1598 = vpack.c.b16 %v1534, %v1530
        %v1599 = vpack.c.b16 %v1535, %v1531
        %v1600 = vpack.c.b16 %v1536, %v1532
        %1665 = vmatprep.subr.bf16.mxu0 %v1538
        %1666 = vmatpush1.bf16.msra.mxu0 %v1537
        %1667 = vmatprep.subr.bf16.mxu0 %v1542
        %1668 = vmatpush1.bf16.msra.mxu0 %v1541
        %1669 = vmatprep.subr.bf16.mxu0 %v1546
        %1670 = vmatpush1.bf16.msra.mxu0 %v1545
        %1671 = vmatprep.subr.bf16.mxu0 %v1550
        %1672 = vmatpush1.bf16.msra.mxu0 %v1549
        %1673 = vmatprep.subr.bf16.mxu0 %v1554
        %1674 = vmatpush1.bf16.msra.mxu0 %v1553
        %1675 = vmatprep.subr.bf16.mxu0 %v1558
        %1676 = vmatpush1.bf16.msra.mxu0 %v1557
        %1677 = vmatprep.subr.bf16.mxu0 %v1562
        %1678 = vmatpush1.bf16.msra.mxu0 %v1561
        %1679 = vmatprep.subr.bf16.mxu0 %v1566
        %1680 = vmatpush1.bf16.msra.mxu0 %v1565
        %1681 = vmatprep.subr.bf16.mxu0 %v1570
        %1682 = vmatpush1.bf16.msra.mxu0 %v1569
        %1683 = vmatprep.subr.bf16.mxu0 %v1574
        %1684 = vmatpush1.bf16.msra.mxu0 %v1573
        %1685 = vmatprep.subr.bf16.mxu0 %v1578
        %1686 = vmatpush1.bf16.msra.mxu0 %v1577
        %1687 = vmatprep.subr.bf16.mxu0 %v1582
        %1688 = vmatpush1.bf16.msra.mxu0 %v1581
        %1689 = vmatprep.subr.bf16.mxu0 %v1586
        %1690 = vmatpush1.bf16.msra.mxu0 %v1585
        %1691 = vmatprep.subr.bf16.mxu0 %v1590
        %1692 = vmatpush1.bf16.msra.mxu0 %v1589
        %1693 = vmatprep.subr.bf16.mxu0 %v1594
        %1694 = vmatpush1.bf16.msra.mxu0 %v1593
        %1695 = vmatprep.subr.bf16.mxu0 %v1598
        %1696 = vmatpush1.bf16.msra.mxu0 %v1597
        %1697 = vmatprep.mubr.bf16.mxu0 %v1344
        %1698 = vmatmul.mubr.bf16.gmra.mrb[0].mxu0 %v1343
        %v1699 = vpop.f32.mrb[0].mxu0
        %v1700 = vadd.f32 %v1041, %v1699
        %v1701 = vpop.f32.mrb[0].mxu0
        %v1702 = vadd.f32 %v1045, %v1701
        %v1703 = vpop.f32.mrb[0].mxu0
        %v1704 = vpop.f32.mrb[0].mxu0
        %1705 = vdwg.mxu0
        %1706 = vmatprep.subr.bf16.mxu0 %v1540
        %1707 = vmatpush1.bf16.msra.mxu0 %v1539
        %1708 = vmatprep.subr.bf16.mxu0 %v1544
        %1709 = vmatpush1.bf16.msra.mxu0 %v1543
        %1710 = vmatprep.subr.bf16.mxu0 %v1548
        %1711 = vmatpush1.bf16.msra.mxu0 %v1547
        %1712 = vmatprep.subr.bf16.mxu0 %v1552
        %1713 = vmatpush1.bf16.msra.mxu0 %v1551
        %1714 = vmatprep.subr.bf16.mxu0 %v1556
        %1715 = vmatpush1.bf16.msra.mxu0 %v1555
        %1716 = vmatprep.subr.bf16.mxu0 %v1560
        %1717 = vmatpush1.bf16.msra.mxu0 %v1559
        %1718 = vmatprep.subr.bf16.mxu0 %v1564
        %1719 = vmatpush1.bf16.msra.mxu0 %v1563
        %1720 = vmatprep.subr.bf16.mxu0 %v1568
        %1721 = vmatpush1.bf16.msra.mxu0 %v1567
        %1722 = vmatprep.subr.bf16.mxu0 %v1572
        %1723 = vmatpush1.bf16.msra.mxu0 %v1571
        %1724 = vmatprep.subr.bf16.mxu0 %v1576
        %1725 = vmatpush1.bf16.msra.mxu0 %v1575
        %1726 = vmatprep.subr.bf16.mxu0 %v1580
        %1727 = vmatpush1.bf16.msra.mxu0 %v1579
        %1728 = vmatprep.subr.bf16.mxu0 %v1584
        %1729 = vmatpush1.bf16.msra.mxu0 %v1583
        %1730 = vmatprep.subr.bf16.mxu0 %v1588
        %1731 = vmatpush1.bf16.msra.mxu0 %v1587
        %1732 = vmatprep.subr.bf16.mxu0 %v1592
        %1733 = vmatpush1.bf16.msra.mxu0 %v1591
        %1734 = vmatprep.subr.bf16.mxu0 %v1596
        %1735 = vmatpush1.bf16.msra.mxu0 %v1595
        %1736 = vmatprep.subr.bf16.mxu0 %v1600
        %1737 = vmatpush1.bf16.msra.mxu0 %v1599
        %1738 = vmatprep.mubr.bf16.mxu0 %v1344
        %1739 = vmatmul.mubr.bf16.gmra.mrb[0].mxu0 %v1343
        %v1740 = vpop.f32.mrb[0].mxu0
        %v1741 = vadd.f32 %v1049, %v1740
        %v1742 = vpop.f32.mrb[0].mxu0
        %v1743 = vadd.f32 %v1053, %v1742
        %v1744 = vpop.f32.mrb[0].mxu0
        %v1745 = vpop.f32.mrb[0].mxu0
        %1746 = vdwg.mxu0
        %v1747 = vxor.u32 %v1700, 2147483648
        %v1748 = vmul.f32 %v1747, 1.442695
        %v1749 = vpow.pop %v1748
        %v1750 = vadd.f32 %v1749, 1.0
        %v1751 = vrcp.pop %v1750
        %v1752 = vmul.f32 1.0, %v1751
        %v1753 = vxor.u32 %v1702, 2147483648
        %v1754 = vmul.f32 %v1753, 1.442695
        %v1755 = vpow.pop %v1754
        %v1756 = vadd.f32 %v1755, 1.0
        %v1757 = vrcp.pop %v1756
        %v1758 = vmul.f32 1.0, %v1757
        %v1759 = vtanh.pop %v1741
        %v1760 = vxor.u32 %v1743, 2147483648
        %v1761 = vmul.f32 %v1760, 1.442695
        %v1762 = vpow.pop %v1761
        %v1763 = vadd.f32 %v1762, 1.0
        %v1764 = vrcp.pop %v1763
        %v1765 = vmul.f32 1.0, %v1764
        %v1766 = vmul.f32 %v1758, %v1063
        %v1767 = vmul.f32 %v1752, %v1759
        %v1768 = vadd.f32 %v1766, %v1767
        %v1769 = vtanh.pop %v1768
        %v1770 = vmul.f32 %v1765, %v1769
        %1771 = vst [vmem:[#allocation3] sm:$0xff] %v1770
        %s1772 = scalar_lea.vmem [#allocation2], 32
        %v1773 = vld [vmem:[%s1772] sm:$0xff]
        %v1774 = vld [vmem:[%s1772 + $0x8] sm:$0xff]
        %v1775 = vld [vmem:[%s1772 + $0x10] sm:$0xff]
        %v1776 = vld [vmem:[%s1772 + $0x18] sm:$0xff]
        %1777 = vmatprep.subr.bf16.mxu0 %v1166
        %1778 = vmatpush1.bf16.msra.mxu0 %v1165
        %1779 = vmatprep.subr.bf16.mxu0 %v1170
        %1780 = vmatpush1.bf16.msra.mxu0 %v1169
        %1781 = vmatprep.subr.bf16.mxu0 %v1174
        %1782 = vmatpush1.bf16.msra.mxu0 %v1173
        %1783 = vmatprep.subr.bf16.mxu0 %v1178
        %1784 = vmatpush1.bf16.msra.mxu0 %v1177
        %1785 = vmatprep.subr.bf16.mxu0 %v1182
        %1786 = vmatpush1.bf16.msra.mxu0 %v1181
        %1787 = vmatprep.subr.bf16.mxu0 %v1186
        %1788 = vmatpush1.bf16.msra.mxu0 %v1185
        %1789 = vmatprep.subr.bf16.mxu0 %v1190
        %1790 = vmatpush1.bf16.msra.mxu0 %v1189
        %1791 = vmatprep.subr.bf16.mxu0 %v1194
        %1792 = vmatpush1.bf16.msra.mxu0 %v1193
        %1793 = vmatprep.subr.bf16.mxu0 0
        %1794 = vmatpush1.bf16.msra.mxu0 0
        %1795 = vmatprep.subr.bf16.mxu0 0
        %1796 = vmatpush1.bf16.msra.mxu0 0
        %1797 = vmatprep.subr.bf16.mxu0 0
        %1798 = vmatpush1.bf16.msra.mxu0 0
        %1799 = vmatprep.subr.bf16.mxu0 0
        %1800 = vmatpush1.bf16.msra.mxu0 0
        %1801 = vmatprep.subr.bf16.mxu0 0
        %1802 = vmatpush1.bf16.msra.mxu0 0
        %1803 = vmatprep.subr.bf16.mxu0 0
        %1804 = vmatpush1.bf16.msra.mxu0 0
        %1805 = vmatprep.subr.bf16.mxu0 0
        %1806 = vmatpush1.bf16.msra.mxu0 0
        %1807 = vmatprep.subr.bf16.mxu0 0
        %1808 = vmatpush1.bf16.msra.mxu0 0
        %1809 = vmatprep.mubr.bf16.mxu0 0
        %1810 = vmatmul.mubr.bf16.gmra.mrb[0].mxu0 %v1343
        %v1811 = vpop.f32.mrb[0].mxu0
        %v1812 = vadd.f32 0.0, %v1811
        %v1813 = vpop.f32.mrb[0].mxu0
        %v1814 = vadd.f32 0.0, %v1813
        %v1815 = vpop.f32.mrb[0].mxu0
        %v1816 = vpop.f32.mrb[0].mxu0
        %1817 = vdwg.mxu0
        %1818 = vmatprep.subr.bf16.mxu0 %v1168
        %1819 = vmatpush1.bf16.msra.mxu0 %v1167
        %1820 = vmatprep.subr.bf16.mxu0 %v1172
        %1821 = vmatpush1.bf16.msra.mxu0 %v1171
        %1822 = vmatprep.subr.bf16.mxu0 %v1176
        %1823 = vmatpush1.bf16.msra.mxu0 %v1175
        %1824 = vmatprep.subr.bf16.mxu0 %v1180
        %1825 = vmatpush1.bf16.msra.mxu0 %v1179
        %1826 = vmatprep.subr.bf16.mxu0 %v1184
        %1827 = vmatpush1.bf16.msra.mxu0 %v1183
        %1828 = vmatprep.subr.bf16.mxu0 %v1188
        %1829 = vmatpush1.bf16.msra.mxu0 %v1187
        %1830 = vmatprep.subr.bf16.mxu0 %v1192
        %1831 = vmatpush1.bf16.msra.mxu0 %v1191
        %1832 = vmatprep.subr.bf16.mxu0 %v1196
        %1833 = vmatpush1.bf16.msra.mxu0 %v1195
        %1834 = vmatprep.subr.bf16.mxu0 0
        %1835 = vmatpush1.bf16.msra.mxu0 0
        %1836 = vmatprep.subr.bf16.mxu0 0
        %1837 = vmatpush1.bf16.msra.mxu0 0
        %1838 = vmatprep.subr.bf16.mxu0 0
        %1839 = vmatpush1.bf16.msra.mxu0 0
        %1840 = vmatprep.subr.bf16.mxu0 0
        %1841 = vmatpush1.bf16.msra.mxu0 0
        %1842 = vmatprep.subr.bf16.mxu0 0
        %1843 = vmatpush1.bf16.msra.mxu0 0
        %1844 = vmatprep.subr.bf16.mxu0 0
        %1845 = vmatpush1.bf16.msra.mxu0 0
        %1846 = vmatprep.subr.bf16.mxu0 0
        %1847 = vmatpush1.bf16.msra.mxu0 0
        %1848 = vmatprep.subr.bf16.mxu0 0
        %1849 = vmatpush1.bf16.msra.mxu0 0
        %1850 = vmatprep.mubr.bf16.mxu0 0
        %1851 = vmatmul.mubr.bf16.gmra.mrb[0].mxu0 %v1343
        %v1852 = vpop.f32.mrb[0].mxu0
        %v1853 = vadd.f32 0.0, %v1852
        %v1854 = vpop.f32.mrb[0].mxu0
        %v1855 = vadd.f32 0.0, %v1854
        %v1856 = vpop.f32.mrb[0].mxu0
        %v1857 = vpop.f32.mrb[0].mxu0
        %1858 = vdwg.mxu0
        %v1859 = vadd.f32 %v1773, %v1812
        %v1860 = vadd.f32 %v1774, %v1814
        %v1861 = vadd.f32 %v1775, %v1853
        %v1862 = vadd.f32 %v1776, %v1855
        %v1863 = vadd.f32 %v1859, %v1019
        %v1864 = vadd.f32 %v1860, %v1023
        %v1865 = vadd.f32 %v1861, %v1027
        %v1866 = vadd.f32 %v1862, %v1031
        %v1867 = vxor.u32 %v1863, 2147483648
        %v1868 = vmul.f32 %v1867, 1.442695
        %v1869 = vpow.pop %v1868
        %v1870 = vadd.f32 %v1869, 1.0
        %v1871 = vrcp.pop %v1870
        %v1872 = vmul.f32 1.0, %v1871
        %v1873 = vxor.u32 %v1864, 2147483648
        %v1874 = vmul.f32 %v1873, 1.442695
        %v1875 = vpow.pop %v1874
        %v1876 = vadd.f32 %v1875, 1.0
        %v1877 = vrcp.pop %v1876
        %v1878 = vmul.f32 1.0, %v1877
        %v1879 = vtanh.pop %v1865
        %v1880 = vxor.u32 %v1866, 2147483648
        %v1881 = vmul.f32 %v1880, 1.442695
        %v1882 = vpow.pop %v1881
        %v1883 = vadd.f32 %v1882, 1.0
        %v1884 = vrcp.pop %v1883
        %v1885 = vmul.f32 1.0, %v1884
        %v1886 = vmul.f32 %v1878, %v1340
        %v1887 = vmul.f32 %v1872, %v1879
        %v1888 = vadd.f32 %v1886, %v1887
        %v1889 = vtanh.pop %v1888
        %v1890 = vmul.f32 %v1885, %v1889
        %v1891 = vpack.c.bf16 %v1890, %v1890
        %v1892 = vpack.c.bf16 %v1770, %v1770
        %1893 = vmatprep.subr.bf16.mxu0 %v1538
        %1894 = vmatpush1.bf16.msra.mxu0 %v1537
        %1895 = vmatprep.subr.bf16.mxu0 %v1542
        %1896 = vmatpush1.bf16.msra.mxu0 %v1541
        %1897 = vmatprep.subr.bf16.mxu0 %v1546
        %1898 = vmatpush1.bf16.msra.mxu0 %v1545
        %1899 = vmatprep.subr.bf16.mxu0 %v1550
        %1900 = vmatpush1.bf16.msra.mxu0 %v1549
        %1901 = vmatprep.subr.bf16.mxu0 %v1554
        %1902 = vmatpush1.bf16.msra.mxu0 %v1553
        %1903 = vmatprep.subr.bf16.mxu0 %v1558
        %1904 = vmatpush1.bf16.msra.mxu0 %v1557
        %1905 = vmatprep.subr.bf16.mxu0 %v1562
        %1906 = vmatpush1.bf16.msra.mxu0 %v1561
        %1907 = vmatprep.subr.bf16.mxu0 %v1566
        %1908 = vmatpush1.bf16.msra.mxu0 %v1565
        %1909 = vmatprep.subr.bf16.mxu0 %v1570
        %1910 = vmatpush1.bf16.msra.mxu0 %v1569
        %1911 = vmatprep.subr.bf16.mxu0 %v1574
        %1912 = vmatpush1.bf16.msra.mxu0 %v1573
        %1913 = vmatprep.subr.bf16.mxu0 %v1578
        %1914 = vmatpush1.bf16.msra.mxu0 %v1577
        %1915 = vmatprep.subr.bf16.mxu0 %v1582
        %1916 = vmatpush1.bf16.msra.mxu0 %v1581
        %1917 = vmatprep.subr.bf16.mxu0 %v1586
        %1918 = vmatpush1.bf16.msra.mxu0 %v1585
        %1919 = vmatprep.subr.bf16.mxu0 %v1590
        %1920 = vmatpush1.bf16.msra.mxu0 %v1589
        %1921 = vmatprep.subr.bf16.mxu0 %v1594
        %1922 = vmatpush1.bf16.msra.mxu0 %v1593
        %1923 = vmatprep.subr.bf16.mxu0 %v1598
        %1924 = vmatpush1.bf16.msra.mxu0 %v1597
        %1925 = vmatprep.mubr.bf16.mxu0 %v1892
        %1926 = vmatmul.mubr.bf16.gmra.mrb[0].mxu0 %v1891
        %v1927 = vpop.f32.mrb[0].mxu0
        %v1928 = vadd.f32 %v1041, %v1927
        %v1929 = vpop.f32.mrb[0].mxu0
        %v1930 = vadd.f32 %v1045, %v1929
        %v1931 = vpop.f32.mrb[0].mxu0
        %v1932 = vpop.f32.mrb[0].mxu0
        %1933 = vdwg.mxu0
        %1934 = vmatprep.subr.bf16.mxu0 %v1540
        %1935 = vmatpush1.bf16.msra.mxu0 %v1539
        %1936 = vmatprep.subr.bf16.mxu0 %v1544
        %1937 = vmatpush1.bf16.msra.mxu0 %v1543
        %1938 = vmatprep.subr.bf16.mxu0 %v1548
        %1939 = vmatpush1.bf16.msra.mxu0 %v1547
        %1940 = vmatprep.subr.bf16.mxu0 %v1552
        %1941 = vmatpush1.bf16.msra.mxu0 %v1551
        %1942 = vmatprep.subr.bf16.mxu0 %v1556
        %1943 = vmatpush1.bf16.msra.mxu0 %v1555
        %1944 = vmatprep.subr.bf16.mxu0 %v1560
        %1945 = vmatpush1.bf16.msra.mxu0 %v1559
        %1946 = vmatprep.subr.bf16.mxu0 %v1564
        %1947 = vmatpush1.bf16.msra.mxu0 %v1563
        %1948 = vmatprep.subr.bf16.mxu0 %v1568
        %1949 = vmatpush1.bf16.msra.mxu0 %v1567
        %1950 = vmatprep.subr.bf16.mxu0 %v1572
        %1951 = vmatpush1.bf16.msra.mxu0 %v1571
        %1952 = vmatprep.subr.bf16.mxu0 %v1576
        %1953 = vmatpush1.bf16.msra.mxu0 %v1575
        %1954 = vmatprep.subr.bf16.mxu0 %v1580
        %1955 = vmatpush1.bf16.msra.mxu0 %v1579
        %1956 = vmatprep.subr.bf16.mxu0 %v1584
        %1957 = vmatpush1.bf16.msra.mxu0 %v1583
        %1958 = vmatprep.subr.bf16.mxu0 %v1588
        %1959 = vmatpush1.bf16.msra.mxu0 %v1587
        %1960 = vmatprep.subr.bf16.mxu0 %v1592
        %1961 = vmatpush1.bf16.msra.mxu0 %v1591
        %1962 = vmatprep.subr.bf16.mxu0 %v1596
        %1963 = vmatpush1.bf16.msra.mxu0 %v1595
        %1964 = vmatprep.subr.bf16.mxu0 %v1600
        %1965 = vmatpush1.bf16.msra.mxu0 %v1599
        %1966 = vmatprep.mubr.bf16.mxu0 %v1892
        %1967 = vmatmul.mubr.bf16.gmra.mrb[0].mxu0 %v1891
        %v1968 = vpop.f32.mrb[0].mxu0
        %v1969 = vadd.f32 %v1049, %v1968
        %v1970 = vpop.f32.mrb[0].mxu0
        %v1971 = vadd.f32 %v1053, %v1970
        %v1972 = vpop.f32.mrb[0].mxu0
        %v1973 = vpop.f32.mrb[0].mxu0
        %1974 = vdwg.mxu0
        %v1975 = vxor.u32 %v1928, 2147483648
        %v1976 = vmul.f32 %v1975, 1.442695
        %v1977 = vpow.pop %v1976
        %v1978 = vadd.f32 %v1977, 1.0
        %v1979 = vrcp.pop %v1978
        %v1980 = vmul.f32 1.0, %v1979
        %v1981 = vxor.u32 %v1930, 2147483648
        %v1982 = vmul.f32 %v1981, 1.442695
        %v1983 = vpow.pop %v1982
        %v1984 = vadd.f32 %v1983, 1.0
        %v1985 = vrcp.pop %v1984
        %v1986 = vmul.f32 1.0, %v1985
        %v1987 = vtanh.pop %v1969
        %v1988 = vxor.u32 %v1971, 2147483648
        %v1989 = vmul.f32 %v1988, 1.442695
        %v1990 = vpow.pop %v1989
        %v1991 = vadd.f32 %v1990, 1.0
        %v1992 = vrcp.pop %v1991
        %v1993 = vmul.f32 1.0, %v1992
        %v1994 = vmul.f32 %v1986, %v1768
        %v1995 = vmul.f32 %v1980, %v1987
        %v1996 = vadd.f32 %v1994, %v1995
        %v1997 = vtanh.pop %v1996
        %v1998 = vmul.f32 %v1993, %v1997
        %s1999 = scalar_lea.vmem [#allocation3], 8
        %2000 = vst [vmem:[%s1999] sm:$0xff] %v1998
        %s2001 = scalar_lea.vmem [#allocation2], 64
        %v2002 = vld [vmem:[%s2001] sm:$0xff]
        %v2003 = vld [vmem:[%s2001 + $0x8] sm:$0xff]
        %v2004 = vld [vmem:[%s2001 + $0x10] sm:$0xff]
        %v2005 = vld [vmem:[%s2001 + $0x18] sm:$0xff]
        %2006 = vmatprep.subr.bf16.mxu0 %v1166
        %2007 = vmatpush1.bf16.msra.mxu0 %v1165
        %2008 = vmatprep.subr.bf16.mxu0 %v1170
        %2009 = vmatpush1.bf16.msra.mxu0 %v1169
        %2010 = vmatprep.subr.bf16.mxu0 %v1174
        %2011 = vmatpush1.bf16.msra.mxu0 %v1173
        %2012 = vmatprep.subr.bf16.mxu0 %v1178
        %2013 = vmatpush1.bf16.msra.mxu0 %v1177
        %2014 = vmatprep.subr.bf16.mxu0 %v1182
        %2015 = vmatpush1.bf16.msra.mxu0 %v1181
        %2016 = vmatprep.subr.bf16.mxu0 %v1186
        %2017 = vmatpush1.bf16.msra.mxu0 %v1185
        %2018 = vmatprep.subr.bf16.mxu0 %v1190
        %2019 = vmatpush1.bf16.msra.mxu0 %v1189
        %2020 = vmatprep.subr.bf16.mxu0 %v1194
        %2021 = vmatpush1.bf16.msra.mxu0 %v1193
        %2022 = vmatprep.subr.bf16.mxu0 0
        %2023 = vmatpush1.bf16.msra.mxu0 0
        %2024 = vmatprep.subr.bf16.mxu0 0
        %2025 = vmatpush1.bf16.msra.mxu0 0
        %2026 = vmatprep.subr.bf16.mxu0 0
        %2027 = vmatpush1.bf16.msra.mxu0 0
        %2028 = vmatprep.subr.bf16.mxu0 0
        %2029 = vmatpush1.bf16.msra.mxu0 0
        %2030 = vmatprep.subr.bf16.mxu0 0
        %2031 = vmatpush1.bf16.msra.mxu0 0
        %2032 = vmatprep.subr.bf16.mxu0 0
        %2033 = vmatpush1.bf16.msra.mxu0 0
        %2034 = vmatprep.subr.bf16.mxu0 0
        %2035 = vmatpush1.bf16.msra.mxu0 0
        %2036 = vmatprep.subr.bf16.mxu0 0
        %2037 = vmatpush1.bf16.msra.mxu0 0
        %2038 = vmatprep.mubr.bf16.mxu0 0
        %2039 = vmatmul.mubr.bf16.gmra.mrb[0].mxu0 %v1891
        %v2040 = vpop.f32.mrb[0].mxu0
        %v2041 = vadd.f32 0.0, %v2040
        %v2042 = vpop.f32.mrb[0].mxu0
        %v2043 = vadd.f32 0.0, %v2042
        %v2044 = vpop.f32.mrb[0].mxu0
        %v2045 = vpop.f32.mrb[0].mxu0
        %2046 = vdwg.mxu0
        %2047 = vmatprep.subr.bf16.mxu0 %v1168
        %2048 = vmatpush1.bf16.msra.mxu0 %v1167
        %2049 = vmatprep.subr.bf16.mxu0 %v1172
        %2050 = vmatpush1.bf16.msra.mxu0 %v1171
        %2051 = vmatprep.subr.bf16.mxu0 %v1176
        %2052 = vmatpush1.bf16.msra.mxu0 %v1175
        %2053 = vmatprep.subr.bf16.mxu0 %v1180
        %2054 = vmatpush1.bf16.msra.mxu0 %v1179
        %2055 = vmatprep.subr.bf16.mxu0 %v1184
        %2056 = vmatpush1.bf16.msra.mxu0 %v1183
        %2057 = vmatprep.subr.bf16.mxu0 %v1188
        %2058 = vmatpush1.bf16.msra.mxu0 %v1187
        %2059 = vmatprep.subr.bf16.mxu0 %v1192
        %2060 = vmatpush1.bf16.msra.mxu0 %v1191
        %2061 = vmatprep.subr.bf16.mxu0 %v1196
        %2062 = vmatpush1.bf16.msra.mxu0 %v1195
        %2063 = vmatprep.subr.bf16.mxu0 0
        %2064 = vmatpush1.bf16.msra.mxu0 0
        %2065 = vmatprep.subr.bf16.mxu0 0
        %2066 = vmatpush1.bf16.msra.mxu0 0
        %2067 = vmatprep.subr.bf16.mxu0 0
        %2068 = vmatpush1.bf16.msra.mxu0 0
        %2069 = vmatprep.subr.bf16.mxu0 0
        %2070 = vmatpush1.bf16.msra.mxu0 0
        %2071 = vmatprep.subr.bf16.mxu0 0
        %2072 = vmatpush1.bf16.msra.mxu0 0
        %2073 = vmatprep.subr.bf16.mxu0 0
        %2074 = vmatpush1.bf16.msra.mxu0 0
        %2075 = vmatprep.subr.bf16.mxu0 0
        %2076 = vmatpush1.bf16.msra.mxu0 0
        %2077 = vmatprep.subr.bf16.mxu0 0
        %2078 = vmatpush1.bf16.msra.mxu0 0
        %2079 = vmatprep.mubr.bf16.mxu0 0
        %2080 = vmatmul.mubr.bf16.gmra.mrb[0].mxu0 %v1891
        %v2081 = vpop.f32.mrb[0].mxu0
        %v2082 = vadd.f32 0.0, %v2081
        %v2083 = vpop.f32.mrb[0].mxu0
        %v2084 = vadd.f32 0.0, %v2083
        %v2085 = vpop.f32.mrb[0].mxu0
        %v2086 = vpop.f32.mrb[0].mxu0
        %2087 = vdwg.mxu0
        %v2088 = vadd.f32 %v2002, %v2041
        %v2089 = vadd.f32 %v2003, %v2043
        %v2090 = vadd.f32 %v2004, %v2082
        %v2091 = vadd.f32 %v2005, %v2084
        %v2092 = vadd.f32 %v2088, %v1019
        %v2093 = vadd.f32 %v2089, %v1023
        %v2094 = vadd.f32 %v2090, %v1027
        %v2095 = vadd.f32 %v2091, %v1031
        %v2096 = vxor.u32 %v2092, 2147483648
        %v2097 = vmul.f32 %v2096, 1.442695
        %v2098 = vpow.pop %v2097
        %v2099 = vadd.f32 %v2098, 1.0
        %v2100 = vrcp.pop %v2099
        %v2101 = vmul.f32 1.0, %v2100
        %v2102 = vxor.u32 %v2093, 2147483648
        %v2103 = vmul.f32 %v2102, 1.442695
        %v2104 = vpow.pop %v2103
        %v2105 = vadd.f32 %v2104, 1.0
        %v2106 = vrcp.pop %v2105
        %v2107 = vmul.f32 1.0, %v2106
        %v2108 = vtanh.pop %v2094
        %v2109 = vxor.u32 %v2095, 2147483648
        %v2110 = vmul.f32 %v2109, 1.442695
        %v2111 = vpow.pop %v2110
        %v2112 = vadd.f32 %v2111, 1.0
        %v2113 = vrcp.pop %v2112
        %v2114 = vmul.f32 1.0, %v2113
        %v2115 = vmul.f32 %v2107, %v1888
        %v2116 = vmul.f32 %v2101, %v2108
        %v2117 = vadd.f32 %v2115, %v2116
        %v2118 = vtanh.pop %v2117
        %v2119 = vmul.f32 %v2114, %v2118
        %v2120 = vpack.c.bf16 %v2119, %v2119
        %v2121 = vpack.c.bf16 %v1998, %v1998
        %2122 = vmatprep.subr.bf16.mxu0 %v1538
        %2123 = vmatpush1.bf16.msra.mxu0 %v1537
        %2124 = vmatprep.subr.bf16.mxu0 %v1542
        %2125 = vmatpush1.bf16.msra.mxu0 %v1541
        %2126 = vmatprep.subr.bf16.mxu0 %v1546
        %2127 = vmatpush1.bf16.msra.mxu0 %v1545
        %2128 = vmatprep.subr.bf16.mxu0 %v1550
        %2129 = vmatpush1.bf16.msra.mxu0 %v1549
        %2130 = vmatprep.subr.bf16.mxu0 %v1554
        %2131 = vmatpush1.bf16.msra.mxu0 %v1553
        %2132 = vmatprep.subr.bf16.mxu0 %v1558
        %2133 = vmatpush1.bf16.msra.mxu0 %v1557
        %2134 = vmatprep.subr.bf16.mxu0 %v1562
        %2135 = vmatpush1.bf16.msra.mxu0 %v1561
        %2136 = vmatprep.subr.bf16.mxu0 %v1566
        %2137 = vmatpush1.bf16.msra.mxu0 %v1565
        %2138 = vmatprep.subr.bf16.mxu0 %v1570
        %2139 = vmatpush1.bf16.msra.mxu0 %v1569
        %2140 = vmatprep.subr.bf16.mxu0 %v1574
        %2141 = vmatpush1.bf16.msra.mxu0 %v1573
        %2142 = vmatprep.subr.bf16.mxu0 %v1578
        %2143 = vmatpush1.bf16.msra.mxu0 %v1577
        %2144 = vmatprep.subr.bf16.mxu0 %v1582
        %2145 = vmatpush1.bf16.msra.mxu0 %v1581
        %2146 = vmatprep.subr.bf16.mxu0 %v1586
        %2147 = vmatpush1.bf16.msra.mxu0 %v1585
        %2148 = vmatprep.subr.bf16.mxu0 %v1590
        %2149 = vmatpush1.bf16.msra.mxu0 %v1589
        %2150 = vmatprep.subr.bf16.mxu0 %v1594
        %2151 = vmatpush1.bf16.msra.mxu0 %v1593
        %2152 = vmatprep.subr.bf16.mxu0 %v1598
        %2153 = vmatpush1.bf16.msra.mxu0 %v1597
        %2154 = vmatprep.mubr.bf16.mxu0 %v2121
        %2155 = vmatmul.mubr.bf16.gmra.mrb[0].mxu0 %v2120
        %v2156 = vpop.f32.mrb[0].mxu0
        %v2157 = vadd.f32 %v1041, %v2156
        %v2158 = vpop.f32.mrb[0].mxu0
        %v2159 = vadd.f32 %v1045, %v2158
        %v2160 = vpop.f32.mrb[0].mxu0
        %v2161 = vpop.f32.mrb[0].mxu0
        %2162 = vdwg.mxu0
        %2163 = vmatprep.subr.bf16.mxu0 %v1540
        %2164 = vmatpush1.bf16.msra.mxu0 %v1539
        %2165 = vmatprep.subr.bf16.mxu0 %v1544
        %2166 = vmatpush1.bf16.msra.mxu0 %v1543
        %2167 = vmatprep.subr.bf16.mxu0 %v1548
        %2168 = vmatpush1.bf16.msra.mxu0 %v1547
        %2169 = vmatprep.subr.bf16.mxu0 %v1552
        %2170 = vmatpush1.bf16.msra.mxu0 %v1551
        %2171 = vmatprep.subr.bf16.mxu0 %v1556
        %2172 = vmatpush1.bf16.msra.mxu0 %v1555
        %2173 = vmatprep.subr.bf16.mxu0 %v1560
        %2174 = vmatpush1.bf16.msra.mxu0 %v1559
        %2175 = vmatprep.subr.bf16.mxu0 %v1564
        %2176 = vmatpush1.bf16.msra.mxu0 %v1563
        %2177 = vmatprep.subr.bf16.mxu0 %v1568
        %2178 = vmatpush1.bf16.msra.mxu0 %v1567
        %2179 = vmatprep.subr.bf16.mxu0 %v1572
        %2180 = vmatpush1.bf16.msra.mxu0 %v1571
        %2181 = vmatprep.subr.bf16.mxu0 %v1576
        %2182 = vmatpush1.bf16.msra.mxu0 %v1575
        %2183 = vmatprep.subr.bf16.mxu0 %v1580
        %2184 = vmatpush1.bf16.msra.mxu0 %v1579
        %2185 = vmatprep.subr.bf16.mxu0 %v1584
        %2186 = vmatpush1.bf16.msra.mxu0 %v1583
        %2187 = vmatprep.subr.bf16.mxu0 %v1588
        %2188 = vmatpush1.bf16.msra.mxu0 %v1587
        %2189 = vmatprep.subr.bf16.mxu0 %v1592
        %2190 = vmatpush1.bf16.msra.mxu0 %v1591
        %2191 = vmatprep.subr.bf16.mxu0 %v1596
        %2192 = vmatpush1.bf16.msra.mxu0 %v1595
        %2193 = vmatprep.subr.bf16.mxu0 %v1600
        %2194 = vmatpush1.bf16.msra.mxu0 %v1599
        %2195 = vmatprep.mubr.bf16.mxu0 %v2121
        %2196 = vmatmul.mubr.bf16.gmra.mrb[0].mxu0 %v2120
        %v2197 = vpop.f32.mrb[0].mxu0
        %v2198 = vadd.f32 %v1049, %v2197
        %v2199 = vpop.f32.mrb[0].mxu0
        %v2200 = vadd.f32 %v1053, %v2199
        %v2201 = vpop.f32.mrb[0].mxu0
        %v2202 = vpop.f32.mrb[0].mxu0
        %2203 = vdwg.mxu0
        %v2204 = vxor.u32 %v2157, 2147483648
        %v2205 = vmul.f32 %v2204, 1.442695
        %v2206 = vpow.pop %v2205
        %v2207 = vadd.f32 %v2206, 1.0
        %v2208 = vrcp.pop %v2207
        %v2209 = vmul.f32 1.0, %v2208
        %v2210 = vxor.u32 %v2159, 2147483648
        %v2211 = vmul.f32 %v2210, 1.442695
        %v2212 = vpow.pop %v2211
        %v2213 = vadd.f32 %v2212, 1.0
        %v2214 = vrcp.pop %v2213
        %v2215 = vmul.f32 1.0, %v2214
        %v2216 = vtanh.pop %v2198
        %v2217 = vxor.u32 %v2200, 2147483648
        %v2218 = vmul.f32 %v2217, 1.442695
        %v2219 = vpow.pop %v2218
        %v2220 = vadd.f32 %v2219, 1.0
        %v2221 = vrcp.pop %v2220
        %v2222 = vmul.f32 1.0, %v2221
        %v2223 = vmul.f32 %v2215, %v1996
        %v2224 = vmul.f32 %v2209, %v2216
        %v2225 = vadd.f32 %v2223, %v2224
        %v2226 = vtanh.pop %v2225
        %v2227 = vmul.f32 %v2222, %v2226
        %s2228 = scalar_lea.vmem [#allocation3], 16
        %2229 = vst [vmem:[%s2228] sm:$0xff] %v2227
        %s2230 = scalar_lea.vmem [#allocation2], 96
        %v2231 = vld [vmem:[%s2230] sm:$0xff]
        %v2232 = vld [vmem:[%s2230 + $0x8] sm:$0xff]
        %v2233 = vld [vmem:[%s2230 + $0x10] sm:$0xff]
        %v2234 = vld [vmem:[%s2230 + $0x18] sm:$0xff]
        %2235 = vmatprep.subr.bf16.mxu0 %v1166
        %2236 = vmatpush1.bf16.msra.mxu0 %v1165
        %2237 = vmatprep.subr.bf16.mxu0 %v1170
        %2238 = vmatpush1.bf16.msra.mxu0 %v1169
        %2239 = vmatprep.subr.bf16.mxu0 %v1174
        %2240 = vmatpush1.bf16.msra.mxu0 %v1173
        %2241 = vmatprep.subr.bf16.mxu0 %v1178
        %2242 = vmatpush1.bf16.msra.mxu0 %v1177
        %2243 = vmatprep.subr.bf16.mxu0 %v1182
        %2244 = vmatpush1.bf16.msra.mxu0 %v1181
        %2245 = vmatprep.subr.bf16.mxu0 %v1186
        %2246 = vmatpush1.bf16.msra.mxu0 %v1185
        %2247 = vmatprep.subr.bf16.mxu0 %v1190
        %2248 = vmatpush1.bf16.msra.mxu0 %v1189
        %2249 = vmatprep.subr.bf16.mxu0 %v1194
        %2250 = vmatpush1.bf16.msra.mxu0 %v1193
        %2251 = vmatprep.subr.bf16.mxu0 0
        %2252 = vmatpush1.bf16.msra.mxu0 0
        %2253 = vmatprep.subr.bf16.mxu0 0
        %2254 = vmatpush1.bf16.msra.mxu0 0
        %2255 = vmatprep.subr.bf16.mxu0 0
        %2256 = vmatpush1.bf16.msra.mxu0 0
        %2257 = vmatprep.subr.bf16.mxu0 0
        %2258 = vmatpush1.bf16.msra.mxu0 0
        %2259 = vmatprep.subr.bf16.mxu0 0
        %2260 = vmatpush1.bf16.msra.mxu0 0
        %2261 = vmatprep.subr.bf16.mxu0 0
        %2262 = vmatpush1.bf16.msra.mxu0 0
        %2263 = vmatprep.subr.bf16.mxu0 0
        %2264 = vmatpush1.bf16.msra.mxu0 0
        %2265 = vmatprep.subr.bf16.mxu0 0
        %2266 = vmatpush1.bf16.msra.mxu0 0
        %2267 = vmatprep.mubr.bf16.mxu0 0
        %2268 = vmatmul.mubr.bf16.gmra.mrb[0].mxu0 %v2120
        %v2269 = vpop.f32.mrb[0].mxu0
        %v2270 = vadd.f32 0.0, %v2269
        %v2271 = vpop.f32.mrb[0].mxu0
        %v2272 = vadd.f32 0.0, %v2271
        %v2273 = vpop.f32.mrb[0].mxu0
        %v2274 = vpop.f32.mrb[0].mxu0
        %2275 = vdwg.mxu0
        %2276 = vmatprep.subr.bf16.mxu0 %v1168
        %2277 = vmatpush1.bf16.msra.mxu0 %v1167
        %2278 = vmatprep.subr.bf16.mxu0 %v1172
        %2279 = vmatpush1.bf16.msra.mxu0 %v1171
        %2280 = vmatprep.subr.bf16.mxu0 %v1176
        %2281 = vmatpush1.bf16.msra.mxu0 %v1175
        %2282 = vmatprep.subr.bf16.mxu0 %v1180
        %2283 = vmatpush1.bf16.msra.mxu0 %v1179
        %2284 = vmatprep.subr.bf16.mxu0 %v1184
        %2285 = vmatpush1.bf16.msra.mxu0 %v1183
        %2286 = vmatprep.subr.bf16.mxu0 %v1188
        %2287 = vmatpush1.bf16.msra.mxu0 %v1187
        %2288 = vmatprep.subr.bf16.mxu0 %v1192
        %2289 = vmatpush1.bf16.msra.mxu0 %v1191
        %2290 = vmatprep.subr.bf16.mxu0 %v1196
        %2291 = vmatpush1.bf16.msra.mxu0 %v1195
        %2292 = vmatprep.subr.bf16.mxu0 0
        %2293 = vmatpush1.bf16.msra.mxu0 0
        %2294 = vmatprep.subr.bf16.mxu0 0
        %2295 = vmatpush1.bf16.msra.mxu0 0
        %2296 = vmatprep.subr.bf16.mxu0 0
        %2297 = vmatpush1.bf16.msra.mxu0 0
        %2298 = vmatprep.subr.bf16.mxu0 0
        %2299 = vmatpush1.bf16.msra.mxu0 0
        %2300 = vmatprep.subr.bf16.mxu0 0
        %2301 = vmatpush1.bf16.msra.mxu0 0
        %2302 = vmatprep.subr.bf16.mxu0 0
        %2303 = vmatpush1.bf16.msra.mxu0 0
        %2304 = vmatprep.subr.bf16.mxu0 0
        %2305 = vmatpush1.bf16.msra.mxu0 0
        %2306 = vmatprep.subr.bf16.mxu0 0
        %2307 = vmatpush1.bf16.msra.mxu0 0
        %2308 = vmatprep.mubr.bf16.mxu0 0
        %2309 = vmatmul.mubr.bf16.gmra.mrb[0].mxu0 %v2120
        %v2310 = vpop.f32.mrb[0].mxu0
        %v2311 = vadd.f32 0.0, %v2310
        %v2312 = vpop.f32.mrb[0].mxu0
        %v2313 = vadd.f32 0.0, %v2312
        %v2314 = vpop.f32.mrb[0].mxu0
        %v2315 = vpop.f32.mrb[0].mxu0
        %2316 = vdwg.mxu0
        %v2317 = vadd.f32 %v2231, %v2270
        %v2318 = vadd.f32 %v2232, %v2272
        %v2319 = vadd.f32 %v2233, %v2311
        %v2320 = vadd.f32 %v2234, %v2313
        %v2321 = vadd.f32 %v2317, %v1019
        %v2322 = vadd.f32 %v2318, %v1023
        %v2323 = vadd.f32 %v2319, %v1027
        %v2324 = vadd.f32 %v2320, %v1031
        %v2325 = vxor.u32 %v2321, 2147483648
        %v2326 = vmul.f32 %v2325, 1.442695
        %v2327 = vpow.pop %v2326
        %v2328 = vadd.f32 %v2327, 1.0
        %v2329 = vrcp.pop %v2328
        %v2330 = vmul.f32 1.0, %v2329
        %v2331 = vxor.u32 %v2322, 2147483648
        %v2332 = vmul.f32 %v2331, 1.442695
        %v2333 = vpow.pop %v2332
        %v2334 = vadd.f32 %v2333, 1.0
        %v2335 = vrcp.pop %v2334
        %v2336 = vmul.f32 1.0, %v2335
        %v2337 = vtanh.pop %v2323
        %v2338 = vxor.u32 %v2324, 2147483648
        %v2339 = vmul.f32 %v2338, 1.442695
        %v2340 = vpow.pop %v2339
        %v2341 = vadd.f32 %v2340, 1.0
        %v2342 = vrcp.pop %v2341
        %v2343 = vmul.f32 1.0, %v2342
        %v2344 = vmul.f32 %v2336, %v2117
        %v2345 = vmul.f32 %v2330, %v2337
        %v2346 = vadd.f32 %v2344, %v2345
        %v2347 = vtanh.pop %v2346
        %v2348 = vmul.f32 %v2343, %v2347
        %v2349 = vpack.c.bf16 %v2348, %v2348
        %v2350 = vpack.c.bf16 %v2227, %v2227
        %2351 = vmatprep.subr.bf16.mxu0 %v1538
        %2352 = vmatpush1.bf16.msra.mxu0 %v1537
        %2353 = vmatprep.subr.bf16.mxu0 %v1542
        %2354 = vmatpush1.bf16.msra.mxu0 %v1541
        %2355 = vmatprep.subr.bf16.mxu0 %v1546
        %2356 = vmatpush1.bf16.msra.mxu0 %v1545
        %2357 = vmatprep.subr.bf16.mxu0 %v1550
        %2358 = vmatpush1.bf16.msra.mxu0 %v1549
        %2359 = vmatprep.subr.bf16.mxu0 %v1554
        %2360 = vmatpush1.bf16.msra.mxu0 %v1553
        %2361 = vmatprep.subr.bf16.mxu0 %v1558
        %2362 = vmatpush1.bf16.msra.mxu0 %v1557
        %2363 = vmatprep.subr.bf16.mxu0 %v1562
        %2364 = vmatpush1.bf16.msra.mxu0 %v1561
        %2365 = vmatprep.subr.bf16.mxu0 %v1566
        %2366 = vmatpush1.bf16.msra.mxu0 %v1565
        %2367 = vmatprep.subr.bf16.mxu0 %v1570
        %2368 = vmatpush1.bf16.msra.mxu0 %v1569
        %2369 = vmatprep.subr.bf16.mxu0 %v1574
        %2370 = vmatpush1.bf16.msra.mxu0 %v1573
        %2371 = vmatprep.subr.bf16.mxu0 %v1578
        %2372 = vmatpush1.bf16.msra.mxu0 %v1577
        %2373 = vmatprep.subr.bf16.mxu0 %v1582
        %2374 = vmatpush1.bf16.msra.mxu0 %v1581
        %2375 = vmatprep.subr.bf16.mxu0 %v1586
        %2376 = vmatpush1.bf16.msra.mxu0 %v1585
        %2377 = vmatprep.subr.bf16.mxu0 %v1590
        %2378 = vmatpush1.bf16.msra.mxu0 %v1589
        %2379 = vmatprep.subr.bf16.mxu0 %v1594
        %2380 = vmatpush1.bf16.msra.mxu0 %v1593
        %2381 = vmatprep.subr.bf16.mxu0 %v1598
        %2382 = vmatpush1.bf16.msra.mxu0 %v1597
        %2383 = vmatprep.mubr.bf16.mxu0 %v2350
        %2384 = vmatmul.mubr.bf16.gmra.mrb[0].mxu0 %v2349
        %v2385 = vpop.f32.mrb[0].mxu0
        %v2386 = vadd.f32 %v1041, %v2385
        %v2387 = vpop.f32.mrb[0].mxu0
        %v2388 = vadd.f32 %v1045, %v2387
        %v2389 = vpop.f32.mrb[0].mxu0
        %v2390 = vpop.f32.mrb[0].mxu0
        %2391 = vdwg.mxu0
        %2392 = vmatprep.subr.bf16.mxu0 %v1540
        %2393 = vmatpush1.bf16.msra.mxu0 %v1539
        %2394 = vmatprep.subr.bf16.mxu0 %v1544
        %2395 = vmatpush1.bf16.msra.mxu0 %v1543
        %2396 = vmatprep.subr.bf16.mxu0 %v1548
        %2397 = vmatpush1.bf16.msra.mxu0 %v1547
        %2398 = vmatprep.subr.bf16.mxu0 %v1552
        %2399 = vmatpush1.bf16.msra.mxu0 %v1551
        %2400 = vmatprep.subr.bf16.mxu0 %v1556
        %2401 = vmatpush1.bf16.msra.mxu0 %v1555
        %2402 = vmatprep.subr.bf16.mxu0 %v1560
        %2403 = vmatpush1.bf16.msra.mxu0 %v1559
        %2404 = vmatprep.subr.bf16.mxu0 %v1564
        %2405 = vmatpush1.bf16.msra.mxu0 %v1563
        %2406 = vmatprep.subr.bf16.mxu0 %v1568
        %2407 = vmatpush1.bf16.msra.mxu0 %v1567
        %2408 = vmatprep.subr.bf16.mxu0 %v1572
        %2409 = vmatpush1.bf16.msra.mxu0 %v1571
        %2410 = vmatprep.subr.bf16.mxu0 %v1576
        %2411 = vmatpush1.bf16.msra.mxu0 %v1575
        %2412 = vmatprep.subr.bf16.mxu0 %v1580
        %2413 = vmatpush1.bf16.msra.mxu0 %v1579
        %2414 = vmatprep.subr.bf16.mxu0 %v1584
        %2415 = vmatpush1.bf16.msra.mxu0 %v1583
        %2416 = vmatprep.subr.bf16.mxu0 %v1588
        %2417 = vmatpush1.bf16.msra.mxu0 %v1587
        %2418 = vmatprep.subr.bf16.mxu0 %v1592
        %2419 = vmatpush1.bf16.msra.mxu0 %v1591
        %2420 = vmatprep.subr.bf16.mxu0 %v1596
        %2421 = vmatpush1.bf16.msra.mxu0 %v1595
        %2422 = vmatprep.subr.bf16.mxu0 %v1600
        %2423 = vmatpush1.bf16.msra.mxu0 %v1599
        %2424 = vmatprep.mubr.bf16.mxu0 %v2350
        %2425 = vmatmul.mubr.bf16.gmra.mrb[0].mxu0 %v2349
        %v2426 = vpop.f32.mrb[0].mxu0
        %v2427 = vadd.f32 %v1049, %v2426
        %v2428 = vpop.f32.mrb[0].mxu0
        %v2429 = vadd.f32 %v1053, %v2428
        %v2430 = vpop.f32.mrb[0].mxu0
        %v2431 = vpop.f32.mrb[0].mxu0
        %2432 = vdwg.mxu0
        %v2433 = vxor.u32 %v2386, 2147483648
        %v2434 = vmul.f32 %v2433, 1.442695
        %v2435 = vpow.pop %v2434
        %v2436 = vadd.f32 %v2435, 1.0
        %v2437 = vrcp.pop %v2436
        %v2438 = vmul.f32 1.0, %v2437
        %v2439 = vxor.u32 %v2388, 2147483648
        %v2440 = vmul.f32 %v2439, 1.442695
        %v2441 = vpow.pop %v2440
        %v2442 = vadd.f32 %v2441, 1.0
        %v2443 = vrcp.pop %v2442
        %v2444 = vmul.f32 1.0, %v2443
        %v2445 = vtanh.pop %v2427
        %v2446 = vxor.u32 %v2429, 2147483648
        %v2447 = vmul.f32 %v2446, 1.442695
        %v2448 = vpow.pop %v2447
        %v2449 = vadd.f32 %v2448, 1.0
        %v2450 = vrcp.pop %v2449
        %v2451 = vmul.f32 1.0, %v2450
        %v2452 = vmul.f32 %v2444, %v2225
        %v2453 = vmul.f32 %v2438, %v2445
        %v2454 = vadd.f32 %v2452, %v2453
        %v2455 = vtanh.pop %v2454
        %v2456 = vmul.f32 %v2451, %v2455
        %s2457 = scalar_lea.vmem [#allocation3], 24
        %2458 = vst [vmem:[%s2457] sm:$0xff] %v2456
        %s2459 = scalar_lea.vmem [#allocation2], 128
        %v2460 = vld [vmem:[%s2459] sm:$0xff]
        %v2461 = vld [vmem:[%s2459 + $0x8] sm:$0xff]
        %v2462 = vld [vmem:[%s2459 + $0x10] sm:$0xff]
        %v2463 = vld [vmem:[%s2459 + $0x18] sm:$0xff]
        %2464 = vmatprep.subr.bf16.mxu0 %v1166
        %2465 = vmatpush1.bf16.msra.mxu0 %v1165
        %2466 = vmatprep.subr.bf16.mxu0 %v1170
        %2467 = vmatpush1.bf16.msra.mxu0 %v1169
        %2468 = vmatprep.subr.bf16.mxu0 %v1174
        %2469 = vmatpush1.bf16.msra.mxu0 %v1173
        %2470 = vmatprep.subr.bf16.mxu0 %v1178
        %2471 = vmatpush1.bf16.msra.mxu0 %v1177
        %2472 = vmatprep.subr.bf16.mxu0 %v1182
        %2473 = vmatpush1.bf16.msra.mxu0 %v1181
        %2474 = vmatprep.subr.bf16.mxu0 %v1186
        %2475 = vmatpush1.bf16.msra.mxu0 %v1185
        %2476 = vmatprep.subr.bf16.mxu0 %v1190
        %2477 = vmatpush1.bf16.msra.mxu0 %v1189
        %2478 = vmatprep.subr.bf16.mxu0 %v1194
        %2479 = vmatpush1.bf16.msra.mxu0 %v1193
        %2480 = vmatprep.subr.bf16.mxu0 0
        %2481 = vmatpush1.bf16.msra.mxu0 0
        %2482 = vmatprep.subr.bf16.mxu0 0
        %2483 = vmatpush1.bf16.msra.mxu0 0
        %2484 = vmatprep.subr.bf16.mxu0 0
        %2485 = vmatpush1.bf16.msra.mxu0 0
        %2486 = vmatprep.subr.bf16.mxu0 0
        %2487 = vmatpush1.bf16.msra.mxu0 0
        %2488 = vmatprep.subr.bf16.mxu0 0
        %2489 = vmatpush1.bf16.msra.mxu0 0
        %2490 = vmatprep.subr.bf16.mxu0 0
        %2491 = vmatpush1.bf16.msra.mxu0 0
        %2492 = vmatprep.subr.bf16.mxu0 0
        %2493 = vmatpush1.bf16.msra.mxu0 0
        %2494 = vmatprep.subr.bf16.mxu0 0
        %2495 = vmatpush1.bf16.msra.mxu0 0
        %2496 = vmatprep.mubr.bf16.mxu0 0
        %2497 = vmatmul.mubr.bf16.gmra.mrb[0].mxu0 %v2349
        %v2498 = vpop.f32.mrb[0].mxu0
        %v2499 = vadd.f32 0.0, %v2498
        %v2500 = vpop.f32.mrb[0].mxu0
        %v2501 = vadd.f32 0.0, %v2500
        %v2502 = vpop.f32.mrb[0].mxu0
        %v2503 = vpop.f32.mrb[0].mxu0
        %2504 = vdwg.mxu0
        %2505 = vmatprep.subr.bf16.mxu0 %v1168
        %2506 = vmatpush1.bf16.msra.mxu0 %v1167
        %2507 = vmatprep.subr.bf16.mxu0 %v1172
        %2508 = vmatpush1.bf16.msra.mxu0 %v1171
        %2509 = vmatprep.subr.bf16.mxu0 %v1176
        %2510 = vmatpush1.bf16.msra.mxu0 %v1175
        %2511 = vmatprep.subr.bf16.mxu0 %v1180
        %2512 = vmatpush1.bf16.msra.mxu0 %v1179
        %2513 = vmatprep.subr.bf16.mxu0 %v1184
        %2514 = vmatpush1.bf16.msra.mxu0 %v1183
        %2515 = vmatprep.subr.bf16.mxu0 %v1188
        %2516 = vmatpush1.bf16.msra.mxu0 %v1187
        %2517 = vmatprep.subr.bf16.mxu0 %v1192
        %2518 = vmatpush1.bf16.msra.mxu0 %v1191
        %2519 = vmatprep.subr.bf16.mxu0 %v1196
        %2520 = vmatpush1.bf16.msra.mxu0 %v1195
        %2521 = vmatprep.subr.bf16.mxu0 0
        %2522 = vmatpush1.bf16.msra.mxu0 0
        %2523 = vmatprep.subr.bf16.mxu0 0
        %2524 = vmatpush1.bf16.msra.mxu0 0
        %2525 = vmatprep.subr.bf16.mxu0 0
        %2526 = vmatpush1.bf16.msra.mxu0 0
        %2527 = vmatprep.subr.bf16.mxu0 0
        %2528 = vmatpush1.bf16.msra.mxu0 0
        %2529 = vmatprep.subr.bf16.mxu0 0
        %2530 = vmatpush1.bf16.msra.mxu0 0
        %2531 = vmatprep.subr.bf16.mxu0 0
        %2532 = vmatpush1.bf16.msra.mxu0 0
        %2533 = vmatprep.subr.bf16.mxu0 0
        %2534 = vmatpush1.bf16.msra.mxu0 0
        %2535 = vmatprep.subr.bf16.mxu0 0
        %2536 = vmatpush1.bf16.msra.mxu0 0
        %2537 = vmatprep.mubr.bf16.mxu0 0
        %2538 = vmatmul.mubr.bf16.gmra.mrb[0].mxu0 %v2349
        %v2539 = vpop.f32.mrb[0].mxu0
        %v2540 = vadd.f32 0.0, %v2539
        %v2541 = vpop.f32.mrb[0].mxu0
        %v2542 = vadd.f32 0.0, %v2541
        %v2543 = vpop.f32.mrb[0].mxu0
        %v2544 = vpop.f32.mrb[0].mxu0
        %2545 = vdwg.mxu0
        %v2546 = vadd.f32 %v2460, %v2499
        %v2547 = vadd.f32 %v2461, %v2501
        %v2548 = vadd.f32 %v2462, %v2540
        %v2549 = vadd.f32 %v2463, %v2542
        %v2550 = vadd.f32 %v2546, %v1019
        %v2551 = vadd.f32 %v2547, %v1023
        %v2552 = vadd.f32 %v2548, %v1027
        %v2553 = vadd.f32 %v2549, %v1031
        %v2554 = vxor.u32 %v2550, 2147483648
        %v2555 = vmul.f32 %v2554, 1.442695
        %v2556 = vpow.pop %v2555
        %v2557 = vadd.f32 %v2556, 1.0
        %v2558 = vrcp.pop %v2557
        %v2559 = vmul.f32 1.0, %v2558
        %v2560 = vxor.u32 %v2551, 2147483648
        %v2561 = vmul.f32 %v2560, 1.442695
        %v2562 = vpow.pop %v2561
        %v2563 = vadd.f32 %v2562, 1.0
        %v2564 = vrcp.pop %v2563
        %v2565 = vmul.f32 1.0, %v2564
        %v2566 = vtanh.pop %v2552
        %v2567 = vxor.u32 %v2553, 2147483648
        %v2568 = vmul.f32 %v2567, 1.442695
        %v2569 = vpow.pop %v2568
        %v2570 = vadd.f32 %v2569, 1.0
        %v2571 = vrcp.pop %v2570
        %v2572 = vmul.f32 1.0, %v2571
        %v2573 = vmul.f32 %v2565, %v2346
        %v2574 = vmul.f32 %v2559, %v2566
        %v2575 = vadd.f32 %v2573, %v2574
        %v2576 = vtanh.pop %v2575
        %v2577 = vmul.f32 %v2572, %v2576
        %v2578 = vpack.c.bf16 %v2577, %v2577
        %v2579 = vpack.c.bf16 %v2456, %v2456
        %2580 = vmatprep.subr.bf16.mxu0 %v1538
        %2581 = vmatpush1.bf16.msra.mxu0 %v1537
        %2582 = vmatprep.subr.bf16.mxu0 %v1542
        %2583 = vmatpush1.bf16.msra.mxu0 %v1541
        %2584 = vmatprep.subr.bf16.mxu0 %v1546
        %2585 = vmatpush1.bf16.msra.mxu0 %v1545
        %2586 = vmatprep.subr.bf16.mxu0 %v1550
        %2587 = vmatpush1.bf16.msra.mxu0 %v1549
        %2588 = vmatprep.subr.bf16.mxu0 %v1554
        %2589 = vmatpush1.bf16.msra.mxu0 %v1553
        %2590 = vmatprep.subr.bf16.mxu0 %v1558
        %2591 = vmatpush1.bf16.msra.mxu0 %v1557
        %2592 = vmatprep.subr.bf16.mxu0 %v1562
        %2593 = vmatpush1.bf16.msra.mxu0 %v1561
        %2594 = vmatprep.subr.bf16.mxu0 %v1566
        %2595 = vmatpush1.bf16.msra.mxu0 %v1565
        %2596 = vmatprep.subr.bf16.mxu0 %v1570
        %2597 = vmatpush1.bf16.msra.mxu0 %v1569
        %2598 = vmatprep.subr.bf16.mxu0 %v1574
        %2599 = vmatpush1.bf16.msra.mxu0 %v1573
        %2600 = vmatprep.subr.bf16.mxu0 %v1578
        %2601 = vmatpush1.bf16.msra.mxu0 %v1577
        %2602 = vmatprep.subr.bf16.mxu0 %v1582
        %2603 = vmatpush1.bf16.msra.mxu0 %v1581
        %2604 = vmatprep.subr.bf16.mxu0 %v1586
        %2605 = vmatpush1.bf16.msra.mxu0 %v1585
        %2606 = vmatprep.subr.bf16.mxu0 %v1590
        %2607 = vmatpush1.bf16.msra.mxu0 %v1589
        %2608 = vmatprep.subr.bf16.mxu0 %v1594
        %2609 = vmatpush1.bf16.msra.mxu0 %v1593
        %2610 = vmatprep.subr.bf16.mxu0 %v1598
        %2611 = vmatpush1.bf16.msra.mxu0 %v1597
        %2612 = vmatprep.mubr.bf16.mxu0 %v2579
        %2613 = vmatmul.mubr.bf16.gmra.mrb[0].mxu0 %v2578
        %v2614 = vpop.f32.mrb[0].mxu0
        %v2615 = vadd.f32 %v1041, %v2614
        %v2616 = vpop.f32.mrb[0].mxu0
        %v2617 = vadd.f32 %v1045, %v2616
        %v2618 = vpop.f32.mrb[0].mxu0
        %v2619 = vpop.f32.mrb[0].mxu0
        %2620 = vdwg.mxu0
        %2621 = vmatprep.subr.bf16.mxu0 %v1540
        %2622 = vmatpush1.bf16.msra.mxu0 %v1539
        %2623 = vmatprep.subr.bf16.mxu0 %v1544
        %2624 = vmatpush1.bf16.msra.mxu0 %v1543
        %2625 = vmatprep.subr.bf16.mxu0 %v1548
        %2626 = vmatpush1.bf16.msra.mxu0 %v1547
        %2627 = vmatprep.subr.bf16.mxu0 %v1552
        %2628 = vmatpush1.bf16.msra.mxu0 %v1551
        %2629 = vmatprep.subr.bf16.mxu0 %v1556
        %2630 = vmatpush1.bf16.msra.mxu0 %v1555
        %2631 = vmatprep.subr.bf16.mxu0 %v1560
        %2632 = vmatpush1.bf16.msra.mxu0 %v1559
        %2633 = vmatprep.subr.bf16.mxu0 %v1564
        %2634 = vmatpush1.bf16.msra.mxu0 %v1563
        %2635 = vmatprep.subr.bf16.mxu0 %v1568
        %2636 = vmatpush1.bf16.msra.mxu0 %v1567
        %2637 = vmatprep.subr.bf16.mxu0 %v1572
        %2638 = vmatpush1.bf16.msra.mxu0 %v1571
        %2639 = vmatprep.subr.bf16.mxu0 %v1576
        %2640 = vmatpush1.bf16.msra.mxu0 %v1575
        %2641 = vmatprep.subr.bf16.mxu0 %v1580
        %2642 = vmatpush1.bf16.msra.mxu0 %v1579
        %2643 = vmatprep.subr.bf16.mxu0 %v1584
        %2644 = vmatpush1.bf16.msra.mxu0 %v1583
        %2645 = vmatprep.subr.bf16.mxu0 %v1588
        %2646 = vmatpush1.bf16.msra.mxu0 %v1587
        %2647 = vmatprep.subr.bf16.mxu0 %v1592
        %2648 = vmatpush1.bf16.msra.mxu0 %v1591
        %2649 = vmatprep.subr.bf16.mxu0 %v1596
        %2650 = vmatpush1.bf16.msra.mxu0 %v1595
        %2651 = vmatprep.subr.bf16.mxu0 %v1600
        %2652 = vmatpush1.bf16.msra.mxu0 %v1599
        %2653 = vmatprep.mubr.bf16.mxu0 %v2579
        %2654 = vmatmul.mubr.bf16.gmra.mrb[0].mxu0 %v2578
        %v2655 = vpop.f32.mrb[0].mxu0
        %v2656 = vadd.f32 %v1049, %v2655
        %v2657 = vpop.f32.mrb[0].mxu0
        %v2658 = vadd.f32 %v1053, %v2657
        %v2659 = vpop.f32.mrb[0].mxu0
        %v2660 = vpop.f32.mrb[0].mxu0
        %2661 = vdwg.mxu0
        %v2662 = vxor.u32 %v2615, 2147483648
        %v2663 = vmul.f32 %v2662, 1.442695
        %v2664 = vpow.pop %v2663
        %v2665 = vadd.f32 %v2664, 1.0
        %v2666 = vrcp.pop %v2665
        %v2667 = vmul.f32 1.0, %v2666
        %v2668 = vxor.u32 %v2617, 2147483648
        %v2669 = vmul.f32 %v2668, 1.442695
        %v2670 = vpow.pop %v2669
        %v2671 = vadd.f32 %v2670, 1.0
        %v2672 = vrcp.pop %v2671
        %v2673 = vmul.f32 1.0, %v2672
        %v2674 = vtanh.pop %v2656
        %v2675 = vxor.u32 %v2658, 2147483648
        %v2676 = vmul.f32 %v2675, 1.442695
        %v2677 = vpow.pop %v2676
        %v2678 = vadd.f32 %v2677, 1.0
        %v2679 = vrcp.pop %v2678
        %v2680 = vmul.f32 1.0, %v2679
        %v2681 = vmul.f32 %v2673, %v2454
        %v2682 = vmul.f32 %v2667, %v2674
        %v2683 = vadd.f32 %v2681, %v2682
        %v2684 = vtanh.pop %v2683
        %v2685 = vmul.f32 %v2680, %v2684
        %s2686 = scalar_lea.vmem [#allocation3], 32
        %2687 = vst [vmem:[%s2686] sm:$0xff] %v2685
        %s2688 = scalar_lea.vmem [#allocation2], 160
        %v2689 = vld [vmem:[%s2688] sm:$0xff]
        %v2690 = vld [vmem:[%s2688 + $0x8] sm:$0xff]
        %v2691 = vld [vmem:[%s2688 + $0x10] sm:$0xff]
        %v2692 = vld [vmem:[%s2688 + $0x18] sm:$0xff]
        %2693 = vmatprep.subr.bf16.mxu0 %v1166
        %2694 = vmatpush1.bf16.msra.mxu0 %v1165
        %2695 = vmatprep.subr.bf16.mxu0 %v1170
        %2696 = vmatpush1.bf16.msra.mxu0 %v1169
        %2697 = vmatprep.subr.bf16.mxu0 %v1174
        %2698 = vmatpush1.bf16.msra.mxu0 %v1173
        %2699 = vmatprep.subr.bf16.mxu0 %v1178
        %2700 = vmatpush1.bf16.msra.mxu0 %v1177
        %2701 = vmatprep.subr.bf16.mxu0 %v1182
        %2702 = vmatpush1.bf16.msra.mxu0 %v1181
        %2703 = vmatprep.subr.bf16.mxu0 %v1186
        %2704 = vmatpush1.bf16.msra.mxu0 %v1185
        %2705 = vmatprep.subr.bf16.mxu0 %v1190
        %2706 = vmatpush1.bf16.msra.mxu0 %v1189
        %2707 = vmatprep.subr.bf16.mxu0 %v1194
        %2708 = vmatpush1.bf16.msra.mxu0 %v1193
        %2709 = vmatprep.subr.bf16.mxu0 0
        %2710 = vmatpush1.bf16.msra.mxu0 0
        %2711 = vmatprep.subr.bf16.mxu0 0
        %2712 = vmatpush1.bf16.msra.mxu0 0
        %2713 = vmatprep.subr.bf16.mxu0 0
        %2714 = vmatpush1.bf16.msra.mxu0 0
        %2715 = vmatprep.subr.bf16.mxu0 0
        %2716 = vmatpush1.bf16.msra.mxu0 0
        %2717 = vmatprep.subr.bf16.mxu0 0
        %2718 = vmatpush1.bf16.msra.mxu0 0
        %2719 = vmatprep.subr.bf16.mxu0 0
        %2720 = vmatpush1.bf16.msra.mxu0 0
        %2721 = vmatprep.subr.bf16.mxu0 0
        %2722 = vmatpush1.bf16.msra.mxu0 0
        %2723 = vmatprep.subr.bf16.mxu0 0
        %2724 = vmatpush1.bf16.msra.mxu0 0
        %2725 = vmatprep.mubr.bf16.mxu0 0
        %2726 = vmatmul.mubr.bf16.gmra.mrb[0].mxu0 %v2578
        %v2727 = vpop.f32.mrb[0].mxu0
        %v2728 = vadd.f32 0.0, %v2727
        %v2729 = vpop.f32.mrb[0].mxu0
        %v2730 = vadd.f32 0.0, %v2729
        %v2731 = vpop.f32.mrb[0].mxu0
        %v2732 = vpop.f32.mrb[0].mxu0
        %2733 = vdwg.mxu0
        %2734 = vmatprep.subr.bf16.mxu0 %v1168
        %2735 = vmatpush1.bf16.msra.mxu0 %v1167
        %2736 = vmatprep.subr.bf16.mxu0 %v1172
        %2737 = vmatpush1.bf16.msra.mxu0 %v1171
        %2738 = vmatprep.subr.bf16.mxu0 %v1176
        %2739 = vmatpush1.bf16.msra.mxu0 %v1175
        %2740 = vmatprep.subr.bf16.mxu0 %v1180
        %2741 = vmatpush1.bf16.msra.mxu0 %v1179
        %2742 = vmatprep.subr.bf16.mxu0 %v1184
        %2743 = vmatpush1.bf16.msra.mxu0 %v1183
        %2744 = vmatprep.subr.bf16.mxu0 %v1188
        %2745 = vmatpush1.bf16.msra.mxu0 %v1187
        %2746 = vmatprep.subr.bf16.mxu0 %v1192
        %2747 = vmatpush1.bf16.msra.mxu0 %v1191
        %2748 = vmatprep.subr.bf16.mxu0 %v1196
        %2749 = vmatpush1.bf16.msra.mxu0 %v1195
        %2750 = vmatprep.subr.bf16.mxu0 0
        %2751 = vmatpush1.bf16.msra.mxu0 0
        %2752 = vmatprep.subr.bf16.mxu0 0
        %2753 = vmatpush1.bf16.msra.mxu0 0
        %2754 = vmatprep.subr.bf16.mxu0 0
        %2755 = vmatpush1.bf16.msra.mxu0 0
        %2756 = vmatprep.subr.bf16.mxu0 0
        %2757 = vmatpush1.bf16.msra.mxu0 0
        %2758 = vmatprep.subr.bf16.mxu0 0
        %2759 = vmatpush1.bf16.msra.mxu0 0
        %2760 = vmatprep.subr.bf16.mxu0 0
        %2761 = vmatpush1.bf16.msra.mxu0 0
        %2762 = vmatprep.subr.bf16.mxu0 0
        %2763 = vmatpush1.bf16.msra.mxu0 0
        %2764 = vmatprep.subr.bf16.mxu0 0
        %2765 = vmatpush1.bf16.msra.mxu0 0
        %2766 = vmatprep.mubr.bf16.mxu0 0
        %2767 = vmatmul.mubr.bf16.gmra.mrb[0].mxu0 %v2578
        %v2768 = vpop.f32.mrb[0].mxu0
        %v2769 = vadd.f32 0.0, %v2768
        %v2770 = vpop.f32.mrb[0].mxu0
        %v2771 = vadd.f32 0.0, %v2770
        %v2772 = vpop.f32.mrb[0].mxu0
        %v2773 = vpop.f32.mrb[0].mxu0
        %2774 = vdwg.mxu0
        %v2775 = vadd.f32 %v2689, %v2728
        %v2776 = vadd.f32 %v2690, %v2730
        %v2777 = vadd.f32 %v2691, %v2769
        %v2778 = vadd.f32 %v2692, %v2771
        %v2779 = vadd.f32 %v2775, %v1019
        %v2780 = vadd.f32 %v2776, %v1023
        %v2781 = vadd.f32 %v2777, %v1027
        %v2782 = vadd.f32 %v2778, %v1031
        %v2783 = vxor.u32 %v2779, 2147483648
        %v2784 = vmul.f32 %v2783, 1.442695
        %v2785 = vpow.pop %v2784
        %v2786 = vadd.f32 %v2785, 1.0
        %v2787 = vrcp.pop %v2786
        %v2788 = vmul.f32 1.0, %v2787
        %v2789 = vxor.u32 %v2780, 2147483648
        %v2790 = vmul.f32 %v2789, 1.442695
        %v2791 = vpow.pop %v2790
        %v2792 = vadd.f32 %v2791, 1.0
        %v2793 = vrcp.pop %v2792
        %v2794 = vmul.f32 1.0, %v2793
        %v2795 = vtanh.pop %v2781
        %v2796 = vxor.u32 %v2782, 2147483648
        %v2797 = vmul.f32 %v2796, 1.442695
        %v2798 = vpow.pop %v2797
        %v2799 = vadd.f32 %v2798, 1.0
        %v2800 = vrcp.pop %v2799
        %v2801 = vmul.f32 1.0, %v2800
        %v2802 = vmul.f32 %v2794, %v2575
        %v2803 = vmul.f32 %v2788, %v2795
        %v2804 = vadd.f32 %v2802, %v2803
        %v2805 = vtanh.pop %v2804
        %v2806 = vmul.f32 %v2801, %v2805
        %v2807 = vpack.c.bf16 %v2806, %v2806
        %v2808 = vpack.c.bf16 %v2685, %v2685
        %2809 = vmatprep.subr.bf16.mxu0 %v1538
        %2810 = vmatpush1.bf16.msra.mxu0 %v1537
        %2811 = vmatprep.subr.bf16.mxu0 %v1542
        %2812 = vmatpush1.bf16.msra.mxu0 %v1541
        %2813 = vmatprep.subr.bf16.mxu0 %v1546
        %2814 = vmatpush1.bf16.msra.mxu0 %v1545
        %2815 = vmatprep.subr.bf16.mxu0 %v1550
        %2816 = vmatpush1.bf16.msra.mxu0 %v1549
        %2817 = vmatprep.subr.bf16.mxu0 %v1554
        %2818 = vmatpush1.bf16.msra.mxu0 %v1553
        %2819 = vmatprep.subr.bf16.mxu0 %v1558
        %2820 = vmatpush1.bf16.msra.mxu0 %v1557
        %2821 = vmatprep.subr.bf16.mxu0 %v1562
        %2822 = vmatpush1.bf16.msra.mxu0 %v1561
        %2823 = vmatprep.subr.bf16.mxu0 %v1566
        %2824 = vmatpush1.bf16.msra.mxu0 %v1565
        %2825 = vmatprep.subr.bf16.mxu0 %v1570
        %2826 = vmatpush1.bf16.msra.mxu0 %v1569
        %2827 = vmatprep.subr.bf16.mxu0 %v1574
        %2828 = vmatpush1.bf16.msra.mxu0 %v1573
        %2829 = vmatprep.subr.bf16.mxu0 %v1578
        %2830 = vmatpush1.bf16.msra.mxu0 %v1577
        %2831 = vmatprep.subr.bf16.mxu0 %v1582
        %2832 = vmatpush1.bf16.msra.mxu0 %v1581
        %2833 = vmatprep.subr.bf16.mxu0 %v1586
        %2834 = vmatpush1.bf16.msra.mxu0 %v1585
        %2835 = vmatprep.subr.bf16.mxu0 %v1590
        %2836 = vmatpush1.bf16.msra.mxu0 %v1589
        %2837 = vmatprep.subr.bf16.mxu0 %v1594
        %2838 = vmatpush1.bf16.msra.mxu0 %v1593
        %2839 = vmatprep.subr.bf16.mxu0 %v1598
        %2840 = vmatpush1.bf16.msra.mxu0 %v1597
        %2841 = vmatprep.mubr.bf16.mxu0 %v2808
        %2842 = vmatmul.mubr.bf16.gmra.mrb[0].mxu0 %v2807
        %v2843 = vpop.f32.mrb[0].mxu0
        %v2844 = vadd.f32 %v1041, %v2843
        %v2845 = vpop.f32.mrb[0].mxu0
        %v2846 = vadd.f32 %v1045, %v2845
        %v2847 = vpop.f32.mrb[0].mxu0
        %v2848 = vpop.f32.mrb[0].mxu0
        %2849 = vdwg.mxu0
        %2850 = vmatprep.subr.bf16.mxu0 %v1540
        %2851 = vmatpush1.bf16.msra.mxu0 %v1539
        %2852 = vmatprep.subr.bf16.mxu0 %v1544
        %2853 = vmatpush1.bf16.msra.mxu0 %v1543
        %2854 = vmatprep.subr.bf16.mxu0 %v1548
        %2855 = vmatpush1.bf16.msra.mxu0 %v1547
        %2856 = vmatprep.subr.bf16.mxu0 %v1552
        %2857 = vmatpush1.bf16.msra.mxu0 %v1551
        %2858 = vmatprep.subr.bf16.mxu0 %v1556
        %2859 = vmatpush1.bf16.msra.mxu0 %v1555
        %2860 = vmatprep.subr.bf16.mxu0 %v1560
        %2861 = vmatpush1.bf16.msra.mxu0 %v1559
        %2862 = vmatprep.subr.bf16.mxu0 %v1564
        %2863 = vmatpush1.bf16.msra.mxu0 %v1563
        %2864 = vmatprep.subr.bf16.mxu0 %v1568
        %2865 = vmatpush1.bf16.msra.mxu0 %v1567
        %2866 = vmatprep.subr.bf16.mxu0 %v1572
        %2867 = vmatpush1.bf16.msra.mxu0 %v1571
        %2868 = vmatprep.subr.bf16.mxu0 %v1576
        %2869 = vmatpush1.bf16.msra.mxu0 %v1575
        %2870 = vmatprep.subr.bf16.mxu0 %v1580
        %2871 = vmatpush1.bf16.msra.mxu0 %v1579
        %2872 = vmatprep.subr.bf16.mxu0 %v1584
        %2873 = vmatpush1.bf16.msra.mxu0 %v1583
        %2874 = vmatprep.subr.bf16.mxu0 %v1588
        %2875 = vmatpush1.bf16.msra.mxu0 %v1587
        %2876 = vmatprep.subr.bf16.mxu0 %v1592
        %2877 = vmatpush1.bf16.msra.mxu0 %v1591
        %2878 = vmatprep.subr.bf16.mxu0 %v1596
        %2879 = vmatpush1.bf16.msra.mxu0 %v1595
        %2880 = vmatprep.subr.bf16.mxu0 %v1600
        %2881 = vmatpush1.bf16.msra.mxu0 %v1599
        %2882 = vmatprep.mubr.bf16.mxu0 %v2808
        %2883 = vmatmul.mubr.bf16.gmra.mrb[0].mxu0 %v2807
        %v2884 = vpop.f32.mrb[0].mxu0
        %v2885 = vadd.f32 %v1049, %v2884
        %v2886 = vpop.f32.mrb[0].mxu0
        %v2887 = vadd.f32 %v1053, %v2886
        %v2888 = vpop.f32.mrb[0].mxu0
        %v2889 = vpop.f32.mrb[0].mxu0
        %2890 = vdwg.mxu0
        %v2891 = vxor.u32 %v2844, 2147483648
        %v2892 = vmul.f32 %v2891, 1.442695
        %v2893 = vpow.pop %v2892
        %v2894 = vadd.f32 %v2893, 1.0
        %v2895 = vrcp.pop %v2894
        %v2896 = vmul.f32 1.0, %v2895
        %v2897 = vxor.u32 %v2846, 2147483648
        %v2898 = vmul.f32 %v2897, 1.442695
        %v2899 = vpow.pop %v2898
        %v2900 = vadd.f32 %v2899, 1.0
        %v2901 = vrcp.pop %v2900
        %v2902 = vmul.f32 1.0, %v2901
        %v2903 = vtanh.pop %v2885
        %v2904 = vxor.u32 %v2887, 2147483648
        %v2905 = vmul.f32 %v2904, 1.442695
        %v2906 = vpow.pop %v2905
        %v2907 = vadd.f32 %v2906, 1.0
        %v2908 = vrcp.pop %v2907
        %v2909 = vmul.f32 1.0, %v2908
        %v2910 = vmul.f32 %v2902, %v2683
        %v2911 = vmul.f32 %v2896, %v2903
        %v2912 = vadd.f32 %v2910, %v2911
        %v2913 = vtanh.pop %v2912
        %v2914 = vmul.f32 %v2909, %v2913
        %s2915 = scalar_lea.vmem [#allocation3], 40
        %2916 = vst [vmem:[%s2915] sm:$0xff] %v2914
        %s2917 = scalar_lea.vmem [#allocation2], 192
        %v2918 = vld [vmem:[%s2917] sm:$0xff]
        %v2919 = vld [vmem:[%s2917 + $0x8] sm:$0xff]
        %v2920 = vld [vmem:[%s2917 + $0x10] sm:$0xff]
        %v2921 = vld [vmem:[%s2917 + $0x18] sm:$0xff]
        %2922 = vmatprep.subr.bf16.mxu0 %v1166
        %2923 = vmatpush1.bf16.msra.mxu0 %v1165
        %2924 = vmatprep.subr.bf16.mxu0 %v1170
        %2925 = vmatpush1.bf16.msra.mxu0 %v1169
        %2926 = vmatprep.subr.bf16.mxu0 %v1174
        %2927 = vmatpush1.bf16.msra.mxu0 %v1173
        %2928 = vmatprep.subr.bf16.mxu0 %v1178
        %2929 = vmatpush1.bf16.msra.mxu0 %v1177
        %2930 = vmatprep.subr.bf16.mxu0 %v1182
        %2931 = vmatpush1.bf16.msra.mxu0 %v1181
        %2932 = vmatprep.subr.bf16.mxu0 %v1186
        %2933 = vmatpush1.bf16.msra.mxu0 %v1185
        %2934 = vmatprep.subr.bf16.mxu0 %v1190
        %2935 = vmatpush1.bf16.msra.mxu0 %v1189
        %2936 = vmatprep.subr.bf16.mxu0 %v1194
        %2937 = vmatpush1.bf16.msra.mxu0 %v1193
        %2938 = vmatprep.subr.bf16.mxu0 0
        %2939 = vmatpush1.bf16.msra.mxu0 0
        %2940 = vmatprep.subr.bf16.mxu0 0
        %2941 = vmatpush1.bf16.msra.mxu0 0
        %2942 = vmatprep.subr.bf16.mxu0 0
        %2943 = vmatpush1.bf16.msra.mxu0 0
        %2944 = vmatprep.subr.bf16.mxu0 0
        %2945 = vmatpush1.bf16.msra.mxu0 0
        %2946 = vmatprep.subr.bf16.mxu0 0
        %2947 = vmatpush1.bf16.msra.mxu0 0
        %2948 = vmatprep.subr.bf16.mxu0 0
        %2949 = vmatpush1.bf16.msra.mxu0 0
        %2950 = vmatprep.subr.bf16.mxu0 0
        %2951 = vmatpush1.bf16.msra.mxu0 0
        %2952 = vmatprep.subr.bf16.mxu0 0
        %2953 = vmatpush1.bf16.msra.mxu0 0
        %2954 = vmatprep.mubr.bf16.mxu0 0
        %2955 = vmatmul.mubr.bf16.gmra.mrb[0].mxu0 %v2807
        %v2956 = vpop.f32.mrb[0].mxu0
        %v2957 = vadd.f32 0.0, %v2956
        %v2958 = vpop.f32.mrb[0].mxu0
        %v2959 = vadd.f32 0.0, %v2958
        %v2960 = vpop.f32.mrb[0].mxu0
        %v2961 = vpop.f32.mrb[0].mxu0
        %2962 = vdwg.mxu0
        %2963 = vmatprep.subr.bf16.mxu0 %v1168
        %2964 = vmatpush1.bf16.msra.mxu0 %v1167
        %2965 = vmatprep.subr.bf16.mxu0 %v1172
        %2966 = vmatpush1.bf16.msra.mxu0 %v1171
        %2967 = vmatprep.subr.bf16.mxu0 %v1176
        %2968 = vmatpush1.bf16.msra.mxu0 %v1175
        %2969 = vmatprep.subr.bf16.mxu0 %v1180
        %2970 = vmatpush1.bf16.msra.mxu0 %v1179
        %2971 = vmatprep.subr.bf16.mxu0 %v1184
        %2972 = vmatpush1.bf16.msra.mxu0 %v1183
        %2973 = vmatprep.subr.bf16.mxu0 %v1188
        %2974 = vmatpush1.bf16.msra.mxu0 %v1187
        %2975 = vmatprep.subr.bf16.mxu0 %v1192
        %2976 = vmatpush1.bf16.msra.mxu0 %v1191
        %2977 = vmatprep.subr.bf16.mxu0 %v1196
        %2978 = vmatpush1.bf16.msra.mxu0 %v1195
        %2979 = vmatprep.subr.bf16.mxu0 0
        %2980 = vmatpush1.bf16.msra.mxu0 0
        %2981 = vmatprep.subr.bf16.mxu0 0
        %2982 = vmatpush1.bf16.msra.mxu0 0
        %2983 = vmatprep.subr.bf16.mxu0 0
        %2984 = vmatpush1.bf16.msra.mxu0 0
        %2985 = vmatprep.subr.bf16.mxu0 0
        %2986 = vmatpush1.bf16.msra.mxu0 0
        %2987 = vmatprep.subr.bf16.mxu0 0
        %2988 = vmatpush1.bf16.msra.mxu0 0
        %2989 = vmatprep.subr.bf16.mxu0 0
        %2990 = vmatpush1.bf16.msra.mxu0 0
        %2991 = vmatprep.subr.bf16.mxu0 0
        %2992 = vmatpush1.bf16.msra.mxu0 0
        %2993 = vmatprep.subr.bf16.mxu0 0
        %2994 = vmatpush1.bf16.msra.mxu0 0
        %2995 = vmatprep.mubr.bf16.mxu0 0
        %2996 = vmatmul.mubr.bf16.gmra.mrb[0].mxu0 %v2807
        %v2997 = vpop.f32.mrb[0].mxu0
        %v2998 = vadd.f32 0.0, %v2997
        %v2999 = vpop.f32.mrb[0].mxu0
        %v3000 = vadd.f32 0.0, %v2999
        %v3001 = vpop.f32.mrb[0].mxu0
        %v3002 = vpop.f32.mrb[0].mxu0
        %3003 = vdwg.mxu0
        %v3004 = vadd.f32 %v2918, %v2957
        %v3005 = vadd.f32 %v2919, %v2959
        %v3006 = vadd.f32 %v2920, %v2998
        %v3007 = vadd.f32 %v2921, %v3000
        %v3008 = vadd.f32 %v3004, %v1019
        %v3009 = vadd.f32 %v3005, %v1023
        %v3010 = vadd.f32 %v3006, %v1027
        %v3011 = vadd.f32 %v3007, %v1031
        %v3012 = vxor.u32 %v3008, 2147483648
        %v3013 = vmul.f32 %v3012, 1.442695
        %v3014 = vpow.pop %v3013
        %v3015 = vadd.f32 %v3014, 1.0
        %v3016 = vrcp.pop %v3015
        %v3017 = vmul.f32 1.0, %v3016
        %v3018 = vxor.u32 %v3009, 2147483648
        %v3019 = vmul.f32 %v3018, 1.442695
        %v3020 = vpow.pop %v3019
        %v3021 = vadd.f32 %v3020, 1.0
        %v3022 = vrcp.pop %v3021
        %v3023 = vmul.f32 1.0, %v3022
        %v3024 = vtanh.pop %v3010
        %v3025 = vxor.u32 %v3011, 2147483648
        %v3026 = vmul.f32 %v3025, 1.442695
        %v3027 = vpow.pop %v3026
        %v3028 = vadd.f32 %v3027, 1.0
        %v3029 = vrcp.pop %v3028
        %v3030 = vmul.f32 1.0, %v3029
        %v3031 = vmul.f32 %v3023, %v2804
        %v3032 = vmul.f32 %v3017, %v3024
        %v3033 = vadd.f32 %v3031, %v3032
        %v3034 = vtanh.pop %v3033
        %v3035 = vmul.f32 %v3030, %v3034
        %v3036 = vpack.c.bf16 %v3035, %v3035
        %v3037 = vpack.c.bf16 %v2914, %v2914
        %3038 = vmatprep.subr.bf16.mxu0 %v1538
        %3039 = vmatpush1.bf16.msra.mxu0 %v1537
        %3040 = vmatprep.subr.bf16.mxu0 %v1542
        %3041 = vmatpush1.bf16.msra.mxu0 %v1541
        %3042 = vmatprep.subr.bf16.mxu0 %v1546
        %3043 = vmatpush1.bf16.msra.mxu0 %v1545
        %3044 = vmatprep.subr.bf16.mxu0 %v1550
        %3045 = vmatpush1.bf16.msra.mxu0 %v1549
        %3046 = vmatprep.subr.bf16.mxu0 %v1554
        %3047 = vmatpush1.bf16.msra.mxu0 %v1553
        %3048 = vmatprep.subr.bf16.mxu0 %v1558
        %3049 = vmatpush1.bf16.msra.mxu0 %v1557
        %3050 = vmatprep.subr.bf16.mxu0 %v1562
        %3051 = vmatpush1.bf16.msra.mxu0 %v1561
        %3052 = vmatprep.subr.bf16.mxu0 %v1566
        %3053 = vmatpush1.bf16.msra.mxu0 %v1565
        %3054 = vmatprep.subr.bf16.mxu0 %v1570
        %3055 = vmatpush1.bf16.msra.mxu0 %v1569
        %3056 = vmatprep.subr.bf16.mxu0 %v1574
        %3057 = vmatpush1.bf16.msra.mxu0 %v1573
        %3058 = vmatprep.subr.bf16.mxu0 %v1578
        %3059 = vmatpush1.bf16.msra.mxu0 %v1577
        %3060 = vmatprep.subr.bf16.mxu0 %v1582
        %3061 = vmatpush1.bf16.msra.mxu0 %v1581
        %3062 = vmatprep.subr.bf16.mxu0 %v1586
        %3063 = vmatpush1.bf16.msra.mxu0 %v1585
        %3064 = vmatprep.subr.bf16.mxu0 %v1590
        %3065 = vmatpush1.bf16.msra.mxu0 %v1589
        %3066 = vmatprep.subr.bf16.mxu0 %v1594
        %3067 = vmatpush1.bf16.msra.mxu0 %v1593
        %3068 = vmatprep.subr.bf16.mxu0 %v1598
        %3069 = vmatpush1.bf16.msra.mxu0 %v1597
        %3070 = vmatprep.mubr.bf16.mxu0 %v3037
        %3071 = vmatmul.mubr.bf16.gmra.mrb[0].mxu0 %v3036
        %v3072 = vpop.f32.mrb[0].mxu0
        %v3073 = vadd.f32 %v1041, %v3072
        %v3074 = vpop.f32.mrb[0].mxu0
        %v3075 = vadd.f32 %v1045, %v3074
        %v3076 = vpop.f32.mrb[0].mxu0
        %v3077 = vpop.f32.mrb[0].mxu0
        %3078 = vdwg.mxu0
        %3079 = vmatprep.subr.bf16.mxu0 %v1540
        %3080 = vmatpush1.bf16.msra.mxu0 %v1539
        %3081 = vmatprep.subr.bf16.mxu0 %v1544
        %3082 = vmatpush1.bf16.msra.mxu0 %v1543
        %3083 = vmatprep.subr.bf16.mxu0 %v1548
        %3084 = vmatpush1.bf16.msra.mxu0 %v1547
        %3085 = vmatprep.subr.bf16.mxu0 %v1552
        %3086 = vmatpush1.bf16.msra.mxu0 %v1551
        %3087 = vmatprep.subr.bf16.mxu0 %v1556
        %3088 = vmatpush1.bf16.msra.mxu0 %v1555
        %3089 = vmatprep.subr.bf16.mxu0 %v1560
        %3090 = vmatpush1.bf16.msra.mxu0 %v1559
        %3091 = vmatprep.subr.bf16.mxu0 %v1564
        %3092 = vmatpush1.bf16.msra.mxu0 %v1563
        %3093 = vmatprep.subr.bf16.mxu0 %v1568
        %3094 = vmatpush1.bf16.msra.mxu0 %v1567
        %3095 = vmatprep.subr.bf16.mxu0 %v1572
        %3096 = vmatpush1.bf16.msra.mxu0 %v1571
        %3097 = vmatprep.subr.bf16.mxu0 %v1576
        %3098 = vmatpush1.bf16.msra.mxu0 %v1575
        %3099 = vmatprep.subr.bf16.mxu0 %v1580
        %3100 = vmatpush1.bf16.msra.mxu0 %v1579
        %3101 = vmatprep.subr.bf16.mxu0 %v1584
        %3102 = vmatpush1.bf16.msra.mxu0 %v1583
        %3103 = vmatprep.subr.bf16.mxu0 %v1588
        %3104 = vmatpush1.bf16.msra.mxu0 %v1587
        %3105 = vmatprep.subr.bf16.mxu0 %v1592
        %3106 = vmatpush1.bf16.msra.mxu0 %v1591
        %3107 = vmatprep.subr.bf16.mxu0 %v1596
        %3108 = vmatpush1.bf16.msra.mxu0 %v1595
        %3109 = vmatprep.subr.bf16.mxu0 %v1600
        %3110 = vmatpush1.bf16.msra.mxu0 %v1599
        %3111 = vmatprep.mubr.bf16.mxu0 %v3037
        %3112 = vmatmul.mubr.bf16.gmra.mrb[0].mxu0 %v3036
        %v3113 = vpop.f32.mrb[0].mxu0
        %v3114 = vadd.f32 %v1049, %v3113
        %v3115 = vpop.f32.mrb[0].mxu0
        %v3116 = vadd.f32 %v1053, %v3115
        %v3117 = vpop.f32.mrb[0].mxu0
        %v3118 = vpop.f32.mrb[0].mxu0
        %3119 = vdwg.mxu0
        %v3120 = vxor.u32 %v3073, 2147483648
        %v3121 = vmul.f32 %v3120, 1.442695
        %v3122 = vpow.pop %v3121
        %v3123 = vadd.f32 %v3122, 1.0
        %v3124 = vrcp.pop %v3123
        %v3125 = vmul.f32 1.0, %v3124
        %v3126 = vxor.u32 %v3075, 2147483648
        %v3127 = vmul.f32 %v3126, 1.442695
        %v3128 = vpow.pop %v3127
        %v3129 = vadd.f32 %v3128, 1.0
        %v3130 = vrcp.pop %v3129
        %v3131 = vmul.f32 1.0, %v3130
        %v3132 = vtanh.pop %v3114
        %v3133 = vxor.u32 %v3116, 2147483648
        %v3134 = vmul.f32 %v3133, 1.442695
        %v3135 = vpow.pop %v3134
        %v3136 = vadd.f32 %v3135, 1.0
        %v3137 = vrcp.pop %v3136
        %v3138 = vmul.f32 1.0, %v3137
        %v3139 = vmul.f32 %v3131, %v2912
        %v3140 = vmul.f32 %v3125, %v3132
        %v3141 = vadd.f32 %v3139, %v3140
        %v3142 = vtanh.pop %v3141
        %v3143 = vmul.f32 %v3138, %v3142
        %s3144 = scalar_lea.vmem [#allocation3], 48
        %3145 = vst [vmem:[%s3144] sm:$0xff] %v3143
        %s3146 = scalar_lea.vmem [#allocation2], 224
        %v3147 = vld [vmem:[%s3146] sm:$0xff]
        %v3148 = vld [vmem:[%s3146 + $0x8] sm:$0xff]
        %v3149 = vld [vmem:[%s3146 + $0x10] sm:$0xff]
        %v3150 = vld [vmem:[%s3146 + $0x18] sm:$0xff]
        %3151 = vmatprep.subr.bf16.mxu0 %v1166
        %3152 = vmatpush1.bf16.msra.mxu0 %v1165
        %3153 = vmatprep.subr.bf16.mxu0 %v1170
        %3154 = vmatpush1.bf16.msra.mxu0 %v1169
        %3155 = vmatprep.subr.bf16.mxu0 %v1174
        %3156 = vmatpush1.bf16.msra.mxu0 %v1173
        %3157 = vmatprep.subr.bf16.mxu0 %v1178
        %3158 = vmatpush1.bf16.msra.mxu0 %v1177
        %3159 = vmatprep.subr.bf16.mxu0 %v1182
        %3160 = vmatpush1.bf16.msra.mxu0 %v1181
        %3161 = vmatprep.subr.bf16.mxu0 %v1186
        %3162 = vmatpush1.bf16.msra.mxu0 %v1185
        %3163 = vmatprep.subr.bf16.mxu0 %v1190
        %3164 = vmatpush1.bf16.msra.mxu0 %v1189
        %3165 = vmatprep.subr.bf16.mxu0 %v1194
        %3166 = vmatpush1.bf16.msra.mxu0 %v1193
        %3167 = vmatprep.subr.bf16.mxu0 0
        %3168 = vmatpush1.bf16.msra.mxu0 0
        %3169 = vmatprep.subr.bf16.mxu0 0
        %3170 = vmatpush1.bf16.msra.mxu0 0
        %3171 = vmatprep.subr.bf16.mxu0 0
        %3172 = vmatpush1.bf16.msra.mxu0 0
        %3173 = vmatprep.subr.bf16.mxu0 0
        %3174 = vmatpush1.bf16.msra.mxu0 0
        %3175 = vmatprep.subr.bf16.mxu0 0
        %3176 = vmatpush1.bf16.msra.mxu0 0
        %3177 = vmatprep.subr.bf16.mxu0 0
        %3178 = vmatpush1.bf16.msra.mxu0 0
        %3179 = vmatprep.subr.bf16.mxu0 0
        %3180 = vmatpush1.bf16.msra.mxu0 0
        %3181 = vmatprep.subr.bf16.mxu0 0
        %3182 = vmatpush1.bf16.msra.mxu0 0
        %3183 = vmatprep.mubr.bf16.mxu0 0
        %3184 = vmatmul.mubr.bf16.gmra.mrb[0].mxu0 %v3036
        %v3185 = vpop.f32.mrb[0].mxu0
        %v3186 = vadd.f32 0.0, %v3185
        %v3187 = vpop.f32.mrb[0].mxu0
        %v3188 = vadd.f32 0.0, %v3187
        %v3189 = vpop.f32.mrb[0].mxu0
        %v3190 = vpop.f32.mrb[0].mxu0
        %3191 = vdwg.mxu0
        %3192 = vmatprep.subr.bf16.mxu0 %v1168
        %3193 = vmatpush1.bf16.msra.mxu0 %v1167
        %3194 = vmatprep.subr.bf16.mxu0 %v1172
        %3195 = vmatpush1.bf16.msra.mxu0 %v1171
        %3196 = vmatprep.subr.bf16.mxu0 %v1176
        %3197 = vmatpush1.bf16.msra.mxu0 %v1175
        %3198 = vmatprep.subr.bf16.mxu0 %v1180
        %3199 = vmatpush1.bf16.msra.mxu0 %v1179
        %3200 = vmatprep.subr.bf16.mxu0 %v1184
        %3201 = vmatpush1.bf16.msra.mxu0 %v1183
        %3202 = vmatprep.subr.bf16.mxu0 %v1188
        %3203 = vmatpush1.bf16.msra.mxu0 %v1187
        %3204 = vmatprep.subr.bf16.mxu0 %v1192
        %3205 = vmatpush1.bf16.msra.mxu0 %v1191
        %3206 = vmatprep.subr.bf16.mxu0 %v1196
        %3207 = vmatpush1.bf16.msra.mxu0 %v1195
        %3208 = vmatprep.subr.bf16.mxu0 0
        %3209 = vmatpush1.bf16.msra.mxu0 0
        %3210 = vmatprep.subr.bf16.mxu0 0
        %3211 = vmatpush1.bf16.msra.mxu0 0
        %3212 = vmatprep.subr.bf16.mxu0 0
        %3213 = vmatpush1.bf16.msra.mxu0 0
        %3214 = vmatprep.subr.bf16.mxu0 0
        %3215 = vmatpush1.bf16.msra.mxu0 0
        %3216 = vmatprep.subr.bf16.mxu0 0
        %3217 = vmatpush1.bf16.msra.mxu0 0
        %3218 = vmatprep.subr.bf16.mxu0 0
        %3219 = vmatpush1.bf16.msra.mxu0 0
        %3220 = vmatprep.subr.bf16.mxu0 0
        %3221 = vmatpush1.bf16.msra.mxu0 0
        %3222 = vmatprep.subr.bf16.mxu0 0
        %3223 = vmatpush1.bf16.msra.mxu0 0
        %3224 = vmatprep.mubr.bf16.mxu0 0
        %3225 = vmatmul.mubr.bf16.gmra.mrb[0].mxu0 %v3036
        %v3226 = vpop.f32.mrb[0].mxu0
        %v3227 = vadd.f32 0.0, %v3226
        %v3228 = vpop.f32.mrb[0].mxu0
        %v3229 = vadd.f32 0.0, %v3228
        %v3230 = vpop.f32.mrb[0].mxu0
        %v3231 = vpop.f32.mrb[0].mxu0
        %3232 = vdwg.mxu0
        %v3233 = vadd.f32 %v3147, %v3186
        %v3234 = vadd.f32 %v3148, %v3188
        %v3235 = vadd.f32 %v3149, %v3227
        %v3236 = vadd.f32 %v3150, %v3229
        %v3237 = vadd.f32 %v3233, %v1019
        %v3238 = vadd.f32 %v3234, %v1023
        %v3239 = vadd.f32 %v3235, %v1027
        %v3240 = vadd.f32 %v3236, %v1031
        %v3241 = vxor.u32 %v3237, 2147483648
        %v3242 = vmul.f32 %v3241, 1.442695
        %v3243 = vpow.pop %v3242
        %v3244 = vadd.f32 %v3243, 1.0
        %v3245 = vrcp.pop %v3244
        %v3246 = vmul.f32 1.0, %v3245
        %v3247 = vxor.u32 %v3238, 2147483648
        %v3248 = vmul.f32 %v3247, 1.442695
        %v3249 = vpow.pop %v3248
        %v3250 = vadd.f32 %v3249, 1.0
        %v3251 = vrcp.pop %v3250
        %v3252 = vmul.f32 1.0, %v3251
        %v3253 = vtanh.pop %v3239
        %v3254 = vxor.u32 %v3240, 2147483648
        %v3255 = vmul.f32 %v3254, 1.442695
        %v3256 = vpow.pop %v3255
        %v3257 = vadd.f32 %v3256, 1.0
        %v3258 = vrcp.pop %v3257
        %v3259 = vmul.f32 1.0, %v3258
        %v3260 = vmul.f32 %v3252, %v3033
        %v3261 = vmul.f32 %v3246, %v3253
        %v3262 = vadd.f32 %v3260, %v3261
        %v3263 = vtanh.pop %v3262
        %v3264 = vmul.f32 %v3259, %v3263
        %v3265 = vpack.c.bf16 %v3264, %v3264
        %v3266 = vpack.c.bf16 %v3143, %v3143
        %3267 = vmatprep.subr.bf16.mxu0 %v1538
        %3268 = vmatpush1.bf16.msra.mxu0 %v1537
        %3269 = vmatprep.subr.bf16.mxu0 %v1542
        %3270 = vmatpush1.bf16.msra.mxu0 %v1541
        %3271 = vmatprep.subr.bf16.mxu0 %v1546
        %3272 = vmatpush1.bf16.msra.mxu0 %v1545
        %3273 = vmatprep.subr.bf16.mxu0 %v1550
        %3274 = vmatpush1.bf16.msra.mxu0 %v1549
        %3275 = vmatprep.subr.bf16.mxu0 %v1554
        %3276 = vmatpush1.bf16.msra.mxu0 %v1553
        %3277 = vmatprep.subr.bf16.mxu0 %v1558
        %3278 = vmatpush1.bf16.msra.mxu0 %v1557
        %3279 = vmatprep.subr.bf16.mxu0 %v1562
        %3280 = vmatpush1.bf16.msra.mxu0 %v1561
        %3281 = vmatprep.subr.bf16.mxu0 %v1566
        %3282 = vmatpush1.bf16.msra.mxu0 %v1565
        %3283 = vmatprep.subr.bf16.mxu0 %v1570
        %3284 = vmatpush1.bf16.msra.mxu0 %v1569
        %3285 = vmatprep.subr.bf16.mxu0 %v1574
        %3286 = vmatpush1.bf16.msra.mxu0 %v1573
        %3287 = vmatprep.subr.bf16.mxu0 %v1578
        %3288 = vmatpush1.bf16.msra.mxu0 %v1577
        %3289 = vmatprep.subr.bf16.mxu0 %v1582
        %3290 = vmatpush1.bf16.msra.mxu0 %v1581
        %3291 = vmatprep.subr.bf16.mxu0 %v1586
        %3292 = vmatpush1.bf16.msra.mxu0 %v1585
        %3293 = vmatprep.subr.bf16.mxu0 %v1590
        %3294 = vmatpush1.bf16.msra.mxu0 %v1589
        %3295 = vmatprep.subr.bf16.mxu0 %v1594
        %3296 = vmatpush1.bf16.msra.mxu0 %v1593
        %3297 = vmatprep.subr.bf16.mxu0 %v1598
        %3298 = vmatpush1.bf16.msra.mxu0 %v1597
        %3299 = vmatprep.mubr.bf16.mxu0 %v3266
        %3300 = vmatmul.mubr.bf16.gmra.mrb[0].mxu0 %v3265
        %v3301 = vpop.f32.mrb[0].mxu0
        %v3302 = vadd.f32 %v1041, %v3301
        %v3303 = vpop.f32.mrb[0].mxu0
        %v3304 = vadd.f32 %v1045, %v3303
        %v3305 = vpop.f32.mrb[0].mxu0
        %v3306 = vpop.f32.mrb[0].mxu0
        %3307 = vdwg.mxu0
        %3308 = vmatprep.subr.bf16.mxu0 %v1540
        %3309 = vmatpush1.bf16.msra.mxu0 %v1539
        %3310 = vmatprep.subr.bf16.mxu0 %v1544
        %3311 = vmatpush1.bf16.msra.mxu0 %v1543
        %3312 = vmatprep.subr.bf16.mxu0 %v1548
        %3313 = vmatpush1.bf16.msra.mxu0 %v1547
        %3314 = vmatprep.subr.bf16.mxu0 %v1552
        %3315 = vmatpush1.bf16.msra.mxu0 %v1551
        %3316 = vmatprep.subr.bf16.mxu0 %v1556
        %3317 = vmatpush1.bf16.msra.mxu0 %v1555
        %3318 = vmatprep.subr.bf16.mxu0 %v1560
        %3319 = vmatpush1.bf16.msra.mxu0 %v1559
        %3320 = vmatprep.subr.bf16.mxu0 %v1564
        %3321 = vmatpush1.bf16.msra.mxu0 %v1563
        %3322 = vmatprep.subr.bf16.mxu0 %v1568
        %3323 = vmatpush1.bf16.msra.mxu0 %v1567
        %3324 = vmatprep.subr.bf16.mxu0 %v1572
        %3325 = vmatpush1.bf16.msra.mxu0 %v1571
        %3326 = vmatprep.subr.bf16.mxu0 %v1576
        %3327 = vmatpush1.bf16.msra.mxu0 %v1575
        %3328 = vmatprep.subr.bf16.mxu0 %v1580
        %3329 = vmatpush1.bf16.msra.mxu0 %v1579
        %3330 = vmatprep.subr.bf16.mxu0 %v1584
        %3331 = vmatpush1.bf16.msra.mxu0 %v1583
        %3332 = vmatprep.subr.bf16.mxu0 %v1588
        %3333 = vmatpush1.bf16.msra.mxu0 %v1587
        %3334 = vmatprep.subr.bf16.mxu0 %v1592
        %3335 = vmatpush1.bf16.msra.mxu0 %v1591
        %3336 = vmatprep.subr.bf16.mxu0 %v1596
        %3337 = vmatpush1.bf16.msra.mxu0 %v1595
        %3338 = vmatprep.subr.bf16.mxu0 %v1600
        %3339 = vmatpush1.bf16.msra.mxu0 %v1599
        %3340 = vmatprep.mubr.bf16.mxu0 %v3266
        %3341 = vmatmul.mubr.bf16.gmra.mrb[0].mxu0 %v3265
        %v3342 = vpop.f32.mrb[0].mxu0
        %v3343 = vadd.f32 %v1049, %v3342
        %v3344 = vpop.f32.mrb[0].mxu0
        %v3345 = vadd.f32 %v1053, %v3344
        %v3346 = vpop.f32.mrb[0].mxu0
        %v3347 = vpop.f32.mrb[0].mxu0
        %3348 = vdwg.mxu0
        %v3349 = vxor.u32 %v3302, 2147483648
        %v3350 = vmul.f32 %v3349, 1.442695
        %v3351 = vpow.pop %v3350
        %v3352 = vadd.f32 %v3351, 1.0
        %v3353 = vrcp.pop %v3352
        %v3354 = vmul.f32 1.0, %v3353
        %v3355 = vxor.u32 %v3304, 2147483648
        %v3356 = vmul.f32 %v3355, 1.442695
        %v3357 = vpow.pop %v3356
        %v3358 = vadd.f32 %v3357, 1.0
        %v3359 = vrcp.pop %v3358
        %v3360 = vmul.f32 1.0, %v3359
        %v3361 = vtanh.pop %v3343
        %v3362 = vxor.u32 %v3345, 2147483648
        %v3363 = vmul.f32 %v3362, 1.442695
        %v3364 = vpow.pop %v3363
        %v3365 = vadd.f32 %v3364, 1.0
        %v3366 = vrcp.pop %v3365
        %v3367 = vmul.f32 1.0, %v3366
        %v3368 = vmul.f32 %v3360, %v3141
        %v3369 = vmul.f32 %v3354, %v3361
        %v3370 = vadd.f32 %v3368, %v3369
        %v3371 = vtanh.pop %v3370
        %v3372 = vmul.f32 %v3367, %v3371
        %s3373 = scalar_lea.vmem [#allocation3], 56
        %3374 = vst [vmem:[%s3373] sm:$0xff] %v3372
        %3375 = vst [vmem:[#allocation8] sm:$0xff] %v3264
        %3376 = vst [vmem:[%s1060] sm:$0xff] %v3372
        %3377 = vst [vmem:[#allocation9] sm:$0xff] %v3262
        %3378 = vst [vmem:[%s1062] sm:$0xff] %v3370
        %v3379 = vld [vmem:[%s1] sm:$0xf]
        %v3380 = vld [vmem:[%s1 + $0x4] sm:$0xf]
        %v3381 = vld [vmem:[%s1 + $0x8] sm:$0xf]
        %v3382 = vld [vmem:[%s1 + $0xc] sm:$0xf]
        %v3383 = vld [vmem:[%s1 + $0x10] sm:$0xf]
        %v3384 = vld [vmem:[%s1 + $0x14] sm:$0xf]
        %v3385 = vld [vmem:[%s1 + $0x18] sm:$0xf]
        %v3386 = vld [vmem:[%s1 + $0x1c] sm:$0xf]
        %v3387 = vld [vmem:[%s1 + $0x20] sm:$0xf]
        %v3388 = vld [vmem:[%s1 + $0x24] sm:$0xf]
        %v3389 = vld [vmem:[%s1 + $0x28] sm:$0xf]
        %v3390 = vld [vmem:[%s1 + $0x2c] sm:$0xf]
        %v3391 = vld [vmem:[%s1 + $0x30] sm:$0xf]
        %v3392 = vld [vmem:[%s1 + $0x34] sm:$0xf]
        %v3393 = vld [vmem:[%s1 + $0x38] sm:$0xf]
        %v3394 = vld [vmem:[%s1 + $0x3c] sm:$0xf]
        %v3395 = vld [vmem:[%s1 + $0x40] sm:$0xf]
        %v3396 = vld [vmem:[%s1 + $0x44] sm:$0xf]
        %v3397 = vld [vmem:[%s1 + $0x48] sm:$0xf]
        %v3398 = vld [vmem:[%s1 + $0x4c] sm:$0xf]
        %v3399 = vld [vmem:[%s1 + $0x50] sm:$0xf]
        %v3400 = vld [vmem:[%s1 + $0x54] sm:$0xf]
        %v3401 = vld [vmem:[%s1 + $0x58] sm:$0xf]
        %v3402 = vld [vmem:[%s1 + $0x5c] sm:$0xf]
        %v3403 = vld [vmem:[%s1 + $0x60] sm:$0xf]
        %v3404 = vld [vmem:[%s1 + $0x64] sm:$0xf]
        %v3405 = vld [vmem:[%s1 + $0x68] sm:$0xf]
        %v3406 = vld [vmem:[%s1 + $0x6c] sm:$0xf]
        %v3407 = vld [vmem:[%s1 + $0x70] sm:$0xf]
        %v3408 = vld [vmem:[%s1 + $0x74] sm:$0xf]
        %v3409 = vld [vmem:[%s1 + $0x78] sm:$0xf]
        %v3410 = vld [vmem:[%s1 + $0x7c] sm:$0xf]
        %v3411 = vld [vmem:[%s1 + $0x80] sm:$0xf]
        %v3412 = vld [vmem:[%s1 + $0x84] sm:$0xf]
        %v3413 = vld [vmem:[%s1 + $0x88] sm:$0xf]
        %v3414 = vld [vmem:[%s1 + $0x8c] sm:$0xf]
        %v3415 = vld [vmem:[%s1 + $0x90] sm:$0xf]
        %v3416 = vld [vmem:[%s1 + $0x94] sm:$0xf]
        %v3417 = vld [vmem:[%s1 + $0x98] sm:$0xf]
        %v3418 = vld [vmem:[%s1 + $0x9c] sm:$0xf]
        %v3419 = vld [vmem:[%s1 + $0xa0] sm:$0xf]
        %v3420 = vld [vmem:[%s1 + $0xa4] sm:$0xf]
        %v3421 = vld [vmem:[%s1 + $0xa8] sm:$0xf]
        %v3422 = vld [vmem:[%s1 + $0xac] sm:$0xf]
        %v3423 = vld [vmem:[%s1 + $0xb0] sm:$0xf]
        %v3424 = vld [vmem:[%s1 + $0xb4] sm:$0xf]
        %v3425 = vld [vmem:[%s1 + $0xb8] sm:$0xf]
        %v3426 = vld [vmem:[%s1 + $0xbc] sm:$0xf]
        %v3427 = vld [vmem:[%s1 + $0xc0] sm:$0xf]
        %v3428 = vld [vmem:[%s1 + $0xc4] sm:$0xf]
        %v3429 = vld [vmem:[%s1 + $0xc8] sm:$0xf]
        %v3430 = vld [vmem:[%s1 + $0xcc] sm:$0xf]
        %v3431 = vld [vmem:[%s1 + $0xd0] sm:$0xf]
        %v3432 = vld [vmem:[%s1 + $0xd4] sm:$0xf]
        %v3433 = vld [vmem:[%s1 + $0xd8] sm:$0xf]
        %v3434 = vld [vmem:[%s1 + $0xdc] sm:$0xf]
        %v3435 = vld [vmem:[%s1 + $0xe0] sm:$0xf]
        %v3436 = vld [vmem:[%s1 + $0xe4] sm:$0xf]
        %v3437 = vld [vmem:[%s1 + $0xe8] sm:$0xf]
        %v3438 = vld [vmem:[%s1 + $0xec] sm:$0xf]
        %v3439 = vld [vmem:[%s1 + $0xf0] sm:$0xf]
        %v3440 = vld [vmem:[%s1 + $0xf4] sm:$0xf]
        %v3441 = vld [vmem:[%s1 + $0xf8] sm:$0xf]
        %v3442 = vld [vmem:[%s1 + $0xfc] sm:$0xf]
        %v3443 = vld [vmem:[%s1 + $0x100] sm:$0xf]
        %v3444 = vld [vmem:[%s1 + $0x104] sm:$0xf]
        %v3445 = vld [vmem:[%s1 + $0x108] sm:$0xf]
        %v3446 = vld [vmem:[%s1 + $0x10c] sm:$0xf]
        %v3447 = vld [vmem:[%s1 + $0x110] sm:$0xf]
        %v3448 = vld [vmem:[%s1 + $0x114] sm:$0xf]
        %v3449 = vld [vmem:[%s1 + $0x118] sm:$0xf]
        %v3450 = vld [vmem:[%s1 + $0x11c] sm:$0xf]
        %v3451 = vld [vmem:[%s1 + $0x120] sm:$0xf]
        %v3452 = vld [vmem:[%s1 + $0x124] sm:$0xf]
        %v3453 = vld [vmem:[%s1 + $0x128] sm:$0xf]
        %v3454 = vld [vmem:[%s1 + $0x12c] sm:$0xf]
        %v3455 = vld [vmem:[%s1 + $0x130] sm:$0xf]
        %v3456 = vld [vmem:[%s1 + $0x134] sm:$0xf]
        %v3457 = vld [vmem:[%s1 + $0x138] sm:$0xf]
        %v3458 = vld [vmem:[%s1 + $0x13c] sm:$0xf]
        %v3459 = vld [vmem:[%s1 + $0x140] sm:$0xf]
        %v3460 = vld [vmem:[%s1 + $0x144] sm:$0xf]
        %v3461 = vld [vmem:[%s1 + $0x148] sm:$0xf]
        %v3462 = vld [vmem:[%s1 + $0x14c] sm:$0xf]
        %v3463 = vld [vmem:[%s1 + $0x150] sm:$0xf]
        %v3464 = vld [vmem:[%s1 + $0x154] sm:$0xf]
        %v3465 = vld [vmem:[%s1 + $0x158] sm:$0xf]
        %v3466 = vld [vmem:[%s1 + $0x15c] sm:$0xf]
        %v3467 = vld [vmem:[%s1 + $0x160] sm:$0xf]
        %v3468 = vld [vmem:[%s1 + $0x164] sm:$0xf]
        %v3469 = vld [vmem:[%s1 + $0x168] sm:$0xf]
        %v3470 = vld [vmem:[%s1 + $0x16c] sm:$0xf]
        %v3471 = vld [vmem:[%s1 + $0x170] sm:$0xf]
        %v3472 = vld [vmem:[%s1 + $0x174] sm:$0xf]
        %v3473 = vld [vmem:[%s1 + $0x178] sm:$0xf]
        %v3474 = vld [vmem:[%s1 + $0x17c] sm:$0xf]
        %v3475 = vld [vmem:[%s1 + $0x180] sm:$0xf]
        %v3476 = vld [vmem:[%s1 + $0x184] sm:$0xf]
        %v3477 = vld [vmem:[%s1 + $0x188] sm:$0xf]
        %v3478 = vld [vmem:[%s1 + $0x18c] sm:$0xf]
        %v3479 = vld [vmem:[%s1 + $0x190] sm:$0xf]
        %v3480 = vld [vmem:[%s1 + $0x194] sm:$0xf]
        %v3481 = vld [vmem:[%s1 + $0x198] sm:$0xf]
        %v3482 = vld [vmem:[%s1 + $0x19c] sm:$0xf]
        %v3483 = vld [vmem:[%s1 + $0x1a0] sm:$0xf]
        %v3484 = vld [vmem:[%s1 + $0x1a4] sm:$0xf]
        %v3485 = vld [vmem:[%s1 + $0x1a8] sm:$0xf]
        %v3486 = vld [vmem:[%s1 + $0x1ac] sm:$0xf]
        %v3487 = vld [vmem:[%s1 + $0x1b0] sm:$0xf]
        %v3488 = vld [vmem:[%s1 + $0x1b4] sm:$0xf]
        %v3489 = vld [vmem:[%s1 + $0x1b8] sm:$0xf]
        %v3490 = vld [vmem:[%s1 + $0x1bc] sm:$0xf]
        %v3491 = vld [vmem:[%s1 + $0x1c0] sm:$0xf]
        %v3492 = vld [vmem:[%s1 + $0x1c4] sm:$0xf]
        %v3493 = vld [vmem:[%s1 + $0x1c8] sm:$0xf]
        %v3494 = vld [vmem:[%s1 + $0x1cc] sm:$0xf]
        %v3495 = vld [vmem:[%s1 + $0x1d0] sm:$0xf]
        %v3496 = vld [vmem:[%s1 + $0x1d4] sm:$0xf]
        %v3497 = vld [vmem:[%s1 + $0x1d8] sm:$0xf]
        %v3498 = vld [vmem:[%s1 + $0x1dc] sm:$0xf]
        %v3499 = vld [vmem:[%s1 + $0x1e0] sm:$0xf]
        %v3500 = vld [vmem:[%s1 + $0x1e4] sm:$0xf]
        %v3501 = vld [vmem:[%s1 + $0x1e8] sm:$0xf]
        %v3502 = vld [vmem:[%s1 + $0x1ec] sm:$0xf]
        %v3503 = vld [vmem:[%s1 + $0x1f0] sm:$0xf]
        %v3504 = vld [vmem:[%s1 + $0x1f4] sm:$0xf]
        %v3505 = vld [vmem:[%s1 + $0x1f8] sm:$0xf]
        %v3506 = vld [vmem:[%s1 + $0x1fc] sm:$0xf]
        %v3507 = vld [vmem:[%s2] sm:$0x1]
        %v3508 = vld [vmem:[%s2 + $0x1] sm:$0x1]
        %v3509 = vld [vmem:[%s2 + $0x2] sm:$0x1]
        %v3510 = vld [vmem:[%s2 + $0x3] sm:$0x1]
        %v3511 = vld [vmem:[%s2 + $0x4] sm:$0x1]
        %v3512 = vld [vmem:[%s2 + $0x5] sm:$0x1]
        %v3513 = vld [vmem:[%s2 + $0x6] sm:$0x1]
        %v3514 = vld [vmem:[%s2 + $0x7] sm:$0x1]
        %v3515 = vld [vmem:[#allocation3] sm:$0xff]
        %v3516 = vld [vmem:[#allocation3 + $0x8] sm:$0xff]
        %v3517 = vld [vmem:[#allocation3 + $0x10] sm:$0xff]
        %v3518 = vld [vmem:[#allocation3 + $0x18] sm:$0xff]
        %v3519 = vld [vmem:[#allocation3 + $0x20] sm:$0xff]
        %v3520 = vld [vmem:[#allocation3 + $0x28] sm:$0xff]
        %v3521 = vld [vmem:[#allocation3 + $0x30] sm:$0xff]
        %v3522 = vld [vmem:[#allocation3 + $0x38] sm:$0xff]
        %v3523 = vcombine.low %v3515, %v3517
        %v3524 = vcombine.high %v3515, %v3517
        %v3526 = vunpack.c.l.s4 1983009808
        %v3527 = vunpack.c.0.s8 %v3526
        %v3528 = vlaneseq
        %v3529 = vshrl.u32 %v3528, 7
        %v3530 = vsub.s32 %v3527, %v3529
        %v3531 = vrot.slane %v3523, %v3530
        %v3533 = vunpack.c.l.s4 1983009808
        %v3534 = vunpack.c.0.s8 %v3533
        %v3535 = vlaneseq
        %v3536 = vshrl.u32 %v3535, 7
        %v3537 = vsub.s32 %v3534, %v3536
        %v3538 = vrot.slane %v3524, %v3537
        %v3539 = vcombine.low %v3516, %v3518
        %v3540 = vcombine.high %v3516, %v3518
        %v3542 = vunpack.c.l.s4 1983009808
        %v3543 = vunpack.c.0.s8 %v3542
        %v3544 = vlaneseq
        %v3545 = vshrl.u32 %v3544, 7
        %v3546 = vsub.s32 %v3543, %v3545
        %v3547 = vrot.slane %v3539, %v3546
        %v3549 = vunpack.c.l.s4 1983009808
        %v3550 = vunpack.c.0.s8 %v3549
        %v3551 = vlaneseq
        %v3552 = vshrl.u32 %v3551, 7
        %v3553 = vsub.s32 %v3550, %v3552
        %v3554 = vrot.slane %v3540, %v3553
        %v3555 = vcombine.low %v3519, %v3521
        %v3556 = vcombine.high %v3519, %v3521
        %v3558 = vunpack.c.l.s4 1983009808
        %v3559 = vunpack.c.0.s8 %v3558
        %v3560 = vlaneseq
        %v3561 = vshrl.u32 %v3560, 7
        %v3562 = vsub.s32 %v3559, %v3561
        %v3563 = vrot.slane %v3555, %v3562
        %v3565 = vunpack.c.l.s4 1983009808
        %v3566 = vunpack.c.0.s8 %v3565
        %v3567 = vlaneseq
        %v3568 = vshrl.u32 %v3567, 7
        %v3569 = vsub.s32 %v3566, %v3568
        %v3570 = vrot.slane %v3556, %v3569
        %v3571 = vcombine.low %v3520, %v3522
        %v3572 = vcombine.high %v3520, %v3522
        %v3574 = vunpack.c.l.s4 1983009808
        %v3575 = vunpack.c.0.s8 %v3574
        %v3576 = vlaneseq
        %v3577 = vshrl.u32 %v3576, 7
        %v3578 = vsub.s32 %v3575, %v3577
        %v3579 = vrot.slane %v3571, %v3578
        %v3581 = vunpack.c.l.s4 1983009808
        %v3582 = vunpack.c.0.s8 %v3581
        %v3583 = vlaneseq
        %v3584 = vshrl.u32 %v3583, 7
        %v3585 = vsub.s32 %v3582, %v3584
        %v3586 = vrot.slane %v3572, %v3585
        %v3587 = vcombine.low %v3531, %v3547
        %v3588 = vcombine.high %v3531, %v3547
        %v3590 = vunpack.c.l.s4 1934713408
        %v3591 = vunpack.c.0.s8 %v3590
        %v3592 = vlaneseq
        %v3593 = vshrl.u32 %v3592, 7
        %v3594 = vsub.s32 %v3591, %v3593
        %v3595 = vrot.slane %v3587, %v3594
        %v3597 = vunpack.c.l.s4 1934713408
        %v3598 = vunpack.c.0.s8 %v3597
        %v3599 = vlaneseq
        %v3600 = vshrl.u32 %v3599, 7
        %v3601 = vsub.s32 %v3598, %v3600
        %v3602 = vrot.slane %v3588, %v3601
        %v3603 = vcombine.low %v3538, %v3554
        %v3604 = vcombine.high %v3538, %v3554
        %v3606 = vunpack.c.l.s4 1934713408
        %v3607 = vunpack.c.0.s8 %v3606
        %v3608 = vlaneseq
        %v3609 = vshrl.u32 %v3608, 7
        %v3610 = vsub.s32 %v3607, %v3609
        %v3611 = vrot.slane %v3603, %v3610
        %v3613 = vunpack.c.l.s4 1934713408
        %v3614 = vunpack.c.0.s8 %v3613
        %v3615 = vlaneseq
        %v3616 = vshrl.u32 %v3615, 7
        %v3617 = vsub.s32 %v3614, %v3616
        %v3618 = vrot.slane %v3604, %v3617
        %v3619 = vcombine.low %v3563, %v3579
        %v3620 = vcombine.high %v3563, %v3579
        %v3622 = vunpack.c.l.s4 1934713408
        %v3623 = vunpack.c.0.s8 %v3622
        %v3624 = vlaneseq
        %v3625 = vshrl.u32 %v3624, 7
        %v3626 = vsub.s32 %v3623, %v3625
        %v3627 = vrot.slane %v3619, %v3626
        %v3629 = vunpack.c.l.s4 1934713408
        %v3630 = vunpack.c.0.s8 %v3629
        %v3631 = vlaneseq
        %v3632 = vshrl.u32 %v3631, 7
        %v3633 = vsub.s32 %v3630, %v3632
        %v3634 = vrot.slane %v3620, %v3633
        %v3635 = vcombine.low %v3570, %v3586
        %v3636 = vcombine.high %v3570, %v3586
        %v3638 = vunpack.c.l.s4 1934713408
        %v3639 = vunpack.c.0.s8 %v3638
        %v3640 = vlaneseq
        %v3641 = vshrl.u32 %v3640, 7
        %v3642 = vsub.s32 %v3639, %v3641
        %v3643 = vrot.slane %v3635, %v3642
        %v3645 = vunpack.c.l.s4 1934713408
        %v3646 = vunpack.c.0.s8 %v3645
        %v3647 = vlaneseq
        %v3648 = vshrl.u32 %v3647, 7
        %v3649 = vsub.s32 %v3646, %v3648
        %v3650 = vrot.slane %v3636, %v3649
        %v3651 = vcombine.low %v3595, %v3627
        %v3652 = vcombine.high %v3595, %v3627
        %v3653 = vcombine.low %v3602, %v3634
        %v3654 = vcombine.high %v3602, %v3634
        %v3655 = vcombine.low %v3611, %v3643
        %v3656 = vcombine.high %v3611, %v3643
        %v3657 = vcombine.low %v3618, %v3650
        %v3658 = vcombine.high %v3618, %v3650
        %v3659 = vpack.c.bf16 %v3652, %v3651
        %v3660 = vpack.c.bf16 %v3654, %v3653
        %v3661 = vpack.c.bf16 %v3656, %v3655
        %v3662 = vpack.c.bf16 %v3658, %v3657
        %v3663 = vld [vmem:[%s10] sm:$0xf]
        %v3664 = vld [vmem:[%s10 + $0x4] sm:$0xf]
        %v3665 = vld [vmem:[%s10 + $0x8] sm:$0xf]
        %v3666 = vld [vmem:[%s10 + $0xc] sm:$0xf]
        %v3667 = vld [vmem:[%s10 + $0x10] sm:$0xf]
        %v3668 = vld [vmem:[%s10 + $0x14] sm:$0xf]
        %v3669 = vld [vmem:[%s10 + $0x18] sm:$0xf]
        %v3670 = vld [vmem:[%s10 + $0x1c] sm:$0xf]
        %v3671 = vld [vmem:[%s10 + $0x20] sm:$0xf]
        %v3672 = vld [vmem:[%s10 + $0x24] sm:$0xf]
        %v3673 = vld [vmem:[%s10 + $0x28] sm:$0xf]
        %v3674 = vld [vmem:[%s10 + $0x2c] sm:$0xf]
        %v3675 = vld [vmem:[%s10 + $0x30] sm:$0xf]
        %v3676 = vld [vmem:[%s10 + $0x34] sm:$0xf]
        %v3677 = vld [vmem:[%s10 + $0x38] sm:$0xf]
        %v3678 = vld [vmem:[%s10 + $0x3c] sm:$0xf]
        %v3695 = vunpack.c.l.b16 %v3663
        %v3696 = vunpack.c.l.b16 %v3664
        %v3697 = vunpack.c.l.b16 %v3665
        %v3698 = vunpack.c.l.b16 %v3666
        %v3699 = vunpack.c.l.b16 %v3667
        %v3700 = vunpack.c.l.b16 %v3668
        %v3701 = vunpack.c.l.b16 %v3669
        %v3702 = vunpack.c.l.b16 %v3670
        %v3703 = vunpack.c.l.b16 %v3671
        %v3704 = vunpack.c.l.b16 %v3672
        %v3705 = vunpack.c.l.b16 %v3673
        %v3706 = vunpack.c.l.b16 %v3674
        %v3707 = vunpack.c.l.b16 %v3675
        %v3708 = vunpack.c.l.b16 %v3676
        %v3709 = vunpack.c.l.b16 %v3677
        %v3710 = vunpack.c.l.b16 %v3678
        %v3711 = vpack.c.b16 %v3696, %v3695
        %v3712 = vpack.c.b16 %v3698, %v3697
        %v3713 = vpack.c.b16 %v3700, %v3699
        %v3714 = vpack.c.b16 %v3702, %v3701
        %v3715 = vpack.c.b16 %v3704, %v3703
        %v3716 = vpack.c.b16 %v3706, %v3705
        %v3717 = vpack.c.b16 %v3708, %v3707
        %v3718 = vpack.c.b16 %v3710, %v3709
        %3727 = vmatprep.subr.bf16.mxu0 0
        %3728 = vmatpush1.bf16.msra.mxu0 %v3711
        %3729 = vmatprep.subr.bf16.mxu0 0
        %3730 = vmatpush1.bf16.msra.mxu0 %v3712
        %3731 = vmatprep.subr.bf16.mxu0 0
        %3732 = vmatpush1.bf16.msra.mxu0 %v3713
        %3733 = vmatprep.subr.bf16.mxu0 0
        %3734 = vmatpush1.bf16.msra.mxu0 %v3714
        %3735 = vmatprep.subr.bf16.mxu0 0
        %3736 = vmatpush1.bf16.msra.mxu0 %v3715
        %3737 = vmatprep.subr.bf16.mxu0 0
        %3738 = vmatpush1.bf16.msra.mxu0 %v3716
        %3739 = vmatprep.subr.bf16.mxu0 0
        %3740 = vmatpush1.bf16.msra.mxu0 %v3717
        %3741 = vmatprep.subr.bf16.mxu0 0
        %3742 = vmatpush1.bf16.msra.mxu0 %v3718
        %3743 = vmatprep.subr.bf16.mxu0 0
        %3744 = vmatpush1.bf16.msra.mxu0 0
        %3745 = vmatprep.subr.bf16.mxu0 0
        %3746 = vmatpush1.bf16.msra.mxu0 0
        %3747 = vmatprep.subr.bf16.mxu0 0
        %3748 = vmatpush1.bf16.msra.mxu0 0
        %3749 = vmatprep.subr.bf16.mxu0 0
        %3750 = vmatpush1.bf16.msra.mxu0 0
        %3751 = vmatprep.subr.bf16.mxu0 0
        %3752 = vmatpush1.bf16.msra.mxu0 0
        %3753 = vmatprep.subr.bf16.mxu0 0
        %3754 = vmatpush1.bf16.msra.mxu0 0
        %3755 = vmatprep.subr.bf16.mxu0 0
        %3756 = vmatpush1.bf16.msra.mxu0 0
        %3757 = vmatprep.subr.bf16.mxu0 0
        %3758 = vmatpush1.bf16.msra.mxu0 0
        %3759 = vmatprep.mubr.bf16.mxu0 0
        %3760 = vmatmul.mubr.bf16.gmra.mrb[0].mxu0 %v3659
        %v3761 = vpop.f32.mrb[0].mxu0
        %v3762 = vadd.f32 0.0, %v3761
        %v3763 = vpop.f32.mrb[0].mxu0
        %v3764 = vpop.f32.mrb[0].mxu0
        %v3765 = vadd.f32 0.0, %v3764
        %v3766 = vpop.f32.mrb[0].mxu0
        %3767 = vmatprep.mubr.bf16.mxu0 0
        %3768 = vmatmul.mubr.bf16.gmra.mrb[0].mxu0 %v3660
        %v3769 = vpop.f32.mrb[0].mxu0
        %v3770 = vadd.f32 0.0, %v3769
        %v3771 = vpop.f32.mrb[0].mxu0
        %v3772 = vpop.f32.mrb[0].mxu0
        %v3773 = vadd.f32 0.0, %v3772
        %v3774 = vpop.f32.mrb[0].mxu0
        %3775 = vmatprep.mubr.bf16.mxu0 0
        %3776 = vmatmul.mubr.bf16.gmra.mrb[0].mxu0 %v3661
        %v3777 = vpop.f32.mrb[0].mxu0
        %v3778 = vadd.f32 0.0, %v3777
        %v3779 = vpop.f32.mrb[0].mxu0
        %v3780 = vpop.f32.mrb[0].mxu0
        %v3781 = vadd.f32 0.0, %v3780
        %v3782 = vpop.f32.mrb[0].mxu0
        %3783 = vmatprep.mubr.bf16.mxu0 0
        %3784 = vmatmul.mubr.bf16.gmra.mrb[0].mxu0 %v3662
        %v3785 = vpop.f32.mrb[0].mxu0
        %v3786 = vadd.f32 0.0, %v3785
        %v3787 = vpop.f32.mrb[0].mxu0
        %v3788 = vpop.f32.mrb[0].mxu0
        %v3789 = vadd.f32 0.0, %v3788
        %v3790 = vpop.f32.mrb[0].mxu0
        %3791 = vdwg.mxu0
        %v3792 = vpack.c.bf16 %v3762, %v3762
        %v3793 = vpack.c.bf16 %v3765, %v3765
        %v3794 = vpack.c.bf16 %v3770, %v3770
        %v3795 = vpack.c.bf16 %v3773, %v3773
        %v3796 = vpack.c.bf16 %v3778, %v3778
        %v3797 = vpack.c.bf16 %v3781, %v3781
        %v3798 = vpack.c.bf16 %v3786, %v3786
        %v3799 = vpack.c.bf16 %v3789, %v3789
        %v3808 = vlaneseq
        %v3809 = vshrl.u32 %v3808, 7
        %v3810 = vsub.s32 0, %v3809
        %v3811 = vrot.slane %v3507, %v3810
        %v3812 = vlaneseq
        %v3813 = vshrl.u32 %v3812, 7
        %v3814 = vsub.s32 0, %v3813
        %v3815 = vrot.slane %v3508, %v3814
        %v3816 = vlaneseq
        %v3817 = vshrl.u32 %v3816, 7
        %v3818 = vsub.s32 0, %v3817
        %v3819 = vrot.slane %v3509, %v3818
        %v3820 = vlaneseq
        %v3821 = vshrl.u32 %v3820, 7
        %v3822 = vsub.s32 0, %v3821
        %v3823 = vrot.slane %v3510, %v3822
        %v3824 = vlaneseq
        %v3825 = vshrl.u32 %v3824, 7
        %v3826 = vsub.s32 0, %v3825
        %v3827 = vrot.slane %v3511, %v3826
        %v3828 = vlaneseq
        %v3829 = vshrl.u32 %v3828, 7
        %v3830 = vsub.s32 0, %v3829
        %v3831 = vrot.slane %v3512, %v3830
        %v3832 = vlaneseq
        %v3833 = vshrl.u32 %v3832, 7
        %v3834 = vsub.s32 0, %v3833
        %v3835 = vrot.slane %v3513, %v3834
        %v3836 = vlaneseq
        %v3837 = vshrl.u32 %v3836, 7
        %v3838 = vsub.s32 0, %v3837
        %v3839 = vrot.slane %v3514, %v3838
        %v3864 = vunpack.c.l.b16 %v3379
        %v3865 = vunpack.c.l.b16 %v3380
        %v3866 = vunpack.c.l.b16 %v3381
        %v3867 = vunpack.c.l.b16 %v3382
        %v3868 = vunpack.c.l.b16 %v3383
        %v3869 = vunpack.c.l.b16 %v3384
        %v3870 = vunpack.c.l.b16 %v3385
        %v3871 = vunpack.c.l.b16 %v3386
        %v3872 = vunpack.c.l.b16 %v3387
        %v3873 = vunpack.c.l.b16 %v3388
        %v3874 = vunpack.c.l.b16 %v3389
        %v3875 = vunpack.c.l.b16 %v3390
        %v3876 = vunpack.c.l.b16 %v3391
        %v3877 = vunpack.c.l.b16 %v3392
        %v3878 = vunpack.c.l.b16 %v3393
        %v3879 = vunpack.c.l.b16 %v3394
        %v3880 = vpack.c.b16 %v3865, %v3864
        %v3881 = vpack.c.b16 %v3867, %v3866
        %v3882 = vpack.c.b16 %v3869, %v3868
        %v3883 = vpack.c.b16 %v3871, %v3870
        %v3884 = vpack.c.b16 %v3873, %v3872
        %v3885 = vpack.c.b16 %v3875, %v3874
        %v3886 = vpack.c.b16 %v3877, %v3876
        %v3887 = vpack.c.b16 %v3879, %v3878
        %3896 = vmatprep.subr.bf16.mxu0 0
        %3897 = vmatpush1.bf16.xpose.msra.mxu0 %v3880
        %3898 = vmatprep.subr.bf16.mxu0 0
        %3899 = vmatpush1.bf16.xpose.msra.mxu0 %v3881
        %3900 = vmatprep.subr.bf16.mxu0 0
        %3901 = vmatpush1.bf16.xpose.msra.mxu0 %v3882
        %3902 = vmatprep.subr.bf16.mxu0 0
        %3903 = vmatpush1.bf16.xpose.msra.mxu0 %v3883
        %3904 = vmatprep.subr.bf16.mxu0 0
        %3905 = vmatpush1.bf16.xpose.msra.mxu0 %v3884
        %3906 = vmatprep.subr.bf16.mxu0 0
        %3907 = vmatpush1.bf16.xpose.msra.mxu0 %v3885
        %3908 = vmatprep.subr.bf16.mxu0 0
        %3909 = vmatpush1.bf16.xpose.msra.mxu0 %v3886
        %3910 = vmatprep.subr.bf16.mxu0 0
        %3911 = vmatpush1.bf16.xpose.msra.mxu0 %v3887
        %3912 = vmatprep.subr.bf16.mxu0 0
        %3913 = vmatpush1.bf16.xpose.msra.mxu0 0
        %3914 = vmatprep.subr.bf16.mxu0 0
        %3915 = vmatpush1.bf16.xpose.msra.mxu0 0
        %3916 = vmatprep.subr.bf16.mxu0 0
        %3917 = vmatpush1.bf16.xpose.msra.mxu0 0
        %3918 = vmatprep.subr.bf16.mxu0 0
        %3919 = vmatpush1.bf16.xpose.msra.mxu0 0
        %3920 = vmatprep.subr.bf16.mxu0 0
        %3921 = vmatpush1.bf16.xpose.msra.mxu0 0
        %3922 = vmatprep.subr.bf16.mxu0 0
        %3923 = vmatpush1.bf16.xpose.msra.mxu0 0
        %3924 = vmatprep.subr.bf16.mxu0 0
        %3925 = vmatpush1.bf16.xpose.msra.mxu0 0
        %3926 = vmatprep.subr.bf16.mxu0 0
        %3927 = vmatpush1.bf16.xpose.msra.mxu0 0
        %3928 = vmatprep.mubr.bf16.mxu0 0
        %3929 = vmatmul.mubr.bf16.gmra.mrb[0].mxu0 %v3792
        %v3930 = vpop.f32.mrb[0].mxu0
        %v3931 = vadd.f32 %v3811, %v3930
        %v3932 = vpop.f32.mrb[0].mxu0
        %v3933 = vpop.f32.mrb[0].mxu0
        %v3934 = vpop.f32.mrb[0].mxu0
        %3935 = vdwg.mxu0
        %v3952 = vunpack.c.l.b16 %v3395
        %v3953 = vunpack.c.l.b16 %v3396
        %v3954 = vunpack.c.l.b16 %v3397
        %v3955 = vunpack.c.l.b16 %v3398
        %v3956 = vunpack.c.l.b16 %v3399
        %v3957 = vunpack.c.l.b16 %v3400
        %v3958 = vunpack.c.l.b16 %v3401
        %v3959 = vunpack.c.l.b16 %v3402
        %v3960 = vunpack.c.l.b16 %v3403
        %v3961 = vunpack.c.l.b16 %v3404
        %v3962 = vunpack.c.l.b16 %v3405
        %v3963 = vunpack.c.l.b16 %v3406
        %v3964 = vunpack.c.l.b16 %v3407
        %v3965 = vunpack.c.l.b16 %v3408
        %v3966 = vunpack.c.l.b16 %v3409
        %v3967 = vunpack.c.l.b16 %v3410
        %v3968 = vpack.c.b16 %v3953, %v3952
        %v3969 = vpack.c.b16 %v3955, %v3954
        %v3970 = vpack.c.b16 %v3957, %v3956
        %v3971 = vpack.c.b16 %v3959, %v3958
        %v3972 = vpack.c.b16 %v3961, %v3960
        %v3973 = vpack.c.b16 %v3963, %v3962
        %v3974 = vpack.c.b16 %v3965, %v3964
        %v3975 = vpack.c.b16 %v3967, %v3966
        %3984 = vmatprep.subr.bf16.mxu0 0
        %3985 = vmatpush1.bf16.xpose.msra.mxu0 %v3968
        %3986 = vmatprep.subr.bf16.mxu0 0
        %3987 = vmatpush1.bf16.xpose.msra.mxu0 %v3969
        %3988 = vmatprep.subr.bf16.mxu0 0
        %3989 = vmatpush1.bf16.xpose.msra.mxu0 %v3970
        %3990 = vmatprep.subr.bf16.mxu0 0
        %3991 = vmatpush1.bf16.xpose.msra.mxu0 %v3971
        %3992 = vmatprep.subr.bf16.mxu0 0
        %3993 = vmatpush1.bf16.xpose.msra.mxu0 %v3972
        %3994 = vmatprep.subr.bf16.mxu0 0
        %3995 = vmatpush1.bf16.xpose.msra.mxu0 %v3973
        %3996 = vmatprep.subr.bf16.mxu0 0
        %3997 = vmatpush1.bf16.xpose.msra.mxu0 %v3974
        %3998 = vmatprep.subr.bf16.mxu0 0
        %3999 = vmatpush1.bf16.xpose.msra.mxu0 %v3975
        %4000 = vmatprep.subr.bf16.mxu0 0
        %4001 = vmatpush1.bf16.xpose.msra.mxu0 0
        %4002 = vmatprep.subr.bf16.mxu0 0
        %4003 = vmatpush1.bf16.xpose.msra.mxu0 0
        %4004 = vmatprep.subr.bf16.mxu0 0
        %4005 = vmatpush1.bf16.xpose.msra.mxu0 0
        %4006 = vmatprep.subr.bf16.mxu0 0
        %4007 = vmatpush1.bf16.xpose.msra.mxu0 0
        %4008 = vmatprep.subr.bf16.mxu0 0
        %4009 = vmatpush1.bf16.xpose.msra.mxu0 0
        %4010 = vmatprep.subr.bf16.mxu0 0
        %4011 = vmatpush1.bf16.xpose.msra.mxu0 0
        %4012 = vmatprep.subr.bf16.mxu0 0
        %4013 = vmatpush1.bf16.xpose.msra.mxu0 0
        %4014 = vmatprep.subr.bf16.mxu0 0
        %4015 = vmatpush1.bf16.xpose.msra.mxu0 0
        %4016 = vmatprep.mubr.bf16.mxu0 0
        %4017 = vmatmul.mubr.bf16.gmra.mrb[0].mxu0 %v3793
        %v4018 = vpop.f32.mrb[0].mxu0
        %v4019 = vadd.f32 %v3815, %v4018
        %v4020 = vpop.f32.mrb[0].mxu0
        %v4021 = vpop.f32.mrb[0].mxu0
        %v4022 = vpop.f32.mrb[0].mxu0
        %4023 = vdwg.mxu0
        %v4040 = vunpack.c.l.b16 %v3411
        %v4041 = vunpack.c.l.b16 %v3412
        %v4042 = vunpack.c.l.b16 %v3413
        %v4043 = vunpack.c.l.b16 %v3414
        %v4044 = vunpack.c.l.b16 %v3415
        %v4045 = vunpack.c.l.b16 %v3416
        %v4046 = vunpack.c.l.b16 %v3417
        %v4047 = vunpack.c.l.b16 %v3418
        %v4048 = vunpack.c.l.b16 %v3419
        %v4049 = vunpack.c.l.b16 %v3420
        %v4050 = vunpack.c.l.b16 %v3421
        %v4051 = vunpack.c.l.b16 %v3422
        %v4052 = vunpack.c.l.b16 %v3423
        %v4053 = vunpack.c.l.b16 %v3424
        %v4054 = vunpack.c.l.b16 %v3425
        %v4055 = vunpack.c.l.b16 %v3426
        %v4056 = vpack.c.b16 %v4041, %v4040
        %v4057 = vpack.c.b16 %v4043, %v4042
        %v4058 = vpack.c.b16 %v4045, %v4044
        %v4059 = vpack.c.b16 %v4047, %v4046
        %v4060 = vpack.c.b16 %v4049, %v4048
        %v4061 = vpack.c.b16 %v4051, %v4050
        %v4062 = vpack.c.b16 %v4053, %v4052
        %v4063 = vpack.c.b16 %v4055, %v4054
        %4072 = vmatprep.subr.bf16.mxu0 0
        %4073 = vmatpush1.bf16.xpose.msra.mxu0 %v4056
        %4074 = vmatprep.subr.bf16.mxu0 0
        %4075 = vmatpush1.bf16.xpose.msra.mxu0 %v4057
        %4076 = vmatprep.subr.bf16.mxu0 0
        %4077 = vmatpush1.bf16.xpose.msra.mxu0 %v4058
        %4078 = vmatprep.subr.bf16.mxu0 0
        %4079 = vmatpush1.bf16.xpose.msra.mxu0 %v4059
        %4080 = vmatprep.subr.bf16.mxu0 0
        %4081 = vmatpush1.bf16.xpose.msra.mxu0 %v4060
        %4082 = vmatprep.subr.bf16.mxu0 0
        %4083 = vmatpush1.bf16.xpose.msra.mxu0 %v4061
        %4084 = vmatprep.subr.bf16.mxu0 0
        %4085 = vmatpush1.bf16.xpose.msra.mxu0 %v4062
        %4086 = vmatprep.subr.bf16.mxu0 0
        %4087 = vmatpush1.bf16.xpose.msra.mxu0 %v4063
        %4088 = vmatprep.subr.bf16.mxu0 0
        %4089 = vmatpush1.bf16.xpose.msra.mxu0 0
        %4090 = vmatprep.subr.bf16.mxu0 0
        %4091 = vmatpush1.bf16.xpose.msra.mxu0 0
        %4092 = vmatprep.subr.bf16.mxu0 0
        %4093 = vmatpush1.bf16.xpose.msra.mxu0 0
        %4094 = vmatprep.subr.bf16.mxu0 0
        %4095 = vmatpush1.bf16.xpose.msra.mxu0 0
        %4096 = vmatprep.subr.bf16.mxu0 0
        %4097 = vmatpush1.bf16.xpose.msra.mxu0 0
        %4098 = vmatprep.subr.bf16.mxu0 0
        %4099 = vmatpush1.bf16.xpose.msra.mxu0 0
        %4100 = vmatprep.subr.bf16.mxu0 0
        %4101 = vmatpush1.bf16.xpose.msra.mxu0 0
        %4102 = vmatprep.subr.bf16.mxu0 0
        %4103 = vmatpush1.bf16.xpose.msra.mxu0 0
        %4104 = vmatprep.mubr.bf16.mxu0 0
        %4105 = vmatmul.mubr.bf16.gmra.mrb[0].mxu0 %v3794
        %v4106 = vpop.f32.mrb[0].mxu0
        %v4107 = vadd.f32 %v3819, %v4106
        %v4108 = vpop.f32.mrb[0].mxu0
        %v4109 = vpop.f32.mrb[0].mxu0
        %v4110 = vpop.f32.mrb[0].mxu0
        %4111 = vdwg.mxu0
        %v4128 = vunpack.c.l.b16 %v3427
        %v4129 = vunpack.c.l.b16 %v3428
        %v4130 = vunpack.c.l.b16 %v3429
        %v4131 = vunpack.c.l.b16 %v3430
        %v4132 = vunpack.c.l.b16 %v3431
        %v4133 = vunpack.c.l.b16 %v3432
        %v4134 = vunpack.c.l.b16 %v3433
        %v4135 = vunpack.c.l.b16 %v3434
        %v4136 = vunpack.c.l.b16 %v3435
        %v4137 = vunpack.c.l.b16 %v3436
        %v4138 = vunpack.c.l.b16 %v3437
        %v4139 = vunpack.c.l.b16 %v3438
        %v4140 = vunpack.c.l.b16 %v3439
        %v4141 = vunpack.c.l.b16 %v3440
        %v4142 = vunpack.c.l.b16 %v3441
        %v4143 = vunpack.c.l.b16 %v3442
        %v4144 = vpack.c.b16 %v4129, %v4128
        %v4145 = vpack.c.b16 %v4131, %v4130
        %v4146 = vpack.c.b16 %v4133, %v4132
        %v4147 = vpack.c.b16 %v4135, %v4134
        %v4148 = vpack.c.b16 %v4137, %v4136
        %v4149 = vpack.c.b16 %v4139, %v4138
        %v4150 = vpack.c.b16 %v4141, %v4140
        %v4151 = vpack.c.b16 %v4143, %v4142
        %4160 = vmatprep.subr.bf16.mxu0 0
        %4161 = vmatpush1.bf16.xpose.msra.mxu0 %v4144
        %4162 = vmatprep.subr.bf16.mxu0 0
        %4163 = vmatpush1.bf16.xpose.msra.mxu0 %v4145
        %4164 = vmatprep.subr.bf16.mxu0 0
        %4165 = vmatpush1.bf16.xpose.msra.mxu0 %v4146
        %4166 = vmatprep.subr.bf16.mxu0 0
        %4167 = vmatpush1.bf16.xpose.msra.mxu0 %v4147
        %4168 = vmatprep.subr.bf16.mxu0 0
        %4169 = vmatpush1.bf16.xpose.msra.mxu0 %v4148
        %4170 = vmatprep.subr.bf16.mxu0 0
        %4171 = vmatpush1.bf16.xpose.msra.mxu0 %v4149
        %4172 = vmatprep.subr.bf16.mxu0 0
        %4173 = vmatpush1.bf16.xpose.msra.mxu0 %v4150
        %4174 = vmatprep.subr.bf16.mxu0 0
        %4175 = vmatpush1.bf16.xpose.msra.mxu0 %v4151
        %4176 = vmatprep.subr.bf16.mxu0 0
        %4177 = vmatpush1.bf16.xpose.msra.mxu0 0
        %4178 = vmatprep.subr.bf16.mxu0 0
        %4179 = vmatpush1.bf16.xpose.msra.mxu0 0
        %4180 = vmatprep.subr.bf16.mxu0 0
        %4181 = vmatpush1.bf16.xpose.msra.mxu0 0
        %4182 = vmatprep.subr.bf16.mxu0 0
        %4183 = vmatpush1.bf16.xpose.msra.mxu0 0
        %4184 = vmatprep.subr.bf16.mxu0 0
        %4185 = vmatpush1.bf16.xpose.msra.mxu0 0
        %4186 = vmatprep.subr.bf16.mxu0 0
        %4187 = vmatpush1.bf16.xpose.msra.mxu0 0
        %4188 = vmatprep.subr.bf16.mxu0 0
        %4189 = vmatpush1.bf16.xpose.msra.mxu0 0
        %4190 = vmatprep.subr.bf16.mxu0 0
        %4191 = vmatpush1.bf16.xpose.msra.mxu0 0
        %4192 = vmatprep.mubr.bf16.mxu0 0
        %4193 = vmatmul.mubr.bf16.gmra.mrb[0].mxu0 %v3795
        %v4194 = vpop.f32.mrb[0].mxu0
        %v4195 = vadd.f32 %v3823, %v4194
        %v4196 = vpop.f32.mrb[0].mxu0
        %v4197 = vpop.f32.mrb[0].mxu0
        %v4198 = vpop.f32.mrb[0].mxu0
        %4199 = vdwg.mxu0
        %v4216 = vunpack.c.l.b16 %v3443
        %v4217 = vunpack.c.l.b16 %v3444
        %v4218 = vunpack.c.l.b16 %v3445
        %v4219 = vunpack.c.l.b16 %v3446
        %v4220 = vunpack.c.l.b16 %v3447
        %v4221 = vunpack.c.l.b16 %v3448
        %v4222 = vunpack.c.l.b16 %v3449
        %v4223 = vunpack.c.l.b16 %v3450
        %v4224 = vunpack.c.l.b16 %v3451
        %v4225 = vunpack.c.l.b16 %v3452
        %v4226 = vunpack.c.l.b16 %v3453
        %v4227 = vunpack.c.l.b16 %v3454
        %v4228 = vunpack.c.l.b16 %v3455
        %v4229 = vunpack.c.l.b16 %v3456
        %v4230 = vunpack.c.l.b16 %v3457
        %v4231 = vunpack.c.l.b16 %v3458
        %v4232 = vpack.c.b16 %v4217, %v4216
        %v4233 = vpack.c.b16 %v4219, %v4218
        %v4234 = vpack.c.b16 %v4221, %v4220
        %v4235 = vpack.c.b16 %v4223, %v4222
        %v4236 = vpack.c.b16 %v4225, %v4224
        %v4237 = vpack.c.b16 %v4227, %v4226
        %v4238 = vpack.c.b16 %v4229, %v4228
        %v4239 = vpack.c.b16 %v4231, %v4230
        %4248 = vmatprep.subr.bf16.mxu0 0
        %4249 = vmatpush1.bf16.xpose.msra.mxu0 %v4232
        %4250 = vmatprep.subr.bf16.mxu0 0
        %4251 = vmatpush1.bf16.xpose.msra.mxu0 %v4233
        %4252 = vmatprep.subr.bf16.mxu0 0
        %4253 = vmatpush1.bf16.xpose.msra.mxu0 %v4234
        %4254 = vmatprep.subr.bf16.mxu0 0
        %4255 = vmatpush1.bf16.xpose.msra.mxu0 %v4235
        %4256 = vmatprep.subr.bf16.mxu0 0
        %4257 = vmatpush1.bf16.xpose.msra.mxu0 %v4236
        %4258 = vmatprep.subr.bf16.mxu0 0
        %4259 = vmatpush1.bf16.xpose.msra.mxu0 %v4237
        %4260 = vmatprep.subr.bf16.mxu0 0
        %4261 = vmatpush1.bf16.xpose.msra.mxu0 %v4238
        %4262 = vmatprep.subr.bf16.mxu0 0
        %4263 = vmatpush1.bf16.xpose.msra.mxu0 %v4239
        %4264 = vmatprep.subr.bf16.mxu0 0
        %4265 = vmatpush1.bf16.xpose.msra.mxu0 0
        %4266 = vmatprep.subr.bf16.mxu0 0
        %4267 = vmatpush1.bf16.xpose.msra.mxu0 0
        %4268 = vmatprep.subr.bf16.mxu0 0
        %4269 = vmatpush1.bf16.xpose.msra.mxu0 0
        %4270 = vmatprep.subr.bf16.mxu0 0
        %4271 = vmatpush1.bf16.xpose.msra.mxu0 0
        %4272 = vmatprep.subr.bf16.mxu0 0
        %4273 = vmatpush1.bf16.xpose.msra.mxu0 0
        %4274 = vmatprep.subr.bf16.mxu0 0
        %4275 = vmatpush1.bf16.xpose.msra.mxu0 0
        %4276 = vmatprep.subr.bf16.mxu0 0
        %4277 = vmatpush1.bf16.xpose.msra.mxu0 0
        %4278 = vmatprep.subr.bf16.mxu0 0
        %4279 = vmatpush1.bf16.xpose.msra.mxu0 0
        %4280 = vmatprep.mubr.bf16.mxu0 0
        %4281 = vmatmul.mubr.bf16.gmra.mrb[0].mxu0 %v3796
        %v4282 = vpop.f32.mrb[0].mxu0
        %v4283 = vadd.f32 %v3827, %v4282
        %v4284 = vpop.f32.mrb[0].mxu0
        %v4285 = vpop.f32.mrb[0].mxu0
        %v4286 = vpop.f32.mrb[0].mxu0
        %4287 = vdwg.mxu0
        %v4304 = vunpack.c.l.b16 %v3459
        %v4305 = vunpack.c.l.b16 %v3460
        %v4306 = vunpack.c.l.b16 %v3461
        %v4307 = vunpack.c.l.b16 %v3462
        %v4308 = vunpack.c.l.b16 %v3463
        %v4309 = vunpack.c.l.b16 %v3464
        %v4310 = vunpack.c.l.b16 %v3465
        %v4311 = vunpack.c.l.b16 %v3466
        %v4312 = vunpack.c.l.b16 %v3467
        %v4313 = vunpack.c.l.b16 %v3468
        %v4314 = vunpack.c.l.b16 %v3469
        %v4315 = vunpack.c.l.b16 %v3470
        %v4316 = vunpack.c.l.b16 %v3471
        %v4317 = vunpack.c.l.b16 %v3472
        %v4318 = vunpack.c.l.b16 %v3473
        %v4319 = vunpack.c.l.b16 %v3474
        %v4320 = vpack.c.b16 %v4305, %v4304
        %v4321 = vpack.c.b16 %v4307, %v4306
        %v4322 = vpack.c.b16 %v4309, %v4308
        %v4323 = vpack.c.b16 %v4311, %v4310
        %v4324 = vpack.c.b16 %v4313, %v4312
        %v4325 = vpack.c.b16 %v4315, %v4314
        %v4326 = vpack.c.b16 %v4317, %v4316
        %v4327 = vpack.c.b16 %v4319, %v4318
        %4336 = vmatprep.subr.bf16.mxu0 0
        %4337 = vmatpush1.bf16.xpose.msra.mxu0 %v4320
        %4338 = vmatprep.subr.bf16.mxu0 0
        %4339 = vmatpush1.bf16.xpose.msra.mxu0 %v4321
        %4340 = vmatprep.subr.bf16.mxu0 0
        %4341 = vmatpush1.bf16.xpose.msra.mxu0 %v4322
        %4342 = vmatprep.subr.bf16.mxu0 0
        %4343 = vmatpush1.bf16.xpose.msra.mxu0 %v4323
        %4344 = vmatprep.subr.bf16.mxu0 0
        %4345 = vmatpush1.bf16.xpose.msra.mxu0 %v4324
        %4346 = vmatprep.subr.bf16.mxu0 0
        %4347 = vmatpush1.bf16.xpose.msra.mxu0 %v4325
        %4348 = vmatprep.subr.bf16.mxu0 0
        %4349 = vmatpush1.bf16.xpose.msra.mxu0 %v4326
        %4350 = vmatprep.subr.bf16.mxu0 0
        %4351 = vmatpush1.bf16.xpose.msra.mxu0 %v4327
        %4352 = vmatprep.subr.bf16.mxu0 0
        %4353 = vmatpush1.bf16.xpose.msra.mxu0 0
        %4354 = vmatprep.subr.bf16.mxu0 0
        %4355 = vmatpush1.bf16.xpose.msra.mxu0 0
        %4356 = vmatprep.subr.bf16.mxu0 0
        %4357 = vmatpush1.bf16.xpose.msra.mxu0 0
        %4358 = vmatprep.subr.bf16.mxu0 0
        %4359 = vmatpush1.bf16.xpose.msra.mxu0 0
        %4360 = vmatprep.subr.bf16.mxu0 0
        %4361 = vmatpush1.bf16.xpose.msra.mxu0 0
        %4362 = vmatprep.subr.bf16.mxu0 0
        %4363 = vmatpush1.bf16.xpose.msra.mxu0 0
        %4364 = vmatprep.subr.bf16.mxu0 0
        %4365 = vmatpush1.bf16.xpose.msra.mxu0 0
        %4366 = vmatprep.subr.bf16.mxu0 0
        %4367 = vmatpush1.bf16.xpose.msra.mxu0 0
        %4368 = vmatprep.mubr.bf16.mxu0 0
        %4369 = vmatmul.mubr.bf16.gmra.mrb[0].mxu0 %v3797
        %v4370 = vpop.f32.mrb[0].mxu0
        %v4371 = vadd.f32 %v3831, %v4370
        %v4372 = vpop.f32.mrb[0].mxu0
        %v4373 = vpop.f32.mrb[0].mxu0
        %v4374 = vpop.f32.mrb[0].mxu0
        %4375 = vdwg.mxu0
        %v4392 = vunpack.c.l.b16 %v3475
        %v4393 = vunpack.c.l.b16 %v3476
        %v4394 = vunpack.c.l.b16 %v3477
        %v4395 = vunpack.c.l.b16 %v3478
        %v4396 = vunpack.c.l.b16 %v3479
        %v4397 = vunpack.c.l.b16 %v3480
        %v4398 = vunpack.c.l.b16 %v3481
        %v4399 = vunpack.c.l.b16 %v3482
        %v4400 = vunpack.c.l.b16 %v3483
        %v4401 = vunpack.c.l.b16 %v3484
        %v4402 = vunpack.c.l.b16 %v3485
        %v4403 = vunpack.c.l.b16 %v3486
        %v4404 = vunpack.c.l.b16 %v3487
        %v4405 = vunpack.c.l.b16 %v3488
        %v4406 = vunpack.c.l.b16 %v3489
        %v4407 = vunpack.c.l.b16 %v3490
        %v4408 = vpack.c.b16 %v4393, %v4392
        %v4409 = vpack.c.b16 %v4395, %v4394
        %v4410 = vpack.c.b16 %v4397, %v4396
        %v4411 = vpack.c.b16 %v4399, %v4398
        %v4412 = vpack.c.b16 %v4401, %v4400
        %v4413 = vpack.c.b16 %v4403, %v4402
        %v4414 = vpack.c.b16 %v4405, %v4404
        %v4415 = vpack.c.b16 %v4407, %v4406
        %4424 = vmatprep.subr.bf16.mxu0 0
        %4425 = vmatpush1.bf16.xpose.msra.mxu0 %v4408
        %4426 = vmatprep.subr.bf16.mxu0 0
        %4427 = vmatpush1.bf16.xpose.msra.mxu0 %v4409
        %4428 = vmatprep.subr.bf16.mxu0 0
        %4429 = vmatpush1.bf16.xpose.msra.mxu0 %v4410
        %4430 = vmatprep.subr.bf16.mxu0 0
        %4431 = vmatpush1.bf16.xpose.msra.mxu0 %v4411
        %4432 = vmatprep.subr.bf16.mxu0 0
        %4433 = vmatpush1.bf16.xpose.msra.mxu0 %v4412
        %4434 = vmatprep.subr.bf16.mxu0 0
        %4435 = vmatpush1.bf16.xpose.msra.mxu0 %v4413
        %4436 = vmatprep.subr.bf16.mxu0 0
        %4437 = vmatpush1.bf16.xpose.msra.mxu0 %v4414
        %4438 = vmatprep.subr.bf16.mxu0 0
        %4439 = vmatpush1.bf16.xpose.msra.mxu0 %v4415
        %4440 = vmatprep.subr.bf16.mxu0 0
        %4441 = vmatpush1.bf16.xpose.msra.mxu0 0
        %4442 = vmatprep.subr.bf16.mxu0 0
        %4443 = vmatpush1.bf16.xpose.msra.mxu0 0
        %4444 = vmatprep.subr.bf16.mxu0 0
        %4445 = vmatpush1.bf16.xpose.msra.mxu0 0
        %4446 = vmatprep.subr.bf16.mxu0 0
        %4447 = vmatpush1.bf16.xpose.msra.mxu0 0
        %4448 = vmatprep.subr.bf16.mxu0 0
        %4449 = vmatpush1.bf16.xpose.msra.mxu0 0
        %4450 = vmatprep.subr.bf16.mxu0 0
        %4451 = vmatpush1.bf16.xpose.msra.mxu0 0
        %4452 = vmatprep.subr.bf16.mxu0 0
        %4453 = vmatpush1.bf16.xpose.msra.mxu0 0
        %4454 = vmatprep.subr.bf16.mxu0 0
        %4455 = vmatpush1.bf16.xpose.msra.mxu0 0
        %4456 = vmatprep.mubr.bf16.mxu0 0
        %4457 = vmatmul.mubr.bf16.gmra.mrb[0].mxu0 %v3798
        %v4458 = vpop.f32.mrb[0].mxu0
        %v4459 = vadd.f32 %v3835, %v4458
        %v4460 = vpop.f32.mrb[0].mxu0
        %v4461 = vpop.f32.mrb[0].mxu0
        %v4462 = vpop.f32.mrb[0].mxu0
        %4463 = vdwg.mxu0
        %v4480 = vunpack.c.l.b16 %v3491
        %v4481 = vunpack.c.l.b16 %v3492
        %v4482 = vunpack.c.l.b16 %v3493
        %v4483 = vunpack.c.l.b16 %v3494
        %v4484 = vunpack.c.l.b16 %v3495
        %v4485 = vunpack.c.l.b16 %v3496
        %v4486 = vunpack.c.l.b16 %v3497
        %v4487 = vunpack.c.l.b16 %v3498
        %v4488 = vunpack.c.l.b16 %v3499
        %v4489 = vunpack.c.l.b16 %v3500
        %v4490 = vunpack.c.l.b16 %v3501
        %v4491 = vunpack.c.l.b16 %v3502
        %v4492 = vunpack.c.l.b16 %v3503
        %v4493 = vunpack.c.l.b16 %v3504
        %v4494 = vunpack.c.l.b16 %v3505
        %v4495 = vunpack.c.l.b16 %v3506
        %v4496 = vpack.c.b16 %v4481, %v4480
        %v4497 = vpack.c.b16 %v4483, %v4482
        %v4498 = vpack.c.b16 %v4485, %v4484
        %v4499 = vpack.c.b16 %v4487, %v4486
        %v4500 = vpack.c.b16 %v4489, %v4488
        %v4501 = vpack.c.b16 %v4491, %v4490
        %v4502 = vpack.c.b16 %v4493, %v4492
        %v4503 = vpack.c.b16 %v4495, %v4494
        %4512 = vmatprep.subr.bf16.mxu0 0
        %4513 = vmatpush1.bf16.xpose.msra.mxu0 %v4496
        %4514 = vmatprep.subr.bf16.mxu0 0
        %4515 = vmatpush1.bf16.xpose.msra.mxu0 %v4497
        %4516 = vmatprep.subr.bf16.mxu0 0
        %4517 = vmatpush1.bf16.xpose.msra.mxu0 %v4498
        %4518 = vmatprep.subr.bf16.mxu0 0
        %4519 = vmatpush1.bf16.xpose.msra.mxu0 %v4499
        %4520 = vmatprep.subr.bf16.mxu0 0
        %4521 = vmatpush1.bf16.xpose.msra.mxu0 %v4500
        %4522 = vmatprep.subr.bf16.mxu0 0
        %4523 = vmatpush1.bf16.xpose.msra.mxu0 %v4501
        %4524 = vmatprep.subr.bf16.mxu0 0
        %4525 = vmatpush1.bf16.xpose.msra.mxu0 %v4502
        %4526 = vmatprep.subr.bf16.mxu0 0
        %4527 = vmatpush1.bf16.xpose.msra.mxu0 %v4503
        %4528 = vmatprep.subr.bf16.mxu0 0
        %4529 = vmatpush1.bf16.xpose.msra.mxu0 0
        %4530 = vmatprep.subr.bf16.mxu0 0
        %4531 = vmatpush1.bf16.xpose.msra.mxu0 0
        %4532 = vmatprep.subr.bf16.mxu0 0
        %4533 = vmatpush1.bf16.xpose.msra.mxu0 0
        %4534 = vmatprep.subr.bf16.mxu0 0
        %4535 = vmatpush1.bf16.xpose.msra.mxu0 0
        %4536 = vmatprep.subr.bf16.mxu0 0
        %4537 = vmatpush1.bf16.xpose.msra.mxu0 0
        %4538 = vmatprep.subr.bf16.mxu0 0
        %4539 = vmatpush1.bf16.xpose.msra.mxu0 0
        %4540 = vmatprep.subr.bf16.mxu0 0
        %4541 = vmatpush1.bf16.xpose.msra.mxu0 0
        %4542 = vmatprep.subr.bf16.mxu0 0
        %4543 = vmatpush1.bf16.xpose.msra.mxu0 0
        %4544 = vmatprep.mubr.bf16.mxu0 0
        %4545 = vmatmul.mubr.bf16.gmra.mrb[0].mxu0 %v3799
        %v4546 = vpop.f32.mrb[0].mxu0
        %v4547 = vadd.f32 %v3839, %v4546
        %v4548 = vpop.f32.mrb[0].mxu0
        %v4549 = vpop.f32.mrb[0].mxu0
        %v4550 = vpop.f32.mrb[0].mxu0
        %4551 = vdwg.mxu0
        %4552 = vmax.xlane.f32.xlu0 %v3931
        %v4553 = vpop.xlane.xlu0 %4552
        %4554 = vmax.xlane.f32.xlu0 %v4019
        %v4555 = vpop.xlane.xlu0 %4554
        %4556 = vmax.xlane.f32.xlu0 %v4107
        %v4557 = vpop.xlane.xlu0 %4556
        %4558 = vmax.xlane.f32.xlu0 %v4195
        %v4559 = vpop.xlane.xlu0 %4558
        %4560 = vmax.xlane.f32.xlu0 %v4283
        %v4561 = vpop.xlane.xlu0 %4560
        %4562 = vmax.xlane.f32.xlu0 %v4371
        %v4563 = vpop.xlane.xlu0 %4562
        %4564 = vmax.xlane.f32.xlu0 %v4459
        %v4565 = vpop.xlane.xlu0 %4564
        %4566 = vmax.xlane.f32.xlu0 %v4547
        %v4567 = vpop.xlane.xlu0 %4566
        %v4568 = vsub.f32 %v3931, %v4553
        %v4569 = vsub.f32 %v4019, %v4555
        %v4570 = vsub.f32 %v4107, %v4557
        %v4571 = vsub.f32 %v4195, %v4559
        %v4572 = vsub.f32 %v4283, %v4561
        %v4573 = vsub.f32 %v4371, %v4563
        %v4574 = vsub.f32 %v4459, %v4565
        %v4575 = vsub.f32 %v4547, %v4567
        %v4576 = vmul.f32 %v4568, 1.442695
        %v4577 = vpow.pop %v4576
        %v4578 = vmul.f32 %v4569, 1.442695
        %v4579 = vpow.pop %v4578
        %v4580 = vmul.f32 %v4570, 1.442695
        %v4581 = vpow.pop %v4580
        %v4582 = vmul.f32 %v4571, 1.442695
        %v4583 = vpow.pop %v4582
        %v4584 = vmul.f32 %v4572, 1.442695
        %v4585 = vpow.pop %v4584
        %v4586 = vmul.f32 %v4573, 1.442695
        %v4587 = vpow.pop %v4586
        %v4588 = vmul.f32 %v4574, 1.442695
        %v4589 = vpow.pop %v4588
        %v4590 = vmul.f32 %v4575, 1.442695
        %v4591 = vpow.pop %v4590
        %4592 = vadd.xlane.f32.xlu0 %v4577
        %v4593 = vpop.xlane.xlu0 %4592
        %4594 = vadd.xlane.f32.xlu0 %v4579
        %v4595 = vpop.xlane.xlu0 %4594
        %4596 = vadd.xlane.f32.xlu0 %v4581
        %v4597 = vpop.xlane.xlu0 %4596
        %4598 = vadd.xlane.f32.xlu0 %v4583
        %v4599 = vpop.xlane.xlu0 %4598
        %4600 = vadd.xlane.f32.xlu0 %v4585
        %v4601 = vpop.xlane.xlu0 %4600
        %4602 = vadd.xlane.f32.xlu0 %v4587
        %v4603 = vpop.xlane.xlu0 %4602
        %4604 = vadd.xlane.f32.xlu0 %v4589
        %v4605 = vpop.xlane.xlu0 %4604
        %4606 = vadd.xlane.f32.xlu0 %v4591
        %v4607 = vpop.xlane.xlu0 %4606
        %v4608 = vrcp.pop %v4593
        %v4609 = vrcp.pop %v4595
        %v4610 = vrcp.pop %v4597
        %v4611 = vrcp.pop %v4599
        %v4612 = vrcp.pop %v4601
        %v4613 = vrcp.pop %v4603
        %v4614 = vrcp.pop %v4605
        %v4615 = vrcp.pop %v4607
        %v4616 = vmul.f32 %v4577, %v4608
        %v4617 = vmul.f32 %v4579, %v4609
        %v4618 = vmul.f32 %v4581, %v4610
        %v4619 = vmul.f32 %v4583, %v4611
        %v4620 = vmul.f32 %v4585, %v4612
        %v4621 = vmul.f32 %v4587, %v4613
        %v4622 = vmul.f32 %v4589, %v4614
        %v4623 = vmul.f32 %v4591, %v4615
        %v4624 = vpack.c.bf16 %v4616, %v4616
        %v4625 = vpack.c.bf16 %v4617, %v4617
        %v4626 = vpack.c.bf16 %v4618, %v4618
        %v4627 = vpack.c.bf16 %v4619, %v4619
        %v4628 = vpack.c.bf16 %v4620, %v4620
        %v4629 = vpack.c.bf16 %v4621, %v4621
        %v4630 = vpack.c.bf16 %v4622, %v4622
        %v4631 = vpack.c.bf16 %v4623, %v4623
        %4632 = vmatprep.subr.bf16.mxu0 0
        %4633 = vmatpush1.bf16.msra.mxu0 %v3880
        %4634 = vmatprep.subr.bf16.mxu0 0
        %4635 = vmatpush1.bf16.msra.mxu0 %v3881
        %4636 = vmatprep.subr.bf16.mxu0 0
        %4637 = vmatpush1.bf16.msra.mxu0 %v3882
        %4638 = vmatprep.subr.bf16.mxu0 0
        %4639 = vmatpush1.bf16.msra.mxu0 %v3883
        %4640 = vmatprep.subr.bf16.mxu0 0
        %4641 = vmatpush1.bf16.msra.mxu0 %v3884
        %4642 = vmatprep.subr.bf16.mxu0 0
        %4643 = vmatpush1.bf16.msra.mxu0 %v3885
        %4644 = vmatprep.subr.bf16.mxu0 0
        %4645 = vmatpush1.bf16.msra.mxu0 %v3886
        %4646 = vmatprep.subr.bf16.mxu0 0
        %4647 = vmatpush1.bf16.msra.mxu0 %v3887
        %4648 = vmatprep.subr.bf16.mxu0 0
        %4649 = vmatpush1.bf16.msra.mxu0 0
        %4650 = vmatprep.subr.bf16.mxu0 0
        %4651 = vmatpush1.bf16.msra.mxu0 0
        %4652 = vmatprep.subr.bf16.mxu0 0
        %4653 = vmatpush1.bf16.msra.mxu0 0
        %4654 = vmatprep.subr.bf16.mxu0 0
        %4655 = vmatpush1.bf16.msra.mxu0 0
        %4656 = vmatprep.subr.bf16.mxu0 0
        %4657 = vmatpush1.bf16.msra.mxu0 0
        %4658 = vmatprep.subr.bf16.mxu0 0
        %4659 = vmatpush1.bf16.msra.mxu0 0
        %4660 = vmatprep.subr.bf16.mxu0 0
        %4661 = vmatpush1.bf16.msra.mxu0 0
        %4662 = vmatprep.subr.bf16.mxu0 0
        %4663 = vmatpush1.bf16.msra.mxu0 0
        %4664 = vmatprep.mubr.bf16.mxu0 0
        %4665 = vmatmul.mubr.bf16.gmra.mrb[0].mxu0 %v4624
        %v4666 = vpop.f32.mrb[0].mxu0
        %v4667 = vadd.f32 0.0, %v4666
        %v4668 = vpop.f32.mrb[0].mxu0
        %v4669 = vpop.f32.mrb[0].mxu0
        %v4670 = vpop.f32.mrb[0].mxu0
        %4671 = vdwg.mxu0
        %4672 = vmatprep.subr.bf16.mxu0 0
        %4673 = vmatpush1.bf16.msra.mxu0 %v3968
        %4674 = vmatprep.subr.bf16.mxu0 0
        %4675 = vmatpush1.bf16.msra.mxu0 %v3969
        %4676 = vmatprep.subr.bf16.mxu0 0
        %4677 = vmatpush1.bf16.msra.mxu0 %v3970
        %4678 = vmatprep.subr.bf16.mxu0 0
        %4679 = vmatpush1.bf16.msra.mxu0 %v3971
        %4680 = vmatprep.subr.bf16.mxu0 0
        %4681 = vmatpush1.bf16.msra.mxu0 %v3972
        %4682 = vmatprep.subr.bf16.mxu0 0
        %4683 = vmatpush1.bf16.msra.mxu0 %v3973
        %4684 = vmatprep.subr.bf16.mxu0 0
        %4685 = vmatpush1.bf16.msra.mxu0 %v3974
        %4686 = vmatprep.subr.bf16.mxu0 0
        %4687 = vmatpush1.bf16.msra.mxu0 %v3975
        %4688 = vmatprep.subr.bf16.mxu0 0
        %4689 = vmatpush1.bf16.msra.mxu0 0
        %4690 = vmatprep.subr.bf16.mxu0 0
        %4691 = vmatpush1.bf16.msra.mxu0 0
        %4692 = vmatprep.subr.bf16.mxu0 0
        %4693 = vmatpush1.bf16.msra.mxu0 0
        %4694 = vmatprep.subr.bf16.mxu0 0
        %4695 = vmatpush1.bf16.msra.mxu0 0
        %4696 = vmatprep.subr.bf16.mxu0 0
        %4697 = vmatpush1.bf16.msra.mxu0 0
        %4698 = vmatprep.subr.bf16.mxu0 0
        %4699 = vmatpush1.bf16.msra.mxu0 0
        %4700 = vmatprep.subr.bf16.mxu0 0
        %4701 = vmatpush1.bf16.msra.mxu0 0
        %4702 = vmatprep.subr.bf16.mxu0 0
        %4703 = vmatpush1.bf16.msra.mxu0 0
        %4704 = vmatprep.mubr.bf16.mxu0 0
        %4705 = vmatmul.mubr.bf16.gmra.mrb[0].mxu0 %v4625
        %v4706 = vpop.f32.mrb[0].mxu0
        %v4707 = vadd.f32 0.0, %v4706
        %v4708 = vpop.f32.mrb[0].mxu0
        %v4709 = vpop.f32.mrb[0].mxu0
        %v4710 = vpop.f32.mrb[0].mxu0
        %4711 = vdwg.mxu0
        %4712 = vmatprep.subr.bf16.mxu0 0
        %4713 = vmatpush1.bf16.msra.mxu0 %v4056
        %4714 = vmatprep.subr.bf16.mxu0 0
        %4715 = vmatpush1.bf16.msra.mxu0 %v4057
        %4716 = vmatprep.subr.bf16.mxu0 0
        %4717 = vmatpush1.bf16.msra.mxu0 %v4058
        %4718 = vmatprep.subr.bf16.mxu0 0
        %4719 = vmatpush1.bf16.msra.mxu0 %v4059
        %4720 = vmatprep.subr.bf16.mxu0 0
        %4721 = vmatpush1.bf16.msra.mxu0 %v4060
        %4722 = vmatprep.subr.bf16.mxu0 0
        %4723 = vmatpush1.bf16.msra.mxu0 %v4061
        %4724 = vmatprep.subr.bf16.mxu0 0
        %4725 = vmatpush1.bf16.msra.mxu0 %v4062
        %4726 = vmatprep.subr.bf16.mxu0 0
        %4727 = vmatpush1.bf16.msra.mxu0 %v4063
        %4728 = vmatprep.subr.bf16.mxu0 0
        %4729 = vmatpush1.bf16.msra.mxu0 0
        %4730 = vmatprep.subr.bf16.mxu0 0
        %4731 = vmatpush1.bf16.msra.mxu0 0
        %4732 = vmatprep.subr.bf16.mxu0 0
        %4733 = vmatpush1.bf16.msra.mxu0 0
        %4734 = vmatprep.subr.bf16.mxu0 0
        %4735 = vmatpush1.bf16.msra.mxu0 0
        %4736 = vmatprep.subr.bf16.mxu0 0
        %4737 = vmatpush1.bf16.msra.mxu0 0
        %4738 = vmatprep.subr.bf16.mxu0 0
        %4739 = vmatpush1.bf16.msra.mxu0 0
        %4740 = vmatprep.subr.bf16.mxu0 0
        %4741 = vmatpush1.bf16.msra.mxu0 0
        %4742 = vmatprep.subr.bf16.mxu0 0
        %4743 = vmatpush1.bf16.msra.mxu0 0
        %4744 = vmatprep.mubr.bf16.mxu0 0
        %4745 = vmatmul.mubr.bf16.gmra.mrb[0].mxu0 %v4626
        %v4746 = vpop.f32.mrb[0].mxu0
        %v4747 = vadd.f32 0.0, %v4746
        %v4748 = vpop.f32.mrb[0].mxu0
        %v4749 = vpop.f32.mrb[0].mxu0
        %v4750 = vpop.f32.mrb[0].mxu0
        %4751 = vdwg.mxu0
        %4752 = vmatprep.subr.bf16.mxu0 0
        %4753 = vmatpush1.bf16.msra.mxu0 %v4144
        %4754 = vmatprep.subr.bf16.mxu0 0
        %4755 = vmatpush1.bf16.msra.mxu0 %v4145
        %4756 = vmatprep.subr.bf16.mxu0 0
        %4757 = vmatpush1.bf16.msra.mxu0 %v4146
        %4758 = vmatprep.subr.bf16.mxu0 0
        %4759 = vmatpush1.bf16.msra.mxu0 %v4147
        %4760 = vmatprep.subr.bf16.mxu0 0
        %4761 = vmatpush1.bf16.msra.mxu0 %v4148
        %4762 = vmatprep.subr.bf16.mxu0 0
        %4763 = vmatpush1.bf16.msra.mxu0 %v4149
        %4764 = vmatprep.subr.bf16.mxu0 0
        %4765 = vmatpush1.bf16.msra.mxu0 %v4150
        %4766 = vmatprep.subr.bf16.mxu0 0
        %4767 = vmatpush1.bf16.msra.mxu0 %v4151
        %4768 = vmatprep.subr.bf16.mxu0 0
        %4769 = vmatpush1.bf16.msra.mxu0 0
        %4770 = vmatprep.subr.bf16.mxu0 0
        %4771 = vmatpush1.bf16.msra.mxu0 0
        %4772 = vmatprep.subr.bf16.mxu0 0
        %4773 = vmatpush1.bf16.msra.mxu0 0
        %4774 = vmatprep.subr.bf16.mxu0 0
        %4775 = vmatpush1.bf16.msra.mxu0 0
        %4776 = vmatprep.subr.bf16.mxu0 0
        %4777 = vmatpush1.bf16.msra.mxu0 0
        %4778 = vmatprep.subr.bf16.mxu0 0
        %4779 = vmatpush1.bf16.msra.mxu0 0
        %4780 = vmatprep.subr.bf16.mxu0 0
        %4781 = vmatpush1.bf16.msra.mxu0 0
        %4782 = vmatprep.subr.bf16.mxu0 0
        %4783 = vmatpush1.bf16.msra.mxu0 0
        %4784 = vmatprep.mubr.bf16.mxu0 0
        %4785 = vmatmul.mubr.bf16.gmra.mrb[0].mxu0 %v4627
        %v4786 = vpop.f32.mrb[0].mxu0
        %v4787 = vadd.f32 0.0, %v4786
        %v4788 = vpop.f32.mrb[0].mxu0
        %v4789 = vpop.f32.mrb[0].mxu0
        %v4790 = vpop.f32.mrb[0].mxu0
        %4791 = vdwg.mxu0
        %4792 = vmatprep.subr.bf16.mxu0 0
        %4793 = vmatpush1.bf16.msra.mxu0 %v4232
        %4794 = vmatprep.subr.bf16.mxu0 0
        %4795 = vmatpush1.bf16.msra.mxu0 %v4233
        %4796 = vmatprep.subr.bf16.mxu0 0
        %4797 = vmatpush1.bf16.msra.mxu0 %v4234
        %4798 = vmatprep.subr.bf16.mxu0 0
        %4799 = vmatpush1.bf16.msra.mxu0 %v4235
        %4800 = vmatprep.subr.bf16.mxu0 0
        %4801 = vmatpush1.bf16.msra.mxu0 %v4236
        %4802 = vmatprep.subr.bf16.mxu0 0
        %4803 = vmatpush1.bf16.msra.mxu0 %v4237
        %4804 = vmatprep.subr.bf16.mxu0 0
        %4805 = vmatpush1.bf16.msra.mxu0 %v4238
        %4806 = vmatprep.subr.bf16.mxu0 0
        %4807 = vmatpush1.bf16.msra.mxu0 %v4239
        %4808 = vmatprep.subr.bf16.mxu0 0
        %4809 = vmatpush1.bf16.msra.mxu0 0
        %4810 = vmatprep.subr.bf16.mxu0 0
        %4811 = vmatpush1.bf16.msra.mxu0 0
        %4812 = vmatprep.subr.bf16.mxu0 0
        %4813 = vmatpush1.bf16.msra.mxu0 0
        %4814 = vmatprep.subr.bf16.mxu0 0
        %4815 = vmatpush1.bf16.msra.mxu0 0
        %4816 = vmatprep.subr.bf16.mxu0 0
        %4817 = vmatpush1.bf16.msra.mxu0 0
        %4818 = vmatprep.subr.bf16.mxu0 0
        %4819 = vmatpush1.bf16.msra.mxu0 0
        %4820 = vmatprep.subr.bf16.mxu0 0
        %4821 = vmatpush1.bf16.msra.mxu0 0
        %4822 = vmatprep.subr.bf16.mxu0 0
        %4823 = vmatpush1.bf16.msra.mxu0 0
        %4824 = vmatprep.mubr.bf16.mxu0 0
        %4825 = vmatmul.mubr.bf16.gmra.mrb[0].mxu0 %v4628
        %v4826 = vpop.f32.mrb[0].mxu0
        %v4827 = vadd.f32 0.0, %v4826
        %v4828 = vpop.f32.mrb[0].mxu0
        %v4829 = vpop.f32.mrb[0].mxu0
        %v4830 = vpop.f32.mrb[0].mxu0
        %4831 = vdwg.mxu0
        %4832 = vmatprep.subr.bf16.mxu0 0
        %4833 = vmatpush1.bf16.msra.mxu0 %v4320
        %4834 = vmatprep.subr.bf16.mxu0 0
        %4835 = vmatpush1.bf16.msra.mxu0 %v4321
        %4836 = vmatprep.subr.bf16.mxu0 0
        %4837 = vmatpush1.bf16.msra.mxu0 %v4322
        %4838 = vmatprep.subr.bf16.mxu0 0
        %4839 = vmatpush1.bf16.msra.mxu0 %v4323
        %4840 = vmatprep.subr.bf16.mxu0 0
        %4841 = vmatpush1.bf16.msra.mxu0 %v4324
        %4842 = vmatprep.subr.bf16.mxu0 0
        %4843 = vmatpush1.bf16.msra.mxu0 %v4325
        %4844 = vmatprep.subr.bf16.mxu0 0
        %4845 = vmatpush1.bf16.msra.mxu0 %v4326
        %4846 = vmatprep.subr.bf16.mxu0 0
        %4847 = vmatpush1.bf16.msra.mxu0 %v4327
        %4848 = vmatprep.subr.bf16.mxu0 0
        %4849 = vmatpush1.bf16.msra.mxu0 0
        %4850 = vmatprep.subr.bf16.mxu0 0
        %4851 = vmatpush1.bf16.msra.mxu0 0
        %4852 = vmatprep.subr.bf16.mxu0 0
        %4853 = vmatpush1.bf16.msra.mxu0 0
        %4854 = vmatprep.subr.bf16.mxu0 0
        %4855 = vmatpush1.bf16.msra.mxu0 0
        %4856 = vmatprep.subr.bf16.mxu0 0
        %4857 = vmatpush1.bf16.msra.mxu0 0
        %4858 = vmatprep.subr.bf16.mxu0 0
        %4859 = vmatpush1.bf16.msra.mxu0 0
        %4860 = vmatprep.subr.bf16.mxu0 0
        %4861 = vmatpush1.bf16.msra.mxu0 0
        %4862 = vmatprep.subr.bf16.mxu0 0
        %4863 = vmatpush1.bf16.msra.mxu0 0
        %4864 = vmatprep.mubr.bf16.mxu0 0
        %4865 = vmatmul.mubr.bf16.gmra.mrb[0].mxu0 %v4629
        %v4866 = vpop.f32.mrb[0].mxu0
        %v4867 = vadd.f32 0.0, %v4866
        %v4868 = vpop.f32.mrb[0].mxu0
        %v4869 = vpop.f32.mrb[0].mxu0
        %v4870 = vpop.f32.mrb[0].mxu0
        %4871 = vdwg.mxu0
        %4872 = vmatprep.subr.bf16.mxu0 0
        %4873 = vmatpush1.bf16.msra.mxu0 %v4408
        %4874 = vmatprep.subr.bf16.mxu0 0
        %4875 = vmatpush1.bf16.msra.mxu0 %v4409
        %4876 = vmatprep.subr.bf16.mxu0 0
        %4877 = vmatpush1.bf16.msra.mxu0 %v4410
        %4878 = vmatprep.subr.bf16.mxu0 0
        %4879 = vmatpush1.bf16.msra.mxu0 %v4411
        %4880 = vmatprep.subr.bf16.mxu0 0
        %4881 = vmatpush1.bf16.msra.mxu0 %v4412
        %4882 = vmatprep.subr.bf16.mxu0 0
        %4883 = vmatpush1.bf16.msra.mxu0 %v4413
        %4884 = vmatprep.subr.bf16.mxu0 0
        %4885 = vmatpush1.bf16.msra.mxu0 %v4414
        %4886 = vmatprep.subr.bf16.mxu0 0
        %4887 = vmatpush1.bf16.msra.mxu0 %v4415
        %4888 = vmatprep.subr.bf16.mxu0 0
        %4889 = vmatpush1.bf16.msra.mxu0 0
        %4890 = vmatprep.subr.bf16.mxu0 0
        %4891 = vmatpush1.bf16.msra.mxu0 0
        %4892 = vmatprep.subr.bf16.mxu0 0
        %4893 = vmatpush1.bf16.msra.mxu0 0
        %4894 = vmatprep.subr.bf16.mxu0 0
        %4895 = vmatpush1.bf16.msra.mxu0 0
        %4896 = vmatprep.subr.bf16.mxu0 0
        %4897 = vmatpush1.bf16.msra.mxu0 0
        %4898 = vmatprep.subr.bf16.mxu0 0
        %4899 = vmatpush1.bf16.msra.mxu0 0
        %4900 = vmatprep.subr.bf16.mxu0 0
        %4901 = vmatpush1.bf16.msra.mxu0 0
        %4902 = vmatprep.subr.bf16.mxu0 0
        %4903 = vmatpush1.bf16.msra.mxu0 0
        %4904 = vmatprep.mubr.bf16.mxu0 0
        %4905 = vmatmul.mubr.bf16.gmra.mrb[0].mxu0 %v4630
        %v4906 = vpop.f32.mrb[0].mxu0
        %v4907 = vadd.f32 0.0, %v4906
        %v4908 = vpop.f32.mrb[0].mxu0
        %v4909 = vpop.f32.mrb[0].mxu0
        %v4910 = vpop.f32.mrb[0].mxu0
        %4911 = vdwg.mxu0
        %4912 = vmatprep.subr.bf16.mxu0 0
        %4913 = vmatpush1.bf16.msra.mxu0 %v4496
        %4914 = vmatprep.subr.bf16.mxu0 0
        %4915 = vmatpush1.bf16.msra.mxu0 %v4497
        %4916 = vmatprep.subr.bf16.mxu0 0
        %4917 = vmatpush1.bf16.msra.mxu0 %v4498
        %4918 = vmatprep.subr.bf16.mxu0 0
        %4919 = vmatpush1.bf16.msra.mxu0 %v4499
        %4920 = vmatprep.subr.bf16.mxu0 0
        %4921 = vmatpush1.bf16.msra.mxu0 %v4500
        %4922 = vmatprep.subr.bf16.mxu0 0
        %4923 = vmatpush1.bf16.msra.mxu0 %v4501
        %4924 = vmatprep.subr.bf16.mxu0 0
        %4925 = vmatpush1.bf16.msra.mxu0 %v4502
        %4926 = vmatprep.subr.bf16.mxu0 0
        %4927 = vmatpush1.bf16.msra.mxu0 %v4503
        %4928 = vmatprep.subr.bf16.mxu0 0
        %4929 = vmatpush1.bf16.msra.mxu0 0
        %4930 = vmatprep.subr.bf16.mxu0 0
        %4931 = vmatpush1.bf16.msra.mxu0 0
        %4932 = vmatprep.subr.bf16.mxu0 0
        %4933 = vmatpush1.bf16.msra.mxu0 0
        %4934 = vmatprep.subr.bf16.mxu0 0
        %4935 = vmatpush1.bf16.msra.mxu0 0
        %4936 = vmatprep.subr.bf16.mxu0 0
        %4937 = vmatpush1.bf16.msra.mxu0 0
        %4938 = vmatprep.subr.bf16.mxu0 0
        %4939 = vmatpush1.bf16.msra.mxu0 0
        %4940 = vmatprep.subr.bf16.mxu0 0
        %4941 = vmatpush1.bf16.msra.mxu0 0
        %4942 = vmatprep.subr.bf16.mxu0 0
        %4943 = vmatpush1.bf16.msra.mxu0 0
        %4944 = vmatprep.mubr.bf16.mxu0 0
        %4945 = vmatmul.mubr.bf16.gmra.mrb[0].mxu0 %v4631
        %v4946 = vpop.f32.mrb[0].mxu0
        %v4947 = vadd.f32 0.0, %v4946
        %v4948 = vpop.f32.mrb[0].mxu0
        %v4949 = vpop.f32.mrb[0].mxu0
        %v4950 = vpop.f32.mrb[0].mxu0
        %4951 = vdwg.mxu0
        %v4952 = vpack.c.bf16 %v4707, %v4667
        %v4953 = vpack.c.bf16 %v4787, %v4747
        %v4954 = vpack.c.bf16 %v4867, %v4827
        %v4955 = vpack.c.bf16 %v4947, %v4907
        %v4956 = vld [vmem:[%s11] sm:$0xf]
        %v4957 = vld [vmem:[%s11 + $0x4] sm:$0xf]
        %v4958 = vld [vmem:[%s11 + $0x8] sm:$0xf]
        %v4959 = vld [vmem:[%s11 + $0xc] sm:$0xf]
        %v4960 = vld [vmem:[%s11 + $0x10] sm:$0xf]
        %v4961 = vld [vmem:[%s11 + $0x14] sm:$0xf]
        %v4962 = vld [vmem:[%s11 + $0x18] sm:$0xf]
        %v4963 = vld [vmem:[%s11 + $0x1c] sm:$0xf]
        %v4964 = vld [vmem:[%s11 + $0x20] sm:$0xf]
        %v4965 = vld [vmem:[%s11 + $0x24] sm:$0xf]
        %v4966 = vld [vmem:[%s11 + $0x28] sm:$0xf]
        %v4967 = vld [vmem:[%s11 + $0x2c] sm:$0xf]
        %v4968 = vld [vmem:[%s11 + $0x30] sm:$0xf]
        %v4969 = vld [vmem:[%s11 + $0x34] sm:$0xf]
        %v4970 = vld [vmem:[%s11 + $0x38] sm:$0xf]
        %v4971 = vld [vmem:[%s11 + $0x3c] sm:$0xf]
        %v4972 = vld [vmem:[%s11 + $0x40] sm:$0xf]
        %v4973 = vld [vmem:[%s11 + $0x44] sm:$0xf]
        %v4974 = vld [vmem:[%s11 + $0x48] sm:$0xf]
        %v4975 = vld [vmem:[%s11 + $0x4c] sm:$0xf]
        %v4976 = vld [vmem:[%s11 + $0x50] sm:$0xf]
        %v4977 = vld [vmem:[%s11 + $0x54] sm:$0xf]
        %v4978 = vld [vmem:[%s11 + $0x58] sm:$0xf]
        %v4979 = vld [vmem:[%s11 + $0x5c] sm:$0xf]
        %v4980 = vld [vmem:[%s11 + $0x60] sm:$0xf]
        %v4981 = vld [vmem:[%s11 + $0x64] sm:$0xf]
        %v4982 = vld [vmem:[%s11 + $0x68] sm:$0xf]
        %v4983 = vld [vmem:[%s11 + $0x6c] sm:$0xf]
        %v4984 = vld [vmem:[%s11 + $0x70] sm:$0xf]
        %v4985 = vld [vmem:[%s11 + $0x74] sm:$0xf]
        %v4986 = vld [vmem:[%s11 + $0x78] sm:$0xf]
        %v4987 = vld [vmem:[%s11 + $0x7c] sm:$0xf]
        %v5020 = vunpack.c.l.b16 %v4956
        %v5021 = vunpack.c.l.b16 %v4957
        %v5022 = vunpack.c.l.b16 %v4958
        %v5023 = vunpack.c.l.b16 %v4959
        %v5024 = vunpack.c.l.b16 %v4960
        %v5025 = vunpack.c.l.b16 %v4961
        %v5026 = vunpack.c.l.b16 %v4962
        %v5027 = vunpack.c.l.b16 %v4963
        %v5028 = vunpack.c.l.b16 %v4964
        %v5029 = vunpack.c.l.b16 %v4965
        %v5030 = vunpack.c.l.b16 %v4966
        %v5031 = vunpack.c.l.b16 %v4967
        %v5032 = vunpack.c.l.b16 %v4968
        %v5033 = vunpack.c.l.b16 %v4969
        %v5034 = vunpack.c.l.b16 %v4970
        %v5035 = vunpack.c.l.b16 %v4971
        %v5036 = vunpack.c.l.b16 %v4972
        %v5037 = vunpack.c.l.b16 %v4973
        %v5038 = vunpack.c.l.b16 %v4974
        %v5039 = vunpack.c.l.b16 %v4975
        %v5040 = vunpack.c.l.b16 %v4976
        %v5041 = vunpack.c.l.b16 %v4977
        %v5042 = vunpack.c.l.b16 %v4978
        %v5043 = vunpack.c.l.b16 %v4979
        %v5044 = vunpack.c.l.b16 %v4980
        %v5045 = vunpack.c.l.b16 %v4981
        %v5046 = vunpack.c.l.b16 %v4982
        %v5047 = vunpack.c.l.b16 %v4983
        %v5048 = vunpack.c.l.b16 %v4984
        %v5049 = vunpack.c.l.b16 %v4985
        %v5050 = vunpack.c.l.b16 %v4986
        %v5051 = vunpack.c.l.b16 %v4987
        %v5052 = vpack.c.b16 %v5021, %v5020
        %v5053 = vpack.c.b16 %v5023, %v5022
        %v5054 = vpack.c.b16 %v5025, %v5024
        %v5055 = vpack.c.b16 %v5027, %v5026
        %v5056 = vpack.c.b16 %v5029, %v5028
        %v5057 = vpack.c.b16 %v5031, %v5030
        %v5058 = vpack.c.b16 %v5033, %v5032
        %v5059 = vpack.c.b16 %v5035, %v5034
        %v5060 = vpack.c.b16 %v5037, %v5036
        %v5061 = vpack.c.b16 %v5039, %v5038
        %v5062 = vpack.c.b16 %v5041, %v5040
        %v5063 = vpack.c.b16 %v5043, %v5042
        %v5064 = vpack.c.b16 %v5045, %v5044
        %v5065 = vpack.c.b16 %v5047, %v5046
        %v5066 = vpack.c.b16 %v5049, %v5048
        %v5067 = vpack.c.b16 %v5051, %v5050
        %5084 = vmatprep.subr.bf16.mxu0 0
        %5085 = vmatpush1.bf16.msra.mxu0 %v5052
        %5086 = vmatprep.subr.bf16.mxu0 0
        %5087 = vmatpush1.bf16.msra.mxu0 %v5053
        %5088 = vmatprep.subr.bf16.mxu0 0
        %5089 = vmatpush1.bf16.msra.mxu0 %v5054
        %5090 = vmatprep.subr.bf16.mxu0 0
        %5091 = vmatpush1.bf16.msra.mxu0 %v5055
        %5092 = vmatprep.subr.bf16.mxu0 0
        %5093 = vmatpush1.bf16.msra.mxu0 %v5056
        %5094 = vmatprep.subr.bf16.mxu0 0
        %5095 = vmatpush1.bf16.msra.mxu0 %v5057
        %5096 = vmatprep.subr.bf16.mxu0 0
        %5097 = vmatpush1.bf16.msra.mxu0 %v5058
        %5098 = vmatprep.subr.bf16.mxu0 0
        %5099 = vmatpush1.bf16.msra.mxu0 %v5059
        %5100 = vmatprep.subr.bf16.mxu0 0
        %5101 = vmatpush1.bf16.msra.mxu0 %v5060
        %5102 = vmatprep.subr.bf16.mxu0 0
        %5103 = vmatpush1.bf16.msra.mxu0 %v5061
        %5104 = vmatprep.subr.bf16.mxu0 0
        %5105 = vmatpush1.bf16.msra.mxu0 %v5062
        %5106 = vmatprep.subr.bf16.mxu0 0
        %5107 = vmatpush1.bf16.msra.mxu0 %v5063
        %5108 = vmatprep.subr.bf16.mxu0 0
        %5109 = vmatpush1.bf16.msra.mxu0 %v5064
        %5110 = vmatprep.subr.bf16.mxu0 0
        %5111 = vmatpush1.bf16.msra.mxu0 %v5065
        %5112 = vmatprep.subr.bf16.mxu0 0
        %5113 = vmatpush1.bf16.msra.mxu0 %v5066
        %5114 = vmatprep.subr.bf16.mxu0 0
        %5115 = vmatpush1.bf16.msra.mxu0 %v5067
        %5116 = vmatprep.mubr.bf16.mxu0 %v3659
        %5117 = vmatmul.mubr.bf16.gmra.mrb[0].mxu0 %v4952
        %v5118 = vpop.f32.mrb[0].mxu0
        %v5119 = vadd.f32 0.0, %v5118
        %v5120 = vpop.f32.mrb[0].mxu0
        %v5121 = vpop.f32.mrb[0].mxu0
        %v5122 = vadd.f32 0.0, %v5121
        %v5123 = vpop.f32.mrb[0].mxu0
        %5124 = vmatprep.mubr.bf16.mxu0 %v3660
        %5125 = vmatmul.mubr.bf16.gmra.mrb[0].mxu0 %v4953
        %v5126 = vpop.f32.mrb[0].mxu0
        %v5127 = vadd.f32 0.0, %v5126
        %v5128 = vpop.f32.mrb[0].mxu0
        %v5129 = vpop.f32.mrb[0].mxu0
        %v5130 = vadd.f32 0.0, %v5129
        %v5131 = vpop.f32.mrb[0].mxu0
        %5132 = vmatprep.mubr.bf16.mxu0 %v3661
        %5133 = vmatmul.mubr.bf16.gmra.mrb[0].mxu0 %v4954
        %v5134 = vpop.f32.mrb[0].mxu0
        %v5135 = vadd.f32 0.0, %v5134
        %v5136 = vpop.f32.mrb[0].mxu0
        %v5137 = vpop.f32.mrb[0].mxu0
        %v5138 = vadd.f32 0.0, %v5137
        %v5139 = vpop.f32.mrb[0].mxu0
        %5140 = vmatprep.mubr.bf16.mxu0 %v3662
        %5141 = vmatmul.mubr.bf16.gmra.mrb[0].mxu0 %v4955
        %v5142 = vpop.f32.mrb[0].mxu0
        %v5143 = vadd.f32 0.0, %v5142
        %v5144 = vpop.f32.mrb[0].mxu0
        %v5145 = vpop.f32.mrb[0].mxu0
        %v5146 = vadd.f32 0.0, %v5145
        %v5147 = vpop.f32.mrb[0].mxu0
        %5148 = vdwg.mxu0
        %v5149 = vtanh.pop %v5119
        %v5150 = vtanh.pop %v5122
        %v5151 = vtanh.pop %v5127
        %v5152 = vtanh.pop %v5130
        %v5153 = vtanh.pop %v5135
        %v5154 = vtanh.pop %v5138
        %v5155 = vtanh.pop %v5143
        %v5156 = vtanh.pop %v5146
        %v5157 = vcombine.low %v5149, %v5151
        %v5158 = vcombine.high %v5149, %v5151
        %v5160 = vunpack.c.l.s4 1983009808
        %v5161 = vunpack.c.0.s8 %v5160
        %v5162 = vlaneseq
        %v5163 = vshrl.u32 %v5162, 7
        %v5164 = vsub.s32 %v5161, %v5163
        %v5165 = vrot.slane %v5157, %v5164
        %v5167 = vunpack.c.l.s4 1983009808
        %v5168 = vunpack.c.0.s8 %v5167
        %v5169 = vlaneseq
        %v5170 = vshrl.u32 %v5169, 7
        %v5171 = vsub.s32 %v5168, %v5170
        %v5172 = vrot.slane %v5158, %v5171
        %v5173 = vcombine.low %v5150, %v5152
        %v5174 = vcombine.high %v5150, %v5152
        %v5176 = vunpack.c.l.s4 1983009808
        %v5177 = vunpack.c.0.s8 %v5176
        %v5178 = vlaneseq
        %v5179 = vshrl.u32 %v5178, 7
        %v5180 = vsub.s32 %v5177, %v5179
        %v5181 = vrot.slane %v5173, %v5180
        %v5183 = vunpack.c.l.s4 1983009808
        %v5184 = vunpack.c.0.s8 %v5183
        %v5185 = vlaneseq
        %v5186 = vshrl.u32 %v5185, 7
        %v5187 = vsub.s32 %v5184, %v5186
        %v5188 = vrot.slane %v5174, %v5187
        %v5189 = vcombine.low %v5153, %v5155
        %v5190 = vcombine.high %v5153, %v5155
        %v5192 = vunpack.c.l.s4 1983009808
        %v5193 = vunpack.c.0.s8 %v5192
        %v5194 = vlaneseq
        %v5195 = vshrl.u32 %v5194, 7
        %v5196 = vsub.s32 %v5193, %v5195
        %v5197 = vrot.slane %v5189, %v5196
        %v5199 = vunpack.c.l.s4 1983009808
        %v5200 = vunpack.c.0.s8 %v5199
        %v5201 = vlaneseq
        %v5202 = vshrl.u32 %v5201, 7
        %v5203 = vsub.s32 %v5200, %v5202
        %v5204 = vrot.slane %v5190, %v5203
        %v5205 = vcombine.low %v5154, %v5156
        %v5206 = vcombine.high %v5154, %v5156
        %v5208 = vunpack.c.l.s4 1983009808
        %v5209 = vunpack.c.0.s8 %v5208
        %v5210 = vlaneseq
        %v5211 = vshrl.u32 %v5210, 7
        %v5212 = vsub.s32 %v5209, %v5211
        %v5213 = vrot.slane %v5205, %v5212
        %v5215 = vunpack.c.l.s4 1983009808
        %v5216 = vunpack.c.0.s8 %v5215
        %v5217 = vlaneseq
        %v5218 = vshrl.u32 %v5217, 7
        %v5219 = vsub.s32 %v5216, %v5218
        %v5220 = vrot.slane %v5206, %v5219
        %v5221 = vcombine.low %v5165, %v5181
        %v5222 = vcombine.high %v5165, %v5181
        %v5224 = vunpack.c.l.s4 1934713408
        %v5225 = vunpack.c.0.s8 %v5224
        %v5226 = vlaneseq
        %v5227 = vshrl.u32 %v5226, 7
        %v5228 = vsub.s32 %v5225, %v5227
        %v5229 = vrot.slane %v5221, %v5228
        %v5231 = vunpack.c.l.s4 1934713408
        %v5232 = vunpack.c.0.s8 %v5231
        %v5233 = vlaneseq
        %v5234 = vshrl.u32 %v5233, 7
        %v5235 = vsub.s32 %v5232, %v5234
        %v5236 = vrot.slane %v5222, %v5235
        %v5237 = vcombine.low %v5172, %v5188
        %v5238 = vcombine.high %v5172, %v5188
        %v5240 = vunpack.c.l.s4 1934713408
        %v5241 = vunpack.c.0.s8 %v5240
        %v5242 = vlaneseq
        %v5243 = vshrl.u32 %v5242, 7
        %v5244 = vsub.s32 %v5241, %v5243
        %v5245 = vrot.slane %v5237, %v5244
        %v5247 = vunpack.c.l.s4 1934713408
        %v5248 = vunpack.c.0.s8 %v5247
        %v5249 = vlaneseq
        %v5250 = vshrl.u32 %v5249, 7
        %v5251 = vsub.s32 %v5248, %v5250
        %v5252 = vrot.slane %v5238, %v5251
        %v5253 = vcombine.low %v5197, %v5213
        %v5254 = vcombine.high %v5197, %v5213
        %v5256 = vunpack.c.l.s4 1934713408
        %v5257 = vunpack.c.0.s8 %v5256
        %v5258 = vlaneseq
        %v5259 = vshrl.u32 %v5258, 7
        %v5260 = vsub.s32 %v5257, %v5259
        %v5261 = vrot.slane %v5253, %v5260
        %v5263 = vunpack.c.l.s4 1934713408
        %v5264 = vunpack.c.0.s8 %v5263
        %v5265 = vlaneseq
        %v5266 = vshrl.u32 %v5265, 7
        %v5267 = vsub.s32 %v5264, %v5266
        %v5268 = vrot.slane %v5254, %v5267
        %v5269 = vcombine.low %v5204, %v5220
        %v5270 = vcombine.high %v5204, %v5220
        %v5272 = vunpack.c.l.s4 1934713408
        %v5273 = vunpack.c.0.s8 %v5272
        %v5274 = vlaneseq
        %v5275 = vshrl.u32 %v5274, 7
        %v5276 = vsub.s32 %v5273, %v5275
        %v5277 = vrot.slane %v5269, %v5276
        %v5279 = vunpack.c.l.s4 1934713408
        %v5280 = vunpack.c.0.s8 %v5279
        %v5281 = vlaneseq
        %v5282 = vshrl.u32 %v5281, 7
        %v5283 = vsub.s32 %v5280, %v5282
        %v5284 = vrot.slane %v5270, %v5283
        %v5285 = vcombine.low %v5229, %v5261
        %v5286 = vcombine.high %v5229, %v5261
        %v5287 = vcombine.low %v5236, %v5268
        %v5288 = vcombine.high %v5236, %v5268
        %v5289 = vcombine.low %v5245, %v5277
        %v5290 = vcombine.high %v5245, %v5277
        %v5291 = vcombine.low %v5252, %v5284
        %v5292 = vcombine.high %v5252, %v5284
        %5293 = vst [vmem:[%s483] sm:$0xff] %v5285
        %5294 = vst [vmem:[%s483 + $0x8] sm:$0xff] %v5286
        %5295 = vst [vmem:[%s483 + $0x10] sm:$0xff] %v5287
        %5296 = vst [vmem:[%s483 + $0x18] sm:$0xff] %v5288
        %5297 = vst [vmem:[%s483 + $0x20] sm:$0xff] %v5289
        %5298 = vst [vmem:[%s483 + $0x28] sm:$0xff] %v5290
        %5299 = vst [vmem:[%s483 + $0x30] sm:$0xff] %v5291
        %5300 = vst [vmem:[%s483 + $0x38] sm:$0xff] %v5292
        %v5301 = vcombine.low %v4616, %v4618
        %v5302 = vcombine.high %v4616, %v4618
        %v5304 = vunpack.c.l.s4 1983009808
        %v5305 = vunpack.c.0.s8 %v5304
        %v5306 = vlaneseq
        %v5307 = vshrl.u32 %v5306, 7
        %v5308 = vsub.s32 %v5305, %v5307
        %v5309 = vrot.slane %v5301, %v5308
        %v5311 = vunpack.c.l.s4 1983009808
        %v5312 = vunpack.c.0.s8 %v5311
        %v5313 = vlaneseq
        %v5314 = vshrl.u32 %v5313, 7
        %v5315 = vsub.s32 %v5312, %v5314
        %v5316 = vrot.slane %v5302, %v5315
        %v5317 = vcombine.low %v4617, %v4619
        %v5318 = vcombine.high %v4617, %v4619
        %v5320 = vunpack.c.l.s4 1983009808
        %v5321 = vunpack.c.0.s8 %v5320
        %v5322 = vlaneseq
        %v5323 = vshrl.u32 %v5322, 7
        %v5324 = vsub.s32 %v5321, %v5323
        %v5325 = vrot.slane %v5317, %v5324
        %v5327 = vunpack.c.l.s4 1983009808
        %v5328 = vunpack.c.0.s8 %v5327
        %v5329 = vlaneseq
        %v5330 = vshrl.u32 %v5329, 7
        %v5331 = vsub.s32 %v5328, %v5330
        %v5332 = vrot.slane %v5318, %v5331
        %v5333 = vcombine.low %v4620, %v4622
        %v5334 = vcombine.high %v4620, %v4622
        %v5336 = vunpack.c.l.s4 1983009808
        %v5337 = vunpack.c.0.s8 %v5336
        %v5338 = vlaneseq
        %v5339 = vshrl.u32 %v5338, 7
        %v5340 = vsub.s32 %v5337, %v5339
        %v5341 = vrot.slane %v5333, %v5340
        %v5343 = vunpack.c.l.s4 1983009808
        %v5344 = vunpack.c.0.s8 %v5343
        %v5345 = vlaneseq
        %v5346 = vshrl.u32 %v5345, 7
        %v5347 = vsub.s32 %v5344, %v5346
        %v5348 = vrot.slane %v5334, %v5347
        %v5349 = vcombine.low %v4621, %v4623
        %v5350 = vcombine.high %v4621, %v4623
        %v5352 = vunpack.c.l.s4 1983009808
        %v5353 = vunpack.c.0.s8 %v5352
        %v5354 = vlaneseq
        %v5355 = vshrl.u32 %v5354, 7
        %v5356 = vsub.s32 %v5353, %v5355
        %v5357 = vrot.slane %v5349, %v5356
        %v5359 = vunpack.c.l.s4 1983009808
        %v5360 = vunpack.c.0.s8 %v5359
        %v5361 = vlaneseq
        %v5362 = vshrl.u32 %v5361, 7
        %v5363 = vsub.s32 %v5360, %v5362
        %v5364 = vrot.slane %v5350, %v5363
        %v5365 = vcombine.low %v5309, %v5325
        %v5366 = vcombine.high %v5309, %v5325
        %v5368 = vunpack.c.l.s4 1934713408
        %v5369 = vunpack.c.0.s8 %v5368
        %v5370 = vlaneseq
        %v5371 = vshrl.u32 %v5370, 7
        %v5372 = vsub.s32 %v5369, %v5371
        %v5373 = vrot.slane %v5365, %v5372
        %v5375 = vunpack.c.l.s4 1934713408
        %v5376 = vunpack.c.0.s8 %v5375
        %v5377 = vlaneseq
        %v5378 = vshrl.u32 %v5377, 7
        %v5379 = vsub.s32 %v5376, %v5378
        %v5380 = vrot.slane %v5366, %v5379
        %v5381 = vcombine.low %v5316, %v5332
        %v5382 = vcombine.high %v5316, %v5332
        %v5384 = vunpack.c.l.s4 1934713408
        %v5385 = vunpack.c.0.s8 %v5384
        %v5386 = vlaneseq
        %v5387 = vshrl.u32 %v5386, 7
        %v5388 = vsub.s32 %v5385, %v5387
        %v5389 = vrot.slane %v5381, %v5388
        %v5391 = vunpack.c.l.s4 1934713408
        %v5392 = vunpack.c.0.s8 %v5391
        %v5393 = vlaneseq
        %v5394 = vshrl.u32 %v5393, 7
        %v5395 = vsub.s32 %v5392, %v5394
        %v5396 = vrot.slane %v5382, %v5395
        %v5397 = vcombine.low %v5341, %v5357
        %v5398 = vcombine.high %v5341, %v5357
        %v5400 = vunpack.c.l.s4 1934713408
        %v5401 = vunpack.c.0.s8 %v5400
        %v5402 = vlaneseq
        %v5403 = vshrl.u32 %v5402, 7
        %v5404 = vsub.s32 %v5401, %v5403
        %v5405 = vrot.slane %v5397, %v5404
        %v5407 = vunpack.c.l.s4 1934713408
        %v5408 = vunpack.c.0.s8 %v5407
        %v5409 = vlaneseq
        %v5410 = vshrl.u32 %v5409, 7
        %v5411 = vsub.s32 %v5408, %v5410
        %v5412 = vrot.slane %v5398, %v5411
        %v5413 = vcombine.low %v5348, %v5364
        %v5414 = vcombine.high %v5348, %v5364
        %v5416 = vunpack.c.l.s4 1934713408
        %v5417 = vunpack.c.0.s8 %v5416
        %v5418 = vlaneseq
        %v5419 = vshrl.u32 %v5418, 7
        %v5420 = vsub.s32 %v5417, %v5419
        %v5421 = vrot.slane %v5413, %v5420
        %v5423 = vunpack.c.l.s4 1934713408
        %v5424 = vunpack.c.0.s8 %v5423
        %v5425 = vlaneseq
        %v5426 = vshrl.u32 %v5425, 7
        %v5427 = vsub.s32 %v5424, %v5426
        %v5428 = vrot.slane %v5414, %v5427
        %v5429 = vcombine.low %v5373, %v5405
        %v5430 = vcombine.high %v5373, %v5405
        %v5431 = vcombine.low %v5380, %v5412
        %v5432 = vcombine.high %v5380, %v5412
        %v5433 = vcombine.low %v5389, %v5421
        %v5434 = vcombine.high %v5389, %v5421
        %v5435 = vcombine.low %v5396, %v5428
        %v5436 = vcombine.high %v5396, %v5428
        %5437 = vst [vmem:[%s490] sm:$0xff] %v5429
        %5438 = vst [vmem:[%s490 + $0x8] sm:$0xff] %v5430
        %5439 = vst [vmem:[%s490 + $0x10] sm:$0xff] %v5431
        %5440 = vst [vmem:[%s490 + $0x18] sm:$0xff] %v5432
        %5441 = vst [vmem:[%s490 + $0x20] sm:$0xff] %v5433
        %5442 = vst [vmem:[%s490 + $0x28] sm:$0xff] %v5434
        %5443 = vst [vmem:[%s490 + $0x30] sm:$0xff] %v5435
        %5444 = vst [vmem:[%s490 + $0x38] sm:$0xff] %v5436
        %s5445 = sand.u32 %s299, 1
        %s5446 = scalar_lea.sflag [#allocation5], %s5445
        %s5447 = sand.u32 %s299, 1
        %s5448 = smul.addr %s5447, 64
        %s5449 = scalar_lea.vmem [#allocation4], %s5448
        %s5450 = sand.u32 %s34, 1
        %s5451 = scalar_lea.sflag [#allocation7], %s5450
        %s5452 = sand.u32 %s325, 1
        %s5453 = smul.addr %s5452, 64
        %s5454 = scalar_lea.vmem [#allocation6], %s5453
        // Predicated region
        $region73: #{rnn_decoder_forward.1} parent=67 // pred_check
          %p5455 = pneg %p309
        $region74: #{rnn_decoder_forward.1} parent=67 // pred_check_branch
          %5457 = sbr.rel (%p5455) target = $region76
        $region75: #{rnn_decoder_forward.1} parent=67 // pred_region
          %s5458 = smul.u32 8, %s34
          %s5460 = ssub.s32 1024, 1024
          %5461 = vsyncadd %s5446, %s5460
          %s5462 = smul.addr %s5458, 128
          %s5463 = scalar_lea.hbm %s12, %s5462
          %s5464 = sshll.u32 %s5449, 4
          %s5465 = int_to_ptr.vmem [resolvable:$true] %s5464
          %5470 = dma.vmem_to_hbm [thread:$0]  %s5465, 1024, %s5463, %s5446, 128, 128, 8
        $region76: #{rnn_decoder_forward.1} parent=67 // pred_fallthru
          _
        // Predicated region
        $region77: #{rnn_decoder_forward.1} parent=67 // pred_check
          %p5471 = pneg %p335
        $region78: #{rnn_decoder_forward.1} parent=67 // pred_check_branch
          %5473 = sbr.rel (%p5471) target = $region80
        $region79: #{rnn_decoder_forward.1} parent=67 // pred_region
          %s5474 = smul.u32 8, %s34
          %s5476 = ssub.s32 1024, 1024
          %5477 = vsyncadd %s5451, %s5476
          %s5478 = smul.addr %s5474, 128
          %s5479 = scalar_lea.hbm %s13, %s5478
          %s5480 = sshll.u32 %s5454, 4
          %s5481 = int_to_ptr.vmem [resolvable:$true] %s5480
          %5486 = dma.vmem_to_hbm [thread:$0]  %s5481, 1024, %s5479, %s5451, 128, 128, 8
        $region80: #{rnn_decoder_forward.1} parent=67 // pred_fallthru
          _
        // Predicated region
        $region81: #{rnn_decoder_forward.1} parent=67 // pred_check
          %p5487 = pneg %p356
        $region82: #{rnn_decoder_forward.1} parent=67 // pred_check_branch
          %5489 = sbr.rel (%p5487) target = $region84
        $region83: #{rnn_decoder_forward.1} parent=67 // pred_region
          %s5491 = ssub.s32 256, 256
          %5492 = vsyncadd [#allocation7], %s5491
          %s5493 = sshll.u32 [#allocation8], 4
          %s5494 = int_to_ptr.vmem [resolvable:$true] %s5493
          %5499 = dma.vmem_to_hbm [thread:$0]  %s5494, 256, %s14, [#allocation7], 128, 128, 8
        $region84: #{rnn_decoder_forward.1} parent=67 // pred_fallthru
          _
        // Predicated region
        $region85: #{rnn_decoder_forward.1} parent=67 // pred_check
          %p5500 = pneg %p377
        $region86: #{rnn_decoder_forward.1} parent=67 // pred_check_branch
          %5502 = sbr.rel (%p5500) target = $region88
        $region87: #{rnn_decoder_forward.1} parent=67 // pred_region
          %s5504 = ssub.s32 256, 256
          %5505 = vsyncadd [#allocation10], %s5504
          %s5506 = sshll.u32 [#allocation9], 4
          %s5507 = int_to_ptr.vmem [resolvable:$true] %s5506
          %5512 = dma.vmem_to_hbm [thread:$0]  %s5507, 256, %s15, [#allocation10], 128, 128, 8
        $region88: #{rnn_decoder_forward.1} parent=67 // pred_fallthru
          _
        // Predicated region
        $region89: #{rnn_decoder_forward.1} parent=67 // pred_check
          %p5513 = pneg %p356
        $region90: #{rnn_decoder_forward.1} parent=67 // pred_check_branch
          %5515 = sbr.rel (%p5513) target = $region92
        $region91: #{rnn_decoder_forward.1} parent=67 // pred_region
          %5516 = dma.done [#allocation7], 256
        $region92: #{rnn_decoder_forward.1} parent=67 // pred_fallthru
          _
        // Predicated region
        $region93: #{rnn_decoder_forward.1} parent=67 // pred_check
          %p5517 = pneg %p377
        $region94: #{rnn_decoder_forward.1} parent=67 // pred_check_branch
          %5519 = sbr.rel (%p5517) target = $region96
        $region95: #{rnn_decoder_forward.1} parent=67 // pred_region
          %5520 = dma.done [#allocation10], 256
        $region96: #{rnn_decoder_forward.1} parent=67 // pred_fallthru
          _
      $region68: #{rnn_decoder_forward.1} parent=5 // pred_fallthru
        _
      %p5521 = scmp.le.s32.totalorder 2, %s29
      // Predicated region
      $region97: #{rnn_decoder_forward.1} parent=5 // pred_check
        %p5522 = pneg %p5521
      $region98: #{rnn_decoder_forward.1} parent=5 // pred_check_branch
        %5524 = sbr.rel (%p5522) target = $region100
      $region99: #{rnn_decoder_forward.1} parent=5 // pred_region
        %s5525 = ssub.s32 %s29, 2
        // Predicated region
        $region101: #{rnn_decoder_forward.1} parent=99 // pred_check
          %p5526 = pneg %p315
        $region102: #{rnn_decoder_forward.1} parent=99 // pred_check_branch
          %5528 = sbr.rel (%p5526) target = $region104
        $region103: #{rnn_decoder_forward.1} parent=99 // pred_region
          %s5529 = sand.u32 %s300, 1
          %s5530 = scalar_lea.sflag [#allocation5], %s5529
          %s5531 = sand.u32 %s300, 1
          %s5532 = smul.addr %s5531, 64
          %s5533 = scalar_lea.vmem [#allocation4], %s5532
          %5534 = dma.done %s5530, 1024
        $region104: #{rnn_decoder_forward.1} parent=99 // pred_fallthru
          _
        // Predicated region
        $region105: #{rnn_decoder_forward.1} parent=99 // pred_check
          %p5535 = pneg %p341
        $region106: #{rnn_decoder_forward.1} parent=99 // pred_check_branch
          %5537 = sbr.rel (%p5535) target = $region108
        $region107: #{rnn_decoder_forward.1} parent=99 // pred_region
          %s5538 = sand.u32 %s35, 1
          %s5539 = scalar_lea.sflag [#allocation7], %s5538
          %s5540 = sand.u32 %s326, 1
          %s5541 = smul.addr %s5540, 64
          %s5542 = scalar_lea.vmem [#allocation6], %s5541
          %5543 = dma.done %s5539, 1024
        $region108: #{rnn_decoder_forward.1} parent=99 // pred_fallthru
          _
      $region100: #{rnn_decoder_forward.1} parent=5 // pred_fallthru
        _
    $region6: #{rnn_decoder_forward.1} parent=1 // loop_footer
      %s33 = sadd.s32 1, %s29
    $region7: #{rnn_decoder_forward.1} parent=1 // loop_footer_branch
      %28 = sbr.rel target = $region3
    $region8: #{rnn_decoder_forward.1} parent=1 // loop_exit
      _
    %5544 = vsyncpa [#allocation5], 1
    %s5545 = scalar_lea.sflag [#allocation5], 1
    %5546 = vsyncpa %s5545, 1
    %5547 = vsyncpa [#allocation7], 1
    %s5548 = scalar_lea.sflag [#allocation7], 1
    %5549 = vsyncpa %s5548, 1
    %5550 = vsyncpa [#allocation10], 1

</llo_original>
